<compile_context>
chip_gen: v6e
topology: v6e:2x2x1
jax: 0.10.0
libtpu: 0.0.40
codegen_flags: <defaults>
</compile_context>

<pallas_src>
import functools

import jax
import jax.numpy as jnp
from jax import lax
from jax.experimental import pallas as pl
from jax.experimental.pallas import tpu as pltpu

LEAKY_SLOPE = 0.01   # nn.LeakyReLU() default negative_slope
BN_EPS = 1e-5        # nn.BatchNorm3d default eps
COP = 128            # lane-dense padded output-channel width


# --------------------------------------------------------------------------
# Fused Pallas kernel:  out = act( BN( P @ W + b ) )
#   Grid-free, single shot: all operands are whole-array VMEM blocks, so the
#   matmul, bias, batch-norm and activation happen in one kernel invocation
#   with no accumulator scratch and no pipelining overhead.
# --------------------------------------------------------------------------
def _fused_kernel(p_ref, w_ref, b_ref, g_ref, bt_ref, o_ref, *, use_bn, act):
    y = jnp.dot(p_ref[...], w_ref[...], preferred_element_type=jnp.float32)
    y = y + b_ref[...]
    if use_bn:
        # Training-mode BatchNorm3d: biased batch stats per output channel.
        # Channel == column; rows span the whole B*D*H*W reduction set, so
        # full-N (un-tiled) output blocks are required for correctness.
        mean = jnp.mean(y, axis=0, keepdims=True)
        var = jnp.mean(jnp.square(y - mean), axis=0, keepdims=True)
        y = (y - mean) * lax.rsqrt(var + BN_EPS)
        y = y * g_ref[...] + bt_ref[...]
    if act == "leaky_relu":
        y = jnp.where(y > 0, y, LEAKY_SLOPE * y)
    elif act == "sigmoid":
        y = 1.0 / (1.0 + jnp.exp(-y))
    o_ref[...] = y.astype(o_ref.dtype)


def fused_matmul_bn_act(P, Wm, bias, gamma, beta, *, use_bn, act, out_dtype):
    """P: (N, K) bf16 patches, Wm: (K, COP) bf16.  Returns (N, COP)."""
    N, _ = P.shape
    out_itemsize = jnp.dtype(out_dtype).itemsize
    block_bytes = (P.size * P.dtype.itemsize + Wm.size * Wm.dtype.itemsize
                   + 3 * COP * 4 + N * COP * out_itemsize)
    # Right-sized scoped-VMEM request; always <= 48 MiB (safe on v7x's 64 MiB).
    vmem_limit = int(min(max(2 * block_bytes + (4 << 20), 8 << 20), 48 << 20))

    vspec = pl.BlockSpec(memory_space=pltpu.MemorySpace.VMEM)
    kernel = functools.partial(_fused_kernel, use_bn=use_bn, act=act)
    return pl.pallas_call(
        kernel,
        out_shape=jax.ShapeDtypeStruct((N, COP), out_dtype),
        in_specs=[vspec] * 5,
        out_specs=vspec,
        compiler_params=pltpu.CompilerParams(vmem_limit_bytes=vmem_limit),
    )(P, Wm, bias, gamma, beta)


# --------------------------------------------------------------------------
# Plain-JAX glue: im2col for a regular (correlation) Conv3d, channel-last.
# --------------------------------------------------------------------------
def _im2col_3d(x, ksize, pad):
    """x: (B, D, H, W, C) -> (B*Do*Ho*Wo, KD*KH*KW*C) patches."""
    B, D, H, W, C = x.shape
    KD, KH, KW = ksize
    pd, ph, pw = pad
    Do = D + 2 * pd - KD + 1
    Ho = H + 2 * ph - KH + 1
    Wo = W + 2 * pw - KW + 1
    if (Do, Ho, Wo) == (1, 1, 1) and pad == (0, 0, 0):
        # Kernel spans the whole volume: im2col is just a reshape (layer 5).
        return x.reshape(B, KD * KH * KW * C), (1, 1, 1)
    xp = jnp.pad(x, ((0, 0), (pd, pd), (ph, ph), (pw, pw), (0, 0)))
    taps = []
    for kd in range(KD):
        for kh in range(KH):
            for kw in range(KW):
                taps.append(xp[:, kd:kd + Do, kh:kh + Ho, kw:kw + Wo, :])
    Pm = jnp.stack(taps, axis=-2)                      # (B,Do,Ho,Wo,ntaps,C)
    return Pm.reshape(B * Do * Ho * Wo, KD * KH * KW * C), (Do, Ho, Wo)


def conv3d_block(x, layer, *, ksize, pad, co, use_bn, act, out_dtype):
    """x: (B, D, H, W, Ci) channel-last; layer: prepared matmul-ready params."""
    wm, bias, gamma, beta = layer
    P, (Do, Ho, Wo) = _im2col_3d(x, ksize, pad)
    out = fused_matmul_bn_act(P, wm, bias, gamma, beta,
                              use_bn=use_bn, act=act, out_dtype=out_dtype)
    return out[:, :co].reshape(x.shape[0], Do, Ho, Wo, co)


# --------------------------------------------------------------------------
# netD_3D forward
#   x: (B, 1, bands, windows, windows)  (PyTorch NCDHW)  ->  (B, 1) sigmoid
# --------------------------------------------------------------------------
_LAYER_CFG = (
    ("l1", (7, 3, 3), (3, 0, 0), 28, True, "leaky_relu"),
    ("l2", (7, 3, 3), (3, 0, 0), 28, True, "leaky_relu"),
    ("l3", (7, 3, 3), (3, 0, 0), 28, True, "leaky_relu"),
    ("l4", (7, 1, 1), (3, 0, 0), 1, True, "leaky_relu"),
)


def netd3d_forward(x, prep, *, bands):
    B = x.shape[0]
    h = jnp.transpose(x, (0, 2, 3, 4, 1)).astype(jnp.bfloat16)  # (B,D,H,W,C)
    for name, ks, pad, co, use_bn, act in _LAYER_CFG:
        h = conv3d_block(h, prep[name], ksize=ks, pad=pad, co=co,
                         use_bn=use_bn, act=act, out_dtype=jnp.bfloat16)
    # layer5: Conv3d(1, 1, (bands, 1, 1)) + Flatten + Sigmoid
    h = conv3d_block(h, prep["l5"], ksize=(bands, 1, 1), pad=(0, 0, 0), co=1,
                     use_bn=False, act="sigmoid", out_dtype=jnp.float32)
    return h.reshape(B, 1)                              # nn.Flatten()


# --------------------------------------------------------------------------
# Pure-JAX f32 reference (same math, no Pallas) for correctness checking.
# --------------------------------------------------------------------------
def netd3d_reference(x, prep, *, bands):
    B = x.shape[0]

    def block(h, layer, ksize, pad, co, use_bn, act):
        wm, bias, gamma, beta = layer
        P, (Do, Ho, Wo) = _im2col_3d(h, ksize, pad)
        y = P.astype(jnp.float32) @ wm.astype(jnp.float32) + bias
        if use_bn:
            mean = jnp.mean(y, axis=0, keepdims=True)
            var = jnp.mean(jnp.square(y - mean), axis=0, keepdims=True)
            y = (y - mean) * lax.rsqrt(var + BN_EPS) * gamma + beta
        if act == "leaky_relu":
            y = jnp.where(y > 0, y, LEAKY_SLOPE * y)
        else:
            y = jax.nn.sigmoid(y)
        return y[:, :co].reshape(h.shape[0], Do, Ho, Wo, co)

    h = jnp.transpose(x, (0, 2, 3, 4, 1)).astype(jnp.float32)
    for name, ks, pad, co, use_bn, act in _LAYER_CFG:
        h = block(h, prep[name], ks, pad, co, use_bn, act)
    h = block(h, prep["l5"], (bands, 1, 1), (0, 0, 0), 1, False, "sigmoid")
    return h.reshape(B, 1)


# --------------------------------------------------------------------------
# Parameters: PyTorch-layout init + one-time matmul-ready preparation
# (hoisted out of the per-forward path).
# --------------------------------------------------------------------------
def init_raw_params(key, bands):
    """PyTorch-layout Conv3d weights: (Co, Ci, KD, KH, KW)."""
    ks = jax.random.split(key, 5)

    def conv_p(k, co, ci, kd, kh, kw):
        kw_, kb = jax.random.split(k)
        fan_in = ci * kd * kh * kw
        w = jax.random.normal(kw_, (co, ci, kd, kh, kw), jnp.float32) / jnp.sqrt(fan_in)
        b = jax.random.normal(kb, (co,), jnp.float32) * 0.01
        g = jnp.ones((co,), jnp.float32)      # BN gamma (unused for layer 5)
        bt = jnp.zeros((co,), jnp.float32)    # BN beta  (unused for layer 5)
        return (w, b, g, bt)

    return {
        "l1": conv_p(ks[0], 28, 1, 7, 3, 3),
        "l2": conv_p(ks[1], 28, 28, 7, 3, 3),
        "l3": conv_p(ks[2], 28, 28, 7, 3, 3),
        "l4": conv_p(ks[3], 1, 28, 7, 1, 1),
        "l5": conv_p(ks[4], 1, 1, bands, 1, 1),
    }


def prepare_params(raw):
    """One-time prep: conv weights -> (K, COP) bf16; bias/BN rows padded to COP."""
    prep = {}
    for name, (w, b, g, bt) in raw.items():
        co = w.shape[0]
        # (Co, Ci, KD, KH, KW) -> (KD, KH, KW, Ci, Co) -> (K, Co).  Regular
        # Conv3d is a correlation, so no spatial kernel flip is needed.
        wm = jnp.transpose(w, (2, 3, 4, 1, 0)).reshape(-1, co)
        wm = jnp.pad(wm, ((0, 0), (0, COP - co))).astype(jnp.bfloat16)
        bp = jnp.pad(b, (0, COP - co)).reshape(1, COP).astype(jnp.float32)
        gp = jnp.pad(g, (0, COP - co),
                     constant_values=1.0).reshape(1, COP).astype(jnp.float32)
        btp = jnp.pad(bt, (0, COP - co)).reshape(1, COP).astype(jnp.float32)
        prep[name] = (wm, bp, gp, btp)
    return prep


if __name__ == "__main__":
    B, BANDS, WINDOWS = 2, 16, 7   # small shapes consistent with the module
    key = jax.random.PRNGKey(0)
    kx, kp = jax.random.split(key)
    x = jax.random.normal(kx, (B, 1, BANDS, WINDOWS, WINDOWS), jnp.float32)

    raw = init_raw_params(kp, BANDS)
    prep = prepare_params(raw)     # weight prep runs exactly once, eagerly

    fwd = jax.jit(functools.partial(netd3d_forward, bands=BANDS))
    out = fwd(x, prep)
    jax.block_until_ready(out)

    ref = jax.jit(functools.partial(netd3d_reference, bands=BANDS))(x, prep)
    jax.block_until_ready(ref)

    assert out.shape == (B, 1), out.shape
    assert bool(jnp.all(jnp.isfinite(out)))
    assert bool(jnp.all((out >= 0.0) & (out <= 1.0)))   # sigmoid output range
    # bf16 activations through 5 layers vs f32 reference: loose tolerance.
    assert bool(jnp.max(jnp.abs(out - ref)) < 5e-2), (out, ref)
    print("KERNEL_OK")
</pallas_src>

<mosaic_0001>
module attributes {stable_mosaic.version = 11 : i64} {
  func.func @_fused_kernel(%arg0: memref<800x63xbf16, #tpu.memory_space<vmem>>, %arg1: memref<63x128xbf16, #tpu.memory_space<vmem>>, %arg2: memref<1x128xf32, #tpu.memory_space<vmem>>, %arg3: memref<1x128xf32, #tpu.memory_space<vmem>>, %arg4: memref<1x128xf32, #tpu.memory_space<vmem>>, %arg5: memref<800x128xbf16, #tpu.memory_space<vmem>>) attributes {dimension_semantics = [], scalar_prefetch = 0 : i64, scratch_operands = 0 : i64, tpu.core_type = #tpu.core_type<tc>} {
    %c0 = arith.constant 0 : index
    %c0_0 = arith.constant 0 : index
    %0 = vector.load %arg0[%c0, %c0_0] : memref<800x63xbf16, #tpu.memory_space<vmem>>, vector<800x63xbf16>
    %c0_1 = arith.constant 0 : index
    %c0_2 = arith.constant 0 : index
    %1 = vector.load %arg1[%c0_1, %c0_2] : memref<63x128xbf16, #tpu.memory_space<vmem>>, vector<63x128xbf16>
    %cst = arith.constant dense<0.000000e+00> : vector<800x128xf32>
    %2 = tpu.matmul %0, %1, %cst {dimension_numbers = #tpu.dot_dimension_numbers<[1], [0], [0], [1], [0, 0, 1, 1], [], []>} : vector<800x63xbf16>, vector<63x128xbf16>, vector<800x128xf32> -> vector<800x128xf32>
    %c0_3 = arith.constant 0 : index
    %c0_4 = arith.constant 0 : index
    %3 = vector.load %arg2[%c0_3, %c0_4] : memref<1x128xf32, #tpu.memory_space<vmem>>, vector<1x128xf32>
    %4 = vector.broadcast %3 : vector<1x128xf32> to vector<800x128xf32>
    %5 = arith.addf %2, %4 : vector<800x128xf32>
    %cst_5 = arith.constant dense<0.000000e+00> : vector<128xf32>
    %6 = vector.multi_reduction <add>, %5, %cst_5 [0] : vector<800x128xf32> to vector<128xf32>
    %7 = vector.shape_cast %6 : vector<128xf32> to vector<1x128xf32>
    %cst_6 = arith.constant 8.000000e+02 : f32
    %8 = vector.broadcast %cst_6 : f32 to vector<1x128xf32>
    %9 = arith.divf %7, %8 : vector<1x128xf32>
    %10 = vector.broadcast %9 : vector<1x128xf32> to vector<800x128xf32>
    %11 = arith.subf %5, %10 : vector<800x128xf32>
    %12 = arith.mulf %11, %11 : vector<800x128xf32>
    %cst_7 = arith.constant dense<0.000000e+00> : vector<128xf32>
    %13 = vector.multi_reduction <add>, %12, %cst_7 [0] : vector<800x128xf32> to vector<128xf32>
    %14 = vector.shape_cast %13 : vector<128xf32> to vector<1x128xf32>
    %cst_8 = arith.constant 8.000000e+02 : f32
    %15 = vector.broadcast %cst_8 : f32 to vector<1x128xf32>
    %16 = arith.divf %14, %15 : vector<1x128xf32>
    %17 = vector.broadcast %9 : vector<1x128xf32> to vector<800x128xf32>
    %18 = arith.subf %5, %17 : vector<800x128xf32>
    %cst_9 = arith.constant 9.99999974E-6 : f32
    %19 = vector.broadcast %cst_9 : f32 to vector<1x128xf32>
    %20 = arith.addf %16, %19 : vector<1x128xf32>
    %21 = math.rsqrt %20 : vector<1x128xf32>
    %22 = vector.broadcast %21 : vector<1x128xf32> to vector<800x128xf32>
    %23 = arith.mulf %18, %22 : vector<800x128xf32>
    %c0_10 = arith.constant 0 : index
    %c0_11 = arith.constant 0 : index
    %24 = vector.load %arg3[%c0_10, %c0_11] : memref<1x128xf32, #tpu.memory_space<vmem>>, vector<1x128xf32>
    %25 = vector.broadcast %24 : vector<1x128xf32> to vector<800x128xf32>
    %26 = arith.mulf %23, %25 : vector<800x128xf32>
    %c0_12 = arith.constant 0 : index
    %c0_13 = arith.constant 0 : index
    %27 = vector.load %arg4[%c0_12, %c0_13] : memref<1x128xf32, #tpu.memory_space<vmem>>, vector<1x128xf32>
    %28 = vector.broadcast %27 : vector<1x128xf32> to vector<800x128xf32>
    %29 = arith.addf %26, %28 : vector<800x128xf32>
    %cst_14 = arith.constant 0.000000e+00 : f32
    %30 = vector.broadcast %cst_14 : f32 to vector<800x128xf32>
    %31 = arith.cmpf ogt, %29, %30 : vector<800x128xf32>
    %cst_15 = arith.constant 0.00999999977 : f32
    %32 = vector.broadcast %cst_15 : f32 to vector<800x128xf32>
    %33 = arith.mulf %32, %29 : vector<800x128xf32>
    %34 = arith.select %31, %29, %33 : vector<800x128xi1>, vector<800x128xf32>
    %35 = arith.truncf %34 : vector<800x128xf32> to vector<800x128xbf16>
    %c0_16 = arith.constant 0 : index
    %c0_17 = arith.constant 0 : index
    %36 = vector.load %arg5[%c0_16, %c0_17] : memref<800x128xbf16, #tpu.memory_space<vmem>>, vector<800x128xbf16>
    tpu.vector_store %arg5[%c0_16, %c0_17], %35 {strides = array<i32>} : memref<800x128xbf16, #tpu.memory_space<vmem>>, vector<800x128xbf16>,
    return
  }
}

module attributes {stable_mosaic.version = 11 : i64} {
  func.func @_fused_kernel(%arg0: memref<288x1764xbf16, #tpu.memory_space<vmem>>, %arg1: memref<1764x128xbf16, #tpu.memory_space<vmem>>, %arg2: memref<1x128xf32, #tpu.memory_space<vmem>>, %arg3: memref<1x128xf32, #tpu.memory_space<vmem>>, %arg4: memref<1x128xf32, #tpu.memory_space<vmem>>, %arg5: memref<288x128xbf16, #tpu.memory_space<vmem>>) attributes {dimension_semantics = [], scalar_prefetch = 0 : i64, scratch_operands = 0 : i64, tpu.core_type = #tpu.core_type<tc>} {
    %c0 = arith.constant 0 : index
    %c0_0 = arith.constant 0 : index
    %0 = vector.load %arg0[%c0, %c0_0] : memref<288x1764xbf16, #tpu.memory_space<vmem>>, vector<288x1764xbf16>
    %c0_1 = arith.constant 0 : index
    %c0_2 = arith.constant 0 : index
    %1 = vector.load %arg1[%c0_1, %c0_2] : memref<1764x128xbf16, #tpu.memory_space<vmem>>, vector<1764x128xbf16>
    %cst = arith.constant dense<0.000000e+00> : vector<288x128xf32>
    %2 = tpu.matmul %0, %1, %cst {dimension_numbers = #tpu.dot_dimension_numbers<[1], [0], [0], [1], [0, 0, 1, 1], [], []>} : vector<288x1764xbf16>, vector<1764x128xbf16>, vector<288x128xf32> -> vector<288x128xf32>
    %c0_3 = arith.constant 0 : index
    %c0_4 = arith.constant 0 : index
    %3 = vector.load %arg2[%c0_3, %c0_4] : memref<1x128xf32, #tpu.memory_space<vmem>>, vector<1x128xf32>
    %4 = vector.broadcast %3 : vector<1x128xf32> to vector<288x128xf32>
    %5 = arith.addf %2, %4 : vector<288x128xf32>
    %cst_5 = arith.constant dense<0.000000e+00> : vector<128xf32>
    %6 = vector.multi_reduction <add>, %5, %cst_5 [0] : vector<288x128xf32> to vector<128xf32>
    %7 = vector.shape_cast %6 : vector<128xf32> to vector<1x128xf32>
    %cst_6 = arith.constant 2.880000e+02 : f32
    %8 = vector.broadcast %cst_6 : f32 to vector<1x128xf32>
    %9 = arith.divf %7, %8 : vector<1x128xf32>
    %10 = vector.broadcast %9 : vector<1x128xf32> to vector<288x128xf32>
    %11 = arith.subf %5, %10 : vector<288x128xf32>
    %12 = arith.mulf %11, %11 : vector<288x128xf32>
    %cst_7 = arith.constant dense<0.000000e+00> : vector<128xf32>
    %13 = vector.multi_reduction <add>, %12, %cst_7 [0] : vector<288x128xf32> to vector<128xf32>
    %14 = vector.shape_cast %13 : vector<128xf32> to vector<1x128xf32>
    %cst_8 = arith.constant 2.880000e+02 : f32
    %15 = vector.broadcast %cst_8 : f32 to vector<1x128xf32>
    %16 = arith.divf %14, %15 : vector<1x128xf32>
    %17 = vector.broadcast %9 : vector<1x128xf32> to vector<288x128xf32>
    %18 = arith.subf %5, %17 : vector<288x128xf32>
    %cst_9 = arith.constant 9.99999974E-6 : f32
    %19 = vector.broadcast %cst_9 : f32 to vector<1x128xf32>
    %20 = arith.addf %16, %19 : vector<1x128xf32>
    %21 = math.rsqrt %20 : vector<1x128xf32>
    %22 = vector.broadcast %21 : vector<1x128xf32> to vector<288x128xf32>
    %23 = arith.mulf %18, %22 : vector<288x128xf32>
    %c0_10 = arith.constant 0 : index
    %c0_11 = arith.constant 0 : index
    %24 = vector.load %arg3[%c0_10, %c0_11] : memref<1x128xf32, #tpu.memory_space<vmem>>, vector<1x128xf32>
    %25 = vector.broadcast %24 : vector<1x128xf32> to vector<288x128xf32>
    %26 = arith.mulf %23, %25 : vector<288x128xf32>
    %c0_12 = arith.constant 0 : index
    %c0_13 = arith.constant 0 : index
    %27 = vector.load %arg4[%c0_12, %c0_13] : memref<1x128xf32, #tpu.memory_space<vmem>>, vector<1x128xf32>
    %28 = vector.broadcast %27 : vector<1x128xf32> to vector<288x128xf32>
    %29 = arith.addf %26, %28 : vector<288x128xf32>
    %cst_14 = arith.constant 0.000000e+00 : f32
    %30 = vector.broadcast %cst_14 : f32 to vector<288x128xf32>
    %31 = arith.cmpf ogt, %29, %30 : vector<288x128xf32>
    %cst_15 = arith.constant 0.00999999977 : f32
    %32 = vector.broadcast %cst_15 : f32 to vector<288x128xf32>
    %33 = arith.mulf %32, %29 : vector<288x128xf32>
    %34 = arith.select %31, %29, %33 : vector<288x128xi1>, vector<288x128xf32>
    %35 = arith.truncf %34 : vector<288x128xf32> to vector<288x128xbf16>
    %c0_16 = arith.constant 0 : index
    %c0_17 = arith.constant 0 : index
    %36 = vector.load %arg5[%c0_16, %c0_17] : memref<288x128xbf16, #tpu.memory_space<vmem>>, vector<288x128xbf16>
    tpu.vector_store %arg5[%c0_16, %c0_17], %35 {strides = array<i32>} : memref<288x128xbf16, #tpu.memory_space<vmem>>, vector<288x128xbf16>,
    return
  }
}

module attributes {stable_mosaic.version = 11 : i64} {
  func.func @_fused_kernel(%arg0: memref<32x1764xbf16, #tpu.memory_space<vmem>>, %arg1: memref<1764x128xbf16, #tpu.memory_space<vmem>>, %arg2: memref<1x128xf32, #tpu.memory_space<vmem>>, %arg3: memref<1x128xf32, #tpu.memory_space<vmem>>, %arg4: memref<1x128xf32, #tpu.memory_space<vmem>>, %arg5: memref<32x128xbf16, #tpu.memory_space<vmem>>) attributes {dimension_semantics = [], scalar_prefetch = 0 : i64, scratch_operands = 0 : i64, tpu.core_type = #tpu.core_type<tc>} {
    %c0 = arith.constant 0 : index
    %c0_0 = arith.constant 0 : index
    %0 = vector.load %arg0[%c0, %c0_0] : memref<32x1764xbf16, #tpu.memory_space<vmem>>, vector<32x1764xbf16>
    %c0_1 = arith.constant 0 : index
    %c0_2 = arith.constant 0 : index
    %1 = vector.load %arg1[%c0_1, %c0_2] : memref<1764x128xbf16, #tpu.memory_space<vmem>>, vector<1764x128xbf16>
    %cst = arith.constant dense<0.000000e+00> : vector<32x128xf32>
    %2 = tpu.matmul %0, %1, %cst {dimension_numbers = #tpu.dot_dimension_numbers<[1], [0], [0], [1], [0, 0, 1, 1], [], []>} : vector<32x1764xbf16>, vector<1764x128xbf16>, vector<32x128xf32> -> vector<32x128xf32>
    %c0_3 = arith.constant 0 : index
    %c0_4 = arith.constant 0 : index
    %3 = vector.load %arg2[%c0_3, %c0_4] : memref<1x128xf32, #tpu.memory_space<vmem>>, vector<1x128xf32>
    %4 = vector.broadcast %3 : vector<1x128xf32> to vector<32x128xf32>
    %5 = arith.addf %2, %4 : vector<32x128xf32>
    %cst_5 = arith.constant dense<0.000000e+00> : vector<128xf32>
    %6 = vector.multi_reduction <add>, %5, %cst_5 [0] : vector<32x128xf32> to vector<128xf32>
    %7 = vector.shape_cast %6 : vector<128xf32> to vector<1x128xf32>
    %cst_6 = arith.constant 3.200000e+01 : f32
    %8 = vector.broadcast %cst_6 : f32 to vector<1x128xf32>
    %9 = arith.divf %7, %8 : vector<1x128xf32>
    %10 = vector.broadcast %9 : vector<1x128xf32> to vector<32x128xf32>
    %11 = arith.subf %5, %10 : vector<32x128xf32>
    %12 = arith.mulf %11, %11 : vector<32x128xf32>
    %cst_7 = arith.constant dense<0.000000e+00> : vector<128xf32>
    %13 = vector.multi_reduction <add>, %12, %cst_7 [0] : vector<32x128xf32> to vector<128xf32>
    %14 = vector.shape_cast %13 : vector<128xf32> to vector<1x128xf32>
    %cst_8 = arith.constant 3.200000e+01 : f32
    %15 = vector.broadcast %cst_8 : f32 to vector<1x128xf32>
    %16 = arith.divf %14, %15 : vector<1x128xf32>
    %17 = vector.broadcast %9 : vector<1x128xf32> to vector<32x128xf32>
    %18 = arith.subf %5, %17 : vector<32x128xf32>
    %cst_9 = arith.constant 9.99999974E-6 : f32
    %19 = vector.broadcast %cst_9 : f32 to vector<1x128xf32>
    %20 = arith.addf %16, %19 : vector<1x128xf32>
    %21 = math.rsqrt %20 : vector<1x128xf32>
    %22 = vector.broadcast %21 : vector<1x128xf32> to vector<32x128xf32>
    %23 = arith.mulf %18, %22 : vector<32x128xf32>
    %c0_10 = arith.constant 0 : index
    %c0_11 = arith.constant 0 : index
    %24 = vector.load %arg3[%c0_10, %c0_11] : memref<1x128xf32, #tpu.memory_space<vmem>>, vector<1x128xf32>
    %25 = vector.broadcast %24 : vector<1x128xf32> to vector<32x128xf32>
    %26 = arith.mulf %23, %25 : vector<32x128xf32>
    %c0_12 = arith.constant 0 : index
    %c0_13 = arith.constant 0 : index
    %27 = vector.load %arg4[%c0_12, %c0_13] : memref<1x128xf32, #tpu.memory_space<vmem>>, vector<1x128xf32>
    %28 = vector.broadcast %27 : vector<1x128xf32> to vector<32x128xf32>
    %29 = arith.addf %26, %28 : vector<32x128xf32>
    %cst_14 = arith.constant 0.000000e+00 : f32
    %30 = vector.broadcast %cst_14 : f32 to vector<32x128xf32>
    %31 = arith.cmpf ogt, %29, %30 : vector<32x128xf32>
    %cst_15 = arith.constant 0.00999999977 : f32
    %32 = vector.broadcast %cst_15 : f32 to vector<32x128xf32>
    %33 = arith.mulf %32, %29 : vector<32x128xf32>
    %34 = arith.select %31, %29, %33 : vector<32x128xi1>, vector<32x128xf32>
    %35 = arith.truncf %34 : vector<32x128xf32> to vector<32x128xbf16>
    %c0_16 = arith.constant 0 : index
    %c0_17 = arith.constant 0 : index
    %36 = vector.load %arg5[%c0_16, %c0_17] : memref<32x128xbf16, #tpu.memory_space<vmem>>, vector<32x128xbf16>
    tpu.vector_store %arg5[%c0_16, %c0_17], %35 {strides = array<i32>} : memref<32x128xbf16, #tpu.memory_space<vmem>>, vector<32x128xbf16>,
    return
  }
}

module attributes {stable_mosaic.version = 11 : i64} {
  func.func @_fused_kernel(%arg0: memref<32x196xbf16, #tpu.memory_space<vmem>>, %arg1: memref<196x128xbf16, #tpu.memory_space<vmem>>, %arg2: memref<1x128xf32, #tpu.memory_space<vmem>>, %arg3: memref<1x128xf32, #tpu.memory_space<vmem>>, %arg4: memref<1x128xf32, #tpu.memory_space<vmem>>, %arg5: memref<32x128xbf16, #tpu.memory_space<vmem>>) attributes {dimension_semantics = [], scalar_prefetch = 0 : i64, scratch_operands = 0 : i64, tpu.core_type = #tpu.core_type<tc>} {
    %c0 = arith.constant 0 : index
    %c0_0 = arith.constant 0 : index
    %0 = vector.load %arg0[%c0, %c0_0] : memref<32x196xbf16, #tpu.memory_space<vmem>>, vector<32x196xbf16>
    %c0_1 = arith.constant 0 : index
    %c0_2 = arith.constant 0 : index
    %1 = vector.load %arg1[%c0_1, %c0_2] : memref<196x128xbf16, #tpu.memory_space<vmem>>, vector<196x128xbf16>
    %cst = arith.constant dense<0.000000e+00> : vector<32x128xf32>
    %2 = tpu.matmul %0, %1, %cst {dimension_numbers = #tpu.dot_dimension_numbers<[1], [0], [0], [1], [0, 0, 1, 1], [], []>} : vector<32x196xbf16>, vector<196x128xbf16>, vector<32x128xf32> -> vector<32x128xf32>
    %c0_3 = arith.constant 0 : index
    %c0_4 = arith.constant 0 : index
    %3 = vector.load %arg2[%c0_3, %c0_4] : memref<1x128xf32, #tpu.memory_space<vmem>>, vector<1x128xf32>
    %4 = vector.broadcast %3 : vector<1x128xf32> to vector<32x128xf32>
    %5 = arith.addf %2, %4 : vector<32x128xf32>
    %cst_5 = arith.constant dense<0.000000e+00> : vector<128xf32>
    %6 = vector.multi_reduction <add>, %5, %cst_5 [0] : vector<32x128xf32> to vector<128xf32>
    %7 = vector.shape_cast %6 : vector<128xf32> to vector<1x128xf32>
    %cst_6 = arith.constant 3.200000e+01 : f32
    %8 = vector.broadcast %cst_6 : f32 to vector<1x128xf32>
    %9 = arith.divf %7, %8 : vector<1x128xf32>
    %10 = vector.broadcast %9 : vector<1x128xf32> to vector<32x128xf32>
    %11 = arith.subf %5, %10 : vector<32x128xf32>
    %12 = arith.mulf %11, %11 : vector<32x128xf32>
    %cst_7 = arith.constant dense<0.000000e+00> : vector<128xf32>
    %13 = vector.multi_reduction <add>, %12, %cst_7 [0] : vector<32x128xf32> to vector<128xf32>
    %14 = vector.shape_cast %13 : vector<128xf32> to vector<1x128xf32>
    %cst_8 = arith.constant 3.200000e+01 : f32
    %15 = vector.broadcast %cst_8 : f32 to vector<1x128xf32>
    %16 = arith.divf %14, %15 : vector<1x128xf32>
    %17 = vector.broadcast %9 : vector<1x128xf32> to vector<32x128xf32>
    %18 = arith.subf %5, %17 : vector<32x128xf32>
    %cst_9 = arith.constant 9.99999974E-6 : f32
    %19 = vector.broadcast %cst_9 : f32 to vector<1x128xf32>
    %20 = arith.addf %16, %19 : vector<1x128xf32>
    %21 = math.rsqrt %20 : vector<1x128xf32>
    %22 = vector.broadcast %21 : vector<1x128xf32> to vector<32x128xf32>
    %23 = arith.mulf %18, %22 : vector<32x128xf32>
    %c0_10 = arith.constant 0 : index
    %c0_11 = arith.constant 0 : index
    %24 = vector.load %arg3[%c0_10, %c0_11] : memref<1x128xf32, #tpu.memory_space<vmem>>, vector<1x128xf32>
    %25 = vector.broadcast %24 : vector<1x128xf32> to vector<32x128xf32>
    %26 = arith.mulf %23, %25 : vector<32x128xf32>
    %c0_12 = arith.constant 0 : index
    %c0_13 = arith.constant 0 : index
    %27 = vector.load %arg4[%c0_12, %c0_13] : memref<1x128xf32, #tpu.memory_space<vmem>>, vector<1x128xf32>
    %28 = vector.broadcast %27 : vector<1x128xf32> to vector<32x128xf32>
    %29 = arith.addf %26, %28 : vector<32x128xf32>
    %cst_14 = arith.constant 0.000000e+00 : f32
    %30 = vector.broadcast %cst_14 : f32 to vector<32x128xf32>
    %31 = arith.cmpf ogt, %29, %30 : vector<32x128xf32>
    %cst_15 = arith.constant 0.00999999977 : f32
    %32 = vector.broadcast %cst_15 : f32 to vector<32x128xf32>
    %33 = arith.mulf %32, %29 : vector<32x128xf32>
    %34 = arith.select %31, %29, %33 : vector<32x128xi1>, vector<32x128xf32>
    %35 = arith.truncf %34 : vector<32x128xf32> to vector<32x128xbf16>
    %c0_16 = arith.constant 0 : index
    %c0_17 = arith.constant 0 : index
    %36 = vector.load %arg5[%c0_16, %c0_17] : memref<32x128xbf16, #tpu.memory_space<vmem>>, vector<32x128xbf16>
    tpu.vector_store %arg5[%c0_16, %c0_17], %35 {strides = array<i32>} : memref<32x128xbf16, #tpu.memory_space<vmem>>, vector<32x128xbf16>,
    return
  }
}

module attributes {stable_mosaic.version = 11 : i64} {
  func.func @_fused_kernel(%arg0: memref<2x16xbf16, #tpu.memory_space<vmem>>, %arg1: memref<16x128xbf16, #tpu.memory_space<vmem>>, %arg2: memref<1x128xf32, #tpu.memory_space<vmem>>, %arg3: memref<1x128xf32, #tpu.memory_space<vmem>>, %arg4: memref<1x128xf32, #tpu.memory_space<vmem>>, %arg5: memref<2x128xf32, #tpu.memory_space<vmem>>) attributes {dimension_semantics = [], scalar_prefetch = 0 : i64, scratch_operands = 0 : i64, tpu.core_type = #tpu.core_type<tc>} {
    %c0 = arith.constant 0 : index
    %c0_0 = arith.constant 0 : index
    %0 = vector.load %arg0[%c0, %c0_0] : memref<2x16xbf16, #tpu.memory_space<vmem>>, vector<2x16xbf16>
    %c0_1 = arith.constant 0 : index
    %c0_2 = arith.constant 0 : index
    %1 = vector.load %arg1[%c0_1, %c0_2] : memref<16x128xbf16, #tpu.memory_space<vmem>>, vector<16x128xbf16>
    %cst = arith.constant dense<0.000000e+00> : vector<2x128xf32>
    %2 = tpu.matmul %0, %1, %cst {dimension_numbers = #tpu.dot_dimension_numbers<[1], [0], [0], [1], [0, 0, 1, 1], [], []>} : vector<2x16xbf16>, vector<16x128xbf16>, vector<2x128xf32> -> vector<2x128xf32>
    %c0_3 = arith.constant 0 : index
    %c0_4 = arith.constant 0 : index
    %3 = vector.load %arg2[%c0_3, %c0_4] : memref<1x128xf32, #tpu.memory_space<vmem>>, vector<1x128xf32>
    %4 = vector.broadcast %3 : vector<1x128xf32> to vector<2x128xf32>
    %5 = arith.addf %2, %4 : vector<2x128xf32>
    %cst_5 = arith.constant 0.000000e+00 : f32
    %6 = vector.broadcast %cst_5 : f32 to vector<2x128xf32>
    %7 = arith.subf %6, %5 : vector<2x128xf32>
    %8 = math.exp %7 : vector<2x128xf32>
    %cst_6 = arith.constant 1.000000e+00 : f32
    %9 = vector.broadcast %cst_6 : f32 to vector<2x128xf32>
    %10 = arith.addf %9, %8 : vector<2x128xf32>
    %cst_7 = arith.constant 1.000000e+00 : f32
    %11 = vector.broadcast %cst_7 : f32 to vector<2x128xf32>
    %12 = arith.divf %11, %10 : vector<2x128xf32>
    %c0_8 = arith.constant 0 : index
    %c0_9 = arith.constant 0 : index
    %13 = vector.load %arg5[%c0_8, %c0_9] : memref<2x128xf32, #tpu.memory_space<vmem>>, vector<2x128xf32>
    tpu.vector_store %arg5[%c0_8, %c0_9], %12 {strides = array<i32>} : memref<2x128xf32, #tpu.memory_space<vmem>>, vector<2x128xf32>,
    return
  }
}

</mosaic_0001>

<llo_original>
// kernel: netd3d_forward.5
$region0: #{netd3d_forward.5}
  #allocation0 [shape = 'u32[]', space=smem, size = 0x4, offset = 0x4, fixed_abs, tag = 'smem constant byte address 0x4 - core index']
  #allocation1 [shape = 'u32[144,128]{1,0:T(1,128)}', space=vmem, size = 0x12000, scoped, tag = 'internal scratch']
  %s0 = inlined_call_operand.vmem [shape: bf16[800,63], index: 0, kind: input, shape index: {}]
  %s1 = inlined_call_operand.vmem [shape: bf16[63,128], index: 1, kind: input, shape index: {}]
  %s2 = inlined_call_operand.vmem [shape: f32[1,128], index: 2, kind: input, shape index: {}]
  %s3 = inlined_call_operand.vmem [shape: f32[1,128], index: 3, kind: input, shape index: {}]
  %s4 = inlined_call_operand.vmem [shape: f32[1,128], index: 4, kind: input, shape index: {}]
  %s5 = inlined_call_operand.vmem [shape: bf16[800,128], index: 5, kind: output, shape index: {}]
  %s6 = sld [smem:[#allocation0]]
  $region30: #{netd3d_forward.5} parent=0
    _
  %s8 = ssub.s32 1, %s6
  %s9 = scalar_select 0, %s8, %s6
  // Predicated region
  $region2: #{netd3d_forward.5} parent=0 // pred_check
    _
  $region3: #{netd3d_forward.5} parent=0 // pred_check_branch
    %11 = sbr.rel (0) target = $region5
  $region4: #{netd3d_forward.5} parent=0 // pred_region
    _
  $region5: #{netd3d_forward.5} parent=0 // pred_fallthru
    _
  // Predicated region
  $region6: #{netd3d_forward.5} parent=0 // pred_check
    _
  $region7: #{netd3d_forward.5} parent=0 // pred_check_branch
    %13 = sbr.rel (0) target = $region9
  $region8: #{netd3d_forward.5} parent=0 // pred_region
    _
  $region9: #{netd3d_forward.5} parent=0 // pred_fallthru
    _
  // Predicated region
  $region10: #{netd3d_forward.5} parent=0 // pred_check
    _
  $region11: #{netd3d_forward.5} parent=0 // pred_check_branch
    %15 = sbr.rel (0) target = $region13
  $region12: #{netd3d_forward.5} parent=0 // pred_region
    _
  $region13: #{netd3d_forward.5} parent=0 // pred_fallthru
    _
  // Predicated region
  $region14: #{netd3d_forward.5} parent=0 // pred_check
    _
  $region15: #{netd3d_forward.5} parent=0 // pred_check_branch
    %17 = sbr.rel (0) target = $region17
  $region16: #{netd3d_forward.5} parent=0 // pred_region
    _
  $region17: #{netd3d_forward.5} parent=0 // pred_fallthru
    _
  // Predicated region
  $region18: #{netd3d_forward.5} parent=0 // pred_check
    _
  $region19: #{netd3d_forward.5} parent=0 // pred_check_branch
    %19 = sbr.rel (0) target = $region21
  $region20: #{netd3d_forward.5} parent=0 // pred_region
    _
  $region21: #{netd3d_forward.5} parent=0 // pred_fallthru
    _
  %v21 = vld [vmem:[%s0] sm:$0xf]
  %v22 = vld [vmem:[%s0 + $0x4] sm:$0xf]
  %v23 = vld [vmem:[%s0 + $0x8] sm:$0xf]
  %v24 = vld [vmem:[%s0 + $0xc] sm:$0xf]
  %v25 = vld [vmem:[%s0 + $0x10] sm:$0xf]
  %v26 = vld [vmem:[%s0 + $0x14] sm:$0xf]
  %v27 = vld [vmem:[%s0 + $0x18] sm:$0xf]
  %v28 = vld [vmem:[%s0 + $0x1c] sm:$0xf]
  %v29 = vld [vmem:[%s0 + $0x20] sm:$0xf]
  %v30 = vld [vmem:[%s0 + $0x24] sm:$0xf]
  %v31 = vld [vmem:[%s0 + $0x28] sm:$0xf]
  %v32 = vld [vmem:[%s0 + $0x2c] sm:$0xf]
  %v33 = vld [vmem:[%s0 + $0x30] sm:$0xf]
  %v34 = vld [vmem:[%s0 + $0x34] sm:$0xf]
  %v35 = vld [vmem:[%s0 + $0x38] sm:$0xf]
  %v36 = vld [vmem:[%s0 + $0x3c] sm:$0xf]
  %v37 = vld [vmem:[%s0 + $0x40] sm:$0xf]
  %v38 = vld [vmem:[%s0 + $0x44] sm:$0xf]
  %v39 = vld [vmem:[%s0 + $0x48] sm:$0xf]
  %v40 = vld [vmem:[%s0 + $0x4c] sm:$0xf]
  %v41 = vld [vmem:[%s0 + $0x50] sm:$0xf]
  %v42 = vld [vmem:[%s0 + $0x54] sm:$0xf]
  %v43 = vld [vmem:[%s0 + $0x58] sm:$0xf]
  %v44 = vld [vmem:[%s0 + $0x5c] sm:$0xf]
  %v45 = vld [vmem:[%s0 + $0x60] sm:$0xf]
  %v46 = vld [vmem:[%s0 + $0x64] sm:$0xf]
  %v47 = vld [vmem:[%s0 + $0x68] sm:$0xf]
  %v48 = vld [vmem:[%s0 + $0x6c] sm:$0xf]
  %v49 = vld [vmem:[%s0 + $0x70] sm:$0xf]
  %v50 = vld [vmem:[%s0 + $0x74] sm:$0xf]
  %v51 = vld [vmem:[%s0 + $0x78] sm:$0xf]
  %v52 = vld [vmem:[%s0 + $0x7c] sm:$0xf]
  %v53 = vld [vmem:[%s0 + $0x80] sm:$0xf]
  %v54 = vld [vmem:[%s0 + $0x84] sm:$0xf]
  %v55 = vld [vmem:[%s0 + $0x88] sm:$0xf]
  %v56 = vld [vmem:[%s0 + $0x8c] sm:$0xf]
  %v57 = vld [vmem:[%s0 + $0x90] sm:$0xf]
  %v58 = vld [vmem:[%s0 + $0x94] sm:$0xf]
  %v59 = vld [vmem:[%s0 + $0x98] sm:$0xf]
  %v60 = vld [vmem:[%s0 + $0x9c] sm:$0xf]
  %v61 = vld [vmem:[%s0 + $0xa0] sm:$0xf]
  %v62 = vld [vmem:[%s0 + $0xa4] sm:$0xf]
  %v63 = vld [vmem:[%s0 + $0xa8] sm:$0xf]
  %v64 = vld [vmem:[%s0 + $0xac] sm:$0xf]
  %v65 = vld [vmem:[%s0 + $0xb0] sm:$0xf]
  %v66 = vld [vmem:[%s0 + $0xb4] sm:$0xf]
  %v67 = vld [vmem:[%s0 + $0xb8] sm:$0xf]
  %v68 = vld [vmem:[%s0 + $0xbc] sm:$0xf]
  %v69 = vld [vmem:[%s0 + $0xc0] sm:$0xf]
  %v70 = vld [vmem:[%s0 + $0xc4] sm:$0xf]
  %v71 = vld [vmem:[%s0 + $0xc8] sm:$0xf]
  %v72 = vld [vmem:[%s0 + $0xcc] sm:$0xf]
  %v73 = vld [vmem:[%s0 + $0xd0] sm:$0xf]
  %v74 = vld [vmem:[%s0 + $0xd4] sm:$0xf]
  %v75 = vld [vmem:[%s0 + $0xd8] sm:$0xf]
  %v76 = vld [vmem:[%s0 + $0xdc] sm:$0xf]
  %v77 = vld [vmem:[%s0 + $0xe0] sm:$0xf]
  %v78 = vld [vmem:[%s0 + $0xe4] sm:$0xf]
  %v79 = vld [vmem:[%s0 + $0xe8] sm:$0xf]
  %v80 = vld [vmem:[%s0 + $0xec] sm:$0xf]
  %v81 = vld [vmem:[%s0 + $0xf0] sm:$0xf]
  %v82 = vld [vmem:[%s0 + $0xf4] sm:$0xf]
  %v83 = vld [vmem:[%s0 + $0xf8] sm:$0xf]
  %v84 = vld [vmem:[%s0 + $0xfc] sm:$0xf]
  %v85 = vld [vmem:[%s0 + $0x100] sm:$0xf]
  %v86 = vld [vmem:[%s0 + $0x104] sm:$0xf]
  %v87 = vld [vmem:[%s0 + $0x108] sm:$0xf]
  %v88 = vld [vmem:[%s0 + $0x10c] sm:$0xf]
  %v89 = vld [vmem:[%s0 + $0x110] sm:$0xf]
  %v90 = vld [vmem:[%s0 + $0x114] sm:$0xf]
  %v91 = vld [vmem:[%s0 + $0x118] sm:$0xf]
  %v92 = vld [vmem:[%s0 + $0x11c] sm:$0xf]
  %v93 = vld [vmem:[%s0 + $0x120] sm:$0xf]
  %v94 = vld [vmem:[%s0 + $0x124] sm:$0xf]
  %v95 = vld [vmem:[%s0 + $0x128] sm:$0xf]
  %v96 = vld [vmem:[%s0 + $0x12c] sm:$0xf]
  %v97 = vld [vmem:[%s0 + $0x130] sm:$0xf]
  %v98 = vld [vmem:[%s0 + $0x134] sm:$0xf]
  %v99 = vld [vmem:[%s0 + $0x138] sm:$0xf]
  %v100 = vld [vmem:[%s0 + $0x13c] sm:$0xf]
  %v101 = vld [vmem:[%s0 + $0x140] sm:$0xf]
  %v102 = vld [vmem:[%s0 + $0x144] sm:$0xf]
  %v103 = vld [vmem:[%s0 + $0x148] sm:$0xf]
  %v104 = vld [vmem:[%s0 + $0x14c] sm:$0xf]
  %v105 = vld [vmem:[%s0 + $0x150] sm:$0xf]
  %v106 = vld [vmem:[%s0 + $0x154] sm:$0xf]
  %v107 = vld [vmem:[%s0 + $0x158] sm:$0xf]
  %v108 = vld [vmem:[%s0 + $0x15c] sm:$0xf]
  %v109 = vld [vmem:[%s0 + $0x160] sm:$0xf]
  %v110 = vld [vmem:[%s0 + $0x164] sm:$0xf]
  %v111 = vld [vmem:[%s0 + $0x168] sm:$0xf]
  %v112 = vld [vmem:[%s0 + $0x16c] sm:$0xf]
  %v113 = vld [vmem:[%s0 + $0x170] sm:$0xf]
  %v114 = vld [vmem:[%s0 + $0x174] sm:$0xf]
  %v115 = vld [vmem:[%s0 + $0x178] sm:$0xf]
  %v116 = vld [vmem:[%s0 + $0x17c] sm:$0xf]
  %v117 = vld [vmem:[%s0 + $0x180] sm:$0xf]
  %v118 = vld [vmem:[%s0 + $0x184] sm:$0xf]
  %v119 = vld [vmem:[%s0 + $0x188] sm:$0xf]
  %v120 = vld [vmem:[%s0 + $0x18c] sm:$0xf]
  %v121 = vld [vmem:[%s1] sm:$0xf]
  %v122 = vld [vmem:[%s1 + $0x4] sm:$0xf]
  %v123 = vld [vmem:[%s1 + $0x8] sm:$0xf]
  %v124 = vld [vmem:[%s1 + $0xc] sm:$0xf]
  %v125 = vld [vmem:[%s1 + $0x10] sm:$0xf]
  %v126 = vld [vmem:[%s1 + $0x14] sm:$0xf]
  %v127 = vld [vmem:[%s1 + $0x18] sm:$0xf]
  %v128 = vld [vmem:[%s1 + $0x1c] sm:$0xf]
  %v129 = vld [vmem:[%s2] sm:$0x1]
  %v131 = vlaneseq
  %v132 = vshrl.u32 %v131, 7
  %v133 = vsub.s32 0, %v132
  %v134 = vrot.slane %v129, %v133
  %v236 = vunpack.c.l.b16 %v21
  %v237 = vunpack.c.l.b16 %v22
  %v238 = vunpack.c.l.b16 %v23
  %v239 = vunpack.c.l.b16 %v24
  %v240 = vunpack.c.l.b16 %v25
  %v241 = vunpack.c.l.b16 %v26
  %v242 = vunpack.c.l.b16 %v27
  %v243 = vunpack.c.l.b16 %v28
  %v244 = vunpack.c.l.b16 %v29
  %v245 = vunpack.c.l.b16 %v30
  %v246 = vunpack.c.l.b16 %v31
  %v247 = vunpack.c.l.b16 %v32
  %v248 = vunpack.c.l.b16 %v33
  %v249 = vunpack.c.l.b16 %v34
  %v250 = vunpack.c.l.b16 %v35
  %v251 = vunpack.c.l.b16 %v36
  %v252 = vunpack.c.l.b16 %v37
  %v253 = vunpack.c.l.b16 %v38
  %v254 = vunpack.c.l.b16 %v39
  %v255 = vunpack.c.l.b16 %v40
  %v256 = vunpack.c.l.b16 %v41
  %v257 = vunpack.c.l.b16 %v42
  %v258 = vunpack.c.l.b16 %v43
  %v259 = vunpack.c.l.b16 %v44
  %v260 = vunpack.c.l.b16 %v45
  %v261 = vunpack.c.l.b16 %v46
  %v262 = vunpack.c.l.b16 %v47
  %v263 = vunpack.c.l.b16 %v48
  %v264 = vunpack.c.l.b16 %v49
  %v265 = vunpack.c.l.b16 %v50
  %v266 = vunpack.c.l.b16 %v51
  %v267 = vunpack.c.l.b16 %v52
  %v268 = vunpack.c.l.b16 %v53
  %v269 = vunpack.c.l.b16 %v54
  %v270 = vunpack.c.l.b16 %v55
  %v271 = vunpack.c.l.b16 %v56
  %v272 = vunpack.c.l.b16 %v57
  %v273 = vunpack.c.l.b16 %v58
  %v274 = vunpack.c.l.b16 %v59
  %v275 = vunpack.c.l.b16 %v60
  %v276 = vunpack.c.l.b16 %v61
  %v277 = vunpack.c.l.b16 %v62
  %v278 = vunpack.c.l.b16 %v63
  %v279 = vunpack.c.l.b16 %v64
  %v280 = vunpack.c.l.b16 %v65
  %v281 = vunpack.c.l.b16 %v66
  %v282 = vunpack.c.l.b16 %v67
  %v283 = vunpack.c.l.b16 %v68
  %v284 = vunpack.c.l.b16 %v69
  %v285 = vunpack.c.l.b16 %v70
  %v286 = vunpack.c.l.b16 %v71
  %v287 = vunpack.c.l.b16 %v72
  %v288 = vunpack.c.l.b16 %v73
  %v289 = vunpack.c.l.b16 %v74
  %v290 = vunpack.c.l.b16 %v75
  %v291 = vunpack.c.l.b16 %v76
  %v292 = vunpack.c.l.b16 %v77
  %v293 = vunpack.c.l.b16 %v78
  %v294 = vunpack.c.l.b16 %v79
  %v295 = vunpack.c.l.b16 %v80
  %v296 = vunpack.c.l.b16 %v81
  %v297 = vunpack.c.l.b16 %v82
  %v298 = vunpack.c.l.b16 %v83
  %v299 = vunpack.c.l.b16 %v84
  %v300 = vunpack.c.l.b16 %v85
  %v301 = vunpack.c.l.b16 %v86
  %v302 = vunpack.c.l.b16 %v87
  %v303 = vunpack.c.l.b16 %v88
  %v304 = vunpack.c.l.b16 %v89
  %v305 = vunpack.c.l.b16 %v90
  %v306 = vunpack.c.l.b16 %v91
  %v307 = vunpack.c.l.b16 %v92
  %v308 = vunpack.c.l.b16 %v93
  %v309 = vunpack.c.l.b16 %v94
  %v310 = vunpack.c.l.b16 %v95
  %v311 = vunpack.c.l.b16 %v96
  %v312 = vunpack.c.l.b16 %v97
  %v313 = vunpack.c.l.b16 %v98
  %v314 = vunpack.c.l.b16 %v99
  %v315 = vunpack.c.l.b16 %v100
  %v316 = vunpack.c.l.b16 %v101
  %v317 = vunpack.c.l.b16 %v102
  %v318 = vunpack.c.l.b16 %v103
  %v319 = vunpack.c.l.b16 %v104
  %v320 = vunpack.c.l.b16 %v105
  %v321 = vunpack.c.l.b16 %v106
  %v322 = vunpack.c.l.b16 %v107
  %v323 = vunpack.c.l.b16 %v108
  %v324 = vunpack.c.l.b16 %v109
  %v325 = vunpack.c.l.b16 %v110
  %v326 = vunpack.c.l.b16 %v111
  %v327 = vunpack.c.l.b16 %v112
  %v328 = vunpack.c.l.b16 %v113
  %v329 = vunpack.c.l.b16 %v114
  %v330 = vunpack.c.l.b16 %v115
  %v331 = vunpack.c.l.b16 %v116
  %v332 = vunpack.c.l.b16 %v117
  %v333 = vunpack.c.l.b16 %v118
  %v334 = vunpack.c.l.b16 %v119
  %v335 = vunpack.c.l.b16 %v120
  %v336 = vpack.c.b16 %v237, %v236
  %v337 = vpack.c.b16 %v239, %v238
  %v338 = vpack.c.b16 %v241, %v240
  %v339 = vpack.c.b16 %v243, %v242
  %v340 = vpack.c.b16 %v245, %v244
  %v341 = vpack.c.b16 %v247, %v246
  %v342 = vpack.c.b16 %v249, %v248
  %v343 = vpack.c.b16 %v251, %v250
  %v344 = vpack.c.b16 %v253, %v252
  %v345 = vpack.c.b16 %v255, %v254
  %v346 = vpack.c.b16 %v257, %v256
  %v347 = vpack.c.b16 %v259, %v258
  %v348 = vpack.c.b16 %v261, %v260
  %v349 = vpack.c.b16 %v263, %v262
  %v350 = vpack.c.b16 %v265, %v264
  %v351 = vpack.c.b16 %v267, %v266
  %v352 = vpack.c.b16 %v269, %v268
  %v353 = vpack.c.b16 %v271, %v270
  %v354 = vpack.c.b16 %v273, %v272
  %v355 = vpack.c.b16 %v275, %v274
  %v356 = vpack.c.b16 %v277, %v276
  %v357 = vpack.c.b16 %v279, %v278
  %v358 = vpack.c.b16 %v281, %v280
  %v359 = vpack.c.b16 %v283, %v282
  %v360 = vpack.c.b16 %v285, %v284
  %v361 = vpack.c.b16 %v287, %v286
  %v362 = vpack.c.b16 %v289, %v288
  %v363 = vpack.c.b16 %v291, %v290
  %v364 = vpack.c.b16 %v293, %v292
  %v365 = vpack.c.b16 %v295, %v294
  %v366 = vpack.c.b16 %v297, %v296
  %v367 = vpack.c.b16 %v299, %v298
  %v368 = vpack.c.b16 %v301, %v300
  %v369 = vpack.c.b16 %v303, %v302
  %v370 = vpack.c.b16 %v305, %v304
  %v371 = vpack.c.b16 %v307, %v306
  %v372 = vpack.c.b16 %v309, %v308
  %v373 = vpack.c.b16 %v311, %v310
  %v374 = vpack.c.b16 %v313, %v312
  %v375 = vpack.c.b16 %v315, %v314
  %v376 = vpack.c.b16 %v317, %v316
  %v377 = vpack.c.b16 %v319, %v318
  %v378 = vpack.c.b16 %v321, %v320
  %v379 = vpack.c.b16 %v323, %v322
  %v380 = vpack.c.b16 %v325, %v324
  %v381 = vpack.c.b16 %v327, %v326
  %v382 = vpack.c.b16 %v329, %v328
  %v383 = vpack.c.b16 %v331, %v330
  %v384 = vpack.c.b16 %v333, %v332
  %v385 = vpack.c.b16 %v335, %v334
  %v394 = vunpack.c.l.b16 %v121
  %v395 = vunpack.c.l.b16 %v122
  %v396 = vunpack.c.l.b16 %v123
  %v397 = vunpack.c.l.b16 %v124
  %v398 = vunpack.c.l.b16 %v125
  %v399 = vunpack.c.l.b16 %v126
  %v400 = vunpack.c.l.b16 %v127
  %v401 = vunpack.c.l.b16 %v128
  %v402 = vpack.c.b16 %v395, %v394
  %v403 = vpack.c.b16 %v397, %v396
  %v404 = vpack.c.b16 %v399, %v398
  %v405 = vpack.c.b16 %v401, %v400
  %vm409 = vcmask 515072
  %v411 = vsel %vm409, %v336, 0
  %v414 = vsel %vm409, %v337, 0
  %v417 = vsel %vm409, %v338, 0
  %v420 = vsel %vm409, %v339, 0
  %v423 = vsel %vm409, %v340, 0
  %v426 = vsel %vm409, %v341, 0
  %v429 = vsel %vm409, %v342, 0
  %v432 = vsel %vm409, %v343, 0
  %v435 = vsel %vm409, %v344, 0
  %v438 = vsel %vm409, %v345, 0
  %v441 = vsel %vm409, %v346, 0
  %v444 = vsel %vm409, %v347, 0
  %v447 = vsel %vm409, %v348, 0
  %v450 = vsel %vm409, %v349, 0
  %v453 = vsel %vm409, %v350, 0
  %v456 = vsel %vm409, %v351, 0
  %v459 = vsel %vm409, %v352, 0
  %v462 = vsel %vm409, %v353, 0
  %v465 = vsel %vm409, %v354, 0
  %v468 = vsel %vm409, %v355, 0
  %v471 = vsel %vm409, %v356, 0
  %v474 = vsel %vm409, %v357, 0
  %v477 = vsel %vm409, %v358, 0
  %v480 = vsel %vm409, %v359, 0
  %v483 = vsel %vm409, %v360, 0
  %v486 = vsel %vm409, %v361, 0
  %v489 = vsel %vm409, %v362, 0
  %v492 = vsel %vm409, %v363, 0
  %v495 = vsel %vm409, %v364, 0
  %v498 = vsel %vm409, %v365, 0
  %v501 = vsel %vm409, %v366, 0
  %v504 = vsel %vm409, %v367, 0
  %v507 = vsel %vm409, %v368, 0
  %v510 = vsel %vm409, %v369, 0
  %v513 = vsel %vm409, %v370, 0
  %v516 = vsel %vm409, %v371, 0
  %v519 = vsel %vm409, %v372, 0
  %v522 = vsel %vm409, %v373, 0
  %v525 = vsel %vm409, %v374, 0
  %v528 = vsel %vm409, %v375, 0
  %v531 = vsel %vm409, %v376, 0
  %v534 = vsel %vm409, %v377, 0
  %v537 = vsel %vm409, %v378, 0
  %v540 = vsel %vm409, %v379, 0
  %v543 = vsel %vm409, %v380, 0
  %v546 = vsel %vm409, %v381, 0
  %v549 = vsel %vm409, %v382, 0
  %v552 = vsel %vm409, %v383, 0
  %v555 = vsel %vm409, %v384, 0
  %v558 = vsel %vm409, %v385, 0
  %vm560 = vcmask 1046528
  %vm561 = vcmask 1047552
  %v562 = vsel %vm560, 4294967295, 65535
  %v563 = vsel %vm561, %v562, 0
  %v565 = vand.u32 %v405, %v563
  %567 = vmatprep.subr.bf16.mxu0 0
  %568 = vmatpush1.bf16.msra.mxu0 0
  %569 = vmatprep.subr.bf16.mxu0 0
  %570 = vmatpush1.bf16.msra.mxu0 0
  %571 = vmatprep.subr.bf16.mxu0 0
  %572 = vmatpush1.bf16.msra.mxu0 0
  %573 = vmatprep.subr.bf16.mxu0 0
  %574 = vmatpush1.bf16.msra.mxu0 0
  %575 = vmatprep.subr.bf16.mxu0 0
  %576 = vmatpush1.bf16.msra.mxu0 %v565
  %577 = vmatprep.subr.bf16.mxu0 0
  %578 = vmatpush1.bf16.msra.mxu0 %v404
  %579 = vmatprep.subr.bf16.mxu0 0
  %580 = vmatpush1.bf16.msra.mxu0 %v403
  %581 = vmatprep.subr.bf16.mxu0 0
  %582 = vmatpush1.bf16.msra.mxu0 %v402
  %583 = vmatprep.subr.bf16.mxu0 0
  %584 = vmatpush2.bf16.msra.mxu0 0
  %585 = vmatprep.subr.bf16.mxu0 0
  %586 = vmatpush2.bf16.msra.mxu0 0
  %587 = vmatprep.subr.bf16.mxu0 0
  %588 = vmatpush2.bf16.msra.mxu0 0
  %589 = vmatprep.subr.bf16.mxu0 0
  %590 = vmatpush2.bf16.msra.mxu0 0
  %591 = vmatprep.subr.bf16.mxu0 0
  %592 = vmatpush2.bf16.msra.mxu0 0
  %593 = vmatprep.subr.bf16.mxu0 0
  %594 = vmatpush2.bf16.msra.mxu0 0
  %595 = vmatprep.subr.bf16.mxu0 0
  %596 = vmatpush2.bf16.msra.mxu0 0
  %597 = vmatprep.subr.bf16.mxu0 0
  %598 = vmatpush2.bf16.msra.mxu0 0
  %599 = vmatprep.mubr.bf16.mxu0 0
  %600 = vmatmul.mubr.bf16.gmra.mxu0 %v411
  %v601 = vpop.f32.mrf.mxu0
  %v602 = vadd.f32 %v134, %v601
  %v603 = vpop.f32.mrf.mxu0
  %v604 = vpop.f32.mrf.mxu0
  %v605 = vadd.f32 %v134, %v604
  %v606 = vpop.f32.mrf.mxu0
  %607 = vmatprep.mubr.bf16.mxu0 0
  %608 = vmatmul.mubr.bf16.gmra.mxu0 %v414
  %v609 = vpop.f32.mrf.mxu0
  %v610 = vadd.f32 %v134, %v609
  %v611 = vpop.f32.mrf.mxu0
  %v612 = vpop.f32.mrf.mxu0
  %v613 = vadd.f32 %v134, %v612
  %v614 = vpop.f32.mrf.mxu0
  %615 = vmatprep.mubr.bf16.mxu0 0
  %616 = vmatmul.mubr.bf16.gmra.mxu0 %v417
  %v617 = vpop.f32.mrf.mxu0
  %v618 = vadd.f32 %v134, %v617
  %v619 = vpop.f32.mrf.mxu0
  %v620 = vpop.f32.mrf.mxu0
  %v621 = vadd.f32 %v134, %v620
  %v622 = vpop.f32.mrf.mxu0
  %623 = vmatprep.mubr.bf16.mxu0 0
  %624 = vmatmul.mubr.bf16.gmra.mxu0 %v420
  %v625 = vpop.f32.mrf.mxu0
  %v626 = vadd.f32 %v134, %v625
  %v627 = vpop.f32.mrf.mxu0
  %v628 = vpop.f32.mrf.mxu0
  %v629 = vadd.f32 %v134, %v628
  %v630 = vpop.f32.mrf.mxu0
  %631 = vmatprep.mubr.bf16.mxu0 0
  %632 = vmatmul.mubr.bf16.gmra.mxu0 %v423
  %v633 = vpop.f32.mrf.mxu0
  %v634 = vadd.f32 %v134, %v633
  %v635 = vpop.f32.mrf.mxu0
  %v636 = vpop.f32.mrf.mxu0
  %v637 = vadd.f32 %v134, %v636
  %v638 = vpop.f32.mrf.mxu0
  %639 = vmatprep.mubr.bf16.mxu0 0
  %640 = vmatmul.mubr.bf16.gmra.mxu0 %v426
  %v641 = vpop.f32.mrf.mxu0
  %v642 = vadd.f32 %v134, %v641
  %v643 = vpop.f32.mrf.mxu0
  %v644 = vpop.f32.mrf.mxu0
  %v645 = vadd.f32 %v134, %v644
  %v646 = vpop.f32.mrf.mxu0
  %647 = vmatprep.mubr.bf16.mxu0 0
  %648 = vmatmul.mubr.bf16.gmra.mxu0 %v429
  %v649 = vpop.f32.mrf.mxu0
  %v650 = vadd.f32 %v134, %v649
  %v651 = vpop.f32.mrf.mxu0
  %v652 = vpop.f32.mrf.mxu0
  %v653 = vadd.f32 %v134, %v652
  %v654 = vpop.f32.mrf.mxu0
  %655 = vmatprep.mubr.bf16.mxu0 0
  %656 = vmatmul.mubr.bf16.gmra.mxu0 %v432
  %v657 = vpop.f32.mrf.mxu0
  %v658 = vadd.f32 %v134, %v657
  %v659 = vpop.f32.mrf.mxu0
  %v660 = vpop.f32.mrf.mxu0
  %v661 = vadd.f32 %v134, %v660
  %v662 = vpop.f32.mrf.mxu0
  %663 = vmatprep.mubr.bf16.mxu0 0
  %664 = vmatmul.mubr.bf16.gmra.mxu0 %v435
  %v665 = vpop.f32.mrf.mxu0
  %v666 = vadd.f32 %v134, %v665
  %v667 = vpop.f32.mrf.mxu0
  %v668 = vpop.f32.mrf.mxu0
  %v669 = vadd.f32 %v134, %v668
  %v670 = vpop.f32.mrf.mxu0
  %671 = vmatprep.mubr.bf16.mxu0 0
  %672 = vmatmul.mubr.bf16.gmra.mxu0 %v438
  %v673 = vpop.f32.mrf.mxu0
  %v674 = vadd.f32 %v134, %v673
  %v675 = vpop.f32.mrf.mxu0
  %v676 = vpop.f32.mrf.mxu0
  %v677 = vadd.f32 %v134, %v676
  %v678 = vpop.f32.mrf.mxu0
  %679 = vmatprep.mubr.bf16.mxu0 0
  %680 = vmatmul.mubr.bf16.gmra.mxu0 %v441
  %v681 = vpop.f32.mrf.mxu0
  %v682 = vadd.f32 %v134, %v681
  %v683 = vpop.f32.mrf.mxu0
  %v684 = vpop.f32.mrf.mxu0
  %v685 = vadd.f32 %v134, %v684
  %v686 = vpop.f32.mrf.mxu0
  %687 = vmatprep.mubr.bf16.mxu0 0
  %688 = vmatmul.mubr.bf16.gmra.mxu0 %v444
  %v689 = vpop.f32.mrf.mxu0
  %v690 = vadd.f32 %v134, %v689
  %v691 = vpop.f32.mrf.mxu0
  %v692 = vpop.f32.mrf.mxu0
  %v693 = vadd.f32 %v134, %v692
  %v694 = vpop.f32.mrf.mxu0
  %695 = vmatprep.mubr.bf16.mxu0 0
  %696 = vmatmul.mubr.bf16.gmra.mxu0 %v447
  %v697 = vpop.f32.mrf.mxu0
  %v698 = vadd.f32 %v134, %v697
  %v699 = vpop.f32.mrf.mxu0
  %v700 = vpop.f32.mrf.mxu0
  %v701 = vadd.f32 %v134, %v700
  %v702 = vpop.f32.mrf.mxu0
  %703 = vmatprep.mubr.bf16.mxu0 0
  %704 = vmatmul.mubr.bf16.gmra.mxu0 %v450
  %v705 = vpop.f32.mrf.mxu0
  %v706 = vadd.f32 %v134, %v705
  %v707 = vpop.f32.mrf.mxu0
  %v708 = vpop.f32.mrf.mxu0
  %v709 = vadd.f32 %v134, %v708
  %v710 = vpop.f32.mrf.mxu0
  %711 = vmatprep.mubr.bf16.mxu0 0
  %712 = vmatmul.mubr.bf16.gmra.mxu0 %v453
  %v713 = vpop.f32.mrf.mxu0
  %v714 = vadd.f32 %v134, %v713
  %v715 = vpop.f32.mrf.mxu0
  %v716 = vpop.f32.mrf.mxu0
  %v717 = vadd.f32 %v134, %v716
  %v718 = vpop.f32.mrf.mxu0
  %719 = vmatprep.mubr.bf16.mxu0 0
  %720 = vmatmul.mubr.bf16.gmra.mxu0 %v456
  %v721 = vpop.f32.mrf.mxu0
  %v722 = vadd.f32 %v134, %v721
  %v723 = vpop.f32.mrf.mxu0
  %v724 = vpop.f32.mrf.mxu0
  %v725 = vadd.f32 %v134, %v724
  %v726 = vpop.f32.mrf.mxu0
  %727 = vmatprep.mubr.bf16.mxu0 0
  %728 = vmatmul.mubr.bf16.gmra.mxu0 %v459
  %v729 = vpop.f32.mrf.mxu0
  %v730 = vadd.f32 %v134, %v729
  %v731 = vpop.f32.mrf.mxu0
  %v732 = vpop.f32.mrf.mxu0
  %v733 = vadd.f32 %v134, %v732
  %v734 = vpop.f32.mrf.mxu0
  %735 = vmatprep.mubr.bf16.mxu0 0
  %736 = vmatmul.mubr.bf16.gmra.mxu0 %v462
  %v737 = vpop.f32.mrf.mxu0
  %v738 = vadd.f32 %v134, %v737
  %v739 = vpop.f32.mrf.mxu0
  %v740 = vpop.f32.mrf.mxu0
  %v741 = vadd.f32 %v134, %v740
  %v742 = vpop.f32.mrf.mxu0
  %743 = vmatprep.mubr.bf16.mxu0 0
  %744 = vmatmul.mubr.bf16.gmra.mxu0 %v465
  %v745 = vpop.f32.mrf.mxu0
  %v746 = vadd.f32 %v134, %v745
  %v747 = vpop.f32.mrf.mxu0
  %v748 = vpop.f32.mrf.mxu0
  %v749 = vadd.f32 %v134, %v748
  %v750 = vpop.f32.mrf.mxu0
  %751 = vmatprep.mubr.bf16.mxu0 0
  %752 = vmatmul.mubr.bf16.gmra.mxu0 %v468
  %v753 = vpop.f32.mrf.mxu0
  %v754 = vadd.f32 %v134, %v753
  %v755 = vpop.f32.mrf.mxu0
  %v756 = vpop.f32.mrf.mxu0
  %v757 = vadd.f32 %v134, %v756
  %v758 = vpop.f32.mrf.mxu0
  %759 = vmatprep.mubr.bf16.mxu0 0
  %760 = vmatmul.mubr.bf16.gmra.mxu0 %v471
  %v761 = vpop.f32.mrf.mxu0
  %v762 = vadd.f32 %v134, %v761
  %v763 = vpop.f32.mrf.mxu0
  %v764 = vpop.f32.mrf.mxu0
  %v765 = vadd.f32 %v134, %v764
  %v766 = vpop.f32.mrf.mxu0
  %767 = vmatprep.mubr.bf16.mxu0 0
  %768 = vmatmul.mubr.bf16.gmra.mxu0 %v474
  %v769 = vpop.f32.mrf.mxu0
  %v770 = vadd.f32 %v134, %v769
  %v771 = vpop.f32.mrf.mxu0
  %v772 = vpop.f32.mrf.mxu0
  %v773 = vadd.f32 %v134, %v772
  %v774 = vpop.f32.mrf.mxu0
  %775 = vmatprep.mubr.bf16.mxu0 0
  %776 = vmatmul.mubr.bf16.gmra.mxu0 %v477
  %v777 = vpop.f32.mrf.mxu0
  %v778 = vadd.f32 %v134, %v777
  %v779 = vpop.f32.mrf.mxu0
  %v780 = vpop.f32.mrf.mxu0
  %v781 = vadd.f32 %v134, %v780
  %v782 = vpop.f32.mrf.mxu0
  %783 = vmatprep.mubr.bf16.mxu0 0
  %784 = vmatmul.mubr.bf16.gmra.mxu0 %v480
  %v785 = vpop.f32.mrf.mxu0
  %v786 = vadd.f32 %v134, %v785
  %v787 = vpop.f32.mrf.mxu0
  %v788 = vpop.f32.mrf.mxu0
  %v789 = vadd.f32 %v134, %v788
  %v790 = vpop.f32.mrf.mxu0
  %791 = vmatprep.mubr.bf16.mxu0 0
  %792 = vmatmul.mubr.bf16.gmra.mxu0 %v483
  %v793 = vpop.f32.mrf.mxu0
  %v794 = vadd.f32 %v134, %v793
  %v795 = vpop.f32.mrf.mxu0
  %v796 = vpop.f32.mrf.mxu0
  %v797 = vadd.f32 %v134, %v796
  %v798 = vpop.f32.mrf.mxu0
  %799 = vmatprep.mubr.bf16.mxu0 0
  %800 = vmatmul.mubr.bf16.gmra.mxu0 %v486
  %v801 = vpop.f32.mrf.mxu0
  %v802 = vadd.f32 %v134, %v801
  %v803 = vpop.f32.mrf.mxu0
  %v804 = vpop.f32.mrf.mxu0
  %v805 = vadd.f32 %v134, %v804
  %v806 = vpop.f32.mrf.mxu0
  %807 = vmatprep.mubr.bf16.mxu0 0
  %808 = vmatmul.mubr.bf16.gmra.mxu0 %v489
  %v809 = vpop.f32.mrf.mxu0
  %v810 = vadd.f32 %v134, %v809
  %v811 = vpop.f32.mrf.mxu0
  %v812 = vpop.f32.mrf.mxu0
  %v813 = vadd.f32 %v134, %v812
  %v814 = vpop.f32.mrf.mxu0
  %815 = vmatprep.mubr.bf16.mxu0 0
  %816 = vmatmul.mubr.bf16.gmra.mxu0 %v492
  %v817 = vpop.f32.mrf.mxu0
  %v818 = vadd.f32 %v134, %v817
  %v819 = vpop.f32.mrf.mxu0
  %v820 = vpop.f32.mrf.mxu0
  %v821 = vadd.f32 %v134, %v820
  %v822 = vpop.f32.mrf.mxu0
  %823 = vmatprep.mubr.bf16.mxu0 0
  %824 = vmatmul.mubr.bf16.gmra.mxu0 %v495
  %v825 = vpop.f32.mrf.mxu0
  %v826 = vadd.f32 %v134, %v825
  %v827 = vpop.f32.mrf.mxu0
  %v828 = vpop.f32.mrf.mxu0
  %v829 = vadd.f32 %v134, %v828
  %v830 = vpop.f32.mrf.mxu0
  %831 = vmatprep.mubr.bf16.mxu0 0
  %832 = vmatmul.mubr.bf16.gmra.mxu0 %v498
  %v833 = vpop.f32.mrf.mxu0
  %v834 = vadd.f32 %v134, %v833
  %v835 = vpop.f32.mrf.mxu0
  %v836 = vpop.f32.mrf.mxu0
  %v837 = vadd.f32 %v134, %v836
  %v838 = vpop.f32.mrf.mxu0
  %839 = vmatprep.mubr.bf16.mxu0 0
  %840 = vmatmul.mubr.bf16.gmra.mxu0 %v501
  %v841 = vpop.f32.mrf.mxu0
  %v842 = vadd.f32 %v134, %v841
  %v843 = vpop.f32.mrf.mxu0
  %v844 = vpop.f32.mrf.mxu0
  %v845 = vadd.f32 %v134, %v844
  %v846 = vpop.f32.mrf.mxu0
  %847 = vmatprep.mubr.bf16.mxu0 0
  %848 = vmatmul.mubr.bf16.gmra.mxu0 %v504
  %v849 = vpop.f32.mrf.mxu0
  %v850 = vadd.f32 %v134, %v849
  %v851 = vpop.f32.mrf.mxu0
  %v852 = vpop.f32.mrf.mxu0
  %v853 = vadd.f32 %v134, %v852
  %v854 = vpop.f32.mrf.mxu0
  %855 = vmatprep.mubr.bf16.mxu0 0
  %856 = vmatmul.mubr.bf16.gmra.mxu0 %v507
  %v857 = vpop.f32.mrf.mxu0
  %v858 = vadd.f32 %v134, %v857
  %v859 = vpop.f32.mrf.mxu0
  %v860 = vpop.f32.mrf.mxu0
  %v861 = vadd.f32 %v134, %v860
  %v862 = vpop.f32.mrf.mxu0
  %863 = vmatprep.mubr.bf16.mxu0 0
  %864 = vmatmul.mubr.bf16.gmra.mxu0 %v510
  %v865 = vpop.f32.mrf.mxu0
  %v866 = vadd.f32 %v134, %v865
  %v867 = vpop.f32.mrf.mxu0
  %v868 = vpop.f32.mrf.mxu0
  %v869 = vadd.f32 %v134, %v868
  %v870 = vpop.f32.mrf.mxu0
  %871 = vmatprep.mubr.bf16.mxu0 0
  %872 = vmatmul.mubr.bf16.gmra.mxu0 %v513
  %v873 = vpop.f32.mrf.mxu0
  %v874 = vadd.f32 %v134, %v873
  %v875 = vpop.f32.mrf.mxu0
  %v876 = vpop.f32.mrf.mxu0
  %v877 = vadd.f32 %v134, %v876
  %v878 = vpop.f32.mrf.mxu0
  %879 = vmatprep.mubr.bf16.mxu0 0
  %880 = vmatmul.mubr.bf16.gmra.mxu0 %v516
  %v881 = vpop.f32.mrf.mxu0
  %v882 = vadd.f32 %v134, %v881
  %v883 = vpop.f32.mrf.mxu0
  %v884 = vpop.f32.mrf.mxu0
  %v885 = vadd.f32 %v134, %v884
  %v886 = vpop.f32.mrf.mxu0
  %887 = vmatprep.mubr.bf16.mxu0 0
  %888 = vmatmul.mubr.bf16.gmra.mxu0 %v519
  %v889 = vpop.f32.mrf.mxu0
  %v890 = vadd.f32 %v134, %v889
  %v891 = vpop.f32.mrf.mxu0
  %v892 = vpop.f32.mrf.mxu0
  %v893 = vadd.f32 %v134, %v892
  %v894 = vpop.f32.mrf.mxu0
  %895 = vmatprep.mubr.bf16.mxu0 0
  %896 = vmatmul.mubr.bf16.gmra.mxu0 %v522
  %v897 = vpop.f32.mrf.mxu0
  %v898 = vadd.f32 %v134, %v897
  %v899 = vpop.f32.mrf.mxu0
  %v900 = vpop.f32.mrf.mxu0
  %v901 = vadd.f32 %v134, %v900
  %v902 = vpop.f32.mrf.mxu0
  %903 = vmatprep.mubr.bf16.mxu0 0
  %904 = vmatmul.mubr.bf16.gmra.mxu0 %v525
  %v905 = vpop.f32.mrf.mxu0
  %v906 = vadd.f32 %v134, %v905
  %v907 = vpop.f32.mrf.mxu0
  %v908 = vpop.f32.mrf.mxu0
  %v909 = vadd.f32 %v134, %v908
  %v910 = vpop.f32.mrf.mxu0
  %911 = vmatprep.mubr.bf16.mxu0 0
  %912 = vmatmul.mubr.bf16.gmra.mxu0 %v528
  %v913 = vpop.f32.mrf.mxu0
  %v914 = vadd.f32 %v134, %v913
  %v915 = vpop.f32.mrf.mxu0
  %v916 = vpop.f32.mrf.mxu0
  %v917 = vadd.f32 %v134, %v916
  %v918 = vpop.f32.mrf.mxu0
  %919 = vmatprep.mubr.bf16.mxu0 0
  %920 = vmatmul.mubr.bf16.gmra.mxu0 %v531
  %v921 = vpop.f32.mrf.mxu0
  %v922 = vadd.f32 %v134, %v921
  %v923 = vpop.f32.mrf.mxu0
  %v924 = vpop.f32.mrf.mxu0
  %v925 = vadd.f32 %v134, %v924
  %v926 = vpop.f32.mrf.mxu0
  %927 = vmatprep.mubr.bf16.mxu0 0
  %928 = vmatmul.mubr.bf16.gmra.mxu0 %v534
  %v929 = vpop.f32.mrf.mxu0
  %v930 = vadd.f32 %v134, %v929
  %v931 = vpop.f32.mrf.mxu0
  %v932 = vpop.f32.mrf.mxu0
  %v933 = vadd.f32 %v134, %v932
  %v934 = vpop.f32.mrf.mxu0
  %935 = vmatprep.mubr.bf16.mxu0 0
  %936 = vmatmul.mubr.bf16.gmra.mxu0 %v537
  %v937 = vpop.f32.mrf.mxu0
  %v938 = vadd.f32 %v134, %v937
  %v939 = vpop.f32.mrf.mxu0
  %v940 = vpop.f32.mrf.mxu0
  %v941 = vadd.f32 %v134, %v940
  %v942 = vpop.f32.mrf.mxu0
  %943 = vmatprep.mubr.bf16.mxu0 0
  %944 = vmatmul.mubr.bf16.gmra.mxu0 %v540
  %v945 = vpop.f32.mrf.mxu0
  %v946 = vadd.f32 %v134, %v945
  %v947 = vpop.f32.mrf.mxu0
  %v948 = vpop.f32.mrf.mxu0
  %v949 = vadd.f32 %v134, %v948
  %v950 = vpop.f32.mrf.mxu0
  %951 = vmatprep.mubr.bf16.mxu0 0
  %952 = vmatmul.mubr.bf16.gmra.mxu0 %v543
  %v953 = vpop.f32.mrf.mxu0
  %v954 = vadd.f32 %v134, %v953
  %v955 = vpop.f32.mrf.mxu0
  %v956 = vpop.f32.mrf.mxu0
  %v957 = vadd.f32 %v134, %v956
  %v958 = vpop.f32.mrf.mxu0
  %959 = vmatprep.mubr.bf16.mxu0 0
  %960 = vmatmul.mubr.bf16.gmra.mxu0 %v546
  %v961 = vpop.f32.mrf.mxu0
  %v962 = vadd.f32 %v134, %v961
  %v963 = vpop.f32.mrf.mxu0
  %v964 = vpop.f32.mrf.mxu0
  %v965 = vadd.f32 %v134, %v964
  %v966 = vpop.f32.mrf.mxu0
  %967 = vmatprep.mubr.bf16.mxu0 0
  %968 = vmatmul.mubr.bf16.gmra.mxu0 %v549
  %v969 = vpop.f32.mrf.mxu0
  %v970 = vadd.f32 %v134, %v969
  %v971 = vpop.f32.mrf.mxu0
  %v972 = vpop.f32.mrf.mxu0
  %v973 = vadd.f32 %v134, %v972
  %v974 = vpop.f32.mrf.mxu0
  %975 = vmatprep.mubr.bf16.mxu0 0
  %976 = vmatmul.mubr.bf16.gmra.mxu0 %v552
  %v977 = vpop.f32.mrf.mxu0
  %v978 = vadd.f32 %v134, %v977
  %v979 = vpop.f32.mrf.mxu0
  %v980 = vpop.f32.mrf.mxu0
  %v981 = vadd.f32 %v134, %v980
  %v982 = vpop.f32.mrf.mxu0
  %983 = vmatprep.mubr.bf16.mxu0 0
  %984 = vmatmul.mubr.bf16.gmra.mxu0 %v555
  %v985 = vpop.f32.mrf.mxu0
  %v986 = vadd.f32 %v134, %v985
  %v987 = vpop.f32.mrf.mxu0
  %v988 = vpop.f32.mrf.mxu0
  %v989 = vadd.f32 %v134, %v988
  %v990 = vpop.f32.mrf.mxu0
  %991 = vmatprep.mubr.bf16.mxu0 0
  %992 = vmatmul.mubr.bf16.gmra.mxu0 %v558
  %v993 = vpop.f32.mrf.mxu0
  %v994 = vadd.f32 %v134, %v993
  %v995 = vpop.f32.mrf.mxu0
  %v996 = vpop.f32.mrf.mxu0
  %v997 = vadd.f32 %v134, %v996
  %v998 = vpop.f32.mrf.mxu0
  %999 = vdwg.mxu0
  %v1000 = vadd.f32 %v602, %v605
  %v1001 = vadd.f32 %v1000, %v610
  %v1002 = vadd.f32 %v1001, %v613
  %v1003 = vadd.f32 %v1002, %v618
  %v1004 = vadd.f32 %v1003, %v621
  %v1005 = vadd.f32 %v1004, %v626
  %v1006 = vadd.f32 %v1005, %v629
  %v1007 = vadd.f32 %v1006, %v634
  %v1008 = vadd.f32 %v1007, %v637
  %v1009 = vadd.f32 %v1008, %v642
  %v1010 = vadd.f32 %v1009, %v645
  %v1011 = vadd.f32 %v1010, %v650
  %v1012 = vadd.f32 %v1011, %v653
  %v1013 = vadd.f32 %v1012, %v658
  %v1014 = vadd.f32 %v1013, %v661
  %v1015 = vadd.f32 %v1014, %v666
  %v1016 = vadd.f32 %v1015, %v669
  %v1017 = vadd.f32 %v1016, %v674
  %v1018 = vadd.f32 %v1017, %v677
  %v1019 = vadd.f32 %v1018, %v682
  %v1020 = vadd.f32 %v1019, %v685
  %v1021 = vadd.f32 %v1020, %v690
  %v1022 = vadd.f32 %v1021, %v693
  %v1023 = vadd.f32 %v1022, %v698
  %v1024 = vadd.f32 %v1023, %v701
  %v1025 = vadd.f32 %v1024, %v706
  %v1026 = vadd.f32 %v1025, %v709
  %v1027 = vadd.f32 %v1026, %v714
  %v1028 = vadd.f32 %v1027, %v717
  %v1029 = vadd.f32 %v1028, %v722
  %v1030 = vadd.f32 %v1029, %v725
  %v1031 = vadd.f32 %v1030, %v730
  %v1032 = vadd.f32 %v1031, %v733
  %v1033 = vadd.f32 %v1032, %v738
  %v1034 = vadd.f32 %v1033, %v741
  %v1035 = vadd.f32 %v1034, %v746
  %v1036 = vadd.f32 %v1035, %v749
  %v1037 = vadd.f32 %v1036, %v754
  %v1038 = vadd.f32 %v1037, %v757
  %v1039 = vadd.f32 %v1038, %v762
  %v1040 = vadd.f32 %v1039, %v765
  %v1041 = vadd.f32 %v1040, %v770
  %v1042 = vadd.f32 %v1041, %v773
  %v1043 = vadd.f32 %v1042, %v778
  %v1044 = vadd.f32 %v1043, %v781
  %v1045 = vadd.f32 %v1044, %v786
  %v1046 = vadd.f32 %v1045, %v789
  %v1047 = vadd.f32 %v1046, %v794
  %v1048 = vadd.f32 %v1047, %v797
  %v1049 = vadd.f32 %v1048, %v802
  %v1050 = vadd.f32 %v1049, %v805
  %v1051 = vadd.f32 %v1050, %v810
  %v1052 = vadd.f32 %v1051, %v813
  %v1053 = vadd.f32 %v1052, %v818
  %v1054 = vadd.f32 %v1053, %v821
  %v1055 = vadd.f32 %v1054, %v826
  %v1056 = vadd.f32 %v1055, %v829
  %v1057 = vadd.f32 %v1056, %v834
  %v1058 = vadd.f32 %v1057, %v837
  %v1059 = vadd.f32 %v1058, %v842
  %v1060 = vadd.f32 %v1059, %v845
  %v1061 = vadd.f32 %v1060, %v850
  %v1062 = vadd.f32 %v1061, %v853
  %v1063 = vadd.f32 %v1062, %v858
  %v1064 = vadd.f32 %v1063, %v861
  %v1065 = vadd.f32 %v1064, %v866
  %v1066 = vadd.f32 %v1065, %v869
  %v1067 = vadd.f32 %v1066, %v874
  %v1068 = vadd.f32 %v1067, %v877
  %v1069 = vadd.f32 %v1068, %v882
  %v1070 = vadd.f32 %v1069, %v885
  %v1071 = vadd.f32 %v1070, %v890
  %v1072 = vadd.f32 %v1071, %v893
  %v1073 = vadd.f32 %v1072, %v898
  %v1074 = vadd.f32 %v1073, %v901
  %v1075 = vadd.f32 %v1074, %v906
  %v1076 = vadd.f32 %v1075, %v909
  %v1077 = vadd.f32 %v1076, %v914
  %v1078 = vadd.f32 %v1077, %v917
  %v1079 = vadd.f32 %v1078, %v922
  %v1080 = vadd.f32 %v1079, %v925
  %v1081 = vadd.f32 %v1080, %v930
  %v1082 = vadd.f32 %v1081, %v933
  %v1083 = vadd.f32 %v1082, %v938
  %v1084 = vadd.f32 %v1083, %v941
  %v1085 = vadd.f32 %v1084, %v946
  %v1086 = vadd.f32 %v1085, %v949
  %v1087 = vadd.f32 %v1086, %v954
  %v1088 = vadd.f32 %v1087, %v957
  %v1089 = vadd.f32 %v1088, %v962
  %v1090 = vadd.f32 %v1089, %v965
  %v1091 = vadd.f32 %v1090, %v970
  %v1092 = vadd.f32 %v1091, %v973
  %v1093 = vadd.f32 %v1092, %v978
  %v1094 = vadd.f32 %v1093, %v981
  %v1095 = vadd.f32 %v1094, %v986
  %v1096 = vadd.f32 %v1095, %v989
  %v1097 = vadd.f32 %v1096, %v994
  %v1098 = vadd.f32 %v1097, %v997
  %v1099 = vrot.slane %v1098, 4
  %v1100 = vadd.f32 %v1098, %v1099
  %v1101 = vrot.slane %v1100, 2
  %v1102 = vadd.f32 %v1100, %v1101
  %v1103 = vrot.slane %v1102, 1
  %v1104 = vadd.f32 %v1102, %v1103
  %v1105 = vrcp.pop 800.0
  %v1106 = vmul.f32 %v1104, %v1105
  %v1107 = vsub.f32 %v602, %v1106
  %v1108 = vsub.f32 %v605, %v1106
  %v1109 = vsub.f32 %v610, %v1106
  %v1110 = vsub.f32 %v613, %v1106
  %v1111 = vsub.f32 %v618, %v1106
  %v1112 = vsub.f32 %v621, %v1106
  %v1113 = vsub.f32 %v626, %v1106
  %v1114 = vsub.f32 %v629, %v1106
  %v1115 = vsub.f32 %v634, %v1106
  %v1116 = vsub.f32 %v637, %v1106
  %v1117 = vsub.f32 %v642, %v1106
  %v1118 = vsub.f32 %v645, %v1106
  %v1119 = vsub.f32 %v650, %v1106
  %v1120 = vsub.f32 %v653, %v1106
  %v1121 = vsub.f32 %v658, %v1106
  %v1122 = vsub.f32 %v661, %v1106
  %v1123 = vsub.f32 %v666, %v1106
  %v1124 = vsub.f32 %v669, %v1106
  %v1125 = vsub.f32 %v674, %v1106
  %v1126 = vsub.f32 %v677, %v1106
  %v1127 = vsub.f32 %v682, %v1106
  %v1128 = vsub.f32 %v685, %v1106
  %v1129 = vsub.f32 %v690, %v1106
  %v1130 = vsub.f32 %v693, %v1106
  %v1131 = vsub.f32 %v698, %v1106
  %v1132 = vsub.f32 %v701, %v1106
  %v1133 = vsub.f32 %v706, %v1106
  %v1134 = vsub.f32 %v709, %v1106
  %v1135 = vsub.f32 %v714, %v1106
  %v1136 = vsub.f32 %v717, %v1106
  %v1137 = vsub.f32 %v722, %v1106
  %v1138 = vsub.f32 %v725, %v1106
  %v1139 = vsub.f32 %v730, %v1106
  %v1140 = vsub.f32 %v733, %v1106
  %v1141 = vsub.f32 %v738, %v1106
  %v1142 = vsub.f32 %v741, %v1106
  %v1143 = vsub.f32 %v746, %v1106
  %v1144 = vsub.f32 %v749, %v1106
  %v1145 = vsub.f32 %v754, %v1106
  %v1146 = vsub.f32 %v757, %v1106
  %v1147 = vsub.f32 %v762, %v1106
  %v1148 = vsub.f32 %v765, %v1106
  %v1149 = vsub.f32 %v770, %v1106
  %v1150 = vsub.f32 %v773, %v1106
  %v1151 = vsub.f32 %v778, %v1106
  %v1152 = vsub.f32 %v781, %v1106
  %v1153 = vsub.f32 %v786, %v1106
  %v1154 = vsub.f32 %v789, %v1106
  %v1155 = vsub.f32 %v794, %v1106
  %v1156 = vsub.f32 %v797, %v1106
  %v1157 = vsub.f32 %v802, %v1106
  %v1158 = vsub.f32 %v805, %v1106
  %v1159 = vsub.f32 %v810, %v1106
  %v1160 = vsub.f32 %v813, %v1106
  %v1161 = vsub.f32 %v818, %v1106
  %v1162 = vsub.f32 %v821, %v1106
  %v1163 = vsub.f32 %v826, %v1106
  %v1164 = vsub.f32 %v829, %v1106
  %v1165 = vsub.f32 %v834, %v1106
  %v1166 = vsub.f32 %v837, %v1106
  %v1167 = vsub.f32 %v842, %v1106
  %v1168 = vsub.f32 %v845, %v1106
  %v1169 = vsub.f32 %v850, %v1106
  %v1170 = vsub.f32 %v853, %v1106
  %v1171 = vsub.f32 %v858, %v1106
  %v1172 = vsub.f32 %v861, %v1106
  %v1173 = vsub.f32 %v866, %v1106
  %v1174 = vsub.f32 %v869, %v1106
  %v1175 = vsub.f32 %v874, %v1106
  %v1176 = vsub.f32 %v877, %v1106
  %v1177 = vsub.f32 %v882, %v1106
  %v1178 = vsub.f32 %v885, %v1106
  %v1179 = vsub.f32 %v890, %v1106
  %v1180 = vsub.f32 %v893, %v1106
  %v1181 = vsub.f32 %v898, %v1106
  %v1182 = vsub.f32 %v901, %v1106
  %v1183 = vsub.f32 %v906, %v1106
  %v1184 = vsub.f32 %v909, %v1106
  %v1185 = vsub.f32 %v914, %v1106
  %v1186 = vsub.f32 %v917, %v1106
  %v1187 = vsub.f32 %v922, %v1106
  %v1188 = vsub.f32 %v925, %v1106
  %v1189 = vsub.f32 %v930, %v1106
  %v1190 = vsub.f32 %v933, %v1106
  %v1191 = vsub.f32 %v938, %v1106
  %v1192 = vsub.f32 %v941, %v1106
  %v1193 = vsub.f32 %v946, %v1106
  %v1194 = vsub.f32 %v949, %v1106
  %v1195 = vsub.f32 %v954, %v1106
  %v1196 = vsub.f32 %v957, %v1106
  %v1197 = vsub.f32 %v962, %v1106
  %v1198 = vsub.f32 %v965, %v1106
  %v1199 = vsub.f32 %v970, %v1106
  %v1200 = vsub.f32 %v973, %v1106
  %v1201 = vsub.f32 %v978, %v1106
  %v1202 = vsub.f32 %v981, %v1106
  %v1203 = vsub.f32 %v986, %v1106
  %v1204 = vsub.f32 %v989, %v1106
  %v1205 = vsub.f32 %v994, %v1106
  %v1206 = vsub.f32 %v997, %v1106
  %v1207 = vmul.f32 %v1107, %v1107
  %v1208 = vmul.f32 %v1108, %v1108
  %v1209 = vmul.f32 %v1109, %v1109
  %v1210 = vmul.f32 %v1110, %v1110
  %v1211 = vmul.f32 %v1111, %v1111
  %v1212 = vmul.f32 %v1112, %v1112
  %v1213 = vmul.f32 %v1113, %v1113
  %v1214 = vmul.f32 %v1114, %v1114
  %v1215 = vmul.f32 %v1115, %v1115
  %v1216 = vmul.f32 %v1116, %v1116
  %v1217 = vmul.f32 %v1117, %v1117
  %v1218 = vmul.f32 %v1118, %v1118
  %v1219 = vmul.f32 %v1119, %v1119
  %v1220 = vmul.f32 %v1120, %v1120
  %v1221 = vmul.f32 %v1121, %v1121
  %v1222 = vmul.f32 %v1122, %v1122
  %v1223 = vmul.f32 %v1123, %v1123
  %v1224 = vmul.f32 %v1124, %v1124
  %v1225 = vmul.f32 %v1125, %v1125
  %v1226 = vmul.f32 %v1126, %v1126
  %v1227 = vmul.f32 %v1127, %v1127
  %v1228 = vmul.f32 %v1128, %v1128
  %v1229 = vmul.f32 %v1129, %v1129
  %v1230 = vmul.f32 %v1130, %v1130
  %v1231 = vmul.f32 %v1131, %v1131
  %v1232 = vmul.f32 %v1132, %v1132
  %v1233 = vmul.f32 %v1133, %v1133
  %v1234 = vmul.f32 %v1134, %v1134
  %v1235 = vmul.f32 %v1135, %v1135
  %v1236 = vmul.f32 %v1136, %v1136
  %v1237 = vmul.f32 %v1137, %v1137
  %v1238 = vmul.f32 %v1138, %v1138
  %v1239 = vmul.f32 %v1139, %v1139
  %v1240 = vmul.f32 %v1140, %v1140
  %v1241 = vmul.f32 %v1141, %v1141
  %v1242 = vmul.f32 %v1142, %v1142
  %v1243 = vmul.f32 %v1143, %v1143
  %v1244 = vmul.f32 %v1144, %v1144
  %v1245 = vmul.f32 %v1145, %v1145
  %v1246 = vmul.f32 %v1146, %v1146
  %v1247 = vmul.f32 %v1147, %v1147
  %v1248 = vmul.f32 %v1148, %v1148
  %v1249 = vmul.f32 %v1149, %v1149
  %v1250 = vmul.f32 %v1150, %v1150
  %v1251 = vmul.f32 %v1151, %v1151
  %v1252 = vmul.f32 %v1152, %v1152
  %v1253 = vmul.f32 %v1153, %v1153
  %v1254 = vmul.f32 %v1154, %v1154
  %v1255 = vmul.f32 %v1155, %v1155
  %v1256 = vmul.f32 %v1156, %v1156
  %v1257 = vmul.f32 %v1157, %v1157
  %v1258 = vmul.f32 %v1158, %v1158
  %v1259 = vmul.f32 %v1159, %v1159
  %v1260 = vmul.f32 %v1160, %v1160
  %v1261 = vmul.f32 %v1161, %v1161
  %v1262 = vmul.f32 %v1162, %v1162
  %v1263 = vmul.f32 %v1163, %v1163
  %v1264 = vmul.f32 %v1164, %v1164
  %v1265 = vmul.f32 %v1165, %v1165
  %v1266 = vmul.f32 %v1166, %v1166
  %v1267 = vmul.f32 %v1167, %v1167
  %v1268 = vmul.f32 %v1168, %v1168
  %v1269 = vmul.f32 %v1169, %v1169
  %v1270 = vmul.f32 %v1170, %v1170
  %v1271 = vmul.f32 %v1171, %v1171
  %v1272 = vmul.f32 %v1172, %v1172
  %v1273 = vmul.f32 %v1173, %v1173
  %v1274 = vmul.f32 %v1174, %v1174
  %v1275 = vmul.f32 %v1175, %v1175
  %v1276 = vmul.f32 %v1176, %v1176
  %v1277 = vmul.f32 %v1177, %v1177
  %v1278 = vmul.f32 %v1178, %v1178
  %v1279 = vmul.f32 %v1179, %v1179
  %v1280 = vmul.f32 %v1180, %v1180
  %v1281 = vmul.f32 %v1181, %v1181
  %v1282 = vmul.f32 %v1182, %v1182
  %v1283 = vmul.f32 %v1183, %v1183
  %v1284 = vmul.f32 %v1184, %v1184
  %v1285 = vmul.f32 %v1185, %v1185
  %v1286 = vmul.f32 %v1186, %v1186
  %v1287 = vmul.f32 %v1187, %v1187
  %v1288 = vmul.f32 %v1188, %v1188
  %v1289 = vmul.f32 %v1189, %v1189
  %v1290 = vmul.f32 %v1190, %v1190
  %v1291 = vmul.f32 %v1191, %v1191
  %v1292 = vmul.f32 %v1192, %v1192
  %v1293 = vmul.f32 %v1193, %v1193
  %v1294 = vmul.f32 %v1194, %v1194
  %v1295 = vmul.f32 %v1195, %v1195
  %v1296 = vmul.f32 %v1196, %v1196
  %v1297 = vmul.f32 %v1197, %v1197
  %v1298 = vmul.f32 %v1198, %v1198
  %v1299 = vmul.f32 %v1199, %v1199
  %v1300 = vmul.f32 %v1200, %v1200
  %v1301 = vmul.f32 %v1201, %v1201
  %v1302 = vmul.f32 %v1202, %v1202
  %v1303 = vmul.f32 %v1203, %v1203
  %v1304 = vmul.f32 %v1204, %v1204
  %v1305 = vmul.f32 %v1205, %v1205
  %v1306 = vmul.f32 %v1206, %v1206
  %v1307 = vadd.f32 %v1207, %v1208
  %v1308 = vadd.f32 %v1307, %v1209
  %v1309 = vadd.f32 %v1308, %v1210
  %v1310 = vadd.f32 %v1309, %v1211
  %v1311 = vadd.f32 %v1310, %v1212
  %v1312 = vadd.f32 %v1311, %v1213
  %v1313 = vadd.f32 %v1312, %v1214
  %v1314 = vadd.f32 %v1313, %v1215
  %v1315 = vadd.f32 %v1314, %v1216
  %v1316 = vadd.f32 %v1315, %v1217
  %v1317 = vadd.f32 %v1316, %v1218
  %v1318 = vadd.f32 %v1317, %v1219
  %v1319 = vadd.f32 %v1318, %v1220
  %v1320 = vadd.f32 %v1319, %v1221
  %v1321 = vadd.f32 %v1320, %v1222
  %v1322 = vadd.f32 %v1321, %v1223
  %v1323 = vadd.f32 %v1322, %v1224
  %v1324 = vadd.f32 %v1323, %v1225
  %v1325 = vadd.f32 %v1324, %v1226
  %v1326 = vadd.f32 %v1325, %v1227
  %v1327 = vadd.f32 %v1326, %v1228
  %v1328 = vadd.f32 %v1327, %v1229
  %v1329 = vadd.f32 %v1328, %v1230
  %v1330 = vadd.f32 %v1329, %v1231
  %v1331 = vadd.f32 %v1330, %v1232
  %v1332 = vadd.f32 %v1331, %v1233
  %v1333 = vadd.f32 %v1332, %v1234
  %v1334 = vadd.f32 %v1333, %v1235
  %v1335 = vadd.f32 %v1334, %v1236
  %v1336 = vadd.f32 %v1335, %v1237
  %v1337 = vadd.f32 %v1336, %v1238
  %v1338 = vadd.f32 %v1337, %v1239
  %v1339 = vadd.f32 %v1338, %v1240
  %v1340 = vadd.f32 %v1339, %v1241
  %v1341 = vadd.f32 %v1340, %v1242
  %v1342 = vadd.f32 %v1341, %v1243
  %v1343 = vadd.f32 %v1342, %v1244
  %v1344 = vadd.f32 %v1343, %v1245
  %v1345 = vadd.f32 %v1344, %v1246
  %v1346 = vadd.f32 %v1345, %v1247
  %v1347 = vadd.f32 %v1346, %v1248
  %v1348 = vadd.f32 %v1347, %v1249
  %v1349 = vadd.f32 %v1348, %v1250
  %v1350 = vadd.f32 %v1349, %v1251
  %v1351 = vadd.f32 %v1350, %v1252
  %v1352 = vadd.f32 %v1351, %v1253
  %v1353 = vadd.f32 %v1352, %v1254
  %v1354 = vadd.f32 %v1353, %v1255
  %v1355 = vadd.f32 %v1354, %v1256
  %v1356 = vadd.f32 %v1355, %v1257
  %v1357 = vadd.f32 %v1356, %v1258
  %v1358 = vadd.f32 %v1357, %v1259
  %v1359 = vadd.f32 %v1358, %v1260
  %v1360 = vadd.f32 %v1359, %v1261
  %v1361 = vadd.f32 %v1360, %v1262
  %v1362 = vadd.f32 %v1361, %v1263
  %v1363 = vadd.f32 %v1362, %v1264
  %v1364 = vadd.f32 %v1363, %v1265
  %v1365 = vadd.f32 %v1364, %v1266
  %v1366 = vadd.f32 %v1365, %v1267
  %v1367 = vadd.f32 %v1366, %v1268
  %v1368 = vadd.f32 %v1367, %v1269
  %v1369 = vadd.f32 %v1368, %v1270
  %v1370 = vadd.f32 %v1369, %v1271
  %v1371 = vadd.f32 %v1370, %v1272
  %v1372 = vadd.f32 %v1371, %v1273
  %v1373 = vadd.f32 %v1372, %v1274
  %v1374 = vadd.f32 %v1373, %v1275
  %v1375 = vadd.f32 %v1374, %v1276
  %v1376 = vadd.f32 %v1375, %v1277
  %v1377 = vadd.f32 %v1376, %v1278
  %v1378 = vadd.f32 %v1377, %v1279
  %v1379 = vadd.f32 %v1378, %v1280
  %v1380 = vadd.f32 %v1379, %v1281
  %v1381 = vadd.f32 %v1380, %v1282
  %v1382 = vadd.f32 %v1381, %v1283
  %v1383 = vadd.f32 %v1382, %v1284
  %v1384 = vadd.f32 %v1383, %v1285
  %v1385 = vadd.f32 %v1384, %v1286
  %v1386 = vadd.f32 %v1385, %v1287
  %v1387 = vadd.f32 %v1386, %v1288
  %v1388 = vadd.f32 %v1387, %v1289
  %v1389 = vadd.f32 %v1388, %v1290
  %v1390 = vadd.f32 %v1389, %v1291
  %v1391 = vadd.f32 %v1390, %v1292
  %v1392 = vadd.f32 %v1391, %v1293
  %v1393 = vadd.f32 %v1392, %v1294
  %v1394 = vadd.f32 %v1393, %v1295
  %v1395 = vadd.f32 %v1394, %v1296
  %v1396 = vadd.f32 %v1395, %v1297
  %v1397 = vadd.f32 %v1396, %v1298
  %v1398 = vadd.f32 %v1397, %v1299
  %v1399 = vadd.f32 %v1398, %v1300
  %v1400 = vadd.f32 %v1399, %v1301
  %v1401 = vadd.f32 %v1400, %v1302
  %v1402 = vadd.f32 %v1401, %v1303
  %v1403 = vadd.f32 %v1402, %v1304
  %v1404 = vadd.f32 %v1403, %v1305
  %v1405 = vadd.f32 %v1404, %v1306
  %v1406 = vrot.slane %v1405, 4
  %v1407 = vadd.f32 %v1405, %v1406
  %v1408 = vrot.slane %v1407, 2
  %v1409 = vadd.f32 %v1407, %v1408
  %v1410 = vrot.slane %v1409, 1
  %v1411 = vadd.f32 %v1409, %v1410
  %v1412 = vmul.f32 %v1411, %v1105
  %v1413 = vadd.f32 %v1412, 1e-05
  %v1414 = vrsqrt.pop %v1413
  %v1415 = vmul.f32 %v1107, %v1414
  %v1416 = vmul.f32 %v1108, %v1414
  %v1417 = vmul.f32 %v1109, %v1414
  %v1418 = vmul.f32 %v1110, %v1414
  %v1419 = vmul.f32 %v1111, %v1414
  %v1420 = vmul.f32 %v1112, %v1414
  %v1421 = vmul.f32 %v1113, %v1414
  %v1422 = vmul.f32 %v1114, %v1414
  %v1423 = vmul.f32 %v1115, %v1414
  %v1424 = vmul.f32 %v1116, %v1414
  %v1425 = vmul.f32 %v1117, %v1414
  %v1426 = vmul.f32 %v1118, %v1414
  %v1427 = vmul.f32 %v1119, %v1414
  %v1428 = vmul.f32 %v1120, %v1414
  %v1429 = vmul.f32 %v1121, %v1414
  %v1430 = vmul.f32 %v1122, %v1414
  %v1431 = vmul.f32 %v1123, %v1414
  %v1432 = vmul.f32 %v1124, %v1414
  %v1433 = vmul.f32 %v1125, %v1414
  %v1434 = vmul.f32 %v1126, %v1414
  %v1435 = vmul.f32 %v1127, %v1414
  %v1436 = vmul.f32 %v1128, %v1414
  %v1437 = vmul.f32 %v1129, %v1414
  %v1438 = vmul.f32 %v1130, %v1414
  %v1439 = vmul.f32 %v1131, %v1414
  %v1440 = vmul.f32 %v1132, %v1414
  %v1441 = vmul.f32 %v1133, %v1414
  %v1442 = vmul.f32 %v1134, %v1414
  %v1443 = vmul.f32 %v1135, %v1414
  %v1444 = vmul.f32 %v1136, %v1414
  %v1445 = vmul.f32 %v1137, %v1414
  %v1446 = vmul.f32 %v1138, %v1414
  %v1447 = vmul.f32 %v1139, %v1414
  %v1448 = vmul.f32 %v1140, %v1414
  %v1449 = vmul.f32 %v1141, %v1414
  %v1450 = vmul.f32 %v1142, %v1414
  %v1451 = vmul.f32 %v1143, %v1414
  %v1452 = vmul.f32 %v1144, %v1414
  %v1453 = vmul.f32 %v1145, %v1414
  %v1454 = vmul.f32 %v1146, %v1414
  %v1455 = vmul.f32 %v1147, %v1414
  %v1456 = vmul.f32 %v1148, %v1414
  %v1457 = vmul.f32 %v1149, %v1414
  %v1458 = vmul.f32 %v1150, %v1414
  %v1459 = vmul.f32 %v1151, %v1414
  %v1460 = vmul.f32 %v1152, %v1414
  %v1461 = vmul.f32 %v1153, %v1414
  %v1462 = vmul.f32 %v1154, %v1414
  %v1463 = vmul.f32 %v1155, %v1414
  %v1464 = vmul.f32 %v1156, %v1414
  %v1465 = vmul.f32 %v1157, %v1414
  %v1466 = vmul.f32 %v1158, %v1414
  %v1467 = vmul.f32 %v1159, %v1414
  %v1468 = vmul.f32 %v1160, %v1414
  %v1469 = vmul.f32 %v1161, %v1414
  %v1470 = vmul.f32 %v1162, %v1414
  %v1471 = vmul.f32 %v1163, %v1414
  %v1472 = vmul.f32 %v1164, %v1414
  %v1473 = vmul.f32 %v1165, %v1414
  %v1474 = vmul.f32 %v1166, %v1414
  %v1475 = vmul.f32 %v1167, %v1414
  %v1476 = vmul.f32 %v1168, %v1414
  %v1477 = vmul.f32 %v1169, %v1414
  %v1478 = vmul.f32 %v1170, %v1414
  %v1479 = vmul.f32 %v1171, %v1414
  %v1480 = vmul.f32 %v1172, %v1414
  %v1481 = vmul.f32 %v1173, %v1414
  %v1482 = vmul.f32 %v1174, %v1414
  %v1483 = vmul.f32 %v1175, %v1414
  %v1484 = vmul.f32 %v1176, %v1414
  %v1485 = vmul.f32 %v1177, %v1414
  %v1486 = vmul.f32 %v1178, %v1414
  %v1487 = vmul.f32 %v1179, %v1414
  %v1488 = vmul.f32 %v1180, %v1414
  %v1489 = vmul.f32 %v1181, %v1414
  %v1490 = vmul.f32 %v1182, %v1414
  %v1491 = vmul.f32 %v1183, %v1414
  %v1492 = vmul.f32 %v1184, %v1414
  %v1493 = vmul.f32 %v1185, %v1414
  %v1494 = vmul.f32 %v1186, %v1414
  %v1495 = vmul.f32 %v1187, %v1414
  %v1496 = vmul.f32 %v1188, %v1414
  %v1497 = vmul.f32 %v1189, %v1414
  %v1498 = vmul.f32 %v1190, %v1414
  %v1499 = vmul.f32 %v1191, %v1414
  %v1500 = vmul.f32 %v1192, %v1414
  %v1501 = vmul.f32 %v1193, %v1414
  %v1502 = vmul.f32 %v1194, %v1414
  %v1503 = vmul.f32 %v1195, %v1414
  %v1504 = vmul.f32 %v1196, %v1414
  %v1505 = vmul.f32 %v1197, %v1414
  %v1506 = vmul.f32 %v1198, %v1414
  %v1507 = vmul.f32 %v1199, %v1414
  %v1508 = vmul.f32 %v1200, %v1414
  %v1509 = vmul.f32 %v1201, %v1414
  %v1510 = vmul.f32 %v1202, %v1414
  %v1511 = vmul.f32 %v1203, %v1414
  %v1512 = vmul.f32 %v1204, %v1414
  %v1513 = vmul.f32 %v1205, %v1414
  %v1514 = vmul.f32 %v1206, %v1414
  %v1515 = vld [vmem:[%s3] sm:$0x1]
  %v1517 = vlaneseq
  %v1518 = vshrl.u32 %v1517, 7
  %v1519 = vsub.s32 0, %v1518
  %v1520 = vrot.slane %v1515, %v1519
  %v1522 = vmul.f32 %v1415, %v1520
  %v1523 = vmul.f32 %v1416, %v1520
  %v1524 = vmul.f32 %v1417, %v1520
  %v1525 = vmul.f32 %v1418, %v1520
  %v1526 = vmul.f32 %v1419, %v1520
  %v1527 = vmul.f32 %v1420, %v1520
  %v1528 = vmul.f32 %v1421, %v1520
  %v1529 = vmul.f32 %v1422, %v1520
  %v1530 = vmul.f32 %v1423, %v1520
  %v1531 = vmul.f32 %v1424, %v1520
  %v1532 = vmul.f32 %v1425, %v1520
  %v1533 = vmul.f32 %v1426, %v1520
  %v1534 = vmul.f32 %v1427, %v1520
  %v1535 = vmul.f32 %v1428, %v1520
  %v1536 = vmul.f32 %v1429, %v1520
  %v1537 = vmul.f32 %v1430, %v1520
  %v1538 = vmul.f32 %v1431, %v1520
  %v1539 = vmul.f32 %v1432, %v1520
  %v1540 = vmul.f32 %v1433, %v1520
  %v1541 = vmul.f32 %v1434, %v1520
  %v1542 = vmul.f32 %v1435, %v1520
  %v1543 = vmul.f32 %v1436, %v1520
  %v1544 = vmul.f32 %v1437, %v1520
  %v1545 = vmul.f32 %v1438, %v1520
  %v1546 = vmul.f32 %v1439, %v1520
  %v1547 = vmul.f32 %v1440, %v1520
  %v1548 = vmul.f32 %v1441, %v1520
  %v1549 = vmul.f32 %v1442, %v1520
  %v1550 = vmul.f32 %v1443, %v1520
  %v1551 = vmul.f32 %v1444, %v1520
  %v1552 = vmul.f32 %v1445, %v1520
  %v1553 = vmul.f32 %v1446, %v1520
  %v1554 = vmul.f32 %v1447, %v1520
  %v1555 = vmul.f32 %v1448, %v1520
  %v1556 = vmul.f32 %v1449, %v1520
  %v1557 = vmul.f32 %v1450, %v1520
  %v1558 = vmul.f32 %v1451, %v1520
  %v1559 = vmul.f32 %v1452, %v1520
  %v1560 = vmul.f32 %v1453, %v1520
  %v1561 = vmul.f32 %v1454, %v1520
  %v1562 = vmul.f32 %v1455, %v1520
  %v1563 = vmul.f32 %v1456, %v1520
  %v1564 = vmul.f32 %v1457, %v1520
  %v1565 = vmul.f32 %v1458, %v1520
  %v1566 = vmul.f32 %v1459, %v1520
  %v1567 = vmul.f32 %v1460, %v1520
  %v1568 = vmul.f32 %v1461, %v1520
  %v1569 = vmul.f32 %v1462, %v1520
  %v1570 = vmul.f32 %v1463, %v1520
  %v1571 = vmul.f32 %v1464, %v1520
  %v1572 = vmul.f32 %v1465, %v1520
  %v1573 = vmul.f32 %v1466, %v1520
  %v1574 = vmul.f32 %v1467, %v1520
  %v1575 = vmul.f32 %v1468, %v1520
  %v1576 = vmul.f32 %v1469, %v1520
  %v1577 = vmul.f32 %v1470, %v1520
  %v1578 = vmul.f32 %v1471, %v1520
  %v1579 = vmul.f32 %v1472, %v1520
  %v1580 = vmul.f32 %v1473, %v1520
  %v1581 = vmul.f32 %v1474, %v1520
  %v1582 = vmul.f32 %v1475, %v1520
  %v1583 = vmul.f32 %v1476, %v1520
  %v1584 = vmul.f32 %v1477, %v1520
  %v1585 = vmul.f32 %v1478, %v1520
  %v1586 = vmul.f32 %v1479, %v1520
  %v1587 = vmul.f32 %v1480, %v1520
  %v1588 = vmul.f32 %v1481, %v1520
  %v1589 = vmul.f32 %v1482, %v1520
  %v1590 = vmul.f32 %v1483, %v1520
  %v1591 = vmul.f32 %v1484, %v1520
  %v1592 = vmul.f32 %v1485, %v1520
  %v1593 = vmul.f32 %v1486, %v1520
  %v1594 = vmul.f32 %v1487, %v1520
  %v1595 = vmul.f32 %v1488, %v1520
  %v1596 = vmul.f32 %v1489, %v1520
  %v1597 = vmul.f32 %v1490, %v1520
  %v1598 = vmul.f32 %v1491, %v1520
  %v1599 = vmul.f32 %v1492, %v1520
  %v1600 = vmul.f32 %v1493, %v1520
  %v1601 = vmul.f32 %v1494, %v1520
  %v1602 = vmul.f32 %v1495, %v1520
  %v1603 = vmul.f32 %v1496, %v1520
  %v1604 = vmul.f32 %v1497, %v1520
  %v1605 = vmul.f32 %v1498, %v1520
  %v1606 = vmul.f32 %v1499, %v1520
  %v1607 = vmul.f32 %v1500, %v1520
  %v1608 = vmul.f32 %v1501, %v1520
  %v1609 = vmul.f32 %v1502, %v1520
  %v1610 = vmul.f32 %v1503, %v1520
  %v1611 = vmul.f32 %v1504, %v1520
  %v1612 = vmul.f32 %v1505, %v1520
  %v1613 = vmul.f32 %v1506, %v1520
  %v1614 = vmul.f32 %v1507, %v1520
  %v1615 = vmul.f32 %v1508, %v1520
  %v1616 = vmul.f32 %v1509, %v1520
  %v1617 = vmul.f32 %v1510, %v1520
  %v1618 = vmul.f32 %v1511, %v1520
  %v1619 = vmul.f32 %v1512, %v1520
  %v1620 = vmul.f32 %v1513, %v1520
  %v1621 = vmul.f32 %v1514, %v1520
  %v1622 = vld [vmem:[%s4] sm:$0x1]
  %v1624 = vlaneseq
  %v1625 = vshrl.u32 %v1624, 7
  %v1626 = vsub.s32 0, %v1625
  %v1627 = vrot.slane %v1622, %v1626
  %v1629 = vadd.f32 %v1522, %v1627
  %v1630 = vadd.f32 %v1523, %v1627
  %v1631 = vadd.f32 %v1524, %v1627
  %v1632 = vadd.f32 %v1525, %v1627
  %v1633 = vadd.f32 %v1526, %v1627
  %v1634 = vadd.f32 %v1527, %v1627
  %v1635 = vadd.f32 %v1528, %v1627
  %v1636 = vadd.f32 %v1529, %v1627
  %v1637 = vadd.f32 %v1530, %v1627
  %v1638 = vadd.f32 %v1531, %v1627
  %v1639 = vadd.f32 %v1532, %v1627
  %v1640 = vadd.f32 %v1533, %v1627
  %v1641 = vadd.f32 %v1534, %v1627
  %v1642 = vadd.f32 %v1535, %v1627
  %v1643 = vadd.f32 %v1536, %v1627
  %v1644 = vadd.f32 %v1537, %v1627
  %v1645 = vadd.f32 %v1538, %v1627
  %v1646 = vadd.f32 %v1539, %v1627
  %v1647 = vadd.f32 %v1540, %v1627
  %v1648 = vadd.f32 %v1541, %v1627
  %v1649 = vadd.f32 %v1542, %v1627
  %v1650 = vadd.f32 %v1543, %v1627
  %v1651 = vadd.f32 %v1544, %v1627
  %v1652 = vadd.f32 %v1545, %v1627
  %v1653 = vadd.f32 %v1546, %v1627
  %v1654 = vadd.f32 %v1547, %v1627
  %v1655 = vadd.f32 %v1548, %v1627
  %v1656 = vadd.f32 %v1549, %v1627
  %v1657 = vadd.f32 %v1550, %v1627
  %v1658 = vadd.f32 %v1551, %v1627
  %v1659 = vadd.f32 %v1552, %v1627
  %v1660 = vadd.f32 %v1553, %v1627
  %v1661 = vadd.f32 %v1554, %v1627
  %v1662 = vadd.f32 %v1555, %v1627
  %v1663 = vadd.f32 %v1556, %v1627
  %v1664 = vadd.f32 %v1557, %v1627
  %v1665 = vadd.f32 %v1558, %v1627
  %v1666 = vadd.f32 %v1559, %v1627
  %v1667 = vadd.f32 %v1560, %v1627
  %v1668 = vadd.f32 %v1561, %v1627
  %v1669 = vadd.f32 %v1562, %v1627
  %v1670 = vadd.f32 %v1563, %v1627
  %v1671 = vadd.f32 %v1564, %v1627
  %v1672 = vadd.f32 %v1565, %v1627
  %v1673 = vadd.f32 %v1566, %v1627
  %v1674 = vadd.f32 %v1567, %v1627
  %v1675 = vadd.f32 %v1568, %v1627
  %v1676 = vadd.f32 %v1569, %v1627
  %v1677 = vadd.f32 %v1570, %v1627
  %v1678 = vadd.f32 %v1571, %v1627
  %v1679 = vadd.f32 %v1572, %v1627
  %v1680 = vadd.f32 %v1573, %v1627
  %v1681 = vadd.f32 %v1574, %v1627
  %v1682 = vadd.f32 %v1575, %v1627
  %v1683 = vadd.f32 %v1576, %v1627
  %v1684 = vadd.f32 %v1577, %v1627
  %v1685 = vadd.f32 %v1578, %v1627
  %v1686 = vadd.f32 %v1579, %v1627
  %v1687 = vadd.f32 %v1580, %v1627
  %v1688 = vadd.f32 %v1581, %v1627
  %v1689 = vadd.f32 %v1582, %v1627
  %v1690 = vadd.f32 %v1583, %v1627
  %v1691 = vadd.f32 %v1584, %v1627
  %v1692 = vadd.f32 %v1585, %v1627
  %v1693 = vadd.f32 %v1586, %v1627
  %v1694 = vadd.f32 %v1587, %v1627
  %v1695 = vadd.f32 %v1588, %v1627
  %v1696 = vadd.f32 %v1589, %v1627
  %v1697 = vadd.f32 %v1590, %v1627
  %v1698 = vadd.f32 %v1591, %v1627
  %v1699 = vadd.f32 %v1592, %v1627
  %v1700 = vadd.f32 %v1593, %v1627
  %v1701 = vadd.f32 %v1594, %v1627
  %v1702 = vadd.f32 %v1595, %v1627
  %v1703 = vadd.f32 %v1596, %v1627
  %v1704 = vadd.f32 %v1597, %v1627
  %v1705 = vadd.f32 %v1598, %v1627
  %v1706 = vadd.f32 %v1599, %v1627
  %v1707 = vadd.f32 %v1600, %v1627
  %v1708 = vadd.f32 %v1601, %v1627
  %v1709 = vadd.f32 %v1602, %v1627
  %v1710 = vadd.f32 %v1603, %v1627
  %v1711 = vadd.f32 %v1604, %v1627
  %v1712 = vadd.f32 %v1605, %v1627
  %v1713 = vadd.f32 %v1606, %v1627
  %v1714 = vadd.f32 %v1607, %v1627
  %v1715 = vadd.f32 %v1608, %v1627
  %v1716 = vadd.f32 %v1609, %v1627
  %v1717 = vadd.f32 %v1610, %v1627
  %v1718 = vadd.f32 %v1611, %v1627
  %v1719 = vadd.f32 %v1612, %v1627
  %v1720 = vadd.f32 %v1613, %v1627
  %v1721 = vadd.f32 %v1614, %v1627
  %v1722 = vadd.f32 %v1615, %v1627
  %v1723 = vadd.f32 %v1616, %v1627
  %v1724 = vadd.f32 %v1617, %v1627
  %v1725 = vadd.f32 %v1618, %v1627
  %v1726 = vadd.f32 %v1619, %v1627
  %v1727 = vadd.f32 %v1620, %v1627
  %v1728 = vadd.f32 %v1621, %v1627
  %vm1729 = vcmp.gt.f32.partialorder %v1629, 0.0
  %vm1730 = vcmp.gt.f32.partialorder %v1630, 0.0
  %vm1731 = vcmp.gt.f32.partialorder %v1631, 0.0
  %vm1732 = vcmp.gt.f32.partialorder %v1632, 0.0
  %vm1733 = vcmp.gt.f32.partialorder %v1633, 0.0
  %vm1734 = vcmp.gt.f32.partialorder %v1634, 0.0
  %vm1735 = vcmp.gt.f32.partialorder %v1635, 0.0
  %vm1736 = vcmp.gt.f32.partialorder %v1636, 0.0
  %vm1737 = vcmp.gt.f32.partialorder %v1637, 0.0
  %vm1738 = vcmp.gt.f32.partialorder %v1638, 0.0
  %vm1739 = vcmp.gt.f32.partialorder %v1639, 0.0
  %vm1740 = vcmp.gt.f32.partialorder %v1640, 0.0
  %vm1741 = vcmp.gt.f32.partialorder %v1641, 0.0
  %vm1742 = vcmp.gt.f32.partialorder %v1642, 0.0
  %vm1743 = vcmp.gt.f32.partialorder %v1643, 0.0
  %vm1744 = vcmp.gt.f32.partialorder %v1644, 0.0
  %vm1745 = vcmp.gt.f32.partialorder %v1645, 0.0
  %vm1746 = vcmp.gt.f32.partialorder %v1646, 0.0
  %vm1747 = vcmp.gt.f32.partialorder %v1647, 0.0
  %vm1748 = vcmp.gt.f32.partialorder %v1648, 0.0
  %vm1749 = vcmp.gt.f32.partialorder %v1649, 0.0
  %vm1750 = vcmp.gt.f32.partialorder %v1650, 0.0
  %vm1751 = vcmp.gt.f32.partialorder %v1651, 0.0
  %vm1752 = vcmp.gt.f32.partialorder %v1652, 0.0
  %vm1753 = vcmp.gt.f32.partialorder %v1653, 0.0
  %vm1754 = vcmp.gt.f32.partialorder %v1654, 0.0
  %vm1755 = vcmp.gt.f32.partialorder %v1655, 0.0
  %vm1756 = vcmp.gt.f32.partialorder %v1656, 0.0
  %vm1757 = vcmp.gt.f32.partialorder %v1657, 0.0
  %vm1758 = vcmp.gt.f32.partialorder %v1658, 0.0
  %vm1759 = vcmp.gt.f32.partialorder %v1659, 0.0
  %vm1760 = vcmp.gt.f32.partialorder %v1660, 0.0
  %vm1761 = vcmp.gt.f32.partialorder %v1661, 0.0
  %vm1762 = vcmp.gt.f32.partialorder %v1662, 0.0
  %vm1763 = vcmp.gt.f32.partialorder %v1663, 0.0
  %vm1764 = vcmp.gt.f32.partialorder %v1664, 0.0
  %vm1765 = vcmp.gt.f32.partialorder %v1665, 0.0
  %vm1766 = vcmp.gt.f32.partialorder %v1666, 0.0
  %vm1767 = vcmp.gt.f32.partialorder %v1667, 0.0
  %vm1768 = vcmp.gt.f32.partialorder %v1668, 0.0
  %vm1769 = vcmp.gt.f32.partialorder %v1669, 0.0
  %vm1770 = vcmp.gt.f32.partialorder %v1670, 0.0
  %vm1771 = vcmp.gt.f32.partialorder %v1671, 0.0
  %vm1772 = vcmp.gt.f32.partialorder %v1672, 0.0
  %vm1773 = vcmp.gt.f32.partialorder %v1673, 0.0
  %vm1774 = vcmp.gt.f32.partialorder %v1674, 0.0
  %vm1775 = vcmp.gt.f32.partialorder %v1675, 0.0
  %vm1776 = vcmp.gt.f32.partialorder %v1676, 0.0
  %vm1777 = vcmp.gt.f32.partialorder %v1677, 0.0
  %vm1778 = vcmp.gt.f32.partialorder %v1678, 0.0
  %vm1779 = vcmp.gt.f32.partialorder %v1679, 0.0
  %vm1780 = vcmp.gt.f32.partialorder %v1680, 0.0
  %vm1781 = vcmp.gt.f32.partialorder %v1681, 0.0
  %vm1782 = vcmp.gt.f32.partialorder %v1682, 0.0
  %vm1783 = vcmp.gt.f32.partialorder %v1683, 0.0
  %vm1784 = vcmp.gt.f32.partialorder %v1684, 0.0
  %vm1785 = vcmp.gt.f32.partialorder %v1685, 0.0
  %vm1786 = vcmp.gt.f32.partialorder %v1686, 0.0
  %vm1787 = vcmp.gt.f32.partialorder %v1687, 0.0
  %vm1788 = vcmp.gt.f32.partialorder %v1688, 0.0
  %vm1789 = vcmp.gt.f32.partialorder %v1689, 0.0
  %vm1790 = vcmp.gt.f32.partialorder %v1690, 0.0
  %vm1791 = vcmp.gt.f32.partialorder %v1691, 0.0
  %vm1792 = vcmp.gt.f32.partialorder %v1692, 0.0
  %vm1793 = vcmp.gt.f32.partialorder %v1693, 0.0
  %vm1794 = vcmp.gt.f32.partialorder %v1694, 0.0
  %vm1795 = vcmp.gt.f32.partialorder %v1695, 0.0
  %vm1796 = vcmp.gt.f32.partialorder %v1696, 0.0
  %vm1797 = vcmp.gt.f32.partialorder %v1697, 0.0
  %vm1798 = vcmp.gt.f32.partialorder %v1698, 0.0
  %vm1799 = vcmp.gt.f32.partialorder %v1699, 0.0
  %vm1800 = vcmp.gt.f32.partialorder %v1700, 0.0
  %vm1801 = vcmp.gt.f32.partialorder %v1701, 0.0
  %vm1802 = vcmp.gt.f32.partialorder %v1702, 0.0
  %vm1803 = vcmp.gt.f32.partialorder %v1703, 0.0
  %vm1804 = vcmp.gt.f32.partialorder %v1704, 0.0
  %vm1805 = vcmp.gt.f32.partialorder %v1705, 0.0
  %vm1806 = vcmp.gt.f32.partialorder %v1706, 0.0
  %vm1807 = vcmp.gt.f32.partialorder %v1707, 0.0
  %vm1808 = vcmp.gt.f32.partialorder %v1708, 0.0
  %vm1809 = vcmp.gt.f32.partialorder %v1709, 0.0
  %vm1810 = vcmp.gt.f32.partialorder %v1710, 0.0
  %vm1811 = vcmp.gt.f32.partialorder %v1711, 0.0
  %vm1812 = vcmp.gt.f32.partialorder %v1712, 0.0
  %vm1813 = vcmp.gt.f32.partialorder %v1713, 0.0
  %vm1814 = vcmp.gt.f32.partialorder %v1714, 0.0
  %vm1815 = vcmp.gt.f32.partialorder %v1715, 0.0
  %vm1816 = vcmp.gt.f32.partialorder %v1716, 0.0
  %vm1817 = vcmp.gt.f32.partialorder %v1717, 0.0
  %vm1818 = vcmp.gt.f32.partialorder %v1718, 0.0
  %vm1819 = vcmp.gt.f32.partialorder %v1719, 0.0
  %vm1820 = vcmp.gt.f32.partialorder %v1720, 0.0
  %vm1821 = vcmp.gt.f32.partialorder %v1721, 0.0
  %vm1822 = vcmp.gt.f32.partialorder %v1722, 0.0
  %vm1823 = vcmp.gt.f32.partialorder %v1723, 0.0
  %vm1824 = vcmp.gt.f32.partialorder %v1724, 0.0
  %vm1825 = vcmp.gt.f32.partialorder %v1725, 0.0
  %vm1826 = vcmp.gt.f32.partialorder %v1726, 0.0
  %vm1827 = vcmp.gt.f32.partialorder %v1727, 0.0
  %vm1828 = vcmp.gt.f32.partialorder %v1728, 0.0
  %v1829 = vmul.f32 %v1629, 0.01
  %v1830 = vmul.f32 %v1630, 0.01
  %v1831 = vmul.f32 %v1631, 0.01
  %v1832 = vmul.f32 %v1632, 0.01
  %v1833 = vmul.f32 %v1633, 0.01
  %v1834 = vmul.f32 %v1634, 0.01
  %v1835 = vmul.f32 %v1635, 0.01
  %v1836 = vmul.f32 %v1636, 0.01
  %v1837 = vmul.f32 %v1637, 0.01
  %v1838 = vmul.f32 %v1638, 0.01
  %v1839 = vmul.f32 %v1639, 0.01
  %v1840 = vmul.f32 %v1640, 0.01
  %v1841 = vmul.f32 %v1641, 0.01
  %v1842 = vmul.f32 %v1642, 0.01
  %v1843 = vmul.f32 %v1643, 0.01
  %v1844 = vmul.f32 %v1644, 0.01
  %v1845 = vmul.f32 %v1645, 0.01
  %v1846 = vmul.f32 %v1646, 0.01
  %v1847 = vmul.f32 %v1647, 0.01
  %v1848 = vmul.f32 %v1648, 0.01
  %v1849 = vmul.f32 %v1649, 0.01
  %v1850 = vmul.f32 %v1650, 0.01
  %v1851 = vmul.f32 %v1651, 0.01
  %v1852 = vmul.f32 %v1652, 0.01
  %v1853 = vmul.f32 %v1653, 0.01
  %v1854 = vmul.f32 %v1654, 0.01
  %v1855 = vmul.f32 %v1655, 0.01
  %v1856 = vmul.f32 %v1656, 0.01
  %v1857 = vmul.f32 %v1657, 0.01
  %v1858 = vmul.f32 %v1658, 0.01
  %v1859 = vmul.f32 %v1659, 0.01
  %v1860 = vmul.f32 %v1660, 0.01
  %v1861 = vmul.f32 %v1661, 0.01
  %v1862 = vmul.f32 %v1662, 0.01
  %v1863 = vmul.f32 %v1663, 0.01
  %v1864 = vmul.f32 %v1664, 0.01
  %v1865 = vmul.f32 %v1665, 0.01
  %v1866 = vmul.f32 %v1666, 0.01
  %v1867 = vmul.f32 %v1667, 0.01
  %v1868 = vmul.f32 %v1668, 0.01
  %v1869 = vmul.f32 %v1669, 0.01
  %v1870 = vmul.f32 %v1670, 0.01
  %v1871 = vmul.f32 %v1671, 0.01
  %v1872 = vmul.f32 %v1672, 0.01
  %v1873 = vmul.f32 %v1673, 0.01
  %v1874 = vmul.f32 %v1674, 0.01
  %v1875 = vmul.f32 %v1675, 0.01
  %v1876 = vmul.f32 %v1676, 0.01
  %v1877 = vmul.f32 %v1677, 0.01
  %v1878 = vmul.f32 %v1678, 0.01
  %v1879 = vmul.f32 %v1679, 0.01
  %v1880 = vmul.f32 %v1680, 0.01
  %v1881 = vmul.f32 %v1681, 0.01
  %v1882 = vmul.f32 %v1682, 0.01
  %v1883 = vmul.f32 %v1683, 0.01
  %v1884 = vmul.f32 %v1684, 0.01
  %v1885 = vmul.f32 %v1685, 0.01
  %v1886 = vmul.f32 %v1686, 0.01
  %v1887 = vmul.f32 %v1687, 0.01
  %v1888 = vmul.f32 %v1688, 0.01
  %v1889 = vmul.f32 %v1689, 0.01
  %v1890 = vmul.f32 %v1690, 0.01
  %v1891 = vmul.f32 %v1691, 0.01
  %v1892 = vmul.f32 %v1692, 0.01
  %v1893 = vmul.f32 %v1693, 0.01
  %v1894 = vmul.f32 %v1694, 0.01
  %v1895 = vmul.f32 %v1695, 0.01
  %v1896 = vmul.f32 %v1696, 0.01
  %v1897 = vmul.f32 %v1697, 0.01
  %v1898 = vmul.f32 %v1698, 0.01
  %v1899 = vmul.f32 %v1699, 0.01
  %v1900 = vmul.f32 %v1700, 0.01
  %v1901 = vmul.f32 %v1701, 0.01
  %v1902 = vmul.f32 %v1702, 0.01
  %v1903 = vmul.f32 %v1703, 0.01
  %v1904 = vmul.f32 %v1704, 0.01
  %v1905 = vmul.f32 %v1705, 0.01
  %v1906 = vmul.f32 %v1706, 0.01
  %v1907 = vmul.f32 %v1707, 0.01
  %v1908 = vmul.f32 %v1708, 0.01
  %v1909 = vmul.f32 %v1709, 0.01
  %v1910 = vmul.f32 %v1710, 0.01
  %v1911 = vmul.f32 %v1711, 0.01
  %v1912 = vmul.f32 %v1712, 0.01
  %v1913 = vmul.f32 %v1713, 0.01
  %v1914 = vmul.f32 %v1714, 0.01
  %v1915 = vmul.f32 %v1715, 0.01
  %v1916 = vmul.f32 %v1716, 0.01
  %v1917 = vmul.f32 %v1717, 0.01
  %v1918 = vmul.f32 %v1718, 0.01
  %v1919 = vmul.f32 %v1719, 0.01
  %v1920 = vmul.f32 %v1720, 0.01
  %v1921 = vmul.f32 %v1721, 0.01
  %v1922 = vmul.f32 %v1722, 0.01
  %v1923 = vmul.f32 %v1723, 0.01
  %v1924 = vmul.f32 %v1724, 0.01
  %v1925 = vmul.f32 %v1725, 0.01
  %v1926 = vmul.f32 %v1726, 0.01
  %v1927 = vmul.f32 %v1727, 0.01
  %v1928 = vmul.f32 %v1728, 0.01
  %v1929 = vsel %vm1729, %v1629, %v1829
  %v1930 = vsel %vm1730, %v1630, %v1830
  %v1931 = vsel %vm1731, %v1631, %v1831
  %v1932 = vsel %vm1732, %v1632, %v1832
  %v1933 = vsel %vm1733, %v1633, %v1833
  %v1934 = vsel %vm1734, %v1634, %v1834
  %v1935 = vsel %vm1735, %v1635, %v1835
  %v1936 = vsel %vm1736, %v1636, %v1836
  %v1937 = vsel %vm1737, %v1637, %v1837
  %v1938 = vsel %vm1738, %v1638, %v1838
  %v1939 = vsel %vm1739, %v1639, %v1839
  %v1940 = vsel %vm1740, %v1640, %v1840
  %v1941 = vsel %vm1741, %v1641, %v1841
  %v1942 = vsel %vm1742, %v1642, %v1842
  %v1943 = vsel %vm1743, %v1643, %v1843
  %v1944 = vsel %vm1744, %v1644, %v1844
  %v1945 = vsel %vm1745, %v1645, %v1845
  %v1946 = vsel %vm1746, %v1646, %v1846
  %v1947 = vsel %vm1747, %v1647, %v1847
  %v1948 = vsel %vm1748, %v1648, %v1848
  %v1949 = vsel %vm1749, %v1649, %v1849
  %v1950 = vsel %vm1750, %v1650, %v1850
  %v1951 = vsel %vm1751, %v1651, %v1851
  %v1952 = vsel %vm1752, %v1652, %v1852
  %v1953 = vsel %vm1753, %v1653, %v1853
  %v1954 = vsel %vm1754, %v1654, %v1854
  %v1955 = vsel %vm1755, %v1655, %v1855
  %v1956 = vsel %vm1756, %v1656, %v1856
  %v1957 = vsel %vm1757, %v1657, %v1857
  %v1958 = vsel %vm1758, %v1658, %v1858
  %v1959 = vsel %vm1759, %v1659, %v1859
  %v1960 = vsel %vm1760, %v1660, %v1860
  %v1961 = vsel %vm1761, %v1661, %v1861
  %v1962 = vsel %vm1762, %v1662, %v1862
  %v1963 = vsel %vm1763, %v1663, %v1863
  %v1964 = vsel %vm1764, %v1664, %v1864
  %v1965 = vsel %vm1765, %v1665, %v1865
  %v1966 = vsel %vm1766, %v1666, %v1866
  %v1967 = vsel %vm1767, %v1667, %v1867
  %v1968 = vsel %vm1768, %v1668, %v1868
  %v1969 = vsel %vm1769, %v1669, %v1869
  %v1970 = vsel %vm1770, %v1670, %v1870
  %v1971 = vsel %vm1771, %v1671, %v1871
  %v1972 = vsel %vm1772, %v1672, %v1872
  %v1973 = vsel %vm1773, %v1673, %v1873
  %v1974 = vsel %vm1774, %v1674, %v1874
  %v1975 = vsel %vm1775, %v1675, %v1875
  %v1976 = vsel %vm1776, %v1676, %v1876
  %v1977 = vsel %vm1777, %v1677, %v1877
  %v1978 = vsel %vm1778, %v1678, %v1878
  %v1979 = vsel %vm1779, %v1679, %v1879
  %v1980 = vsel %vm1780, %v1680, %v1880
  %v1981 = vsel %vm1781, %v1681, %v1881
  %v1982 = vsel %vm1782, %v1682, %v1882
  %v1983 = vsel %vm1783, %v1683, %v1883
  %v1984 = vsel %vm1784, %v1684, %v1884
  %v1985 = vsel %vm1785, %v1685, %v1885
  %v1986 = vsel %vm1786, %v1686, %v1886
  %v1987 = vsel %vm1787, %v1687, %v1887
  %v1988 = vsel %vm1788, %v1688, %v1888
  %v1989 = vsel %vm1789, %v1689, %v1889
  %v1990 = vsel %vm1790, %v1690, %v1890
  %v1991 = vsel %vm1791, %v1691, %v1891
  %v1992 = vsel %vm1792, %v1692, %v1892
  %v1993 = vsel %vm1793, %v1693, %v1893
  %v1994 = vsel %vm1794, %v1694, %v1894
  %v1995 = vsel %vm1795, %v1695, %v1895
  %v1996 = vsel %vm1796, %v1696, %v1896
  %v1997 = vsel %vm1797, %v1697, %v1897
  %v1998 = vsel %vm1798, %v1698, %v1898
  %v1999 = vsel %vm1799, %v1699, %v1899
  %v2000 = vsel %vm1800, %v1700, %v1900
  %v2001 = vsel %vm1801, %v1701, %v1901
  %v2002 = vsel %vm1802, %v1702, %v1902
  %v2003 = vsel %vm1803, %v1703, %v1903
  %v2004 = vsel %vm1804, %v1704, %v1904
  %v2005 = vsel %vm1805, %v1705, %v1905
  %v2006 = vsel %vm1806, %v1706, %v1906
  %v2007 = vsel %vm1807, %v1707, %v1907
  %v2008 = vsel %vm1808, %v1708, %v1908
  %v2009 = vsel %vm1809, %v1709, %v1909
  %v2010 = vsel %vm1810, %v1710, %v1910
  %v2011 = vsel %vm1811, %v1711, %v1911
  %v2012 = vsel %vm1812, %v1712, %v1912
  %v2013 = vsel %vm1813, %v1713, %v1913
  %v2014 = vsel %vm1814, %v1714, %v1914
  %v2015 = vsel %vm1815, %v1715, %v1915
  %v2016 = vsel %vm1816, %v1716, %v1916
  %v2017 = vsel %vm1817, %v1717, %v1917
  %v2018 = vsel %vm1818, %v1718, %v1918
  %v2019 = vsel %vm1819, %v1719, %v1919
  %v2020 = vsel %vm1820, %v1720, %v1920
  %v2021 = vsel %vm1821, %v1721, %v1921
  %v2022 = vsel %vm1822, %v1722, %v1922
  %v2023 = vsel %vm1823, %v1723, %v1923
  %v2024 = vsel %vm1824, %v1724, %v1924
  %v2025 = vsel %vm1825, %v1725, %v1925
  %v2026 = vsel %vm1826, %v1726, %v1926
  %v2027 = vsel %vm1827, %v1727, %v1927
  %v2028 = vsel %vm1828, %v1728, %v1928
  %v2029 = vpack.c.bf16 %v1930, %v1929
  %v2030 = vpack.c.bf16 %v1932, %v1931
  %v2031 = vpack.c.bf16 %v1934, %v1933
  %v2032 = vpack.c.bf16 %v1936, %v1935
  %v2033 = vpack.c.bf16 %v1938, %v1937
  %v2034 = vpack.c.bf16 %v1940, %v1939
  %v2035 = vpack.c.bf16 %v1942, %v1941
  %v2036 = vpack.c.bf16 %v1944, %v1943
  %v2037 = vpack.c.bf16 %v1946, %v1945
  %v2038 = vpack.c.bf16 %v1948, %v1947
  %v2039 = vpack.c.bf16 %v1950, %v1949
  %v2040 = vpack.c.bf16 %v1952, %v1951
  %v2041 = vpack.c.bf16 %v1954, %v1953
  %v2042 = vpack.c.bf16 %v1956, %v1955
  %v2043 = vpack.c.bf16 %v1958, %v1957
  %v2044 = vpack.c.bf16 %v1960, %v1959
  %v2045 = vpack.c.bf16 %v1962, %v1961
  %v2046 = vpack.c.bf16 %v1964, %v1963
  %v2047 = vpack.c.bf16 %v1966, %v1965
  %v2048 = vpack.c.bf16 %v1968, %v1967
  %v2049 = vpack.c.bf16 %v1970, %v1969
  %v2050 = vpack.c.bf16 %v1972, %v1971
  %v2051 = vpack.c.bf16 %v1974, %v1973
  %v2052 = vpack.c.bf16 %v1976, %v1975
  %v2053 = vpack.c.bf16 %v1978, %v1977
  %v2054 = vpack.c.bf16 %v1980, %v1979
  %v2055 = vpack.c.bf16 %v1982, %v1981
  %v2056 = vpack.c.bf16 %v1984, %v1983
  %v2057 = vpack.c.bf16 %v1986, %v1985
  %v2058 = vpack.c.bf16 %v1988, %v1987
  %v2059 = vpack.c.bf16 %v1990, %v1989
  %v2060 = vpack.c.bf16 %v1992, %v1991
  %v2061 = vpack.c.bf16 %v1994, %v1993
  %v2062 = vpack.c.bf16 %v1996, %v1995
  %v2063 = vpack.c.bf16 %v1998, %v1997
  %v2064 = vpack.c.bf16 %v2000, %v1999
  %v2065 = vpack.c.bf16 %v2002, %v2001
  %v2066 = vpack.c.bf16 %v2004, %v2003
  %v2067 = vpack.c.bf16 %v2006, %v2005
  %v2068 = vpack.c.bf16 %v2008, %v2007
  %v2069 = vpack.c.bf16 %v2010, %v2009
  %v2070 = vpack.c.bf16 %v2012, %v2011
  %v2071 = vpack.c.bf16 %v2014, %v2013
  %v2072 = vpack.c.bf16 %v2016, %v2015
  %v2073 = vpack.c.bf16 %v2018, %v2017
  %v2074 = vpack.c.bf16 %v2020, %v2019
  %v2075 = vpack.c.bf16 %v2022, %v2021
  %v2076 = vpack.c.bf16 %v2024, %v2023
  %v2077 = vpack.c.bf16 %v2026, %v2025
  %v2078 = vpack.c.bf16 %v2028, %v2027
  %v2129 = vunpack.c.l.b16 %v2029
  %v2130 = vunpack.c.h.b16 %v2029
  %v2131 = vunpack.c.l.b16 %v2030
  %v2132 = vunpack.c.h.b16 %v2030
  %v2133 = vunpack.c.l.b16 %v2031
  %v2134 = vunpack.c.h.b16 %v2031
  %v2135 = vunpack.c.l.b16 %v2032
  %v2136 = vunpack.c.h.b16 %v2032
  %v2137 = vunpack.c.l.b16 %v2033
  %v2138 = vunpack.c.h.b16 %v2033
  %v2139 = vunpack.c.l.b16 %v2034
  %v2140 = vunpack.c.h.b16 %v2034
  %v2141 = vunpack.c.l.b16 %v2035
  %v2142 = vunpack.c.h.b16 %v2035
  %v2143 = vunpack.c.l.b16 %v2036
  %v2144 = vunpack.c.h.b16 %v2036
  %v2145 = vunpack.c.l.b16 %v2037
  %v2146 = vunpack.c.h.b16 %v2037
  %v2147 = vunpack.c.l.b16 %v2038
  %v2148 = vunpack.c.h.b16 %v2038
  %v2149 = vunpack.c.l.b16 %v2039
  %v2150 = vunpack.c.h.b16 %v2039
  %v2151 = vunpack.c.l.b16 %v2040
  %v2152 = vunpack.c.h.b16 %v2040
  %v2153 = vunpack.c.l.b16 %v2041
  %v2154 = vunpack.c.h.b16 %v2041
  %v2155 = vunpack.c.l.b16 %v2042
  %v2156 = vunpack.c.h.b16 %v2042
  %v2157 = vunpack.c.l.b16 %v2043
  %v2158 = vunpack.c.h.b16 %v2043
  %v2159 = vunpack.c.l.b16 %v2044
  %v2160 = vunpack.c.h.b16 %v2044
  %v2161 = vunpack.c.l.b16 %v2045
  %v2162 = vunpack.c.h.b16 %v2045
  %v2163 = vunpack.c.l.b16 %v2046
  %v2164 = vunpack.c.h.b16 %v2046
  %v2165 = vunpack.c.l.b16 %v2047
  %v2166 = vunpack.c.h.b16 %v2047
  %v2167 = vunpack.c.l.b16 %v2048
  %v2168 = vunpack.c.h.b16 %v2048
  %v2169 = vunpack.c.l.b16 %v2049
  %v2170 = vunpack.c.h.b16 %v2049
  %v2171 = vunpack.c.l.b16 %v2050
  %v2172 = vunpack.c.h.b16 %v2050
  %v2173 = vunpack.c.l.b16 %v2051
  %v2174 = vunpack.c.h.b16 %v2051
  %v2175 = vunpack.c.l.b16 %v2052
  %v2176 = vunpack.c.h.b16 %v2052
  %v2177 = vunpack.c.l.b16 %v2053
  %v2178 = vunpack.c.h.b16 %v2053
  %v2179 = vunpack.c.l.b16 %v2054
  %v2180 = vunpack.c.h.b16 %v2054
  %v2181 = vunpack.c.l.b16 %v2055
  %v2182 = vunpack.c.h.b16 %v2055
  %v2183 = vunpack.c.l.b16 %v2056
  %v2184 = vunpack.c.h.b16 %v2056
  %v2185 = vunpack.c.l.b16 %v2057
  %v2186 = vunpack.c.h.b16 %v2057
  %v2187 = vunpack.c.l.b16 %v2058
  %v2188 = vunpack.c.h.b16 %v2058
  %v2189 = vunpack.c.l.b16 %v2059
  %v2190 = vunpack.c.h.b16 %v2059
  %v2191 = vunpack.c.l.b16 %v2060
  %v2192 = vunpack.c.h.b16 %v2060
  %v2193 = vunpack.c.l.b16 %v2061
  %v2194 = vunpack.c.h.b16 %v2061
  %v2195 = vunpack.c.l.b16 %v2062
  %v2196 = vunpack.c.h.b16 %v2062
  %v2197 = vunpack.c.l.b16 %v2063
  %v2198 = vunpack.c.h.b16 %v2063
  %v2199 = vunpack.c.l.b16 %v2064
  %v2200 = vunpack.c.h.b16 %v2064
  %v2201 = vunpack.c.l.b16 %v2065
  %v2202 = vunpack.c.h.b16 %v2065
  %v2203 = vunpack.c.l.b16 %v2066
  %v2204 = vunpack.c.h.b16 %v2066
  %v2205 = vunpack.c.l.b16 %v2067
  %v2206 = vunpack.c.h.b16 %v2067
  %v2207 = vunpack.c.l.b16 %v2068
  %v2208 = vunpack.c.h.b16 %v2068
  %v2209 = vunpack.c.l.b16 %v2069
  %v2210 = vunpack.c.h.b16 %v2069
  %v2211 = vunpack.c.l.b16 %v2070
  %v2212 = vunpack.c.h.b16 %v2070
  %v2213 = vunpack.c.l.b16 %v2071
  %v2214 = vunpack.c.h.b16 %v2071
  %v2215 = vunpack.c.l.b16 %v2072
  %v2216 = vunpack.c.h.b16 %v2072
  %v2217 = vunpack.c.l.b16 %v2073
  %v2218 = vunpack.c.h.b16 %v2073
  %v2219 = vunpack.c.l.b16 %v2074
  %v2220 = vunpack.c.h.b16 %v2074
  %v2221 = vunpack.c.l.b16 %v2075
  %v2222 = vunpack.c.h.b16 %v2075
  %v2223 = vunpack.c.l.b16 %v2076
  %v2224 = vunpack.c.h.b16 %v2076
  %v2225 = vunpack.c.l.b16 %v2077
  %v2226 = vunpack.c.h.b16 %v2077
  %v2227 = vunpack.c.l.b16 %v2078
  %v2228 = vunpack.c.h.b16 %v2078
  %v2229 = vpack.c.b16 %v2129, %v2129
  %v2230 = vpack.c.b16 %v2130, %v2130
  %v2231 = vpack.c.b16 %v2131, %v2131
  %v2232 = vpack.c.b16 %v2132, %v2132
  %v2233 = vpack.c.b16 %v2133, %v2133
  %v2234 = vpack.c.b16 %v2134, %v2134
  %v2235 = vpack.c.b16 %v2135, %v2135
  %v2236 = vpack.c.b16 %v2136, %v2136
  %v2237 = vpack.c.b16 %v2137, %v2137
  %v2238 = vpack.c.b16 %v2138, %v2138
  %v2239 = vpack.c.b16 %v2139, %v2139
  %v2240 = vpack.c.b16 %v2140, %v2140
  %v2241 = vpack.c.b16 %v2141, %v2141
  %v2242 = vpack.c.b16 %v2142, %v2142
  %v2243 = vpack.c.b16 %v2143, %v2143
  %v2244 = vpack.c.b16 %v2144, %v2144
  %v2245 = vpack.c.b16 %v2145, %v2145
  %v2246 = vpack.c.b16 %v2146, %v2146
  %v2247 = vpack.c.b16 %v2147, %v2147
  %v2248 = vpack.c.b16 %v2148, %v2148
  %v2249 = vpack.c.b16 %v2149, %v2149
  %v2250 = vpack.c.b16 %v2150, %v2150
  %v2251 = vpack.c.b16 %v2151, %v2151
  %v2252 = vpack.c.b16 %v2152, %v2152
  %v2253 = vpack.c.b16 %v2153, %v2153
  %v2254 = vpack.c.b16 %v2154, %v2154
  %v2255 = vpack.c.b16 %v2155, %v2155
  %v2256 = vpack.c.b16 %v2156, %v2156
  %v2257 = vpack.c.b16 %v2157, %v2157
  %v2258 = vpack.c.b16 %v2158, %v2158
  %v2259 = vpack.c.b16 %v2159, %v2159
  %v2260 = vpack.c.b16 %v2160, %v2160
  %v2261 = vpack.c.b16 %v2161, %v2161
  %v2262 = vpack.c.b16 %v2162, %v2162
  %v2263 = vpack.c.b16 %v2163, %v2163
  %v2264 = vpack.c.b16 %v2164, %v2164
  %v2265 = vpack.c.b16 %v2165, %v2165
  %v2266 = vpack.c.b16 %v2166, %v2166
  %v2267 = vpack.c.b16 %v2167, %v2167
  %v2268 = vpack.c.b16 %v2168, %v2168
  %v2269 = vpack.c.b16 %v2169, %v2169
  %v2270 = vpack.c.b16 %v2170, %v2170
  %v2271 = vpack.c.b16 %v2171, %v2171
  %v2272 = vpack.c.b16 %v2172, %v2172
  %v2273 = vpack.c.b16 %v2173, %v2173
  %v2274 = vpack.c.b16 %v2174, %v2174
  %v2275 = vpack.c.b16 %v2175, %v2175
  %v2276 = vpack.c.b16 %v2176, %v2176
  %v2277 = vpack.c.b16 %v2177, %v2177
  %v2278 = vpack.c.b16 %v2178, %v2178
  %v2279 = vpack.c.b16 %v2179, %v2179
  %v2280 = vpack.c.b16 %v2180, %v2180
  %v2281 = vpack.c.b16 %v2181, %v2181
  %v2282 = vpack.c.b16 %v2182, %v2182
  %v2283 = vpack.c.b16 %v2183, %v2183
  %v2284 = vpack.c.b16 %v2184, %v2184
  %v2285 = vpack.c.b16 %v2185, %v2185
  %v2286 = vpack.c.b16 %v2186, %v2186
  %v2287 = vpack.c.b16 %v2187, %v2187
  %v2288 = vpack.c.b16 %v2188, %v2188
  %v2289 = vpack.c.b16 %v2189, %v2189
  %v2290 = vpack.c.b16 %v2190, %v2190
  %v2291 = vpack.c.b16 %v2191, %v2191
  %v2292 = vpack.c.b16 %v2192, %v2192
  %v2293 = vpack.c.b16 %v2193, %v2193
  %v2294 = vpack.c.b16 %v2194, %v2194
  %v2295 = vpack.c.b16 %v2195, %v2195
  %v2296 = vpack.c.b16 %v2196, %v2196
  %v2297 = vpack.c.b16 %v2197, %v2197
  %v2298 = vpack.c.b16 %v2198, %v2198
  %v2299 = vpack.c.b16 %v2199, %v2199
  %v2300 = vpack.c.b16 %v2200, %v2200
  %v2301 = vpack.c.b16 %v2201, %v2201
  %v2302 = vpack.c.b16 %v2202, %v2202
  %v2303 = vpack.c.b16 %v2203, %v2203
  %v2304 = vpack.c.b16 %v2204, %v2204
  %v2305 = vpack.c.b16 %v2205, %v2205
  %v2306 = vpack.c.b16 %v2206, %v2206
  %v2307 = vpack.c.b16 %v2207, %v2207
  %v2308 = vpack.c.b16 %v2208, %v2208
  %v2309 = vpack.c.b16 %v2209, %v2209
  %v2310 = vpack.c.b16 %v2210, %v2210
  %v2311 = vpack.c.b16 %v2211, %v2211
  %v2312 = vpack.c.b16 %v2212, %v2212
  %v2313 = vpack.c.b16 %v2213, %v2213
  %v2314 = vpack.c.b16 %v2214, %v2214
  %v2315 = vpack.c.b16 %v2215, %v2215
  %v2316 = vpack.c.b16 %v2216, %v2216
  %v2317 = vpack.c.b16 %v2217, %v2217
  %v2318 = vpack.c.b16 %v2218, %v2218
  %v2319 = vpack.c.b16 %v2219, %v2219
  %v2320 = vpack.c.b16 %v2220, %v2220
  %v2321 = vpack.c.b16 %v2221, %v2221
  %v2322 = vpack.c.b16 %v2222, %v2222
  %v2323 = vpack.c.b16 %v2223, %v2223
  %v2324 = vpack.c.b16 %v2224, %v2224
  %v2325 = vpack.c.b16 %v2225, %v2225
  %v2326 = vpack.c.b16 %v2226, %v2226
  %v2327 = vpack.c.b16 %v2227, %v2227
  %v2328 = vpack.c.b16 %v2228, %v2228
  %2429 = vst [vmem:[%s5] sm:$0xf] %v2229
  %2430 = vst [vmem:[%s5 + $0x4] sm:$0xf] %v2230
  %2431 = vst [vmem:[%s5 + $0x8] sm:$0xf] %v2231
  %2432 = vst [vmem:[%s5 + $0xc] sm:$0xf] %v2232
  %2433 = vst [vmem:[%s5 + $0x10] sm:$0xf] %v2233
  %2434 = vst [vmem:[%s5 + $0x14] sm:$0xf] %v2234
  %2435 = vst [vmem:[%s5 + $0x18] sm:$0xf] %v2235
  %2436 = vst [vmem:[%s5 + $0x1c] sm:$0xf] %v2236
  %2437 = vst [vmem:[%s5 + $0x20] sm:$0xf] %v2237
  %2438 = vst [vmem:[%s5 + $0x24] sm:$0xf] %v2238
  %2439 = vst [vmem:[%s5 + $0x28] sm:$0xf] %v2239
  %2440 = vst [vmem:[%s5 + $0x2c] sm:$0xf] %v2240
  %2441 = vst [vmem:[%s5 + $0x30] sm:$0xf] %v2241
  %2442 = vst [vmem:[%s5 + $0x34] sm:$0xf] %v2242
  %2443 = vst [vmem:[%s5 + $0x38] sm:$0xf] %v2243
  %2444 = vst [vmem:[%s5 + $0x3c] sm:$0xf] %v2244
  %2445 = vst [vmem:[%s5 + $0x40] sm:$0xf] %v2245
  %2446 = vst [vmem:[%s5 + $0x44] sm:$0xf] %v2246
  %2447 = vst [vmem:[%s5 + $0x48] sm:$0xf] %v2247
  %2448 = vst [vmem:[%s5 + $0x4c] sm:$0xf] %v2248
  %2449 = vst [vmem:[%s5 + $0x50] sm:$0xf] %v2249
  %2450 = vst [vmem:[%s5 + $0x54] sm:$0xf] %v2250
  %2451 = vst [vmem:[%s5 + $0x58] sm:$0xf] %v2251
  %2452 = vst [vmem:[%s5 + $0x5c] sm:$0xf] %v2252
  %2453 = vst [vmem:[%s5 + $0x60] sm:$0xf] %v2253
  %2454 = vst [vmem:[%s5 + $0x64] sm:$0xf] %v2254
  %2455 = vst [vmem:[%s5 + $0x68] sm:$0xf] %v2255
  %2456 = vst [vmem:[%s5 + $0x6c] sm:$0xf] %v2256
  %2457 = vst [vmem:[%s5 + $0x70] sm:$0xf] %v2257
  %2458 = vst [vmem:[%s5 + $0x74] sm:$0xf] %v2258
  %2459 = vst [vmem:[%s5 + $0x78] sm:$0xf] %v2259
  %2460 = vst [vmem:[%s5 + $0x7c] sm:$0xf] %v2260
  %2461 = vst [vmem:[%s5 + $0x80] sm:$0xf] %v2261
  %2462 = vst [vmem:[%s5 + $0x84] sm:$0xf] %v2262
  %2463 = vst [vmem:[%s5 + $0x88] sm:$0xf] %v2263
  %2464 = vst [vmem:[%s5 + $0x8c] sm:$0xf] %v2264
  %2465 = vst [vmem:[%s5 + $0x90] sm:$0xf] %v2265
  %2466 = vst [vmem:[%s5 + $0x94] sm:$0xf] %v2266
  %2467 = vst [vmem:[%s5 + $0x98] sm:$0xf] %v2267
  %2468 = vst [vmem:[%s5 + $0x9c] sm:$0xf] %v2268
  %2469 = vst [vmem:[%s5 + $0xa0] sm:$0xf] %v2269
  %2470 = vst [vmem:[%s5 + $0xa4] sm:$0xf] %v2270
  %2471 = vst [vmem:[%s5 + $0xa8] sm:$0xf] %v2271
  %2472 = vst [vmem:[%s5 + $0xac] sm:$0xf] %v2272
  %2473 = vst [vmem:[%s5 + $0xb0] sm:$0xf] %v2273
  %2474 = vst [vmem:[%s5 + $0xb4] sm:$0xf] %v2274
  %2475 = vst [vmem:[%s5 + $0xb8] sm:$0xf] %v2275
  %2476 = vst [vmem:[%s5 + $0xbc] sm:$0xf] %v2276
  %2477 = vst [vmem:[%s5 + $0xc0] sm:$0xf] %v2277
  %2478 = vst [vmem:[%s5 + $0xc4] sm:$0xf] %v2278
  %2479 = vst [vmem:[%s5 + $0xc8] sm:$0xf] %v2279
  %2480 = vst [vmem:[%s5 + $0xcc] sm:$0xf] %v2280
  %2481 = vst [vmem:[%s5 + $0xd0] sm:$0xf] %v2281
  %2482 = vst [vmem:[%s5 + $0xd4] sm:$0xf] %v2282
  %2483 = vst [vmem:[%s5 + $0xd8] sm:$0xf] %v2283
  %2484 = vst [vmem:[%s5 + $0xdc] sm:$0xf] %v2284
  %2485 = vst [vmem:[%s5 + $0xe0] sm:$0xf] %v2285
  %2486 = vst [vmem:[%s5 + $0xe4] sm:$0xf] %v2286
  %2487 = vst [vmem:[%s5 + $0xe8] sm:$0xf] %v2287
  %2488 = vst [vmem:[%s5 + $0xec] sm:$0xf] %v2288
  %2489 = vst [vmem:[%s5 + $0xf0] sm:$0xf] %v2289
  %2490 = vst [vmem:[%s5 + $0xf4] sm:$0xf] %v2290
  %2491 = vst [vmem:[%s5 + $0xf8] sm:$0xf] %v2291
  %2492 = vst [vmem:[%s5 + $0xfc] sm:$0xf] %v2292
  %2493 = vst [vmem:[%s5 + $0x100] sm:$0xf] %v2293
  %2494 = vst [vmem:[%s5 + $0x104] sm:$0xf] %v2294
  %2495 = vst [vmem:[%s5 + $0x108] sm:$0xf] %v2295
  %2496 = vst [vmem:[%s5 + $0x10c] sm:$0xf] %v2296
  %2497 = vst [vmem:[%s5 + $0x110] sm:$0xf] %v2297
  %2498 = vst [vmem:[%s5 + $0x114] sm:$0xf] %v2298
  %2499 = vst [vmem:[%s5 + $0x118] sm:$0xf] %v2299
  %2500 = vst [vmem:[%s5 + $0x11c] sm:$0xf] %v2300
  %2501 = vst [vmem:[%s5 + $0x120] sm:$0xf] %v2301
  %2502 = vst [vmem:[%s5 + $0x124] sm:$0xf] %v2302
  %2503 = vst [vmem:[%s5 + $0x128] sm:$0xf] %v2303
  %2504 = vst [vmem:[%s5 + $0x12c] sm:$0xf] %v2304
  %2505 = vst [vmem:[%s5 + $0x130] sm:$0xf] %v2305
  %2506 = vst [vmem:[%s5 + $0x134] sm:$0xf] %v2306
  %2507 = vst [vmem:[%s5 + $0x138] sm:$0xf] %v2307
  %2508 = vst [vmem:[%s5 + $0x13c] sm:$0xf] %v2308
  %2509 = vst [vmem:[%s5 + $0x140] sm:$0xf] %v2309
  %2510 = vst [vmem:[%s5 + $0x144] sm:$0xf] %v2310
  %2511 = vst [vmem:[%s5 + $0x148] sm:$0xf] %v2311
  %2512 = vst [vmem:[%s5 + $0x14c] sm:$0xf] %v2312
  %2513 = vst [vmem:[%s5 + $0x150] sm:$0xf] %v2313
  %2514 = vst [vmem:[%s5 + $0x154] sm:$0xf] %v2314
  %2515 = vst [vmem:[%s5 + $0x158] sm:$0xf] %v2315
  %2516 = vst [vmem:[%s5 + $0x15c] sm:$0xf] %v2316
  %2517 = vst [vmem:[%s5 + $0x160] sm:$0xf] %v2317
  %2518 = vst [vmem:[%s5 + $0x164] sm:$0xf] %v2318
  %2519 = vst [vmem:[%s5 + $0x168] sm:$0xf] %v2319
  %2520 = vst [vmem:[%s5 + $0x16c] sm:$0xf] %v2320
  %2521 = vst [vmem:[%s5 + $0x170] sm:$0xf] %v2321
  %2522 = vst [vmem:[%s5 + $0x174] sm:$0xf] %v2322
  %2523 = vst [vmem:[%s5 + $0x178] sm:$0xf] %v2323
  %2524 = vst [vmem:[%s5 + $0x17c] sm:$0xf] %v2324
  %2525 = vst [vmem:[%s5 + $0x180] sm:$0xf] %v2325
  %2526 = vst [vmem:[%s5 + $0x184] sm:$0xf] %v2326
  %2527 = vst [vmem:[%s5 + $0x188] sm:$0xf] %v2327
  %2528 = vst [vmem:[%s5 + $0x18c] sm:$0xf] %v2328
  // Predicated region
  $region22: #{netd3d_forward.5} parent=0 // pred_check
    _
  $region23: #{netd3d_forward.5} parent=0 // pred_check_branch
    %2530 = sbr.rel (0) target = $region25
  $region24: #{netd3d_forward.5} parent=0 // pred_region
    _
  $region25: #{netd3d_forward.5} parent=0 // pred_fallthru
    _
  // Predicated region
  $region26: #{netd3d_forward.5} parent=0 // pred_check
    _
  $region27: #{netd3d_forward.5} parent=0 // pred_check_branch
    %2532 = sbr.rel (0) target = $region29
  $region28: #{netd3d_forward.5} parent=0 // pred_region
    _
  $region29: #{netd3d_forward.5} parent=0 // pred_fallthru
    _

// kernel: netd3d_forward.6
$region0: #{netd3d_forward.6}
  #allocation0 [shape = 'u32[]', space=smem, size = 0x4, offset = 0x4, fixed_abs, tag = 'smem constant byte address 0x4 - core index']
  #allocation1 [shape = 'u32[144,128]{1,0:T(1,128)}', space=vmem, size = 0x12000, scoped, tag = 'internal scratch']
  %s0 = inlined_call_operand.vmem [shape: bf16[288,1764], index: 0, kind: input, shape index: {}]
  %s1 = inlined_call_operand.vmem [shape: bf16[1764,128], index: 1, kind: input, shape index: {}]
  %s2 = inlined_call_operand.vmem [shape: f32[1,128], index: 2, kind: input, shape index: {}]
  %s3 = inlined_call_operand.vmem [shape: f32[1,128], index: 3, kind: input, shape index: {}]
  %s4 = inlined_call_operand.vmem [shape: f32[1,128], index: 4, kind: input, shape index: {}]
  %s5 = inlined_call_operand.vmem [shape: bf16[288,128], index: 5, kind: output, shape index: {}]
  %s6 = sld [smem:[#allocation0]]
  $region30: #{netd3d_forward.6} parent=0
    _
  %s8 = ssub.s32 1, %s6
  %s9 = scalar_select 0, %s8, %s6
  // Predicated region
  $region2: #{netd3d_forward.6} parent=0 // pred_check
    _
  $region3: #{netd3d_forward.6} parent=0 // pred_check_branch
    %11 = sbr.rel (0) target = $region5
  $region4: #{netd3d_forward.6} parent=0 // pred_region
    _
  $region5: #{netd3d_forward.6} parent=0 // pred_fallthru
    _
  // Predicated region
  $region6: #{netd3d_forward.6} parent=0 // pred_check
    _
  $region7: #{netd3d_forward.6} parent=0 // pred_check_branch
    %13 = sbr.rel (0) target = $region9
  $region8: #{netd3d_forward.6} parent=0 // pred_region
    _
  $region9: #{netd3d_forward.6} parent=0 // pred_fallthru
    _
  // Predicated region
  $region10: #{netd3d_forward.6} parent=0 // pred_check
    _
  $region11: #{netd3d_forward.6} parent=0 // pred_check_branch
    %15 = sbr.rel (0) target = $region13
  $region12: #{netd3d_forward.6} parent=0 // pred_region
    _
  $region13: #{netd3d_forward.6} parent=0 // pred_fallthru
    _
  // Predicated region
  $region14: #{netd3d_forward.6} parent=0 // pred_check
    _
  $region15: #{netd3d_forward.6} parent=0 // pred_check_branch
    %17 = sbr.rel (0) target = $region17
  $region16: #{netd3d_forward.6} parent=0 // pred_region
    _
  $region17: #{netd3d_forward.6} parent=0 // pred_fallthru
    _
  // Predicated region
  $region18: #{netd3d_forward.6} parent=0 // pred_check
    _
  $region19: #{netd3d_forward.6} parent=0 // pred_check_branch
    %19 = sbr.rel (0) target = $region21
  $region20: #{netd3d_forward.6} parent=0 // pred_region
    _
  $region21: #{netd3d_forward.6} parent=0 // pred_fallthru
    _
  %v21 = vld [vmem:[%s0] sm:$0xff]
  %v22 = vld [vmem:[%s0 + $0x8] sm:$0xff]
  %v23 = vld [vmem:[%s0 + $0x10] sm:$0xff]
  %v24 = vld [vmem:[%s0 + $0x18] sm:$0xff]
  %v25 = vld [vmem:[%s0 + $0x20] sm:$0xff]
  %v26 = vld [vmem:[%s0 + $0x28] sm:$0xff]
  %v27 = vld [vmem:[%s0 + $0x30] sm:$0xff]
  %v28 = vld [vmem:[%s0 + $0x38] sm:$0xff]
  %v29 = vld [vmem:[%s0 + $0x40] sm:$0xff]
  %v30 = vld [vmem:[%s0 + $0x48] sm:$0xff]
  %v31 = vld [vmem:[%s0 + $0x50] sm:$0xff]
  %v32 = vld [vmem:[%s0 + $0x58] sm:$0xff]
  %v33 = vld [vmem:[%s0 + $0x60] sm:$0xff]
  %v34 = vld [vmem:[%s0 + $0x68] sm:$0xff]
  %v35 = vld [vmem:[%s0 + $0x70] sm:$0xff]
  %v36 = vld [vmem:[%s0 + $0x78] sm:$0xff]
  %v37 = vld [vmem:[%s0 + $0x80] sm:$0xff]
  %v38 = vld [vmem:[%s0 + $0x88] sm:$0xff]
  %v39 = vld [vmem:[%s0 + $0x90] sm:$0xff]
  %v40 = vld [vmem:[%s0 + $0x98] sm:$0xff]
  %v41 = vld [vmem:[%s0 + $0xa0] sm:$0xff]
  %v42 = vld [vmem:[%s0 + $0xa8] sm:$0xff]
  %v43 = vld [vmem:[%s0 + $0xb0] sm:$0xff]
  %v44 = vld [vmem:[%s0 + $0xb8] sm:$0xff]
  %v45 = vld [vmem:[%s0 + $0xc0] sm:$0xff]
  %v46 = vld [vmem:[%s0 + $0xc8] sm:$0xff]
  %v47 = vld [vmem:[%s0 + $0xd0] sm:$0xff]
  %v48 = vld [vmem:[%s0 + $0xd8] sm:$0xff]
  %v49 = vld [vmem:[%s0 + $0xe0] sm:$0xff]
  %v50 = vld [vmem:[%s0 + $0xe8] sm:$0xff]
  %v51 = vld [vmem:[%s0 + $0xf0] sm:$0xff]
  %v52 = vld [vmem:[%s0 + $0xf8] sm:$0xff]
  %v53 = vld [vmem:[%s0 + $0x100] sm:$0xff]
  %v54 = vld [vmem:[%s0 + $0x108] sm:$0xff]
  %v55 = vld [vmem:[%s0 + $0x110] sm:$0xff]
  %v56 = vld [vmem:[%s0 + $0x118] sm:$0xff]
  %v57 = vld [vmem:[%s0 + $0x120] sm:$0xff]
  %v58 = vld [vmem:[%s0 + $0x128] sm:$0xff]
  %v59 = vld [vmem:[%s0 + $0x130] sm:$0xff]
  %v60 = vld [vmem:[%s0 + $0x138] sm:$0xff]
  %v61 = vld [vmem:[%s0 + $0x140] sm:$0xff]
  %v62 = vld [vmem:[%s0 + $0x148] sm:$0xff]
  %v63 = vld [vmem:[%s0 + $0x150] sm:$0xff]
  %v64 = vld [vmem:[%s0 + $0x158] sm:$0xff]
  %v65 = vld [vmem:[%s0 + $0x160] sm:$0xff]
  %v66 = vld [vmem:[%s0 + $0x168] sm:$0xff]
  %v67 = vld [vmem:[%s0 + $0x170] sm:$0xff]
  %v68 = vld [vmem:[%s0 + $0x178] sm:$0xff]
  %v69 = vld [vmem:[%s0 + $0x180] sm:$0xff]
  %v70 = vld [vmem:[%s0 + $0x188] sm:$0xff]
  %v71 = vld [vmem:[%s0 + $0x190] sm:$0xff]
  %v72 = vld [vmem:[%s0 + $0x198] sm:$0xff]
  %v73 = vld [vmem:[%s0 + $0x1a0] sm:$0xff]
  %v74 = vld [vmem:[%s0 + $0x1a8] sm:$0xff]
  %v75 = vld [vmem:[%s0 + $0x1b0] sm:$0xff]
  %v76 = vld [vmem:[%s0 + $0x1b8] sm:$0xff]
  %v77 = vld [vmem:[%s0 + $0x1c0] sm:$0xff]
  %v78 = vld [vmem:[%s0 + $0x1c8] sm:$0xff]
  %v79 = vld [vmem:[%s0 + $0x1d0] sm:$0xff]
  %v80 = vld [vmem:[%s0 + $0x1d8] sm:$0xff]
  %v81 = vld [vmem:[%s0 + $0x1e0] sm:$0xff]
  %v82 = vld [vmem:[%s0 + $0x1e8] sm:$0xff]
  %v83 = vld [vmem:[%s0 + $0x1f0] sm:$0xff]
  %v84 = vld [vmem:[%s0 + $0x1f8] sm:$0xff]
  %v85 = vld [vmem:[%s0 + $0x200] sm:$0xff]
  %v86 = vld [vmem:[%s0 + $0x208] sm:$0xff]
  %v87 = vld [vmem:[%s0 + $0x210] sm:$0xff]
  %v88 = vld [vmem:[%s0 + $0x218] sm:$0xff]
  %v89 = vld [vmem:[%s0 + $0x220] sm:$0xff]
  %v90 = vld [vmem:[%s0 + $0x228] sm:$0xff]
  %v91 = vld [vmem:[%s0 + $0x230] sm:$0xff]
  %v92 = vld [vmem:[%s0 + $0x238] sm:$0xff]
  %v93 = vld [vmem:[%s0 + $0x240] sm:$0xff]
  %v94 = vld [vmem:[%s0 + $0x248] sm:$0xff]
  %v95 = vld [vmem:[%s0 + $0x250] sm:$0xff]
  %v96 = vld [vmem:[%s0 + $0x258] sm:$0xff]
  %v97 = vld [vmem:[%s0 + $0x260] sm:$0xff]
  %v98 = vld [vmem:[%s0 + $0x268] sm:$0xff]
  %v99 = vld [vmem:[%s0 + $0x270] sm:$0xff]
  %v100 = vld [vmem:[%s0 + $0x278] sm:$0xff]
  %v101 = vld [vmem:[%s0 + $0x280] sm:$0xff]
  %v102 = vld [vmem:[%s0 + $0x288] sm:$0xff]
  %v103 = vld [vmem:[%s0 + $0x290] sm:$0xff]
  %v104 = vld [vmem:[%s0 + $0x298] sm:$0xff]
  %v105 = vld [vmem:[%s0 + $0x2a0] sm:$0xff]
  %v106 = vld [vmem:[%s0 + $0x2a8] sm:$0xff]
  %v107 = vld [vmem:[%s0 + $0x2b0] sm:$0xff]
  %v108 = vld [vmem:[%s0 + $0x2b8] sm:$0xff]
  %v109 = vld [vmem:[%s0 + $0x2c0] sm:$0xff]
  %v110 = vld [vmem:[%s0 + $0x2c8] sm:$0xff]
  %v111 = vld [vmem:[%s0 + $0x2d0] sm:$0xff]
  %v112 = vld [vmem:[%s0 + $0x2d8] sm:$0xff]
  %v113 = vld [vmem:[%s0 + $0x2e0] sm:$0xff]
  %v114 = vld [vmem:[%s0 + $0x2e8] sm:$0xff]
  %v115 = vld [vmem:[%s0 + $0x2f0] sm:$0xff]
  %v116 = vld [vmem:[%s0 + $0x2f8] sm:$0xff]
  %v117 = vld [vmem:[%s0 + $0x300] sm:$0xff]
  %v118 = vld [vmem:[%s0 + $0x308] sm:$0xff]
  %v119 = vld [vmem:[%s0 + $0x310] sm:$0xff]
  %v120 = vld [vmem:[%s0 + $0x318] sm:$0xff]
  %v121 = vld [vmem:[%s0 + $0x320] sm:$0xff]
  %v122 = vld [vmem:[%s0 + $0x328] sm:$0xff]
  %v123 = vld [vmem:[%s0 + $0x330] sm:$0xff]
  %v124 = vld [vmem:[%s0 + $0x338] sm:$0xff]
  %v125 = vld [vmem:[%s0 + $0x340] sm:$0xff]
  %v126 = vld [vmem:[%s0 + $0x348] sm:$0xff]
  %v127 = vld [vmem:[%s0 + $0x350] sm:$0xff]
  %v128 = vld [vmem:[%s0 + $0x358] sm:$0xff]
  %v129 = vld [vmem:[%s0 + $0x360] sm:$0xff]
  %v130 = vld [vmem:[%s0 + $0x368] sm:$0xff]
  %v131 = vld [vmem:[%s0 + $0x370] sm:$0xff]
  %v132 = vld [vmem:[%s0 + $0x378] sm:$0xff]
  %v133 = vld [vmem:[%s0 + $0x380] sm:$0xff]
  %v134 = vld [vmem:[%s0 + $0x388] sm:$0xff]
  %v135 = vld [vmem:[%s0 + $0x390] sm:$0xff]
  %v136 = vld [vmem:[%s0 + $0x398] sm:$0xff]
  %v137 = vld [vmem:[%s0 + $0x3a0] sm:$0xff]
  %v138 = vld [vmem:[%s0 + $0x3a8] sm:$0xff]
  %v139 = vld [vmem:[%s0 + $0x3b0] sm:$0xff]
  %v140 = vld [vmem:[%s0 + $0x3b8] sm:$0xff]
  %v141 = vld [vmem:[%s0 + $0x3c0] sm:$0xff]
  %v142 = vld [vmem:[%s0 + $0x3c8] sm:$0xff]
  %v143 = vld [vmem:[%s0 + $0x3d0] sm:$0xff]
  %v144 = vld [vmem:[%s0 + $0x3d8] sm:$0xff]
  %v145 = vld [vmem:[%s0 + $0x3e0] sm:$0xff]
  %v146 = vld [vmem:[%s0 + $0x3e8] sm:$0xff]
  %v147 = vld [vmem:[%s0 + $0x3f0] sm:$0xff]
  %v148 = vld [vmem:[%s0 + $0x3f8] sm:$0xff]
  %v149 = vld [vmem:[%s0 + $0x400] sm:$0xff]
  %v150 = vld [vmem:[%s0 + $0x408] sm:$0xff]
  %v151 = vld [vmem:[%s0 + $0x410] sm:$0xff]
  %v152 = vld [vmem:[%s0 + $0x418] sm:$0xff]
  %v153 = vld [vmem:[%s0 + $0x420] sm:$0xff]
  %v154 = vld [vmem:[%s0 + $0x428] sm:$0xff]
  %v155 = vld [vmem:[%s0 + $0x430] sm:$0xff]
  %v156 = vld [vmem:[%s0 + $0x438] sm:$0xff]
  %v157 = vld [vmem:[%s0 + $0x440] sm:$0xff]
  %v158 = vld [vmem:[%s0 + $0x448] sm:$0xff]
  %v159 = vld [vmem:[%s0 + $0x450] sm:$0xff]
  %v160 = vld [vmem:[%s0 + $0x458] sm:$0xff]
  %v161 = vld [vmem:[%s0 + $0x460] sm:$0xff]
  %v162 = vld [vmem:[%s0 + $0x468] sm:$0xff]
  %v163 = vld [vmem:[%s0 + $0x470] sm:$0xff]
  %v164 = vld [vmem:[%s0 + $0x478] sm:$0xff]
  %v165 = vld [vmem:[%s0 + $0x480] sm:$0xff]
  %v166 = vld [vmem:[%s0 + $0x488] sm:$0xff]
  %v167 = vld [vmem:[%s0 + $0x490] sm:$0xff]
  %v168 = vld [vmem:[%s0 + $0x498] sm:$0xff]
  %v169 = vld [vmem:[%s0 + $0x4a0] sm:$0xff]
  %v170 = vld [vmem:[%s0 + $0x4a8] sm:$0xff]
  %v171 = vld [vmem:[%s0 + $0x4b0] sm:$0xff]
  %v172 = vld [vmem:[%s0 + $0x4b8] sm:$0xff]
  %v173 = vld [vmem:[%s0 + $0x4c0] sm:$0xff]
  %v174 = vld [vmem:[%s0 + $0x4c8] sm:$0xff]
  %v175 = vld [vmem:[%s0 + $0x4d0] sm:$0xff]
  %v176 = vld [vmem:[%s0 + $0x4d8] sm:$0xff]
  %v177 = vld [vmem:[%s0 + $0x4e0] sm:$0xff]
  %v178 = vld [vmem:[%s0 + $0x4e8] sm:$0xff]
  %v179 = vld [vmem:[%s0 + $0x4f0] sm:$0xff]
  %v180 = vld [vmem:[%s0 + $0x4f8] sm:$0xff]
  %v181 = vld [vmem:[%s0 + $0x500] sm:$0xff]
  %v182 = vld [vmem:[%s0 + $0x508] sm:$0xff]
  %v183 = vld [vmem:[%s0 + $0x510] sm:$0xff]
  %v184 = vld [vmem:[%s0 + $0x518] sm:$0xff]
  %v185 = vld [vmem:[%s0 + $0x520] sm:$0xff]
  %v186 = vld [vmem:[%s0 + $0x528] sm:$0xff]
  %v187 = vld [vmem:[%s0 + $0x530] sm:$0xff]
  %v188 = vld [vmem:[%s0 + $0x538] sm:$0xff]
  %v189 = vld [vmem:[%s0 + $0x540] sm:$0xff]
  %v190 = vld [vmem:[%s0 + $0x548] sm:$0xff]
  %v191 = vld [vmem:[%s0 + $0x550] sm:$0xff]
  %v192 = vld [vmem:[%s0 + $0x558] sm:$0xff]
  %v193 = vld [vmem:[%s0 + $0x560] sm:$0xff]
  %v194 = vld [vmem:[%s0 + $0x568] sm:$0xff]
  %v195 = vld [vmem:[%s0 + $0x570] sm:$0xff]
  %v196 = vld [vmem:[%s0 + $0x578] sm:$0xff]
  %v197 = vld [vmem:[%s0 + $0x580] sm:$0xff]
  %v198 = vld [vmem:[%s0 + $0x588] sm:$0xff]
  %v199 = vld [vmem:[%s0 + $0x590] sm:$0xff]
  %v200 = vld [vmem:[%s0 + $0x598] sm:$0xff]
  %v201 = vld [vmem:[%s0 + $0x5a0] sm:$0xff]
  %v202 = vld [vmem:[%s0 + $0x5a8] sm:$0xff]
  %v203 = vld [vmem:[%s0 + $0x5b0] sm:$0xff]
  %v204 = vld [vmem:[%s0 + $0x5b8] sm:$0xff]
  %v205 = vld [vmem:[%s0 + $0x5c0] sm:$0xff]
  %v206 = vld [vmem:[%s0 + $0x5c8] sm:$0xff]
  %v207 = vld [vmem:[%s0 + $0x5d0] sm:$0xff]
  %v208 = vld [vmem:[%s0 + $0x5d8] sm:$0xff]
  %v209 = vld [vmem:[%s0 + $0x5e0] sm:$0xff]
  %v210 = vld [vmem:[%s0 + $0x5e8] sm:$0xff]
  %v211 = vld [vmem:[%s0 + $0x5f0] sm:$0xff]
  %v212 = vld [vmem:[%s0 + $0x5f8] sm:$0xff]
  %v213 = vld [vmem:[%s0 + $0x600] sm:$0xff]
  %v214 = vld [vmem:[%s0 + $0x608] sm:$0xff]
  %v215 = vld [vmem:[%s0 + $0x610] sm:$0xff]
  %v216 = vld [vmem:[%s0 + $0x618] sm:$0xff]
  %v217 = vld [vmem:[%s0 + $0x620] sm:$0xff]
  %v218 = vld [vmem:[%s0 + $0x628] sm:$0xff]
  %v219 = vld [vmem:[%s0 + $0x630] sm:$0xff]
  %v220 = vld [vmem:[%s0 + $0x638] sm:$0xff]
  %v221 = vld [vmem:[%s0 + $0x640] sm:$0xff]
  %v222 = vld [vmem:[%s0 + $0x648] sm:$0xff]
  %v223 = vld [vmem:[%s0 + $0x650] sm:$0xff]
  %v224 = vld [vmem:[%s0 + $0x658] sm:$0xff]
  %v225 = vld [vmem:[%s0 + $0x660] sm:$0xff]
  %v226 = vld [vmem:[%s0 + $0x668] sm:$0xff]
  %v227 = vld [vmem:[%s0 + $0x670] sm:$0xff]
  %v228 = vld [vmem:[%s0 + $0x678] sm:$0xff]
  %v229 = vld [vmem:[%s0 + $0x680] sm:$0xff]
  %v230 = vld [vmem:[%s0 + $0x688] sm:$0xff]
  %v231 = vld [vmem:[%s0 + $0x690] sm:$0xff]
  %v232 = vld [vmem:[%s0 + $0x698] sm:$0xff]
  %v233 = vld [vmem:[%s0 + $0x6a0] sm:$0xff]
  %v234 = vld [vmem:[%s0 + $0x6a8] sm:$0xff]
  %v235 = vld [vmem:[%s0 + $0x6b0] sm:$0xff]
  %v236 = vld [vmem:[%s0 + $0x6b8] sm:$0xff]
  %v237 = vld [vmem:[%s0 + $0x6c0] sm:$0xff]
  %v238 = vld [vmem:[%s0 + $0x6c8] sm:$0xff]
  %v239 = vld [vmem:[%s0 + $0x6d0] sm:$0xff]
  %v240 = vld [vmem:[%s0 + $0x6d8] sm:$0xff]
  %v241 = vld [vmem:[%s0 + $0x6e0] sm:$0xff]
  %v242 = vld [vmem:[%s0 + $0x6e8] sm:$0xff]
  %v243 = vld [vmem:[%s0 + $0x6f0] sm:$0xff]
  %v244 = vld [vmem:[%s0 + $0x6f8] sm:$0xff]
  %v245 = vld [vmem:[%s0 + $0x700] sm:$0xff]
  %v246 = vld [vmem:[%s0 + $0x708] sm:$0xff]
  %v247 = vld [vmem:[%s0 + $0x710] sm:$0xff]
  %v248 = vld [vmem:[%s0 + $0x718] sm:$0xff]
  %v249 = vld [vmem:[%s0 + $0x720] sm:$0xff]
  %v250 = vld [vmem:[%s0 + $0x728] sm:$0xff]
  %v251 = vld [vmem:[%s0 + $0x730] sm:$0xff]
  %v252 = vld [vmem:[%s0 + $0x738] sm:$0xff]
  %v253 = vld [vmem:[%s0 + $0x740] sm:$0xff]
  %v254 = vld [vmem:[%s0 + $0x748] sm:$0xff]
  %v255 = vld [vmem:[%s0 + $0x750] sm:$0xff]
  %v256 = vld [vmem:[%s0 + $0x758] sm:$0xff]
  %v257 = vld [vmem:[%s0 + $0x760] sm:$0xff]
  %v258 = vld [vmem:[%s0 + $0x768] sm:$0xff]
  %v259 = vld [vmem:[%s0 + $0x770] sm:$0xff]
  %v260 = vld [vmem:[%s0 + $0x778] sm:$0xff]
  %v261 = vld [vmem:[%s0 + $0x780] sm:$0xff]
  %v262 = vld [vmem:[%s0 + $0x788] sm:$0xff]
  %v263 = vld [vmem:[%s0 + $0x790] sm:$0xff]
  %v264 = vld [vmem:[%s0 + $0x798] sm:$0xff]
  %v265 = vld [vmem:[%s0 + $0x7a0] sm:$0xff]
  %v266 = vld [vmem:[%s0 + $0x7a8] sm:$0xff]
  %v267 = vld [vmem:[%s0 + $0x7b0] sm:$0xff]
  %v268 = vld [vmem:[%s0 + $0x7b8] sm:$0xff]
  %v269 = vld [vmem:[%s0 + $0x7c0] sm:$0xff]
  %v270 = vld [vmem:[%s0 + $0x7c8] sm:$0xff]
  %v271 = vld [vmem:[%s0 + $0x7d0] sm:$0xff]
  %v272 = vld [vmem:[%s0 + $0x7d8] sm:$0xff]
  %v273 = vld [vmem:[%s1] sm:$0xf]
  %v274 = vld [vmem:[%s1 + $0x4] sm:$0xf]
  %v275 = vld [vmem:[%s1 + $0x8] sm:$0xf]
  %v276 = vld [vmem:[%s1 + $0xc] sm:$0xf]
  %v277 = vld [vmem:[%s1 + $0x10] sm:$0xf]
  %v278 = vld [vmem:[%s1 + $0x14] sm:$0xf]
  %v279 = vld [vmem:[%s1 + $0x18] sm:$0xf]
  %v280 = vld [vmem:[%s1 + $0x1c] sm:$0xf]
  %v281 = vld [vmem:[%s1 + $0x20] sm:$0xf]
  %v282 = vld [vmem:[%s1 + $0x24] sm:$0xf]
  %v283 = vld [vmem:[%s1 + $0x28] sm:$0xf]
  %v284 = vld [vmem:[%s1 + $0x2c] sm:$0xf]
  %v285 = vld [vmem:[%s1 + $0x30] sm:$0xf]
  %v286 = vld [vmem:[%s1 + $0x34] sm:$0xf]
  %v287 = vld [vmem:[%s1 + $0x38] sm:$0xf]
  %v288 = vld [vmem:[%s1 + $0x3c] sm:$0xf]
  %v289 = vld [vmem:[%s1 + $0x40] sm:$0xf]
  %v290 = vld [vmem:[%s1 + $0x44] sm:$0xf]
  %v291 = vld [vmem:[%s1 + $0x48] sm:$0xf]
  %v292 = vld [vmem:[%s1 + $0x4c] sm:$0xf]
  %v293 = vld [vmem:[%s1 + $0x50] sm:$0xf]
  %v294 = vld [vmem:[%s1 + $0x54] sm:$0xf]
  %v295 = vld [vmem:[%s1 + $0x58] sm:$0xf]
  %v296 = vld [vmem:[%s1 + $0x5c] sm:$0xf]
  %v297 = vld [vmem:[%s1 + $0x60] sm:$0xf]
  %v298 = vld [vmem:[%s1 + $0x64] sm:$0xf]
  %v299 = vld [vmem:[%s1 + $0x68] sm:$0xf]
  %v300 = vld [vmem:[%s1 + $0x6c] sm:$0xf]
  %v301 = vld [vmem:[%s1 + $0x70] sm:$0xf]
  %v302 = vld [vmem:[%s1 + $0x74] sm:$0xf]
  %v303 = vld [vmem:[%s1 + $0x78] sm:$0xf]
  %v304 = vld [vmem:[%s1 + $0x7c] sm:$0xf]
  %v305 = vld [vmem:[%s1 + $0x80] sm:$0xf]
  %v306 = vld [vmem:[%s1 + $0x84] sm:$0xf]
  %v307 = vld [vmem:[%s1 + $0x88] sm:$0xf]
  %v308 = vld [vmem:[%s1 + $0x8c] sm:$0xf]
  %v309 = vld [vmem:[%s1 + $0x90] sm:$0xf]
  %v310 = vld [vmem:[%s1 + $0x94] sm:$0xf]
  %v311 = vld [vmem:[%s1 + $0x98] sm:$0xf]
  %v312 = vld [vmem:[%s1 + $0x9c] sm:$0xf]
  %v313 = vld [vmem:[%s1 + $0xa0] sm:$0xf]
  %v314 = vld [vmem:[%s1 + $0xa4] sm:$0xf]
  %v315 = vld [vmem:[%s1 + $0xa8] sm:$0xf]
  %v316 = vld [vmem:[%s1 + $0xac] sm:$0xf]
  %v317 = vld [vmem:[%s1 + $0xb0] sm:$0xf]
  %v318 = vld [vmem:[%s1 + $0xb4] sm:$0xf]
  %v319 = vld [vmem:[%s1 + $0xb8] sm:$0xf]
  %v320 = vld [vmem:[%s1 + $0xbc] sm:$0xf]
  %v321 = vld [vmem:[%s1 + $0xc0] sm:$0xf]
  %v322 = vld [vmem:[%s1 + $0xc4] sm:$0xf]
  %v323 = vld [vmem:[%s1 + $0xc8] sm:$0xf]
  %v324 = vld [vmem:[%s1 + $0xcc] sm:$0xf]
  %v325 = vld [vmem:[%s1 + $0xd0] sm:$0xf]
  %v326 = vld [vmem:[%s1 + $0xd4] sm:$0xf]
  %v327 = vld [vmem:[%s1 + $0xd8] sm:$0xf]
  %v328 = vld [vmem:[%s1 + $0xdc] sm:$0xf]
  %v329 = vld [vmem:[%s1 + $0xe0] sm:$0xf]
  %v330 = vld [vmem:[%s1 + $0xe4] sm:$0xf]
  %v331 = vld [vmem:[%s1 + $0xe8] sm:$0xf]
  %v332 = vld [vmem:[%s1 + $0xec] sm:$0xf]
  %v333 = vld [vmem:[%s1 + $0xf0] sm:$0xf]
  %v334 = vld [vmem:[%s1 + $0xf4] sm:$0xf]
  %v335 = vld [vmem:[%s1 + $0xf8] sm:$0xf]
  %v336 = vld [vmem:[%s1 + $0xfc] sm:$0xf]
  %v337 = vld [vmem:[%s1 + $0x100] sm:$0xf]
  %v338 = vld [vmem:[%s1 + $0x104] sm:$0xf]
  %v339 = vld [vmem:[%s1 + $0x108] sm:$0xf]
  %v340 = vld [vmem:[%s1 + $0x10c] sm:$0xf]
  %v341 = vld [vmem:[%s1 + $0x110] sm:$0xf]
  %v342 = vld [vmem:[%s1 + $0x114] sm:$0xf]
  %v343 = vld [vmem:[%s1 + $0x118] sm:$0xf]
  %v344 = vld [vmem:[%s1 + $0x11c] sm:$0xf]
  %v345 = vld [vmem:[%s1 + $0x120] sm:$0xf]
  %v346 = vld [vmem:[%s1 + $0x124] sm:$0xf]
  %v347 = vld [vmem:[%s1 + $0x128] sm:$0xf]
  %v348 = vld [vmem:[%s1 + $0x12c] sm:$0xf]
  %v349 = vld [vmem:[%s1 + $0x130] sm:$0xf]
  %v350 = vld [vmem:[%s1 + $0x134] sm:$0xf]
  %v351 = vld [vmem:[%s1 + $0x138] sm:$0xf]
  %v352 = vld [vmem:[%s1 + $0x13c] sm:$0xf]
  %v353 = vld [vmem:[%s1 + $0x140] sm:$0xf]
  %v354 = vld [vmem:[%s1 + $0x144] sm:$0xf]
  %v355 = vld [vmem:[%s1 + $0x148] sm:$0xf]
  %v356 = vld [vmem:[%s1 + $0x14c] sm:$0xf]
  %v357 = vld [vmem:[%s1 + $0x150] sm:$0xf]
  %v358 = vld [vmem:[%s1 + $0x154] sm:$0xf]
  %v359 = vld [vmem:[%s1 + $0x158] sm:$0xf]
  %v360 = vld [vmem:[%s1 + $0x15c] sm:$0xf]
  %v361 = vld [vmem:[%s1 + $0x160] sm:$0xf]
  %v362 = vld [vmem:[%s1 + $0x164] sm:$0xf]
  %v363 = vld [vmem:[%s1 + $0x168] sm:$0xf]
  %v364 = vld [vmem:[%s1 + $0x16c] sm:$0xf]
  %v365 = vld [vmem:[%s1 + $0x170] sm:$0xf]
  %v366 = vld [vmem:[%s1 + $0x174] sm:$0xf]
  %v367 = vld [vmem:[%s1 + $0x178] sm:$0xf]
  %v368 = vld [vmem:[%s1 + $0x17c] sm:$0xf]
  %v369 = vld [vmem:[%s1 + $0x180] sm:$0xf]
  %v370 = vld [vmem:[%s1 + $0x184] sm:$0xf]
  %v371 = vld [vmem:[%s1 + $0x188] sm:$0xf]
  %v372 = vld [vmem:[%s1 + $0x18c] sm:$0xf]
  %v373 = vld [vmem:[%s1 + $0x190] sm:$0xf]
  %v374 = vld [vmem:[%s1 + $0x194] sm:$0xf]
  %v375 = vld [vmem:[%s1 + $0x198] sm:$0xf]
  %v376 = vld [vmem:[%s1 + $0x19c] sm:$0xf]
  %v377 = vld [vmem:[%s1 + $0x1a0] sm:$0xf]
  %v378 = vld [vmem:[%s1 + $0x1a4] sm:$0xf]
  %v379 = vld [vmem:[%s1 + $0x1a8] sm:$0xf]
  %v380 = vld [vmem:[%s1 + $0x1ac] sm:$0xf]
  %v381 = vld [vmem:[%s1 + $0x1b0] sm:$0xf]
  %v382 = vld [vmem:[%s1 + $0x1b4] sm:$0xf]
  %v383 = vld [vmem:[%s1 + $0x1b8] sm:$0xf]
  %v384 = vld [vmem:[%s1 + $0x1bc] sm:$0xf]
  %v385 = vld [vmem:[%s1 + $0x1c0] sm:$0xf]
  %v386 = vld [vmem:[%s1 + $0x1c4] sm:$0xf]
  %v387 = vld [vmem:[%s1 + $0x1c8] sm:$0xf]
  %v388 = vld [vmem:[%s1 + $0x1cc] sm:$0xf]
  %v389 = vld [vmem:[%s1 + $0x1d0] sm:$0xf]
  %v390 = vld [vmem:[%s1 + $0x1d4] sm:$0xf]
  %v391 = vld [vmem:[%s1 + $0x1d8] sm:$0xf]
  %v392 = vld [vmem:[%s1 + $0x1dc] sm:$0xf]
  %v393 = vld [vmem:[%s1 + $0x1e0] sm:$0xf]
  %v394 = vld [vmem:[%s1 + $0x1e4] sm:$0xf]
  %v395 = vld [vmem:[%s1 + $0x1e8] sm:$0xf]
  %v396 = vld [vmem:[%s1 + $0x1ec] sm:$0xf]
  %v397 = vld [vmem:[%s1 + $0x1f0] sm:$0xf]
  %v398 = vld [vmem:[%s1 + $0x1f4] sm:$0xf]
  %v399 = vld [vmem:[%s1 + $0x1f8] sm:$0xf]
  %v400 = vld [vmem:[%s1 + $0x1fc] sm:$0xf]
  %v401 = vld [vmem:[%s1 + $0x200] sm:$0xf]
  %v402 = vld [vmem:[%s1 + $0x204] sm:$0xf]
  %v403 = vld [vmem:[%s1 + $0x208] sm:$0xf]
  %v404 = vld [vmem:[%s1 + $0x20c] sm:$0xf]
  %v405 = vld [vmem:[%s1 + $0x210] sm:$0xf]
  %v406 = vld [vmem:[%s1 + $0x214] sm:$0xf]
  %v407 = vld [vmem:[%s1 + $0x218] sm:$0xf]
  %v408 = vld [vmem:[%s1 + $0x21c] sm:$0xf]
  %v409 = vld [vmem:[%s1 + $0x220] sm:$0xf]
  %v410 = vld [vmem:[%s1 + $0x224] sm:$0xf]
  %v411 = vld [vmem:[%s1 + $0x228] sm:$0xf]
  %v412 = vld [vmem:[%s1 + $0x22c] sm:$0xf]
  %v413 = vld [vmem:[%s1 + $0x230] sm:$0xf]
  %v414 = vld [vmem:[%s1 + $0x234] sm:$0xf]
  %v415 = vld [vmem:[%s1 + $0x238] sm:$0xf]
  %v416 = vld [vmem:[%s1 + $0x23c] sm:$0xf]
  %v417 = vld [vmem:[%s1 + $0x240] sm:$0xf]
  %v418 = vld [vmem:[%s1 + $0x244] sm:$0xf]
  %v419 = vld [vmem:[%s1 + $0x248] sm:$0xf]
  %v420 = vld [vmem:[%s1 + $0x24c] sm:$0xf]
  %v421 = vld [vmem:[%s1 + $0x250] sm:$0xf]
  %v422 = vld [vmem:[%s1 + $0x254] sm:$0xf]
  %v423 = vld [vmem:[%s1 + $0x258] sm:$0xf]
  %v424 = vld [vmem:[%s1 + $0x25c] sm:$0xf]
  %v425 = vld [vmem:[%s1 + $0x260] sm:$0xf]
  %v426 = vld [vmem:[%s1 + $0x264] sm:$0xf]
  %v427 = vld [vmem:[%s1 + $0x268] sm:$0xf]
  %v428 = vld [vmem:[%s1 + $0x26c] sm:$0xf]
  %v429 = vld [vmem:[%s1 + $0x270] sm:$0xf]
  %v430 = vld [vmem:[%s1 + $0x274] sm:$0xf]
  %v431 = vld [vmem:[%s1 + $0x278] sm:$0xf]
  %v432 = vld [vmem:[%s1 + $0x27c] sm:$0xf]
  %v433 = vld [vmem:[%s1 + $0x280] sm:$0xf]
  %v434 = vld [vmem:[%s1 + $0x284] sm:$0xf]
  %v435 = vld [vmem:[%s1 + $0x288] sm:$0xf]
  %v436 = vld [vmem:[%s1 + $0x28c] sm:$0xf]
  %v437 = vld [vmem:[%s1 + $0x290] sm:$0xf]
  %v438 = vld [vmem:[%s1 + $0x294] sm:$0xf]
  %v439 = vld [vmem:[%s1 + $0x298] sm:$0xf]
  %v440 = vld [vmem:[%s1 + $0x29c] sm:$0xf]
  %v441 = vld [vmem:[%s1 + $0x2a0] sm:$0xf]
  %v442 = vld [vmem:[%s1 + $0x2a4] sm:$0xf]
  %v443 = vld [vmem:[%s1 + $0x2a8] sm:$0xf]
  %v444 = vld [vmem:[%s1 + $0x2ac] sm:$0xf]
  %v445 = vld [vmem:[%s1 + $0x2b0] sm:$0xf]
  %v446 = vld [vmem:[%s1 + $0x2b4] sm:$0xf]
  %v447 = vld [vmem:[%s1 + $0x2b8] sm:$0xf]
  %v448 = vld [vmem:[%s1 + $0x2bc] sm:$0xf]
  %v449 = vld [vmem:[%s1 + $0x2c0] sm:$0xf]
  %v450 = vld [vmem:[%s1 + $0x2c4] sm:$0xf]
  %v451 = vld [vmem:[%s1 + $0x2c8] sm:$0xf]
  %v452 = vld [vmem:[%s1 + $0x2cc] sm:$0xf]
  %v453 = vld [vmem:[%s1 + $0x2d0] sm:$0xf]
  %v454 = vld [vmem:[%s1 + $0x2d4] sm:$0xf]
  %v455 = vld [vmem:[%s1 + $0x2d8] sm:$0xf]
  %v456 = vld [vmem:[%s1 + $0x2dc] sm:$0xf]
  %v457 = vld [vmem:[%s1 + $0x2e0] sm:$0xf]
  %v458 = vld [vmem:[%s1 + $0x2e4] sm:$0xf]
  %v459 = vld [vmem:[%s1 + $0x2e8] sm:$0xf]
  %v460 = vld [vmem:[%s1 + $0x2ec] sm:$0xf]
  %v461 = vld [vmem:[%s1 + $0x2f0] sm:$0xf]
  %v462 = vld [vmem:[%s1 + $0x2f4] sm:$0xf]
  %v463 = vld [vmem:[%s1 + $0x2f8] sm:$0xf]
  %v464 = vld [vmem:[%s1 + $0x2fc] sm:$0xf]
  %v465 = vld [vmem:[%s1 + $0x300] sm:$0xf]
  %v466 = vld [vmem:[%s1 + $0x304] sm:$0xf]
  %v467 = vld [vmem:[%s1 + $0x308] sm:$0xf]
  %v468 = vld [vmem:[%s1 + $0x30c] sm:$0xf]
  %v469 = vld [vmem:[%s1 + $0x310] sm:$0xf]
  %v470 = vld [vmem:[%s1 + $0x314] sm:$0xf]
  %v471 = vld [vmem:[%s1 + $0x318] sm:$0xf]
  %v472 = vld [vmem:[%s1 + $0x31c] sm:$0xf]
  %v473 = vld [vmem:[%s1 + $0x320] sm:$0xf]
  %v474 = vld [vmem:[%s1 + $0x324] sm:$0xf]
  %v475 = vld [vmem:[%s1 + $0x328] sm:$0xf]
  %v476 = vld [vmem:[%s1 + $0x32c] sm:$0xf]
  %v477 = vld [vmem:[%s1 + $0x330] sm:$0xf]
  %v478 = vld [vmem:[%s1 + $0x334] sm:$0xf]
  %v479 = vld [vmem:[%s1 + $0x338] sm:$0xf]
  %v480 = vld [vmem:[%s1 + $0x33c] sm:$0xf]
  %v481 = vld [vmem:[%s1 + $0x340] sm:$0xf]
  %v482 = vld [vmem:[%s1 + $0x344] sm:$0xf]
  %v483 = vld [vmem:[%s1 + $0x348] sm:$0xf]
  %v484 = vld [vmem:[%s1 + $0x34c] sm:$0xf]
  %v485 = vld [vmem:[%s1 + $0x350] sm:$0xf]
  %v486 = vld [vmem:[%s1 + $0x354] sm:$0xf]
  %v487 = vld [vmem:[%s1 + $0x358] sm:$0xf]
  %v488 = vld [vmem:[%s1 + $0x35c] sm:$0xf]
  %v489 = vld [vmem:[%s1 + $0x360] sm:$0xf]
  %v490 = vld [vmem:[%s1 + $0x364] sm:$0xf]
  %v491 = vld [vmem:[%s1 + $0x368] sm:$0xf]
  %v492 = vld [vmem:[%s1 + $0x36c] sm:$0xf]
  %v493 = vld [vmem:[%s1 + $0x370] sm:$0x3]
  %v494 = vld [vmem:[%s2] sm:$0x1]
  %v496 = vlaneseq
  %v497 = vshrl.u32 %v496, 7
  %v498 = vsub.s32 0, %v497
  %v499 = vrot.slane %v494, %v498
  %v753 = vunpack.c.l.b16 %v21
  %v754 = vunpack.c.h.b16 %v21
  %v755 = vunpack.c.l.b16 %v22
  %v756 = vunpack.c.h.b16 %v22
  %v757 = vunpack.c.l.b16 %v23
  %v758 = vunpack.c.h.b16 %v23
  %v759 = vunpack.c.l.b16 %v24
  %v760 = vunpack.c.h.b16 %v24
  %v761 = vunpack.c.l.b16 %v25
  %v762 = vunpack.c.h.b16 %v25
  %v763 = vunpack.c.l.b16 %v26
  %v764 = vunpack.c.h.b16 %v26
  %v765 = vunpack.c.l.b16 %v27
  %v766 = vunpack.c.h.b16 %v27
  %v767 = vunpack.c.l.b16 %v28
  %v768 = vunpack.c.h.b16 %v28
  %v769 = vunpack.c.l.b16 %v29
  %v770 = vunpack.c.h.b16 %v29
  %v771 = vunpack.c.l.b16 %v30
  %v772 = vunpack.c.h.b16 %v30
  %v773 = vunpack.c.l.b16 %v31
  %v774 = vunpack.c.h.b16 %v31
  %v775 = vunpack.c.l.b16 %v32
  %v776 = vunpack.c.h.b16 %v32
  %v777 = vunpack.c.l.b16 %v33
  %v778 = vunpack.c.h.b16 %v33
  %v779 = vunpack.c.l.b16 %v34
  %v780 = vunpack.c.h.b16 %v34
  %v781 = vunpack.c.l.b16 %v35
  %v782 = vunpack.c.h.b16 %v35
  %v783 = vunpack.c.l.b16 %v36
  %v784 = vunpack.c.h.b16 %v36
  %v785 = vunpack.c.l.b16 %v37
  %v786 = vunpack.c.h.b16 %v37
  %v787 = vunpack.c.l.b16 %v38
  %v788 = vunpack.c.h.b16 %v38
  %v789 = vunpack.c.l.b16 %v39
  %v790 = vunpack.c.h.b16 %v39
  %v791 = vunpack.c.l.b16 %v40
  %v792 = vunpack.c.h.b16 %v40
  %v793 = vunpack.c.l.b16 %v41
  %v794 = vunpack.c.h.b16 %v41
  %v795 = vunpack.c.l.b16 %v42
  %v796 = vunpack.c.h.b16 %v42
  %v797 = vunpack.c.l.b16 %v43
  %v798 = vunpack.c.h.b16 %v43
  %v799 = vunpack.c.l.b16 %v44
  %v800 = vunpack.c.h.b16 %v44
  %v801 = vunpack.c.l.b16 %v45
  %v802 = vunpack.c.h.b16 %v45
  %v803 = vunpack.c.l.b16 %v46
  %v804 = vunpack.c.h.b16 %v46
  %v805 = vunpack.c.l.b16 %v47
  %v806 = vunpack.c.h.b16 %v47
  %v807 = vunpack.c.l.b16 %v48
  %v808 = vunpack.c.h.b16 %v48
  %v809 = vunpack.c.l.b16 %v49
  %v810 = vunpack.c.h.b16 %v49
  %v811 = vunpack.c.l.b16 %v50
  %v812 = vunpack.c.h.b16 %v50
  %v813 = vunpack.c.l.b16 %v51
  %v814 = vunpack.c.h.b16 %v51
  %v815 = vunpack.c.l.b16 %v52
  %v816 = vunpack.c.h.b16 %v52
  %v817 = vunpack.c.l.b16 %v53
  %v818 = vunpack.c.h.b16 %v53
  %v819 = vunpack.c.l.b16 %v54
  %v820 = vunpack.c.h.b16 %v54
  %v821 = vunpack.c.l.b16 %v55
  %v822 = vunpack.c.h.b16 %v55
  %v823 = vunpack.c.l.b16 %v56
  %v824 = vunpack.c.h.b16 %v56
  %v825 = vunpack.c.l.b16 %v57
  %v826 = vunpack.c.h.b16 %v57
  %v827 = vunpack.c.l.b16 %v58
  %v828 = vunpack.c.h.b16 %v58
  %v829 = vunpack.c.l.b16 %v59
  %v830 = vunpack.c.h.b16 %v59
  %v831 = vunpack.c.l.b16 %v60
  %v832 = vunpack.c.h.b16 %v60
  %v833 = vunpack.c.l.b16 %v61
  %v834 = vunpack.c.h.b16 %v61
  %v835 = vunpack.c.l.b16 %v62
  %v836 = vunpack.c.h.b16 %v62
  %v837 = vunpack.c.l.b16 %v63
  %v838 = vunpack.c.h.b16 %v63
  %v839 = vunpack.c.l.b16 %v64
  %v840 = vunpack.c.h.b16 %v64
  %v841 = vunpack.c.l.b16 %v65
  %v842 = vunpack.c.h.b16 %v65
  %v843 = vunpack.c.l.b16 %v66
  %v844 = vunpack.c.h.b16 %v66
  %v845 = vunpack.c.l.b16 %v67
  %v846 = vunpack.c.h.b16 %v67
  %v847 = vunpack.c.l.b16 %v68
  %v848 = vunpack.c.h.b16 %v68
  %v849 = vunpack.c.l.b16 %v69
  %v850 = vunpack.c.h.b16 %v69
  %v851 = vunpack.c.l.b16 %v70
  %v852 = vunpack.c.h.b16 %v70
  %v853 = vunpack.c.l.b16 %v71
  %v854 = vunpack.c.h.b16 %v71
  %v855 = vunpack.c.l.b16 %v72
  %v856 = vunpack.c.h.b16 %v72
  %v857 = vunpack.c.l.b16 %v73
  %v858 = vunpack.c.h.b16 %v73
  %v859 = vunpack.c.l.b16 %v74
  %v860 = vunpack.c.h.b16 %v74
  %v861 = vunpack.c.l.b16 %v75
  %v862 = vunpack.c.h.b16 %v75
  %v863 = vunpack.c.l.b16 %v76
  %v864 = vunpack.c.h.b16 %v76
  %v865 = vunpack.c.l.b16 %v77
  %v866 = vunpack.c.h.b16 %v77
  %v867 = vunpack.c.l.b16 %v78
  %v868 = vunpack.c.h.b16 %v78
  %v869 = vunpack.c.l.b16 %v79
  %v870 = vunpack.c.h.b16 %v79
  %v871 = vunpack.c.l.b16 %v80
  %v872 = vunpack.c.h.b16 %v80
  %v873 = vunpack.c.l.b16 %v81
  %v874 = vunpack.c.h.b16 %v81
  %v875 = vunpack.c.l.b16 %v82
  %v876 = vunpack.c.h.b16 %v82
  %v877 = vunpack.c.l.b16 %v83
  %v878 = vunpack.c.h.b16 %v83
  %v879 = vunpack.c.l.b16 %v84
  %v880 = vunpack.c.h.b16 %v84
  %v881 = vunpack.c.l.b16 %v85
  %v882 = vunpack.c.h.b16 %v85
  %v883 = vunpack.c.l.b16 %v86
  %v884 = vunpack.c.h.b16 %v86
  %v885 = vunpack.c.l.b16 %v87
  %v886 = vunpack.c.h.b16 %v87
  %v887 = vunpack.c.l.b16 %v88
  %v888 = vunpack.c.h.b16 %v88
  %v889 = vunpack.c.l.b16 %v89
  %v890 = vunpack.c.h.b16 %v89
  %v891 = vunpack.c.l.b16 %v90
  %v892 = vunpack.c.h.b16 %v90
  %v893 = vunpack.c.l.b16 %v91
  %v894 = vunpack.c.h.b16 %v91
  %v895 = vunpack.c.l.b16 %v92
  %v896 = vunpack.c.h.b16 %v92
  %v897 = vunpack.c.l.b16 %v93
  %v898 = vunpack.c.h.b16 %v93
  %v899 = vunpack.c.l.b16 %v94
  %v900 = vunpack.c.h.b16 %v94
  %v901 = vunpack.c.l.b16 %v95
  %v902 = vunpack.c.h.b16 %v95
  %v903 = vunpack.c.l.b16 %v96
  %v904 = vunpack.c.h.b16 %v96
  %v905 = vunpack.c.l.b16 %v97
  %v906 = vunpack.c.h.b16 %v97
  %v907 = vunpack.c.l.b16 %v98
  %v908 = vunpack.c.h.b16 %v98
  %v909 = vunpack.c.l.b16 %v99
  %v910 = vunpack.c.h.b16 %v99
  %v911 = vunpack.c.l.b16 %v100
  %v912 = vunpack.c.h.b16 %v100
  %v913 = vunpack.c.l.b16 %v101
  %v914 = vunpack.c.h.b16 %v101
  %v915 = vunpack.c.l.b16 %v102
  %v916 = vunpack.c.h.b16 %v102
  %v917 = vunpack.c.l.b16 %v103
  %v918 = vunpack.c.h.b16 %v103
  %v919 = vunpack.c.l.b16 %v104
  %v920 = vunpack.c.h.b16 %v104
  %v921 = vunpack.c.l.b16 %v105
  %v922 = vunpack.c.h.b16 %v105
  %v923 = vunpack.c.l.b16 %v106
  %v924 = vunpack.c.h.b16 %v106
  %v925 = vunpack.c.l.b16 %v107
  %v926 = vunpack.c.h.b16 %v107
  %v927 = vunpack.c.l.b16 %v108
  %v928 = vunpack.c.h.b16 %v108
  %v929 = vunpack.c.l.b16 %v109
  %v930 = vunpack.c.h.b16 %v109
  %v931 = vunpack.c.l.b16 %v110
  %v932 = vunpack.c.h.b16 %v110
  %v933 = vunpack.c.l.b16 %v111
  %v934 = vunpack.c.h.b16 %v111
  %v935 = vunpack.c.l.b16 %v112
  %v936 = vunpack.c.h.b16 %v112
  %v937 = vunpack.c.l.b16 %v113
  %v938 = vunpack.c.h.b16 %v113
  %v939 = vunpack.c.l.b16 %v114
  %v940 = vunpack.c.h.b16 %v114
  %v941 = vunpack.c.l.b16 %v115
  %v942 = vunpack.c.h.b16 %v115
  %v943 = vunpack.c.l.b16 %v116
  %v944 = vunpack.c.h.b16 %v116
  %v945 = vunpack.c.l.b16 %v117
  %v946 = vunpack.c.h.b16 %v117
  %v947 = vunpack.c.l.b16 %v118
  %v948 = vunpack.c.h.b16 %v118
  %v949 = vunpack.c.l.b16 %v119
  %v950 = vunpack.c.h.b16 %v119
  %v951 = vunpack.c.l.b16 %v120
  %v952 = vunpack.c.h.b16 %v120
  %v953 = vunpack.c.l.b16 %v121
  %v954 = vunpack.c.h.b16 %v121
  %v955 = vunpack.c.l.b16 %v122
  %v956 = vunpack.c.h.b16 %v122
  %v957 = vunpack.c.l.b16 %v123
  %v958 = vunpack.c.h.b16 %v123
  %v959 = vunpack.c.l.b16 %v124
  %v960 = vunpack.c.h.b16 %v124
  %v961 = vunpack.c.l.b16 %v125
  %v962 = vunpack.c.h.b16 %v125
  %v963 = vunpack.c.l.b16 %v126
  %v964 = vunpack.c.h.b16 %v126
  %v965 = vunpack.c.l.b16 %v127
  %v966 = vunpack.c.h.b16 %v127
  %v967 = vunpack.c.l.b16 %v128
  %v968 = vunpack.c.h.b16 %v128
  %v969 = vunpack.c.l.b16 %v129
  %v970 = vunpack.c.h.b16 %v129
  %v971 = vunpack.c.l.b16 %v130
  %v972 = vunpack.c.h.b16 %v130
  %v973 = vunpack.c.l.b16 %v131
  %v974 = vunpack.c.h.b16 %v131
  %v975 = vunpack.c.l.b16 %v132
  %v976 = vunpack.c.h.b16 %v132
  %v977 = vunpack.c.l.b16 %v133
  %v978 = vunpack.c.h.b16 %v133
  %v979 = vunpack.c.l.b16 %v134
  %v980 = vunpack.c.h.b16 %v134
  %v981 = vunpack.c.l.b16 %v135
  %v982 = vunpack.c.h.b16 %v135
  %v983 = vunpack.c.l.b16 %v136
  %v984 = vunpack.c.h.b16 %v136
  %v985 = vunpack.c.l.b16 %v137
  %v986 = vunpack.c.h.b16 %v137
  %v987 = vunpack.c.l.b16 %v138
  %v988 = vunpack.c.h.b16 %v138
  %v989 = vunpack.c.l.b16 %v139
  %v990 = vunpack.c.h.b16 %v139
  %v991 = vunpack.c.l.b16 %v140
  %v992 = vunpack.c.h.b16 %v140
  %v993 = vunpack.c.l.b16 %v141
  %v994 = vunpack.c.h.b16 %v141
  %v995 = vunpack.c.l.b16 %v142
  %v996 = vunpack.c.h.b16 %v142
  %v997 = vunpack.c.l.b16 %v143
  %v998 = vunpack.c.h.b16 %v143
  %v999 = vunpack.c.l.b16 %v144
  %v1000 = vunpack.c.h.b16 %v144
  %v1001 = vunpack.c.l.b16 %v145
  %v1002 = vunpack.c.h.b16 %v145
  %v1003 = vunpack.c.l.b16 %v146
  %v1004 = vunpack.c.h.b16 %v146
  %v1005 = vunpack.c.l.b16 %v147
  %v1006 = vunpack.c.h.b16 %v147
  %v1007 = vunpack.c.l.b16 %v148
  %v1008 = vunpack.c.h.b16 %v148
  %v1009 = vunpack.c.l.b16 %v149
  %v1010 = vunpack.c.h.b16 %v149
  %v1011 = vunpack.c.l.b16 %v150
  %v1012 = vunpack.c.h.b16 %v150
  %v1013 = vunpack.c.l.b16 %v151
  %v1014 = vunpack.c.h.b16 %v151
  %v1015 = vunpack.c.l.b16 %v152
  %v1016 = vunpack.c.h.b16 %v152
  %v1017 = vunpack.c.l.b16 %v153
  %v1018 = vunpack.c.h.b16 %v153
  %v1019 = vunpack.c.l.b16 %v154
  %v1020 = vunpack.c.h.b16 %v154
  %v1021 = vunpack.c.l.b16 %v155
  %v1022 = vunpack.c.h.b16 %v155
  %v1023 = vunpack.c.l.b16 %v156
  %v1024 = vunpack.c.h.b16 %v156
  %v1025 = vunpack.c.l.b16 %v157
  %v1026 = vunpack.c.h.b16 %v157
  %v1027 = vunpack.c.l.b16 %v158
  %v1028 = vunpack.c.h.b16 %v158
  %v1029 = vunpack.c.l.b16 %v159
  %v1030 = vunpack.c.h.b16 %v159
  %v1031 = vunpack.c.l.b16 %v160
  %v1032 = vunpack.c.h.b16 %v160
  %v1033 = vunpack.c.l.b16 %v161
  %v1034 = vunpack.c.h.b16 %v161
  %v1035 = vunpack.c.l.b16 %v162
  %v1036 = vunpack.c.h.b16 %v162
  %v1037 = vunpack.c.l.b16 %v163
  %v1038 = vunpack.c.h.b16 %v163
  %v1039 = vunpack.c.l.b16 %v164
  %v1040 = vunpack.c.h.b16 %v164
  %v1041 = vunpack.c.l.b16 %v165
  %v1042 = vunpack.c.h.b16 %v165
  %v1043 = vunpack.c.l.b16 %v166
  %v1044 = vunpack.c.h.b16 %v166
  %v1045 = vunpack.c.l.b16 %v167
  %v1046 = vunpack.c.h.b16 %v167
  %v1047 = vunpack.c.l.b16 %v168
  %v1048 = vunpack.c.h.b16 %v168
  %v1049 = vunpack.c.l.b16 %v169
  %v1050 = vunpack.c.h.b16 %v169
  %v1051 = vunpack.c.l.b16 %v170
  %v1052 = vunpack.c.h.b16 %v170
  %v1053 = vunpack.c.l.b16 %v171
  %v1054 = vunpack.c.h.b16 %v171
  %v1055 = vunpack.c.l.b16 %v172
  %v1056 = vunpack.c.h.b16 %v172
  %v1057 = vunpack.c.l.b16 %v173
  %v1058 = vunpack.c.h.b16 %v173
  %v1059 = vunpack.c.l.b16 %v174
  %v1060 = vunpack.c.h.b16 %v174
  %v1061 = vunpack.c.l.b16 %v175
  %v1062 = vunpack.c.h.b16 %v175
  %v1063 = vunpack.c.l.b16 %v176
  %v1064 = vunpack.c.h.b16 %v176
  %v1065 = vunpack.c.l.b16 %v177
  %v1066 = vunpack.c.h.b16 %v177
  %v1067 = vunpack.c.l.b16 %v178
  %v1068 = vunpack.c.h.b16 %v178
  %v1069 = vunpack.c.l.b16 %v179
  %v1070 = vunpack.c.h.b16 %v179
  %v1071 = vunpack.c.l.b16 %v180
  %v1072 = vunpack.c.h.b16 %v180
  %v1073 = vunpack.c.l.b16 %v181
  %v1074 = vunpack.c.h.b16 %v181
  %v1075 = vunpack.c.l.b16 %v182
  %v1076 = vunpack.c.h.b16 %v182
  %v1077 = vunpack.c.l.b16 %v183
  %v1078 = vunpack.c.h.b16 %v183
  %v1079 = vunpack.c.l.b16 %v184
  %v1080 = vunpack.c.h.b16 %v184
  %v1081 = vunpack.c.l.b16 %v185
  %v1082 = vunpack.c.h.b16 %v185
  %v1083 = vunpack.c.l.b16 %v186
  %v1084 = vunpack.c.h.b16 %v186
  %v1085 = vunpack.c.l.b16 %v187
  %v1086 = vunpack.c.h.b16 %v187
  %v1087 = vunpack.c.l.b16 %v188
  %v1088 = vunpack.c.h.b16 %v188
  %v1089 = vunpack.c.l.b16 %v189
  %v1090 = vunpack.c.h.b16 %v189
  %v1091 = vunpack.c.l.b16 %v190
  %v1092 = vunpack.c.h.b16 %v190
  %v1093 = vunpack.c.l.b16 %v191
  %v1094 = vunpack.c.h.b16 %v191
  %v1095 = vunpack.c.l.b16 %v192
  %v1096 = vunpack.c.h.b16 %v192
  %v1097 = vunpack.c.l.b16 %v193
  %v1098 = vunpack.c.h.b16 %v193
  %v1099 = vunpack.c.l.b16 %v194
  %v1100 = vunpack.c.h.b16 %v194
  %v1101 = vunpack.c.l.b16 %v195
  %v1102 = vunpack.c.h.b16 %v195
  %v1103 = vunpack.c.l.b16 %v196
  %v1104 = vunpack.c.h.b16 %v196
  %v1105 = vunpack.c.l.b16 %v197
  %v1106 = vunpack.c.h.b16 %v197
  %v1107 = vunpack.c.l.b16 %v198
  %v1108 = vunpack.c.h.b16 %v198
  %v1109 = vunpack.c.l.b16 %v199
  %v1110 = vunpack.c.h.b16 %v199
  %v1111 = vunpack.c.l.b16 %v200
  %v1112 = vunpack.c.h.b16 %v200
  %v1113 = vunpack.c.l.b16 %v201
  %v1114 = vunpack.c.h.b16 %v201
  %v1115 = vunpack.c.l.b16 %v202
  %v1116 = vunpack.c.h.b16 %v202
  %v1117 = vunpack.c.l.b16 %v203
  %v1118 = vunpack.c.h.b16 %v203
  %v1119 = vunpack.c.l.b16 %v204
  %v1120 = vunpack.c.h.b16 %v204
  %v1121 = vunpack.c.l.b16 %v205
  %v1122 = vunpack.c.h.b16 %v205
  %v1123 = vunpack.c.l.b16 %v206
  %v1124 = vunpack.c.h.b16 %v206
  %v1125 = vunpack.c.l.b16 %v207
  %v1126 = vunpack.c.h.b16 %v207
  %v1127 = vunpack.c.l.b16 %v208
  %v1128 = vunpack.c.h.b16 %v208
  %v1129 = vunpack.c.l.b16 %v209
  %v1130 = vunpack.c.h.b16 %v209
  %v1131 = vunpack.c.l.b16 %v210
  %v1132 = vunpack.c.h.b16 %v210
  %v1133 = vunpack.c.l.b16 %v211
  %v1134 = vunpack.c.h.b16 %v211
  %v1135 = vunpack.c.l.b16 %v212
  %v1136 = vunpack.c.h.b16 %v212
  %v1137 = vunpack.c.l.b16 %v213
  %v1138 = vunpack.c.h.b16 %v213
  %v1139 = vunpack.c.l.b16 %v214
  %v1140 = vunpack.c.h.b16 %v214
  %v1141 = vunpack.c.l.b16 %v215
  %v1142 = vunpack.c.h.b16 %v215
  %v1143 = vunpack.c.l.b16 %v216
  %v1144 = vunpack.c.h.b16 %v216
  %v1145 = vunpack.c.l.b16 %v217
  %v1146 = vunpack.c.h.b16 %v217
  %v1147 = vunpack.c.l.b16 %v218
  %v1148 = vunpack.c.h.b16 %v218
  %v1149 = vunpack.c.l.b16 %v219
  %v1150 = vunpack.c.h.b16 %v219
  %v1151 = vunpack.c.l.b16 %v220
  %v1152 = vunpack.c.h.b16 %v220
  %v1153 = vunpack.c.l.b16 %v221
  %v1154 = vunpack.c.h.b16 %v221
  %v1155 = vunpack.c.l.b16 %v222
  %v1156 = vunpack.c.h.b16 %v222
  %v1157 = vunpack.c.l.b16 %v223
  %v1158 = vunpack.c.h.b16 %v223
  %v1159 = vunpack.c.l.b16 %v224
  %v1160 = vunpack.c.h.b16 %v224
  %v1161 = vunpack.c.l.b16 %v225
  %v1162 = vunpack.c.h.b16 %v225
  %v1163 = vunpack.c.l.b16 %v226
  %v1164 = vunpack.c.h.b16 %v226
  %v1165 = vunpack.c.l.b16 %v227
  %v1166 = vunpack.c.h.b16 %v227
  %v1167 = vunpack.c.l.b16 %v228
  %v1168 = vunpack.c.h.b16 %v228
  %v1169 = vunpack.c.l.b16 %v229
  %v1170 = vunpack.c.h.b16 %v229
  %v1171 = vunpack.c.l.b16 %v230
  %v1172 = vunpack.c.h.b16 %v230
  %v1173 = vunpack.c.l.b16 %v231
  %v1174 = vunpack.c.h.b16 %v231
  %v1175 = vunpack.c.l.b16 %v232
  %v1176 = vunpack.c.h.b16 %v232
  %v1177 = vunpack.c.l.b16 %v233
  %v1178 = vunpack.c.h.b16 %v233
  %v1179 = vunpack.c.l.b16 %v234
  %v1180 = vunpack.c.h.b16 %v234
  %v1181 = vunpack.c.l.b16 %v235
  %v1182 = vunpack.c.h.b16 %v235
  %v1183 = vunpack.c.l.b16 %v236
  %v1184 = vunpack.c.h.b16 %v236
  %v1185 = vunpack.c.l.b16 %v237
  %v1186 = vunpack.c.h.b16 %v237
  %v1187 = vunpack.c.l.b16 %v238
  %v1188 = vunpack.c.h.b16 %v238
  %v1189 = vunpack.c.l.b16 %v239
  %v1190 = vunpack.c.h.b16 %v239
  %v1191 = vunpack.c.l.b16 %v240
  %v1192 = vunpack.c.h.b16 %v240
  %v1193 = vunpack.c.l.b16 %v241
  %v1194 = vunpack.c.h.b16 %v241
  %v1195 = vunpack.c.l.b16 %v242
  %v1196 = vunpack.c.h.b16 %v242
  %v1197 = vunpack.c.l.b16 %v243
  %v1198 = vunpack.c.h.b16 %v243
  %v1199 = vunpack.c.l.b16 %v244
  %v1200 = vunpack.c.h.b16 %v244
  %v1201 = vunpack.c.l.b16 %v245
  %v1202 = vunpack.c.h.b16 %v245
  %v1203 = vunpack.c.l.b16 %v246
  %v1204 = vunpack.c.h.b16 %v246
  %v1205 = vunpack.c.l.b16 %v247
  %v1206 = vunpack.c.h.b16 %v247
  %v1207 = vunpack.c.l.b16 %v248
  %v1208 = vunpack.c.h.b16 %v248
  %v1209 = vunpack.c.l.b16 %v249
  %v1210 = vunpack.c.h.b16 %v249
  %v1211 = vunpack.c.l.b16 %v250
  %v1212 = vunpack.c.h.b16 %v250
  %v1213 = vunpack.c.l.b16 %v251
  %v1214 = vunpack.c.h.b16 %v251
  %v1215 = vunpack.c.l.b16 %v252
  %v1216 = vunpack.c.h.b16 %v252
  %v1217 = vunpack.c.l.b16 %v253
  %v1218 = vunpack.c.h.b16 %v253
  %v1219 = vunpack.c.l.b16 %v254
  %v1220 = vunpack.c.h.b16 %v254
  %v1221 = vunpack.c.l.b16 %v255
  %v1222 = vunpack.c.h.b16 %v255
  %v1223 = vunpack.c.l.b16 %v256
  %v1224 = vunpack.c.h.b16 %v256
  %v1225 = vunpack.c.l.b16 %v257
  %v1226 = vunpack.c.h.b16 %v257
  %v1227 = vunpack.c.l.b16 %v258
  %v1228 = vunpack.c.h.b16 %v258
  %v1229 = vunpack.c.l.b16 %v259
  %v1230 = vunpack.c.h.b16 %v259
  %v1231 = vunpack.c.l.b16 %v260
  %v1232 = vunpack.c.h.b16 %v260
  %v1233 = vunpack.c.l.b16 %v261
  %v1234 = vunpack.c.h.b16 %v261
  %v1235 = vunpack.c.l.b16 %v262
  %v1236 = vunpack.c.h.b16 %v262
  %v1237 = vunpack.c.l.b16 %v263
  %v1238 = vunpack.c.h.b16 %v263
  %v1239 = vunpack.c.l.b16 %v264
  %v1240 = vunpack.c.h.b16 %v264
  %v1241 = vunpack.c.l.b16 %v265
  %v1242 = vunpack.c.h.b16 %v265
  %v1243 = vunpack.c.l.b16 %v266
  %v1244 = vunpack.c.h.b16 %v266
  %v1245 = vunpack.c.l.b16 %v267
  %v1246 = vunpack.c.h.b16 %v267
  %v1247 = vunpack.c.l.b16 %v268
  %v1248 = vunpack.c.h.b16 %v268
  %v1249 = vunpack.c.l.b16 %v269
  %v1250 = vunpack.c.h.b16 %v269
  %v1251 = vunpack.c.l.b16 %v270
  %v1252 = vunpack.c.h.b16 %v270
  %v1253 = vunpack.c.l.b16 %v271
  %v1254 = vunpack.c.h.b16 %v271
  %v1255 = vunpack.c.l.b16 %v272
  %v1256 = vunpack.c.h.b16 %v272
  %v1257 = vpack.c.b16 %v767, %v753
  %v1258 = vpack.c.b16 %v768, %v754
  %v1259 = vpack.c.b16 %v769, %v755
  %v1260 = vpack.c.b16 %v770, %v756
  %v1261 = vpack.c.b16 %v771, %v757
  %v1262 = vpack.c.b16 %v772, %v758
  %v1263 = vpack.c.b16 %v773, %v759
  %v1264 = vpack.c.b16 %v774, %v760
  %v1265 = vpack.c.b16 %v775, %v761
  %v1266 = vpack.c.b16 %v776, %v762
  %v1267 = vpack.c.b16 %v777, %v763
  %v1268 = vpack.c.b16 %v778, %v764
  %v1269 = vpack.c.b16 %v779, %v765
  %v1270 = vpack.c.b16 %v780, %v766
  %v1271 = vpack.c.b16 %v795, %v781
  %v1272 = vpack.c.b16 %v796, %v782
  %v1273 = vpack.c.b16 %v797, %v783
  %v1274 = vpack.c.b16 %v798, %v784
  %v1275 = vpack.c.b16 %v799, %v785
  %v1276 = vpack.c.b16 %v800, %v786
  %v1277 = vpack.c.b16 %v801, %v787
  %v1278 = vpack.c.b16 %v802, %v788
  %v1279 = vpack.c.b16 %v803, %v789
  %v1280 = vpack.c.b16 %v804, %v790
  %v1281 = vpack.c.b16 %v805, %v791
  %v1282 = vpack.c.b16 %v806, %v792
  %v1283 = vpack.c.b16 %v807, %v793
  %v1284 = vpack.c.b16 %v808, %v794
  %v1285 = vpack.c.b16 %v823, %v809
  %v1286 = vpack.c.b16 %v824, %v810
  %v1287 = vpack.c.b16 %v825, %v811
  %v1288 = vpack.c.b16 %v826, %v812
  %v1289 = vpack.c.b16 %v827, %v813
  %v1290 = vpack.c.b16 %v828, %v814
  %v1291 = vpack.c.b16 %v829, %v815
  %v1292 = vpack.c.b16 %v830, %v816
  %v1293 = vpack.c.b16 %v831, %v817
  %v1294 = vpack.c.b16 %v832, %v818
  %v1295 = vpack.c.b16 %v833, %v819
  %v1296 = vpack.c.b16 %v834, %v820
  %v1297 = vpack.c.b16 %v835, %v821
  %v1298 = vpack.c.b16 %v836, %v822
  %v1299 = vpack.c.b16 %v851, %v837
  %v1300 = vpack.c.b16 %v852, %v838
  %v1301 = vpack.c.b16 %v853, %v839
  %v1302 = vpack.c.b16 %v854, %v840
  %v1303 = vpack.c.b16 %v855, %v841
  %v1304 = vpack.c.b16 %v856, %v842
  %v1305 = vpack.c.b16 %v857, %v843
  %v1306 = vpack.c.b16 %v858, %v844
  %v1307 = vpack.c.b16 %v859, %v845
  %v1308 = vpack.c.b16 %v860, %v846
  %v1309 = vpack.c.b16 %v861, %v847
  %v1310 = vpack.c.b16 %v862, %v848
  %v1311 = vpack.c.b16 %v863, %v849
  %v1312 = vpack.c.b16 %v864, %v850
  %v1313 = vpack.c.b16 %v879, %v865
  %v1314 = vpack.c.b16 %v880, %v866
  %v1315 = vpack.c.b16 %v881, %v867
  %v1316 = vpack.c.b16 %v882, %v868
  %v1317 = vpack.c.b16 %v883, %v869
  %v1318 = vpack.c.b16 %v884, %v870
  %v1319 = vpack.c.b16 %v885, %v871
  %v1320 = vpack.c.b16 %v886, %v872
  %v1321 = vpack.c.b16 %v887, %v873
  %v1322 = vpack.c.b16 %v888, %v874
  %v1323 = vpack.c.b16 %v889, %v875
  %v1324 = vpack.c.b16 %v890, %v876
  %v1325 = vpack.c.b16 %v891, %v877
  %v1326 = vpack.c.b16 %v892, %v878
  %v1327 = vpack.c.b16 %v907, %v893
  %v1328 = vpack.c.b16 %v908, %v894
  %v1329 = vpack.c.b16 %v909, %v895
  %v1330 = vpack.c.b16 %v910, %v896
  %v1331 = vpack.c.b16 %v911, %v897
  %v1332 = vpack.c.b16 %v912, %v898
  %v1333 = vpack.c.b16 %v913, %v899
  %v1334 = vpack.c.b16 %v914, %v900
  %v1335 = vpack.c.b16 %v915, %v901
  %v1336 = vpack.c.b16 %v916, %v902
  %v1337 = vpack.c.b16 %v917, %v903
  %v1338 = vpack.c.b16 %v918, %v904
  %v1339 = vpack.c.b16 %v919, %v905
  %v1340 = vpack.c.b16 %v920, %v906
  %v1341 = vpack.c.b16 %v935, %v921
  %v1342 = vpack.c.b16 %v936, %v922
  %v1343 = vpack.c.b16 %v937, %v923
  %v1344 = vpack.c.b16 %v938, %v924
  %v1345 = vpack.c.b16 %v939, %v925
  %v1346 = vpack.c.b16 %v940, %v926
  %v1347 = vpack.c.b16 %v941, %v927
  %v1348 = vpack.c.b16 %v942, %v928
  %v1349 = vpack.c.b16 %v943, %v929
  %v1350 = vpack.c.b16 %v944, %v930
  %v1351 = vpack.c.b16 %v945, %v931
  %v1352 = vpack.c.b16 %v946, %v932
  %v1353 = vpack.c.b16 %v947, %v933
  %v1354 = vpack.c.b16 %v948, %v934
  %v1355 = vpack.c.b16 %v963, %v949
  %v1356 = vpack.c.b16 %v964, %v950
  %v1357 = vpack.c.b16 %v965, %v951
  %v1358 = vpack.c.b16 %v966, %v952
  %v1359 = vpack.c.b16 %v967, %v953
  %v1360 = vpack.c.b16 %v968, %v954
  %v1361 = vpack.c.b16 %v969, %v955
  %v1362 = vpack.c.b16 %v970, %v956
  %v1363 = vpack.c.b16 %v971, %v957
  %v1364 = vpack.c.b16 %v972, %v958
  %v1365 = vpack.c.b16 %v973, %v959
  %v1366 = vpack.c.b16 %v974, %v960
  %v1367 = vpack.c.b16 %v975, %v961
  %v1368 = vpack.c.b16 %v976, %v962
  %v1369 = vpack.c.b16 %v991, %v977
  %v1370 = vpack.c.b16 %v992, %v978
  %v1371 = vpack.c.b16 %v993, %v979
  %v1372 = vpack.c.b16 %v994, %v980
  %v1373 = vpack.c.b16 %v995, %v981
  %v1374 = vpack.c.b16 %v996, %v982
  %v1375 = vpack.c.b16 %v997, %v983
  %v1376 = vpack.c.b16 %v998, %v984
  %v1377 = vpack.c.b16 %v999, %v985
  %v1378 = vpack.c.b16 %v1000, %v986
  %v1379 = vpack.c.b16 %v1001, %v987
  %v1380 = vpack.c.b16 %v1002, %v988
  %v1381 = vpack.c.b16 %v1003, %v989
  %v1382 = vpack.c.b16 %v1004, %v990
  %v1383 = vpack.c.b16 %v1019, %v1005
  %v1384 = vpack.c.b16 %v1020, %v1006
  %v1385 = vpack.c.b16 %v1021, %v1007
  %v1386 = vpack.c.b16 %v1022, %v1008
  %v1387 = vpack.c.b16 %v1023, %v1009
  %v1388 = vpack.c.b16 %v1024, %v1010
  %v1389 = vpack.c.b16 %v1025, %v1011
  %v1390 = vpack.c.b16 %v1026, %v1012
  %v1391 = vpack.c.b16 %v1027, %v1013
  %v1392 = vpack.c.b16 %v1028, %v1014
  %v1393 = vpack.c.b16 %v1029, %v1015
  %v1394 = vpack.c.b16 %v1030, %v1016
  %v1395 = vpack.c.b16 %v1031, %v1017
  %v1396 = vpack.c.b16 %v1032, %v1018
  %v1397 = vpack.c.b16 %v1047, %v1033
  %v1398 = vpack.c.b16 %v1048, %v1034
  %v1399 = vpack.c.b16 %v1049, %v1035
  %v1400 = vpack.c.b16 %v1050, %v1036
  %v1401 = vpack.c.b16 %v1051, %v1037
  %v1402 = vpack.c.b16 %v1052, %v1038
  %v1403 = vpack.c.b16 %v1053, %v1039
  %v1404 = vpack.c.b16 %v1054, %v1040
  %v1405 = vpack.c.b16 %v1055, %v1041
  %v1406 = vpack.c.b16 %v1056, %v1042
  %v1407 = vpack.c.b16 %v1057, %v1043
  %v1408 = vpack.c.b16 %v1058, %v1044
  %v1409 = vpack.c.b16 %v1059, %v1045
  %v1410 = vpack.c.b16 %v1060, %v1046
  %v1411 = vpack.c.b16 %v1075, %v1061
  %v1412 = vpack.c.b16 %v1076, %v1062
  %v1413 = vpack.c.b16 %v1077, %v1063
  %v1414 = vpack.c.b16 %v1078, %v1064
  %v1415 = vpack.c.b16 %v1079, %v1065
  %v1416 = vpack.c.b16 %v1080, %v1066
  %v1417 = vpack.c.b16 %v1081, %v1067
  %v1418 = vpack.c.b16 %v1082, %v1068
  %v1419 = vpack.c.b16 %v1083, %v1069
  %v1420 = vpack.c.b16 %v1084, %v1070
  %v1421 = vpack.c.b16 %v1085, %v1071
  %v1422 = vpack.c.b16 %v1086, %v1072
  %v1423 = vpack.c.b16 %v1087, %v1073
  %v1424 = vpack.c.b16 %v1088, %v1074
  %v1425 = vpack.c.b16 %v1103, %v1089
  %v1426 = vpack.c.b16 %v1104, %v1090
  %v1427 = vpack.c.b16 %v1105, %v1091
  %v1428 = vpack.c.b16 %v1106, %v1092
  %v1429 = vpack.c.b16 %v1107, %v1093
  %v1430 = vpack.c.b16 %v1108, %v1094
  %v1431 = vpack.c.b16 %v1109, %v1095
  %v1432 = vpack.c.b16 %v1110, %v1096
  %v1433 = vpack.c.b16 %v1111, %v1097
  %v1434 = vpack.c.b16 %v1112, %v1098
  %v1435 = vpack.c.b16 %v1113, %v1099
  %v1436 = vpack.c.b16 %v1114, %v1100
  %v1437 = vpack.c.b16 %v1115, %v1101
  %v1438 = vpack.c.b16 %v1116, %v1102
  %v1439 = vpack.c.b16 %v1131, %v1117
  %v1440 = vpack.c.b16 %v1132, %v1118
  %v1441 = vpack.c.b16 %v1133, %v1119
  %v1442 = vpack.c.b16 %v1134, %v1120
  %v1443 = vpack.c.b16 %v1135, %v1121
  %v1444 = vpack.c.b16 %v1136, %v1122
  %v1445 = vpack.c.b16 %v1137, %v1123
  %v1446 = vpack.c.b16 %v1138, %v1124
  %v1447 = vpack.c.b16 %v1139, %v1125
  %v1448 = vpack.c.b16 %v1140, %v1126
  %v1449 = vpack.c.b16 %v1141, %v1127
  %v1450 = vpack.c.b16 %v1142, %v1128
  %v1451 = vpack.c.b16 %v1143, %v1129
  %v1452 = vpack.c.b16 %v1144, %v1130
  %v1453 = vpack.c.b16 %v1159, %v1145
  %v1454 = vpack.c.b16 %v1160, %v1146
  %v1455 = vpack.c.b16 %v1161, %v1147
  %v1456 = vpack.c.b16 %v1162, %v1148
  %v1457 = vpack.c.b16 %v1163, %v1149
  %v1458 = vpack.c.b16 %v1164, %v1150
  %v1459 = vpack.c.b16 %v1165, %v1151
  %v1460 = vpack.c.b16 %v1166, %v1152
  %v1461 = vpack.c.b16 %v1167, %v1153
  %v1462 = vpack.c.b16 %v1168, %v1154
  %v1463 = vpack.c.b16 %v1169, %v1155
  %v1464 = vpack.c.b16 %v1170, %v1156
  %v1465 = vpack.c.b16 %v1171, %v1157
  %v1466 = vpack.c.b16 %v1172, %v1158
  %v1467 = vpack.c.b16 %v1187, %v1173
  %v1468 = vpack.c.b16 %v1188, %v1174
  %v1469 = vpack.c.b16 %v1189, %v1175
  %v1470 = vpack.c.b16 %v1190, %v1176
  %v1471 = vpack.c.b16 %v1191, %v1177
  %v1472 = vpack.c.b16 %v1192, %v1178
  %v1473 = vpack.c.b16 %v1193, %v1179
  %v1474 = vpack.c.b16 %v1194, %v1180
  %v1475 = vpack.c.b16 %v1195, %v1181
  %v1476 = vpack.c.b16 %v1196, %v1182
  %v1477 = vpack.c.b16 %v1197, %v1183
  %v1478 = vpack.c.b16 %v1198, %v1184
  %v1479 = vpack.c.b16 %v1199, %v1185
  %v1480 = vpack.c.b16 %v1200, %v1186
  %v1481 = vpack.c.b16 %v1215, %v1201
  %v1482 = vpack.c.b16 %v1216, %v1202
  %v1483 = vpack.c.b16 %v1217, %v1203
  %v1484 = vpack.c.b16 %v1218, %v1204
  %v1485 = vpack.c.b16 %v1219, %v1205
  %v1486 = vpack.c.b16 %v1220, %v1206
  %v1487 = vpack.c.b16 %v1221, %v1207
  %v1488 = vpack.c.b16 %v1222, %v1208
  %v1489 = vpack.c.b16 %v1223, %v1209
  %v1490 = vpack.c.b16 %v1224, %v1210
  %v1491 = vpack.c.b16 %v1225, %v1211
  %v1492 = vpack.c.b16 %v1226, %v1212
  %v1493 = vpack.c.b16 %v1227, %v1213
  %v1494 = vpack.c.b16 %v1228, %v1214
  %v1495 = vpack.c.b16 %v1243, %v1229
  %v1496 = vpack.c.b16 %v1244, %v1230
  %v1497 = vpack.c.b16 %v1245, %v1231
  %v1498 = vpack.c.b16 %v1246, %v1232
  %v1499 = vpack.c.b16 %v1247, %v1233
  %v1500 = vpack.c.b16 %v1248, %v1234
  %v1501 = vpack.c.b16 %v1249, %v1235
  %v1502 = vpack.c.b16 %v1250, %v1236
  %v1503 = vpack.c.b16 %v1251, %v1237
  %v1504 = vpack.c.b16 %v1252, %v1238
  %v1505 = vpack.c.b16 %v1253, %v1239
  %v1506 = vpack.c.b16 %v1254, %v1240
  %v1507 = vpack.c.b16 %v1255, %v1241
  %v1508 = vpack.c.b16 %v1256, %v1242
  %v1964 = vunpack.c.l.b16 %v273
  %v1965 = vunpack.c.l.b16 %v274
  %v1966 = vunpack.c.l.b16 %v275
  %v1967 = vunpack.c.l.b16 %v276
  %v1968 = vunpack.c.l.b16 %v277
  %v1969 = vunpack.c.l.b16 %v278
  %v1970 = vunpack.c.l.b16 %v279
  %v1971 = vunpack.c.l.b16 %v280
  %v1972 = vunpack.c.l.b16 %v281
  %v1973 = vunpack.c.l.b16 %v282
  %v1974 = vunpack.c.l.b16 %v283
  %v1975 = vunpack.c.l.b16 %v284
  %v1976 = vunpack.c.l.b16 %v285
  %v1977 = vunpack.c.l.b16 %v286
  %v1978 = vunpack.c.l.b16 %v287
  %v1979 = vunpack.c.l.b16 %v288
  %v1980 = vunpack.c.l.b16 %v289
  %v1981 = vunpack.c.l.b16 %v290
  %v1982 = vunpack.c.l.b16 %v291
  %v1983 = vunpack.c.l.b16 %v292
  %v1984 = vunpack.c.l.b16 %v293
  %v1985 = vunpack.c.l.b16 %v294
  %v1986 = vunpack.c.l.b16 %v295
  %v1987 = vunpack.c.l.b16 %v296
  %v1988 = vunpack.c.l.b16 %v297
  %v1989 = vunpack.c.l.b16 %v298
  %v1990 = vunpack.c.l.b16 %v299
  %v1991 = vunpack.c.l.b16 %v300
  %v1992 = vunpack.c.l.b16 %v301
  %v1993 = vunpack.c.l.b16 %v302
  %v1994 = vunpack.c.l.b16 %v303
  %v1995 = vunpack.c.l.b16 %v304
  %v1996 = vunpack.c.l.b16 %v305
  %v1997 = vunpack.c.l.b16 %v306
  %v1998 = vunpack.c.l.b16 %v307
  %v1999 = vunpack.c.l.b16 %v308
  %v2000 = vunpack.c.l.b16 %v309
  %v2001 = vunpack.c.l.b16 %v310
  %v2002 = vunpack.c.l.b16 %v311
  %v2003 = vunpack.c.l.b16 %v312
  %v2004 = vunpack.c.l.b16 %v313
  %v2005 = vunpack.c.l.b16 %v314
  %v2006 = vunpack.c.l.b16 %v315
  %v2007 = vunpack.c.l.b16 %v316
  %v2008 = vunpack.c.l.b16 %v317
  %v2009 = vunpack.c.l.b16 %v318
  %v2010 = vunpack.c.l.b16 %v319
  %v2011 = vunpack.c.l.b16 %v320
  %v2012 = vunpack.c.l.b16 %v321
  %v2013 = vunpack.c.l.b16 %v322
  %v2014 = vunpack.c.l.b16 %v323
  %v2015 = vunpack.c.l.b16 %v324
  %v2016 = vunpack.c.l.b16 %v325
  %v2017 = vunpack.c.l.b16 %v326
  %v2018 = vunpack.c.l.b16 %v327
  %v2019 = vunpack.c.l.b16 %v328
  %v2020 = vunpack.c.l.b16 %v329
  %v2021 = vunpack.c.l.b16 %v330
  %v2022 = vunpack.c.l.b16 %v331
  %v2023 = vunpack.c.l.b16 %v332
  %v2024 = vunpack.c.l.b16 %v333
  %v2025 = vunpack.c.l.b16 %v334
  %v2026 = vunpack.c.l.b16 %v335
  %v2027 = vunpack.c.l.b16 %v336
  %v2028 = vunpack.c.l.b16 %v337
  %v2029 = vunpack.c.l.b16 %v338
  %v2030 = vunpack.c.l.b16 %v339
  %v2031 = vunpack.c.l.b16 %v340
  %v2032 = vunpack.c.l.b16 %v341
  %v2033 = vunpack.c.l.b16 %v342
  %v2034 = vunpack.c.l.b16 %v343
  %v2035 = vunpack.c.l.b16 %v344
  %v2036 = vunpack.c.l.b16 %v345
  %v2037 = vunpack.c.l.b16 %v346
  %v2038 = vunpack.c.l.b16 %v347
  %v2039 = vunpack.c.l.b16 %v348
  %v2040 = vunpack.c.l.b16 %v349
  %v2041 = vunpack.c.l.b16 %v350
  %v2042 = vunpack.c.l.b16 %v351
  %v2043 = vunpack.c.l.b16 %v352
  %v2044 = vunpack.c.l.b16 %v353
  %v2045 = vunpack.c.l.b16 %v354
  %v2046 = vunpack.c.l.b16 %v355
  %v2047 = vunpack.c.l.b16 %v356
  %v2048 = vunpack.c.l.b16 %v357
  %v2049 = vunpack.c.l.b16 %v358
  %v2050 = vunpack.c.l.b16 %v359
  %v2051 = vunpack.c.l.b16 %v360
  %v2052 = vunpack.c.l.b16 %v361
  %v2053 = vunpack.c.l.b16 %v362
  %v2054 = vunpack.c.l.b16 %v363
  %v2055 = vunpack.c.l.b16 %v364
  %v2056 = vunpack.c.l.b16 %v365
  %v2057 = vunpack.c.l.b16 %v366
  %v2058 = vunpack.c.l.b16 %v367
  %v2059 = vunpack.c.l.b16 %v368
  %v2060 = vunpack.c.l.b16 %v369
  %v2061 = vunpack.c.l.b16 %v370
  %v2062 = vunpack.c.l.b16 %v371
  %v2063 = vunpack.c.l.b16 %v372
  %v2064 = vunpack.c.l.b16 %v373
  %v2065 = vunpack.c.l.b16 %v374
  %v2066 = vunpack.c.l.b16 %v375
  %v2067 = vunpack.c.l.b16 %v376
  %v2068 = vunpack.c.l.b16 %v377
  %v2069 = vunpack.c.l.b16 %v378
  %v2070 = vunpack.c.l.b16 %v379
  %v2071 = vunpack.c.l.b16 %v380
  %v2072 = vunpack.c.l.b16 %v381
  %v2073 = vunpack.c.l.b16 %v382
  %v2074 = vunpack.c.l.b16 %v383
  %v2075 = vunpack.c.l.b16 %v384
  %v2076 = vunpack.c.l.b16 %v385
  %v2077 = vunpack.c.l.b16 %v386
  %v2078 = vunpack.c.l.b16 %v387
  %v2079 = vunpack.c.l.b16 %v388
  %v2080 = vunpack.c.l.b16 %v389
  %v2081 = vunpack.c.l.b16 %v390
  %v2082 = vunpack.c.l.b16 %v391
  %v2083 = vunpack.c.l.b16 %v392
  %v2084 = vunpack.c.l.b16 %v393
  %v2085 = vunpack.c.l.b16 %v394
  %v2086 = vunpack.c.l.b16 %v395
  %v2087 = vunpack.c.l.b16 %v396
  %v2088 = vunpack.c.l.b16 %v397
  %v2089 = vunpack.c.l.b16 %v398
  %v2090 = vunpack.c.l.b16 %v399
  %v2091 = vunpack.c.l.b16 %v400
  %v2092 = vunpack.c.l.b16 %v401
  %v2093 = vunpack.c.l.b16 %v402
  %v2094 = vunpack.c.l.b16 %v403
  %v2095 = vunpack.c.l.b16 %v404
  %v2096 = vunpack.c.l.b16 %v405
  %v2097 = vunpack.c.l.b16 %v406
  %v2098 = vunpack.c.l.b16 %v407
  %v2099 = vunpack.c.l.b16 %v408
  %v2100 = vunpack.c.l.b16 %v409
  %v2101 = vunpack.c.l.b16 %v410
  %v2102 = vunpack.c.l.b16 %v411
  %v2103 = vunpack.c.l.b16 %v412
  %v2104 = vunpack.c.l.b16 %v413
  %v2105 = vunpack.c.l.b16 %v414
  %v2106 = vunpack.c.l.b16 %v415
  %v2107 = vunpack.c.l.b16 %v416
  %v2108 = vunpack.c.l.b16 %v417
  %v2109 = vunpack.c.l.b16 %v418
  %v2110 = vunpack.c.l.b16 %v419
  %v2111 = vunpack.c.l.b16 %v420
  %v2112 = vunpack.c.l.b16 %v421
  %v2113 = vunpack.c.l.b16 %v422
  %v2114 = vunpack.c.l.b16 %v423
  %v2115 = vunpack.c.l.b16 %v424
  %v2116 = vunpack.c.l.b16 %v425
  %v2117 = vunpack.c.l.b16 %v426
  %v2118 = vunpack.c.l.b16 %v427
  %v2119 = vunpack.c.l.b16 %v428
  %v2120 = vunpack.c.l.b16 %v429
  %v2121 = vunpack.c.l.b16 %v430
  %v2122 = vunpack.c.l.b16 %v431
  %v2123 = vunpack.c.l.b16 %v432
  %v2124 = vunpack.c.l.b16 %v433
  %v2125 = vunpack.c.l.b16 %v434
  %v2126 = vunpack.c.l.b16 %v435
  %v2127 = vunpack.c.l.b16 %v436
  %v2128 = vunpack.c.l.b16 %v437
  %v2129 = vunpack.c.l.b16 %v438
  %v2130 = vunpack.c.l.b16 %v439
  %v2131 = vunpack.c.l.b16 %v440
  %v2132 = vunpack.c.l.b16 %v441
  %v2133 = vunpack.c.l.b16 %v442
  %v2134 = vunpack.c.l.b16 %v443
  %v2135 = vunpack.c.l.b16 %v444
  %v2136 = vunpack.c.l.b16 %v445
  %v2137 = vunpack.c.l.b16 %v446
  %v2138 = vunpack.c.l.b16 %v447
  %v2139 = vunpack.c.l.b16 %v448
  %v2140 = vunpack.c.l.b16 %v449
  %v2141 = vunpack.c.l.b16 %v450
  %v2142 = vunpack.c.l.b16 %v451
  %v2143 = vunpack.c.l.b16 %v452
  %v2144 = vunpack.c.l.b16 %v453
  %v2145 = vunpack.c.l.b16 %v454
  %v2146 = vunpack.c.l.b16 %v455
  %v2147 = vunpack.c.l.b16 %v456
  %v2148 = vunpack.c.l.b16 %v457
  %v2149 = vunpack.c.l.b16 %v458
  %v2150 = vunpack.c.l.b16 %v459
  %v2151 = vunpack.c.l.b16 %v460
  %v2152 = vunpack.c.l.b16 %v461
  %v2153 = vunpack.c.l.b16 %v462
  %v2154 = vunpack.c.l.b16 %v463
  %v2155 = vunpack.c.l.b16 %v464
  %v2156 = vunpack.c.l.b16 %v465
  %v2157 = vunpack.c.l.b16 %v466
  %v2158 = vunpack.c.l.b16 %v467
  %v2159 = vunpack.c.l.b16 %v468
  %v2160 = vunpack.c.l.b16 %v469
  %v2161 = vunpack.c.l.b16 %v470
  %v2162 = vunpack.c.l.b16 %v471
  %v2163 = vunpack.c.l.b16 %v472
  %v2164 = vunpack.c.l.b16 %v473
  %v2165 = vunpack.c.l.b16 %v474
  %v2166 = vunpack.c.l.b16 %v475
  %v2167 = vunpack.c.l.b16 %v476
  %v2168 = vunpack.c.l.b16 %v477
  %v2169 = vunpack.c.l.b16 %v478
  %v2170 = vunpack.c.l.b16 %v479
  %v2171 = vunpack.c.l.b16 %v480
  %v2172 = vunpack.c.l.b16 %v481
  %v2173 = vunpack.c.l.b16 %v482
  %v2174 = vunpack.c.l.b16 %v483
  %v2175 = vunpack.c.l.b16 %v484
  %v2176 = vunpack.c.l.b16 %v485
  %v2177 = vunpack.c.l.b16 %v486
  %v2178 = vunpack.c.l.b16 %v487
  %v2179 = vunpack.c.l.b16 %v488
  %v2180 = vunpack.c.l.b16 %v489
  %v2181 = vunpack.c.l.b16 %v490
  %v2182 = vunpack.c.l.b16 %v491
  %v2183 = vunpack.c.l.b16 %v492
  %v2184 = vunpack.c.l.b16 %v493
  %v2185 = vpack.c.b16 %v1965, %v1964
  %v2186 = vpack.c.b16 %v1967, %v1966
  %v2187 = vpack.c.b16 %v1969, %v1968
  %v2188 = vpack.c.b16 %v1971, %v1970
  %v2189 = vpack.c.b16 %v1973, %v1972
  %v2190 = vpack.c.b16 %v1975, %v1974
  %v2191 = vpack.c.b16 %v1977, %v1976
  %v2192 = vpack.c.b16 %v1979, %v1978
  %v2193 = vpack.c.b16 %v1981, %v1980
  %v2194 = vpack.c.b16 %v1983, %v1982
  %v2195 = vpack.c.b16 %v1985, %v1984
  %v2196 = vpack.c.b16 %v1987, %v1986
  %v2197 = vpack.c.b16 %v1989, %v1988
  %v2198 = vpack.c.b16 %v1991, %v1990
  %v2199 = vpack.c.b16 %v1993, %v1992
  %v2200 = vpack.c.b16 %v1995, %v1994
  %v2201 = vpack.c.b16 %v1997, %v1996
  %v2202 = vpack.c.b16 %v1999, %v1998
  %v2203 = vpack.c.b16 %v2001, %v2000
  %v2204 = vpack.c.b16 %v2003, %v2002
  %v2205 = vpack.c.b16 %v2005, %v2004
  %v2206 = vpack.c.b16 %v2007, %v2006
  %v2207 = vpack.c.b16 %v2009, %v2008
  %v2208 = vpack.c.b16 %v2011, %v2010
  %v2209 = vpack.c.b16 %v2013, %v2012
  %v2210 = vpack.c.b16 %v2015, %v2014
  %v2211 = vpack.c.b16 %v2017, %v2016
  %v2212 = vpack.c.b16 %v2019, %v2018
  %v2213 = vpack.c.b16 %v2021, %v2020
  %v2214 = vpack.c.b16 %v2023, %v2022
  %v2215 = vpack.c.b16 %v2025, %v2024
  %v2216 = vpack.c.b16 %v2027, %v2026
  %v2217 = vpack.c.b16 %v2029, %v2028
  %v2218 = vpack.c.b16 %v2031, %v2030
  %v2219 = vpack.c.b16 %v2033, %v2032
  %v2220 = vpack.c.b16 %v2035, %v2034
  %v2221 = vpack.c.b16 %v2037, %v2036
  %v2222 = vpack.c.b16 %v2039, %v2038
  %v2223 = vpack.c.b16 %v2041, %v2040
  %v2224 = vpack.c.b16 %v2043, %v2042
  %v2225 = vpack.c.b16 %v2045, %v2044
  %v2226 = vpack.c.b16 %v2047, %v2046
  %v2227 = vpack.c.b16 %v2049, %v2048
  %v2228 = vpack.c.b16 %v2051, %v2050
  %v2229 = vpack.c.b16 %v2053, %v2052
  %v2230 = vpack.c.b16 %v2055, %v2054
  %v2231 = vpack.c.b16 %v2057, %v2056
  %v2232 = vpack.c.b16 %v2059, %v2058
  %v2233 = vpack.c.b16 %v2061, %v2060
  %v2234 = vpack.c.b16 %v2063, %v2062
  %v2235 = vpack.c.b16 %v2065, %v2064
  %v2236 = vpack.c.b16 %v2067, %v2066
  %v2237 = vpack.c.b16 %v2069, %v2068
  %v2238 = vpack.c.b16 %v2071, %v2070
  %v2239 = vpack.c.b16 %v2073, %v2072
  %v2240 = vpack.c.b16 %v2075, %v2074
  %v2241 = vpack.c.b16 %v2077, %v2076
  %v2242 = vpack.c.b16 %v2079, %v2078
  %v2243 = vpack.c.b16 %v2081, %v2080
  %v2244 = vpack.c.b16 %v2083, %v2082
  %v2245 = vpack.c.b16 %v2085, %v2084
  %v2246 = vpack.c.b16 %v2087, %v2086
  %v2247 = vpack.c.b16 %v2089, %v2088
  %v2248 = vpack.c.b16 %v2091, %v2090
  %v2249 = vpack.c.b16 %v2093, %v2092
  %v2250 = vpack.c.b16 %v2095, %v2094
  %v2251 = vpack.c.b16 %v2097, %v2096
  %v2252 = vpack.c.b16 %v2099, %v2098
  %v2253 = vpack.c.b16 %v2101, %v2100
  %v2254 = vpack.c.b16 %v2103, %v2102
  %v2255 = vpack.c.b16 %v2105, %v2104
  %v2256 = vpack.c.b16 %v2107, %v2106
  %v2257 = vpack.c.b16 %v2109, %v2108
  %v2258 = vpack.c.b16 %v2111, %v2110
  %v2259 = vpack.c.b16 %v2113, %v2112
  %v2260 = vpack.c.b16 %v2115, %v2114
  %v2261 = vpack.c.b16 %v2117, %v2116
  %v2262 = vpack.c.b16 %v2119, %v2118
  %v2263 = vpack.c.b16 %v2121, %v2120
  %v2264 = vpack.c.b16 %v2123, %v2122
  %v2265 = vpack.c.b16 %v2125, %v2124
  %v2266 = vpack.c.b16 %v2127, %v2126
  %v2267 = vpack.c.b16 %v2129, %v2128
  %v2268 = vpack.c.b16 %v2131, %v2130
  %v2269 = vpack.c.b16 %v2133, %v2132
  %v2270 = vpack.c.b16 %v2135, %v2134
  %v2271 = vpack.c.b16 %v2137, %v2136
  %v2272 = vpack.c.b16 %v2139, %v2138
  %v2273 = vpack.c.b16 %v2141, %v2140
  %v2274 = vpack.c.b16 %v2143, %v2142
  %v2275 = vpack.c.b16 %v2145, %v2144
  %v2276 = vpack.c.b16 %v2147, %v2146
  %v2277 = vpack.c.b16 %v2149, %v2148
  %v2278 = vpack.c.b16 %v2151, %v2150
  %v2279 = vpack.c.b16 %v2153, %v2152
  %v2280 = vpack.c.b16 %v2155, %v2154
  %v2281 = vpack.c.b16 %v2157, %v2156
  %v2282 = vpack.c.b16 %v2159, %v2158
  %v2283 = vpack.c.b16 %v2161, %v2160
  %v2284 = vpack.c.b16 %v2163, %v2162
  %v2285 = vpack.c.b16 %v2165, %v2164
  %v2286 = vpack.c.b16 %v2167, %v2166
  %v2287 = vpack.c.b16 %v2169, %v2168
  %v2288 = vpack.c.b16 %v2171, %v2170
  %v2289 = vpack.c.b16 %v2173, %v2172
  %v2290 = vpack.c.b16 %v2175, %v2174
  %v2291 = vpack.c.b16 %v2177, %v2176
  %v2292 = vpack.c.b16 %v2179, %v2178
  %v2293 = vpack.c.b16 %v2181, %v2180
  %v2294 = vpack.c.b16 %v2183, %v2182
  %v2295 = vpack.c.b16 %v2184, %v2184
  %vm2406 = vcmask 818176
  %v2408 = vsel %vm2406, %v1270, 0
  %v2411 = vsel %vm2406, %v1284, 0
  %v2414 = vsel %vm2406, %v1298, 0
  %v2417 = vsel %vm2406, %v1312, 0
  %v2420 = vsel %vm2406, %v1326, 0
  %v2423 = vsel %vm2406, %v1340, 0
  %v2426 = vsel %vm2406, %v1354, 0
  %v2429 = vsel %vm2406, %v1368, 0
  %v2432 = vsel %vm2406, %v1382, 0
  %v2435 = vsel %vm2406, %v1396, 0
  %v2438 = vsel %vm2406, %v1410, 0
  %v2441 = vsel %vm2406, %v1424, 0
  %v2444 = vsel %vm2406, %v1438, 0
  %v2447 = vsel %vm2406, %v1452, 0
  %v2450 = vsel %vm2406, %v1466, 0
  %v2453 = vsel %vm2406, %v1480, 0
  %v2456 = vsel %vm2406, %v1494, 0
  %v2459 = vsel %vm2406, %v1508, 0
  %vm2461 = vcmask 1041408
  %v2463 = vsel %vm2461, %v2295, 0
  %2465 = vmatprep.subr.bf16.mxu0 0
  %2466 = vmatpush1.bf16.msra.mxu0 %v2192
  %2467 = vmatprep.subr.bf16.mxu0 0
  %2468 = vmatpush1.bf16.msra.mxu0 %v2191
  %2469 = vmatprep.subr.bf16.mxu0 0
  %2470 = vmatpush1.bf16.msra.mxu0 %v2190
  %2471 = vmatprep.subr.bf16.mxu0 0
  %2472 = vmatpush1.bf16.msra.mxu0 %v2189
  %2473 = vmatprep.subr.bf16.mxu0 0
  %2474 = vmatpush1.bf16.msra.mxu0 %v2188
  %2475 = vmatprep.subr.bf16.mxu0 0
  %2476 = vmatpush1.bf16.msra.mxu0 %v2187
  %2477 = vmatprep.subr.bf16.mxu0 0
  %2478 = vmatpush1.bf16.msra.mxu0 %v2186
  %2479 = vmatprep.subr.bf16.mxu0 0
  %2480 = vmatpush1.bf16.msra.mxu0 %v2185
  %2481 = vmatprep.subr.bf16.mxu0 0
  %2482 = vmatpush2.bf16.msra.mxu0 %v2200
  %2483 = vmatprep.subr.bf16.mxu0 0
  %2484 = vmatpush2.bf16.msra.mxu0 %v2199
  %2485 = vmatprep.subr.bf16.mxu0 0
  %2486 = vmatpush2.bf16.msra.mxu0 %v2198
  %2487 = vmatprep.subr.bf16.mxu0 0
  %2488 = vmatpush2.bf16.msra.mxu0 %v2197
  %2489 = vmatprep.subr.bf16.mxu0 0
  %2490 = vmatpush2.bf16.msra.mxu0 %v2196
  %2491 = vmatprep.subr.bf16.mxu0 0
  %2492 = vmatpush2.bf16.msra.mxu0 %v2195
  %2493 = vmatprep.subr.bf16.mxu0 0
  %2494 = vmatpush2.bf16.msra.mxu0 %v2194
  %2495 = vmatprep.subr.bf16.mxu0 0
  %2496 = vmatpush2.bf16.msra.mxu0 %v2193
  %2497 = vmatprep.mubr.bf16.mxu0 %v1258
  %2498 = vmatmul.mubr.bf16.gmra.mxu0 %v1257
  %v2499 = vpop.f32.mrf.mxu0
  %v2500 = vadd.f32 %v499, %v2499
  %v2501 = vpop.f32.mrf.mxu0
  %v2502 = vpop.f32.mrf.mxu0
  %v2503 = vadd.f32 %v499, %v2502
  %v2504 = vpop.f32.mrf.mxu0
  %2505 = vmatprep.mubr.bf16.mxu0 %v1272
  %2506 = vmatmul.mubr.bf16.gmra.mxu0 %v1271
  %v2507 = vpop.f32.mrf.mxu0
  %v2508 = vadd.f32 %v499, %v2507
  %v2509 = vpop.f32.mrf.mxu0
  %v2510 = vpop.f32.mrf.mxu0
  %v2511 = vadd.f32 %v499, %v2510
  %v2512 = vpop.f32.mrf.mxu0
  %2513 = vmatprep.mubr.bf16.mxu0 %v1286
  %2514 = vmatmul.mubr.bf16.gmra.mxu0 %v1285
  %v2515 = vpop.f32.mrf.mxu0
  %v2516 = vadd.f32 %v499, %v2515
  %v2517 = vpop.f32.mrf.mxu0
  %v2518 = vpop.f32.mrf.mxu0
  %v2519 = vadd.f32 %v499, %v2518
  %v2520 = vpop.f32.mrf.mxu0
  %2521 = vmatprep.mubr.bf16.mxu0 %v1300
  %2522 = vmatmul.mubr.bf16.gmra.mxu0 %v1299
  %v2523 = vpop.f32.mrf.mxu0
  %v2524 = vadd.f32 %v499, %v2523
  %v2525 = vpop.f32.mrf.mxu0
  %v2526 = vpop.f32.mrf.mxu0
  %v2527 = vadd.f32 %v499, %v2526
  %v2528 = vpop.f32.mrf.mxu0
  %2529 = vmatprep.mubr.bf16.mxu0 %v1314
  %2530 = vmatmul.mubr.bf16.gmra.mxu0 %v1313
  %v2531 = vpop.f32.mrf.mxu0
  %v2532 = vadd.f32 %v499, %v2531
  %v2533 = vpop.f32.mrf.mxu0
  %v2534 = vpop.f32.mrf.mxu0
  %v2535 = vadd.f32 %v499, %v2534
  %v2536 = vpop.f32.mrf.mxu0
  %2537 = vmatprep.mubr.bf16.mxu0 %v1328
  %2538 = vmatmul.mubr.bf16.gmra.mxu0 %v1327
  %v2539 = vpop.f32.mrf.mxu0
  %v2540 = vadd.f32 %v499, %v2539
  %v2541 = vpop.f32.mrf.mxu0
  %v2542 = vpop.f32.mrf.mxu0
  %v2543 = vadd.f32 %v499, %v2542
  %v2544 = vpop.f32.mrf.mxu0
  %2545 = vmatprep.mubr.bf16.mxu0 %v1342
  %2546 = vmatmul.mubr.bf16.gmra.mxu0 %v1341
  %v2547 = vpop.f32.mrf.mxu0
  %v2548 = vadd.f32 %v499, %v2547
  %v2549 = vpop.f32.mrf.mxu0
  %v2550 = vpop.f32.mrf.mxu0
  %v2551 = vadd.f32 %v499, %v2550
  %v2552 = vpop.f32.mrf.mxu0
  %2553 = vmatprep.mubr.bf16.mxu0 %v1356
  %2554 = vmatmul.mubr.bf16.gmra.mxu0 %v1355
  %v2555 = vpop.f32.mrf.mxu0
  %v2556 = vadd.f32 %v499, %v2555
  %v2557 = vpop.f32.mrf.mxu0
  %v2558 = vpop.f32.mrf.mxu0
  %v2559 = vadd.f32 %v499, %v2558
  %v2560 = vpop.f32.mrf.mxu0
  %2561 = vmatprep.mubr.bf16.mxu0 %v1370
  %2562 = vmatmul.mubr.bf16.gmra.mxu0 %v1369
  %v2563 = vpop.f32.mrf.mxu0
  %v2564 = vadd.f32 %v499, %v2563
  %v2565 = vpop.f32.mrf.mxu0
  %v2566 = vpop.f32.mrf.mxu0
  %v2567 = vadd.f32 %v499, %v2566
  %v2568 = vpop.f32.mrf.mxu0
  %2569 = vmatprep.mubr.bf16.mxu0 %v1384
  %2570 = vmatmul.mubr.bf16.gmra.mxu0 %v1383
  %v2571 = vpop.f32.mrf.mxu0
  %v2572 = vadd.f32 %v499, %v2571
  %v2573 = vpop.f32.mrf.mxu0
  %v2574 = vpop.f32.mrf.mxu0
  %v2575 = vadd.f32 %v499, %v2574
  %v2576 = vpop.f32.mrf.mxu0
  %2577 = vmatprep.mubr.bf16.mxu0 %v1398
  %2578 = vmatmul.mubr.bf16.gmra.mxu0 %v1397
  %v2579 = vpop.f32.mrf.mxu0
  %v2580 = vadd.f32 %v499, %v2579
  %v2581 = vpop.f32.mrf.mxu0
  %v2582 = vpop.f32.mrf.mxu0
  %v2583 = vadd.f32 %v499, %v2582
  %v2584 = vpop.f32.mrf.mxu0
  %2585 = vmatprep.mubr.bf16.mxu0 %v1412
  %2586 = vmatmul.mubr.bf16.gmra.mxu0 %v1411
  %v2587 = vpop.f32.mrf.mxu0
  %v2588 = vadd.f32 %v499, %v2587
  %v2589 = vpop.f32.mrf.mxu0
  %v2590 = vpop.f32.mrf.mxu0
  %v2591 = vadd.f32 %v499, %v2590
  %v2592 = vpop.f32.mrf.mxu0
  %2593 = vmatprep.mubr.bf16.mxu0 %v1426
  %2594 = vmatmul.mubr.bf16.gmra.mxu0 %v1425
  %v2595 = vpop.f32.mrf.mxu0
  %v2596 = vadd.f32 %v499, %v2595
  %v2597 = vpop.f32.mrf.mxu0
  %v2598 = vpop.f32.mrf.mxu0
  %v2599 = vadd.f32 %v499, %v2598
  %v2600 = vpop.f32.mrf.mxu0
  %2601 = vmatprep.mubr.bf16.mxu0 %v1440
  %2602 = vmatmul.mubr.bf16.gmra.mxu0 %v1439
  %v2603 = vpop.f32.mrf.mxu0
  %v2604 = vadd.f32 %v499, %v2603
  %v2605 = vpop.f32.mrf.mxu0
  %v2606 = vpop.f32.mrf.mxu0
  %v2607 = vadd.f32 %v499, %v2606
  %v2608 = vpop.f32.mrf.mxu0
  %2609 = vmatprep.mubr.bf16.mxu0 %v1454
  %2610 = vmatmul.mubr.bf16.gmra.mxu0 %v1453
  %v2611 = vpop.f32.mrf.mxu0
  %v2612 = vadd.f32 %v499, %v2611
  %v2613 = vpop.f32.mrf.mxu0
  %v2614 = vpop.f32.mrf.mxu0
  %v2615 = vadd.f32 %v499, %v2614
  %v2616 = vpop.f32.mrf.mxu0
  %2617 = vmatprep.mubr.bf16.mxu0 %v1468
  %2618 = vmatmul.mubr.bf16.gmra.mxu0 %v1467
  %v2619 = vpop.f32.mrf.mxu0
  %v2620 = vadd.f32 %v499, %v2619
  %v2621 = vpop.f32.mrf.mxu0
  %v2622 = vpop.f32.mrf.mxu0
  %v2623 = vadd.f32 %v499, %v2622
  %v2624 = vpop.f32.mrf.mxu0
  %2625 = vmatprep.mubr.bf16.mxu0 %v1482
  %2626 = vmatmul.mubr.bf16.gmra.mxu0 %v1481
  %v2627 = vpop.f32.mrf.mxu0
  %v2628 = vadd.f32 %v499, %v2627
  %v2629 = vpop.f32.mrf.mxu0
  %v2630 = vpop.f32.mrf.mxu0
  %v2631 = vadd.f32 %v499, %v2630
  %v2632 = vpop.f32.mrf.mxu0
  %2633 = vmatprep.mubr.bf16.mxu0 %v1496
  %2634 = vmatmul.mubr.bf16.gmra.mxu0 %v1495
  %v2635 = vpop.f32.mrf.mxu0
  %v2636 = vadd.f32 %v499, %v2635
  %v2637 = vpop.f32.mrf.mxu0
  %v2638 = vpop.f32.mrf.mxu0
  %v2639 = vadd.f32 %v499, %v2638
  %v2640 = vpop.f32.mrf.mxu0
  %2641 = vdwg.mxu0
  %2642 = vmatprep.subr.bf16.mxu0 0
  %2643 = vmatpush1.bf16.msra.mxu0 %v2208
  %2644 = vmatprep.subr.bf16.mxu0 0
  %2645 = vmatpush1.bf16.msra.mxu0 %v2207
  %2646 = vmatprep.subr.bf16.mxu0 0
  %2647 = vmatpush1.bf16.msra.mxu0 %v2206
  %2648 = vmatprep.subr.bf16.mxu0 0
  %2649 = vmatpush1.bf16.msra.mxu0 %v2205
  %2650 = vmatprep.subr.bf16.mxu0 0
  %2651 = vmatpush1.bf16.msra.mxu0 %v2204
  %2652 = vmatprep.subr.bf16.mxu0 0
  %2653 = vmatpush1.bf16.msra.mxu0 %v2203
  %2654 = vmatprep.subr.bf16.mxu0 0
  %2655 = vmatpush1.bf16.msra.mxu0 %v2202
  %2656 = vmatprep.subr.bf16.mxu0 0
  %2657 = vmatpush1.bf16.msra.mxu0 %v2201
  %2658 = vmatprep.subr.bf16.mxu0 0
  %2659 = vmatpush2.bf16.msra.mxu0 %v2216
  %2660 = vmatprep.subr.bf16.mxu0 0
  %2661 = vmatpush2.bf16.msra.mxu0 %v2215
  %2662 = vmatprep.subr.bf16.mxu0 0
  %2663 = vmatpush2.bf16.msra.mxu0 %v2214
  %2664 = vmatprep.subr.bf16.mxu0 0
  %2665 = vmatpush2.bf16.msra.mxu0 %v2213
  %2666 = vmatprep.subr.bf16.mxu0 0
  %2667 = vmatpush2.bf16.msra.mxu0 %v2212
  %2668 = vmatprep.subr.bf16.mxu0 0
  %2669 = vmatpush2.bf16.msra.mxu0 %v2211
  %2670 = vmatprep.subr.bf16.mxu0 0
  %2671 = vmatpush2.bf16.msra.mxu0 %v2210
  %2672 = vmatprep.subr.bf16.mxu0 0
  %2673 = vmatpush2.bf16.msra.mxu0 %v2209
  %2674 = vmatprep.mubr.bf16.mxu0 %v1260
  %2675 = vmatmul.mubr.bf16.gmra.mxu0 %v1259
  %v2676 = vpop.f32.mrf.mxu0
  %v2677 = vadd.f32 %v2500, %v2676
  %v2678 = vpop.f32.mrf.mxu0
  %v2679 = vpop.f32.mrf.mxu0
  %v2680 = vadd.f32 %v2503, %v2679
  %v2681 = vpop.f32.mrf.mxu0
  %2682 = vmatprep.mubr.bf16.mxu0 %v1274
  %2683 = vmatmul.mubr.bf16.gmra.mxu0 %v1273
  %v2684 = vpop.f32.mrf.mxu0
  %v2685 = vadd.f32 %v2508, %v2684
  %v2686 = vpop.f32.mrf.mxu0
  %v2687 = vpop.f32.mrf.mxu0
  %v2688 = vadd.f32 %v2511, %v2687
  %v2689 = vpop.f32.mrf.mxu0
  %2690 = vmatprep.mubr.bf16.mxu0 %v1288
  %2691 = vmatmul.mubr.bf16.gmra.mxu0 %v1287
  %v2692 = vpop.f32.mrf.mxu0
  %v2693 = vadd.f32 %v2516, %v2692
  %v2694 = vpop.f32.mrf.mxu0
  %v2695 = vpop.f32.mrf.mxu0
  %v2696 = vadd.f32 %v2519, %v2695
  %v2697 = vpop.f32.mrf.mxu0
  %2698 = vmatprep.mubr.bf16.mxu0 %v1302
  %2699 = vmatmul.mubr.bf16.gmra.mxu0 %v1301
  %v2700 = vpop.f32.mrf.mxu0
  %v2701 = vadd.f32 %v2524, %v2700
  %v2702 = vpop.f32.mrf.mxu0
  %v2703 = vpop.f32.mrf.mxu0
  %v2704 = vadd.f32 %v2527, %v2703
  %v2705 = vpop.f32.mrf.mxu0
  %2706 = vmatprep.mubr.bf16.mxu0 %v1316
  %2707 = vmatmul.mubr.bf16.gmra.mxu0 %v1315
  %v2708 = vpop.f32.mrf.mxu0
  %v2709 = vadd.f32 %v2532, %v2708
  %v2710 = vpop.f32.mrf.mxu0
  %v2711 = vpop.f32.mrf.mxu0
  %v2712 = vadd.f32 %v2535, %v2711
  %v2713 = vpop.f32.mrf.mxu0
  %2714 = vmatprep.mubr.bf16.mxu0 %v1330
  %2715 = vmatmul.mubr.bf16.gmra.mxu0 %v1329
  %v2716 = vpop.f32.mrf.mxu0
  %v2717 = vadd.f32 %v2540, %v2716
  %v2718 = vpop.f32.mrf.mxu0
  %v2719 = vpop.f32.mrf.mxu0
  %v2720 = vadd.f32 %v2543, %v2719
  %v2721 = vpop.f32.mrf.mxu0
  %2722 = vmatprep.mubr.bf16.mxu0 %v1344
  %2723 = vmatmul.mubr.bf16.gmra.mxu0 %v1343
  %v2724 = vpop.f32.mrf.mxu0
  %v2725 = vadd.f32 %v2548, %v2724
  %v2726 = vpop.f32.mrf.mxu0
  %v2727 = vpop.f32.mrf.mxu0
  %v2728 = vadd.f32 %v2551, %v2727
  %v2729 = vpop.f32.mrf.mxu0
  %2730 = vmatprep.mubr.bf16.mxu0 %v1358
  %2731 = vmatmul.mubr.bf16.gmra.mxu0 %v1357
  %v2732 = vpop.f32.mrf.mxu0
  %v2733 = vadd.f32 %v2556, %v2732
  %v2734 = vpop.f32.mrf.mxu0
  %v2735 = vpop.f32.mrf.mxu0
  %v2736 = vadd.f32 %v2559, %v2735
  %v2737 = vpop.f32.mrf.mxu0
  %2738 = vmatprep.mubr.bf16.mxu0 %v1372
  %2739 = vmatmul.mubr.bf16.gmra.mxu0 %v1371
  %v2740 = vpop.f32.mrf.mxu0
  %v2741 = vadd.f32 %v2564, %v2740
  %v2742 = vpop.f32.mrf.mxu0
  %v2743 = vpop.f32.mrf.mxu0
  %v2744 = vadd.f32 %v2567, %v2743
  %v2745 = vpop.f32.mrf.mxu0
  %2746 = vmatprep.mubr.bf16.mxu0 %v1386
  %2747 = vmatmul.mubr.bf16.gmra.mxu0 %v1385
  %v2748 = vpop.f32.mrf.mxu0
  %v2749 = vadd.f32 %v2572, %v2748
  %v2750 = vpop.f32.mrf.mxu0
  %v2751 = vpop.f32.mrf.mxu0
  %v2752 = vadd.f32 %v2575, %v2751
  %v2753 = vpop.f32.mrf.mxu0
  %2754 = vmatprep.mubr.bf16.mxu0 %v1400
  %2755 = vmatmul.mubr.bf16.gmra.mxu0 %v1399
  %v2756 = vpop.f32.mrf.mxu0
  %v2757 = vadd.f32 %v2580, %v2756
  %v2758 = vpop.f32.mrf.mxu0
  %v2759 = vpop.f32.mrf.mxu0
  %v2760 = vadd.f32 %v2583, %v2759
  %v2761 = vpop.f32.mrf.mxu0
  %2762 = vmatprep.mubr.bf16.mxu0 %v1414
  %2763 = vmatmul.mubr.bf16.gmra.mxu0 %v1413
  %v2764 = vpop.f32.mrf.mxu0
  %v2765 = vadd.f32 %v2588, %v2764
  %v2766 = vpop.f32.mrf.mxu0
  %v2767 = vpop.f32.mrf.mxu0
  %v2768 = vadd.f32 %v2591, %v2767
  %v2769 = vpop.f32.mrf.mxu0
  %2770 = vmatprep.mubr.bf16.mxu0 %v1428
  %2771 = vmatmul.mubr.bf16.gmra.mxu0 %v1427
  %v2772 = vpop.f32.mrf.mxu0
  %v2773 = vadd.f32 %v2596, %v2772
  %v2774 = vpop.f32.mrf.mxu0
  %v2775 = vpop.f32.mrf.mxu0
  %v2776 = vadd.f32 %v2599, %v2775
  %v2777 = vpop.f32.mrf.mxu0
  %2778 = vmatprep.mubr.bf16.mxu0 %v1442
  %2779 = vmatmul.mubr.bf16.gmra.mxu0 %v1441
  %v2780 = vpop.f32.mrf.mxu0
  %v2781 = vadd.f32 %v2604, %v2780
  %v2782 = vpop.f32.mrf.mxu0
  %v2783 = vpop.f32.mrf.mxu0
  %v2784 = vadd.f32 %v2607, %v2783
  %v2785 = vpop.f32.mrf.mxu0
  %2786 = vmatprep.mubr.bf16.mxu0 %v1456
  %2787 = vmatmul.mubr.bf16.gmra.mxu0 %v1455
  %v2788 = vpop.f32.mrf.mxu0
  %v2789 = vadd.f32 %v2612, %v2788
  %v2790 = vpop.f32.mrf.mxu0
  %v2791 = vpop.f32.mrf.mxu0
  %v2792 = vadd.f32 %v2615, %v2791
  %v2793 = vpop.f32.mrf.mxu0
  %2794 = vmatprep.mubr.bf16.mxu0 %v1470
  %2795 = vmatmul.mubr.bf16.gmra.mxu0 %v1469
  %v2796 = vpop.f32.mrf.mxu0
  %v2797 = vadd.f32 %v2620, %v2796
  %v2798 = vpop.f32.mrf.mxu0
  %v2799 = vpop.f32.mrf.mxu0
  %v2800 = vadd.f32 %v2623, %v2799
  %v2801 = vpop.f32.mrf.mxu0
  %2802 = vmatprep.mubr.bf16.mxu0 %v1484
  %2803 = vmatmul.mubr.bf16.gmra.mxu0 %v1483
  %v2804 = vpop.f32.mrf.mxu0
  %v2805 = vadd.f32 %v2628, %v2804
  %v2806 = vpop.f32.mrf.mxu0
  %v2807 = vpop.f32.mrf.mxu0
  %v2808 = vadd.f32 %v2631, %v2807
  %v2809 = vpop.f32.mrf.mxu0
  %2810 = vmatprep.mubr.bf16.mxu0 %v1498
  %2811 = vmatmul.mubr.bf16.gmra.mxu0 %v1497
  %v2812 = vpop.f32.mrf.mxu0
  %v2813 = vadd.f32 %v2636, %v2812
  %v2814 = vpop.f32.mrf.mxu0
  %v2815 = vpop.f32.mrf.mxu0
  %v2816 = vadd.f32 %v2639, %v2815
  %v2817 = vpop.f32.mrf.mxu0
  %2818 = vdwg.mxu0
  %2819 = vmatprep.subr.bf16.mxu0 0
  %2820 = vmatpush1.bf16.msra.mxu0 %v2224
  %2821 = vmatprep.subr.bf16.mxu0 0
  %2822 = vmatpush1.bf16.msra.mxu0 %v2223
  %2823 = vmatprep.subr.bf16.mxu0 0
  %2824 = vmatpush1.bf16.msra.mxu0 %v2222
  %2825 = vmatprep.subr.bf16.mxu0 0
  %2826 = vmatpush1.bf16.msra.mxu0 %v2221
  %2827 = vmatprep.subr.bf16.mxu0 0
  %2828 = vmatpush1.bf16.msra.mxu0 %v2220
  %2829 = vmatprep.subr.bf16.mxu0 0
  %2830 = vmatpush1.bf16.msra.mxu0 %v2219
  %2831 = vmatprep.subr.bf16.mxu0 0
  %2832 = vmatpush1.bf16.msra.mxu0 %v2218
  %2833 = vmatprep.subr.bf16.mxu0 0
  %2834 = vmatpush1.bf16.msra.mxu0 %v2217
  %2835 = vmatprep.subr.bf16.mxu0 0
  %2836 = vmatpush2.bf16.msra.mxu0 %v2232
  %2837 = vmatprep.subr.bf16.mxu0 0
  %2838 = vmatpush2.bf16.msra.mxu0 %v2231
  %2839 = vmatprep.subr.bf16.mxu0 0
  %2840 = vmatpush2.bf16.msra.mxu0 %v2230
  %2841 = vmatprep.subr.bf16.mxu0 0
  %2842 = vmatpush2.bf16.msra.mxu0 %v2229
  %2843 = vmatprep.subr.bf16.mxu0 0
  %2844 = vmatpush2.bf16.msra.mxu0 %v2228
  %2845 = vmatprep.subr.bf16.mxu0 0
  %2846 = vmatpush2.bf16.msra.mxu0 %v2227
  %2847 = vmatprep.subr.bf16.mxu0 0
  %2848 = vmatpush2.bf16.msra.mxu0 %v2226
  %2849 = vmatprep.subr.bf16.mxu0 0
  %2850 = vmatpush2.bf16.msra.mxu0 %v2225
  %2851 = vmatprep.mubr.bf16.mxu0 %v1262
  %2852 = vmatmul.mubr.bf16.gmra.mxu0 %v1261
  %v2853 = vpop.f32.mrf.mxu0
  %v2854 = vadd.f32 %v2677, %v2853
  %v2855 = vpop.f32.mrf.mxu0
  %v2856 = vpop.f32.mrf.mxu0
  %v2857 = vadd.f32 %v2680, %v2856
  %v2858 = vpop.f32.mrf.mxu0
  %2859 = vmatprep.mubr.bf16.mxu0 %v1276
  %2860 = vmatmul.mubr.bf16.gmra.mxu0 %v1275
  %v2861 = vpop.f32.mrf.mxu0
  %v2862 = vadd.f32 %v2685, %v2861
  %v2863 = vpop.f32.mrf.mxu0
  %v2864 = vpop.f32.mrf.mxu0
  %v2865 = vadd.f32 %v2688, %v2864
  %v2866 = vpop.f32.mrf.mxu0
  %2867 = vmatprep.mubr.bf16.mxu0 %v1290
  %2868 = vmatmul.mubr.bf16.gmra.mxu0 %v1289
  %v2869 = vpop.f32.mrf.mxu0
  %v2870 = vadd.f32 %v2693, %v2869
  %v2871 = vpop.f32.mrf.mxu0
  %v2872 = vpop.f32.mrf.mxu0
  %v2873 = vadd.f32 %v2696, %v2872
  %v2874 = vpop.f32.mrf.mxu0
  %2875 = vmatprep.mubr.bf16.mxu0 %v1304
  %2876 = vmatmul.mubr.bf16.gmra.mxu0 %v1303
  %v2877 = vpop.f32.mrf.mxu0
  %v2878 = vadd.f32 %v2701, %v2877
  %v2879 = vpop.f32.mrf.mxu0
  %v2880 = vpop.f32.mrf.mxu0
  %v2881 = vadd.f32 %v2704, %v2880
  %v2882 = vpop.f32.mrf.mxu0
  %2883 = vmatprep.mubr.bf16.mxu0 %v1318
  %2884 = vmatmul.mubr.bf16.gmra.mxu0 %v1317
  %v2885 = vpop.f32.mrf.mxu0
  %v2886 = vadd.f32 %v2709, %v2885
  %v2887 = vpop.f32.mrf.mxu0
  %v2888 = vpop.f32.mrf.mxu0
  %v2889 = vadd.f32 %v2712, %v2888
  %v2890 = vpop.f32.mrf.mxu0
  %2891 = vmatprep.mubr.bf16.mxu0 %v1332
  %2892 = vmatmul.mubr.bf16.gmra.mxu0 %v1331
  %v2893 = vpop.f32.mrf.mxu0
  %v2894 = vadd.f32 %v2717, %v2893
  %v2895 = vpop.f32.mrf.mxu0
  %v2896 = vpop.f32.mrf.mxu0
  %v2897 = vadd.f32 %v2720, %v2896
  %v2898 = vpop.f32.mrf.mxu0
  %2899 = vmatprep.mubr.bf16.mxu0 %v1346
  %2900 = vmatmul.mubr.bf16.gmra.mxu0 %v1345
  %v2901 = vpop.f32.mrf.mxu0
  %v2902 = vadd.f32 %v2725, %v2901
  %v2903 = vpop.f32.mrf.mxu0
  %v2904 = vpop.f32.mrf.mxu0
  %v2905 = vadd.f32 %v2728, %v2904
  %v2906 = vpop.f32.mrf.mxu0
  %2907 = vmatprep.mubr.bf16.mxu0 %v1360
  %2908 = vmatmul.mubr.bf16.gmra.mxu0 %v1359
  %v2909 = vpop.f32.mrf.mxu0
  %v2910 = vadd.f32 %v2733, %v2909
  %v2911 = vpop.f32.mrf.mxu0
  %v2912 = vpop.f32.mrf.mxu0
  %v2913 = vadd.f32 %v2736, %v2912
  %v2914 = vpop.f32.mrf.mxu0
  %2915 = vmatprep.mubr.bf16.mxu0 %v1374
  %2916 = vmatmul.mubr.bf16.gmra.mxu0 %v1373
  %v2917 = vpop.f32.mrf.mxu0
  %v2918 = vadd.f32 %v2741, %v2917
  %v2919 = vpop.f32.mrf.mxu0
  %v2920 = vpop.f32.mrf.mxu0
  %v2921 = vadd.f32 %v2744, %v2920
  %v2922 = vpop.f32.mrf.mxu0
  %2923 = vmatprep.mubr.bf16.mxu0 %v1388
  %2924 = vmatmul.mubr.bf16.gmra.mxu0 %v1387
  %v2925 = vpop.f32.mrf.mxu0
  %v2926 = vadd.f32 %v2749, %v2925
  %v2927 = vpop.f32.mrf.mxu0
  %v2928 = vpop.f32.mrf.mxu0
  %v2929 = vadd.f32 %v2752, %v2928
  %v2930 = vpop.f32.mrf.mxu0
  %2931 = vmatprep.mubr.bf16.mxu0 %v1402
  %2932 = vmatmul.mubr.bf16.gmra.mxu0 %v1401
  %v2933 = vpop.f32.mrf.mxu0
  %v2934 = vadd.f32 %v2757, %v2933
  %v2935 = vpop.f32.mrf.mxu0
  %v2936 = vpop.f32.mrf.mxu0
  %v2937 = vadd.f32 %v2760, %v2936
  %v2938 = vpop.f32.mrf.mxu0
  %2939 = vmatprep.mubr.bf16.mxu0 %v1416
  %2940 = vmatmul.mubr.bf16.gmra.mxu0 %v1415
  %v2941 = vpop.f32.mrf.mxu0
  %v2942 = vadd.f32 %v2765, %v2941
  %v2943 = vpop.f32.mrf.mxu0
  %v2944 = vpop.f32.mrf.mxu0
  %v2945 = vadd.f32 %v2768, %v2944
  %v2946 = vpop.f32.mrf.mxu0
  %2947 = vmatprep.mubr.bf16.mxu0 %v1430
  %2948 = vmatmul.mubr.bf16.gmra.mxu0 %v1429
  %v2949 = vpop.f32.mrf.mxu0
  %v2950 = vadd.f32 %v2773, %v2949
  %v2951 = vpop.f32.mrf.mxu0
  %v2952 = vpop.f32.mrf.mxu0
  %v2953 = vadd.f32 %v2776, %v2952
  %v2954 = vpop.f32.mrf.mxu0
  %2955 = vmatprep.mubr.bf16.mxu0 %v1444
  %2956 = vmatmul.mubr.bf16.gmra.mxu0 %v1443
  %v2957 = vpop.f32.mrf.mxu0
  %v2958 = vadd.f32 %v2781, %v2957
  %v2959 = vpop.f32.mrf.mxu0
  %v2960 = vpop.f32.mrf.mxu0
  %v2961 = vadd.f32 %v2784, %v2960
  %v2962 = vpop.f32.mrf.mxu0
  %2963 = vmatprep.mubr.bf16.mxu0 %v1458
  %2964 = vmatmul.mubr.bf16.gmra.mxu0 %v1457
  %v2965 = vpop.f32.mrf.mxu0
  %v2966 = vadd.f32 %v2789, %v2965
  %v2967 = vpop.f32.mrf.mxu0
  %v2968 = vpop.f32.mrf.mxu0
  %v2969 = vadd.f32 %v2792, %v2968
  %v2970 = vpop.f32.mrf.mxu0
  %2971 = vmatprep.mubr.bf16.mxu0 %v1472
  %2972 = vmatmul.mubr.bf16.gmra.mxu0 %v1471
  %v2973 = vpop.f32.mrf.mxu0
  %v2974 = vadd.f32 %v2797, %v2973
  %v2975 = vpop.f32.mrf.mxu0
  %v2976 = vpop.f32.mrf.mxu0
  %v2977 = vadd.f32 %v2800, %v2976
  %v2978 = vpop.f32.mrf.mxu0
  %2979 = vmatprep.mubr.bf16.mxu0 %v1486
  %2980 = vmatmul.mubr.bf16.gmra.mxu0 %v1485
  %v2981 = vpop.f32.mrf.mxu0
  %v2982 = vadd.f32 %v2805, %v2981
  %v2983 = vpop.f32.mrf.mxu0
  %v2984 = vpop.f32.mrf.mxu0
  %v2985 = vadd.f32 %v2808, %v2984
  %v2986 = vpop.f32.mrf.mxu0
  %2987 = vmatprep.mubr.bf16.mxu0 %v1500
  %2988 = vmatmul.mubr.bf16.gmra.mxu0 %v1499
  %v2989 = vpop.f32.mrf.mxu0
  %v2990 = vadd.f32 %v2813, %v2989
  %v2991 = vpop.f32.mrf.mxu0
  %v2992 = vpop.f32.mrf.mxu0
  %v2993 = vadd.f32 %v2816, %v2992
  %v2994 = vpop.f32.mrf.mxu0
  %2995 = vdwg.mxu0
  %2996 = vmatprep.subr.bf16.mxu0 0
  %2997 = vmatpush1.bf16.msra.mxu0 %v2240
  %2998 = vmatprep.subr.bf16.mxu0 0
  %2999 = vmatpush1.bf16.msra.mxu0 %v2239
  %3000 = vmatprep.subr.bf16.mxu0 0
  %3001 = vmatpush1.bf16.msra.mxu0 %v2238
  %3002 = vmatprep.subr.bf16.mxu0 0
  %3003 = vmatpush1.bf16.msra.mxu0 %v2237
  %3004 = vmatprep.subr.bf16.mxu0 0
  %3005 = vmatpush1.bf16.msra.mxu0 %v2236
  %3006 = vmatprep.subr.bf16.mxu0 0
  %3007 = vmatpush1.bf16.msra.mxu0 %v2235
  %3008 = vmatprep.subr.bf16.mxu0 0
  %3009 = vmatpush1.bf16.msra.mxu0 %v2234
  %3010 = vmatprep.subr.bf16.mxu0 0
  %3011 = vmatpush1.bf16.msra.mxu0 %v2233
  %3012 = vmatprep.subr.bf16.mxu0 0
  %3013 = vmatpush2.bf16.msra.mxu0 %v2248
  %3014 = vmatprep.subr.bf16.mxu0 0
  %3015 = vmatpush2.bf16.msra.mxu0 %v2247
  %3016 = vmatprep.subr.bf16.mxu0 0
  %3017 = vmatpush2.bf16.msra.mxu0 %v2246
  %3018 = vmatprep.subr.bf16.mxu0 0
  %3019 = vmatpush2.bf16.msra.mxu0 %v2245
  %3020 = vmatprep.subr.bf16.mxu0 0
  %3021 = vmatpush2.bf16.msra.mxu0 %v2244
  %3022 = vmatprep.subr.bf16.mxu0 0
  %3023 = vmatpush2.bf16.msra.mxu0 %v2243
  %3024 = vmatprep.subr.bf16.mxu0 0
  %3025 = vmatpush2.bf16.msra.mxu0 %v2242
  %3026 = vmatprep.subr.bf16.mxu0 0
  %3027 = vmatpush2.bf16.msra.mxu0 %v2241
  %3028 = vmatprep.mubr.bf16.mxu0 %v1264
  %3029 = vmatmul.mubr.bf16.gmra.mxu0 %v1263
  %v3030 = vpop.f32.mrf.mxu0
  %v3031 = vadd.f32 %v2854, %v3030
  %v3032 = vpop.f32.mrf.mxu0
  %v3033 = vpop.f32.mrf.mxu0
  %v3034 = vadd.f32 %v2857, %v3033
  %v3035 = vpop.f32.mrf.mxu0
  %3036 = vmatprep.mubr.bf16.mxu0 %v1278
  %3037 = vmatmul.mubr.bf16.gmra.mxu0 %v1277
  %v3038 = vpop.f32.mrf.mxu0
  %v3039 = vadd.f32 %v2862, %v3038
  %v3040 = vpop.f32.mrf.mxu0
  %v3041 = vpop.f32.mrf.mxu0
  %v3042 = vadd.f32 %v2865, %v3041
  %v3043 = vpop.f32.mrf.mxu0
  %3044 = vmatprep.mubr.bf16.mxu0 %v1292
  %3045 = vmatmul.mubr.bf16.gmra.mxu0 %v1291
  %v3046 = vpop.f32.mrf.mxu0
  %v3047 = vadd.f32 %v2870, %v3046
  %v3048 = vpop.f32.mrf.mxu0
  %v3049 = vpop.f32.mrf.mxu0
  %v3050 = vadd.f32 %v2873, %v3049
  %v3051 = vpop.f32.mrf.mxu0
  %3052 = vmatprep.mubr.bf16.mxu0 %v1306
  %3053 = vmatmul.mubr.bf16.gmra.mxu0 %v1305
  %v3054 = vpop.f32.mrf.mxu0
  %v3055 = vadd.f32 %v2878, %v3054
  %v3056 = vpop.f32.mrf.mxu0
  %v3057 = vpop.f32.mrf.mxu0
  %v3058 = vadd.f32 %v2881, %v3057
  %v3059 = vpop.f32.mrf.mxu0
  %3060 = vmatprep.mubr.bf16.mxu0 %v1320
  %3061 = vmatmul.mubr.bf16.gmra.mxu0 %v1319
  %v3062 = vpop.f32.mrf.mxu0
  %v3063 = vadd.f32 %v2886, %v3062
  %v3064 = vpop.f32.mrf.mxu0
  %v3065 = vpop.f32.mrf.mxu0
  %v3066 = vadd.f32 %v2889, %v3065
  %v3067 = vpop.f32.mrf.mxu0
  %3068 = vmatprep.mubr.bf16.mxu0 %v1334
  %3069 = vmatmul.mubr.bf16.gmra.mxu0 %v1333
  %v3070 = vpop.f32.mrf.mxu0
  %v3071 = vadd.f32 %v2894, %v3070
  %v3072 = vpop.f32.mrf.mxu0
  %v3073 = vpop.f32.mrf.mxu0
  %v3074 = vadd.f32 %v2897, %v3073
  %v3075 = vpop.f32.mrf.mxu0
  %3076 = vmatprep.mubr.bf16.mxu0 %v1348
  %3077 = vmatmul.mubr.bf16.gmra.mxu0 %v1347
  %v3078 = vpop.f32.mrf.mxu0
  %v3079 = vadd.f32 %v2902, %v3078
  %v3080 = vpop.f32.mrf.mxu0
  %v3081 = vpop.f32.mrf.mxu0
  %v3082 = vadd.f32 %v2905, %v3081
  %v3083 = vpop.f32.mrf.mxu0
  %3084 = vmatprep.mubr.bf16.mxu0 %v1362
  %3085 = vmatmul.mubr.bf16.gmra.mxu0 %v1361
  %v3086 = vpop.f32.mrf.mxu0
  %v3087 = vadd.f32 %v2910, %v3086
  %v3088 = vpop.f32.mrf.mxu0
  %v3089 = vpop.f32.mrf.mxu0
  %v3090 = vadd.f32 %v2913, %v3089
  %v3091 = vpop.f32.mrf.mxu0
  %3092 = vmatprep.mubr.bf16.mxu0 %v1376
  %3093 = vmatmul.mubr.bf16.gmra.mxu0 %v1375
  %v3094 = vpop.f32.mrf.mxu0
  %v3095 = vadd.f32 %v2918, %v3094
  %v3096 = vpop.f32.mrf.mxu0
  %v3097 = vpop.f32.mrf.mxu0
  %v3098 = vadd.f32 %v2921, %v3097
  %v3099 = vpop.f32.mrf.mxu0
  %3100 = vmatprep.mubr.bf16.mxu0 %v1390
  %3101 = vmatmul.mubr.bf16.gmra.mxu0 %v1389
  %v3102 = vpop.f32.mrf.mxu0
  %v3103 = vadd.f32 %v2926, %v3102
  %v3104 = vpop.f32.mrf.mxu0
  %v3105 = vpop.f32.mrf.mxu0
  %v3106 = vadd.f32 %v2929, %v3105
  %v3107 = vpop.f32.mrf.mxu0
  %3108 = vmatprep.mubr.bf16.mxu0 %v1404
  %3109 = vmatmul.mubr.bf16.gmra.mxu0 %v1403
  %v3110 = vpop.f32.mrf.mxu0
  %v3111 = vadd.f32 %v2934, %v3110
  %v3112 = vpop.f32.mrf.mxu0
  %v3113 = vpop.f32.mrf.mxu0
  %v3114 = vadd.f32 %v2937, %v3113
  %v3115 = vpop.f32.mrf.mxu0
  %3116 = vmatprep.mubr.bf16.mxu0 %v1418
  %3117 = vmatmul.mubr.bf16.gmra.mxu0 %v1417
  %v3118 = vpop.f32.mrf.mxu0
  %v3119 = vadd.f32 %v2942, %v3118
  %v3120 = vpop.f32.mrf.mxu0
  %v3121 = vpop.f32.mrf.mxu0
  %v3122 = vadd.f32 %v2945, %v3121
  %v3123 = vpop.f32.mrf.mxu0
  %3124 = vmatprep.mubr.bf16.mxu0 %v1432
  %3125 = vmatmul.mubr.bf16.gmra.mxu0 %v1431
  %v3126 = vpop.f32.mrf.mxu0
  %v3127 = vadd.f32 %v2950, %v3126
  %v3128 = vpop.f32.mrf.mxu0
  %v3129 = vpop.f32.mrf.mxu0
  %v3130 = vadd.f32 %v2953, %v3129
  %v3131 = vpop.f32.mrf.mxu0
  %3132 = vmatprep.mubr.bf16.mxu0 %v1446
  %3133 = vmatmul.mubr.bf16.gmra.mxu0 %v1445
  %v3134 = vpop.f32.mrf.mxu0
  %v3135 = vadd.f32 %v2958, %v3134
  %v3136 = vpop.f32.mrf.mxu0
  %v3137 = vpop.f32.mrf.mxu0
  %v3138 = vadd.f32 %v2961, %v3137
  %v3139 = vpop.f32.mrf.mxu0
  %3140 = vmatprep.mubr.bf16.mxu0 %v1460
  %3141 = vmatmul.mubr.bf16.gmra.mxu0 %v1459
  %v3142 = vpop.f32.mrf.mxu0
  %v3143 = vadd.f32 %v2966, %v3142
  %v3144 = vpop.f32.mrf.mxu0
  %v3145 = vpop.f32.mrf.mxu0
  %v3146 = vadd.f32 %v2969, %v3145
  %v3147 = vpop.f32.mrf.mxu0
  %3148 = vmatprep.mubr.bf16.mxu0 %v1474
  %3149 = vmatmul.mubr.bf16.gmra.mxu0 %v1473
  %v3150 = vpop.f32.mrf.mxu0
  %v3151 = vadd.f32 %v2974, %v3150
  %v3152 = vpop.f32.mrf.mxu0
  %v3153 = vpop.f32.mrf.mxu0
  %v3154 = vadd.f32 %v2977, %v3153
  %v3155 = vpop.f32.mrf.mxu0
  %3156 = vmatprep.mubr.bf16.mxu0 %v1488
  %3157 = vmatmul.mubr.bf16.gmra.mxu0 %v1487
  %v3158 = vpop.f32.mrf.mxu0
  %v3159 = vadd.f32 %v2982, %v3158
  %v3160 = vpop.f32.mrf.mxu0
  %v3161 = vpop.f32.mrf.mxu0
  %v3162 = vadd.f32 %v2985, %v3161
  %v3163 = vpop.f32.mrf.mxu0
  %3164 = vmatprep.mubr.bf16.mxu0 %v1502
  %3165 = vmatmul.mubr.bf16.gmra.mxu0 %v1501
  %v3166 = vpop.f32.mrf.mxu0
  %v3167 = vadd.f32 %v2990, %v3166
  %v3168 = vpop.f32.mrf.mxu0
  %v3169 = vpop.f32.mrf.mxu0
  %v3170 = vadd.f32 %v2993, %v3169
  %v3171 = vpop.f32.mrf.mxu0
  %3172 = vdwg.mxu0
  %3173 = vmatprep.subr.bf16.mxu0 0
  %3174 = vmatpush1.bf16.msra.mxu0 %v2256
  %3175 = vmatprep.subr.bf16.mxu0 0
  %3176 = vmatpush1.bf16.msra.mxu0 %v2255
  %3177 = vmatprep.subr.bf16.mxu0 0
  %3178 = vmatpush1.bf16.msra.mxu0 %v2254
  %3179 = vmatprep.subr.bf16.mxu0 0
  %3180 = vmatpush1.bf16.msra.mxu0 %v2253
  %3181 = vmatprep.subr.bf16.mxu0 0
  %3182 = vmatpush1.bf16.msra.mxu0 %v2252
  %3183 = vmatprep.subr.bf16.mxu0 0
  %3184 = vmatpush1.bf16.msra.mxu0 %v2251
  %3185 = vmatprep.subr.bf16.mxu0 0
  %3186 = vmatpush1.bf16.msra.mxu0 %v2250
  %3187 = vmatprep.subr.bf16.mxu0 0
  %3188 = vmatpush1.bf16.msra.mxu0 %v2249
  %3189 = vmatprep.subr.bf16.mxu0 0
  %3190 = vmatpush2.bf16.msra.mxu0 %v2264
  %3191 = vmatprep.subr.bf16.mxu0 0
  %3192 = vmatpush2.bf16.msra.mxu0 %v2263
  %3193 = vmatprep.subr.bf16.mxu0 0
  %3194 = vmatpush2.bf16.msra.mxu0 %v2262
  %3195 = vmatprep.subr.bf16.mxu0 0
  %3196 = vmatpush2.bf16.msra.mxu0 %v2261
  %3197 = vmatprep.subr.bf16.mxu0 0
  %3198 = vmatpush2.bf16.msra.mxu0 %v2260
  %3199 = vmatprep.subr.bf16.mxu0 0
  %3200 = vmatpush2.bf16.msra.mxu0 %v2259
  %3201 = vmatprep.subr.bf16.mxu0 0
  %3202 = vmatpush2.bf16.msra.mxu0 %v2258
  %3203 = vmatprep.subr.bf16.mxu0 0
  %3204 = vmatpush2.bf16.msra.mxu0 %v2257
  %3205 = vmatprep.mubr.bf16.mxu0 %v1266
  %3206 = vmatmul.mubr.bf16.gmra.mxu0 %v1265
  %v3207 = vpop.f32.mrf.mxu0
  %v3208 = vadd.f32 %v3031, %v3207
  %v3209 = vpop.f32.mrf.mxu0
  %v3210 = vpop.f32.mrf.mxu0
  %v3211 = vadd.f32 %v3034, %v3210
  %v3212 = vpop.f32.mrf.mxu0
  %3213 = vmatprep.mubr.bf16.mxu0 %v1280
  %3214 = vmatmul.mubr.bf16.gmra.mxu0 %v1279
  %v3215 = vpop.f32.mrf.mxu0
  %v3216 = vadd.f32 %v3039, %v3215
  %v3217 = vpop.f32.mrf.mxu0
  %v3218 = vpop.f32.mrf.mxu0
  %v3219 = vadd.f32 %v3042, %v3218
  %v3220 = vpop.f32.mrf.mxu0
  %3221 = vmatprep.mubr.bf16.mxu0 %v1294
  %3222 = vmatmul.mubr.bf16.gmra.mxu0 %v1293
  %v3223 = vpop.f32.mrf.mxu0
  %v3224 = vadd.f32 %v3047, %v3223
  %v3225 = vpop.f32.mrf.mxu0
  %v3226 = vpop.f32.mrf.mxu0
  %v3227 = vadd.f32 %v3050, %v3226
  %v3228 = vpop.f32.mrf.mxu0
  %3229 = vmatprep.mubr.bf16.mxu0 %v1308
  %3230 = vmatmul.mubr.bf16.gmra.mxu0 %v1307
  %v3231 = vpop.f32.mrf.mxu0
  %v3232 = vadd.f32 %v3055, %v3231
  %v3233 = vpop.f32.mrf.mxu0
  %v3234 = vpop.f32.mrf.mxu0
  %v3235 = vadd.f32 %v3058, %v3234
  %v3236 = vpop.f32.mrf.mxu0
  %3237 = vmatprep.mubr.bf16.mxu0 %v1322
  %3238 = vmatmul.mubr.bf16.gmra.mxu0 %v1321
  %v3239 = vpop.f32.mrf.mxu0
  %v3240 = vadd.f32 %v3063, %v3239
  %v3241 = vpop.f32.mrf.mxu0
  %v3242 = vpop.f32.mrf.mxu0
  %v3243 = vadd.f32 %v3066, %v3242
  %v3244 = vpop.f32.mrf.mxu0
  %3245 = vmatprep.mubr.bf16.mxu0 %v1336
  %3246 = vmatmul.mubr.bf16.gmra.mxu0 %v1335
  %v3247 = vpop.f32.mrf.mxu0
  %v3248 = vadd.f32 %v3071, %v3247
  %v3249 = vpop.f32.mrf.mxu0
  %v3250 = vpop.f32.mrf.mxu0
  %v3251 = vadd.f32 %v3074, %v3250
  %v3252 = vpop.f32.mrf.mxu0
  %3253 = vmatprep.mubr.bf16.mxu0 %v1350
  %3254 = vmatmul.mubr.bf16.gmra.mxu0 %v1349
  %v3255 = vpop.f32.mrf.mxu0
  %v3256 = vadd.f32 %v3079, %v3255
  %v3257 = vpop.f32.mrf.mxu0
  %v3258 = vpop.f32.mrf.mxu0
  %v3259 = vadd.f32 %v3082, %v3258
  %v3260 = vpop.f32.mrf.mxu0
  %3261 = vmatprep.mubr.bf16.mxu0 %v1364
  %3262 = vmatmul.mubr.bf16.gmra.mxu0 %v1363
  %v3263 = vpop.f32.mrf.mxu0
  %v3264 = vadd.f32 %v3087, %v3263
  %v3265 = vpop.f32.mrf.mxu0
  %v3266 = vpop.f32.mrf.mxu0
  %v3267 = vadd.f32 %v3090, %v3266
  %v3268 = vpop.f32.mrf.mxu0
  %3269 = vmatprep.mubr.bf16.mxu0 %v1378
  %3270 = vmatmul.mubr.bf16.gmra.mxu0 %v1377
  %v3271 = vpop.f32.mrf.mxu0
  %v3272 = vadd.f32 %v3095, %v3271
  %v3273 = vpop.f32.mrf.mxu0
  %v3274 = vpop.f32.mrf.mxu0
  %v3275 = vadd.f32 %v3098, %v3274
  %v3276 = vpop.f32.mrf.mxu0
  %3277 = vmatprep.mubr.bf16.mxu0 %v1392
  %3278 = vmatmul.mubr.bf16.gmra.mxu0 %v1391
  %v3279 = vpop.f32.mrf.mxu0
  %v3280 = vadd.f32 %v3103, %v3279
  %v3281 = vpop.f32.mrf.mxu0
  %v3282 = vpop.f32.mrf.mxu0
  %v3283 = vadd.f32 %v3106, %v3282
  %v3284 = vpop.f32.mrf.mxu0
  %3285 = vmatprep.mubr.bf16.mxu0 %v1406
  %3286 = vmatmul.mubr.bf16.gmra.mxu0 %v1405
  %v3287 = vpop.f32.mrf.mxu0
  %v3288 = vadd.f32 %v3111, %v3287
  %v3289 = vpop.f32.mrf.mxu0
  %v3290 = vpop.f32.mrf.mxu0
  %v3291 = vadd.f32 %v3114, %v3290
  %v3292 = vpop.f32.mrf.mxu0
  %3293 = vmatprep.mubr.bf16.mxu0 %v1420
  %3294 = vmatmul.mubr.bf16.gmra.mxu0 %v1419
  %v3295 = vpop.f32.mrf.mxu0
  %v3296 = vadd.f32 %v3119, %v3295
  %v3297 = vpop.f32.mrf.mxu0
  %v3298 = vpop.f32.mrf.mxu0
  %v3299 = vadd.f32 %v3122, %v3298
  %v3300 = vpop.f32.mrf.mxu0
  %3301 = vmatprep.mubr.bf16.mxu0 %v1434
  %3302 = vmatmul.mubr.bf16.gmra.mxu0 %v1433
  %v3303 = vpop.f32.mrf.mxu0
  %v3304 = vadd.f32 %v3127, %v3303
  %v3305 = vpop.f32.mrf.mxu0
  %v3306 = vpop.f32.mrf.mxu0
  %v3307 = vadd.f32 %v3130, %v3306
  %v3308 = vpop.f32.mrf.mxu0
  %3309 = vmatprep.mubr.bf16.mxu0 %v1448
  %3310 = vmatmul.mubr.bf16.gmra.mxu0 %v1447
  %v3311 = vpop.f32.mrf.mxu0
  %v3312 = vadd.f32 %v3135, %v3311
  %v3313 = vpop.f32.mrf.mxu0
  %v3314 = vpop.f32.mrf.mxu0
  %v3315 = vadd.f32 %v3138, %v3314
  %v3316 = vpop.f32.mrf.mxu0
  %3317 = vmatprep.mubr.bf16.mxu0 %v1462
  %3318 = vmatmul.mubr.bf16.gmra.mxu0 %v1461
  %v3319 = vpop.f32.mrf.mxu0
  %v3320 = vadd.f32 %v3143, %v3319
  %v3321 = vpop.f32.mrf.mxu0
  %v3322 = vpop.f32.mrf.mxu0
  %v3323 = vadd.f32 %v3146, %v3322
  %v3324 = vpop.f32.mrf.mxu0
  %3325 = vmatprep.mubr.bf16.mxu0 %v1476
  %3326 = vmatmul.mubr.bf16.gmra.mxu0 %v1475
  %v3327 = vpop.f32.mrf.mxu0
  %v3328 = vadd.f32 %v3151, %v3327
  %v3329 = vpop.f32.mrf.mxu0
  %v3330 = vpop.f32.mrf.mxu0
  %v3331 = vadd.f32 %v3154, %v3330
  %v3332 = vpop.f32.mrf.mxu0
  %3333 = vmatprep.mubr.bf16.mxu0 %v1490
  %3334 = vmatmul.mubr.bf16.gmra.mxu0 %v1489
  %v3335 = vpop.f32.mrf.mxu0
  %v3336 = vadd.f32 %v3159, %v3335
  %v3337 = vpop.f32.mrf.mxu0
  %v3338 = vpop.f32.mrf.mxu0
  %v3339 = vadd.f32 %v3162, %v3338
  %v3340 = vpop.f32.mrf.mxu0
  %3341 = vmatprep.mubr.bf16.mxu0 %v1504
  %3342 = vmatmul.mubr.bf16.gmra.mxu0 %v1503
  %v3343 = vpop.f32.mrf.mxu0
  %v3344 = vadd.f32 %v3167, %v3343
  %v3345 = vpop.f32.mrf.mxu0
  %v3346 = vpop.f32.mrf.mxu0
  %v3347 = vadd.f32 %v3170, %v3346
  %v3348 = vpop.f32.mrf.mxu0
  %3349 = vdwg.mxu0
  %3350 = vmatprep.subr.bf16.mxu0 0
  %3351 = vmatpush1.bf16.msra.mxu0 %v2272
  %3352 = vmatprep.subr.bf16.mxu0 0
  %3353 = vmatpush1.bf16.msra.mxu0 %v2271
  %3354 = vmatprep.subr.bf16.mxu0 0
  %3355 = vmatpush1.bf16.msra.mxu0 %v2270
  %3356 = vmatprep.subr.bf16.mxu0 0
  %3357 = vmatpush1.bf16.msra.mxu0 %v2269
  %3358 = vmatprep.subr.bf16.mxu0 0
  %3359 = vmatpush1.bf16.msra.mxu0 %v2268
  %3360 = vmatprep.subr.bf16.mxu0 0
  %3361 = vmatpush1.bf16.msra.mxu0 %v2267
  %3362 = vmatprep.subr.bf16.mxu0 0
  %3363 = vmatpush1.bf16.msra.mxu0 %v2266
  %3364 = vmatprep.subr.bf16.mxu0 0
  %3365 = vmatpush1.bf16.msra.mxu0 %v2265
  %3366 = vmatprep.subr.bf16.mxu0 0
  %3367 = vmatpush2.bf16.msra.mxu0 %v2280
  %3368 = vmatprep.subr.bf16.mxu0 0
  %3369 = vmatpush2.bf16.msra.mxu0 %v2279
  %3370 = vmatprep.subr.bf16.mxu0 0
  %3371 = vmatpush2.bf16.msra.mxu0 %v2278
  %3372 = vmatprep.subr.bf16.mxu0 0
  %3373 = vmatpush2.bf16.msra.mxu0 %v2277
  %3374 = vmatprep.subr.bf16.mxu0 0
  %3375 = vmatpush2.bf16.msra.mxu0 %v2276
  %3376 = vmatprep.subr.bf16.mxu0 0
  %3377 = vmatpush2.bf16.msra.mxu0 %v2275
  %3378 = vmatprep.subr.bf16.mxu0 0
  %3379 = vmatpush2.bf16.msra.mxu0 %v2274
  %3380 = vmatprep.subr.bf16.mxu0 0
  %3381 = vmatpush2.bf16.msra.mxu0 %v2273
  %3382 = vmatprep.mubr.bf16.mxu0 %v1268
  %3383 = vmatmul.mubr.bf16.gmra.mxu0 %v1267
  %v3384 = vpop.f32.mrf.mxu0
  %v3385 = vadd.f32 %v3208, %v3384
  %v3386 = vpop.f32.mrf.mxu0
  %v3387 = vpop.f32.mrf.mxu0
  %v3388 = vadd.f32 %v3211, %v3387
  %v3389 = vpop.f32.mrf.mxu0
  %3390 = vmatprep.mubr.bf16.mxu0 %v1282
  %3391 = vmatmul.mubr.bf16.gmra.mxu0 %v1281
  %v3392 = vpop.f32.mrf.mxu0
  %v3393 = vadd.f32 %v3216, %v3392
  %v3394 = vpop.f32.mrf.mxu0
  %v3395 = vpop.f32.mrf.mxu0
  %v3396 = vadd.f32 %v3219, %v3395
  %v3397 = vpop.f32.mrf.mxu0
  %3398 = vmatprep.mubr.bf16.mxu0 %v1296
  %3399 = vmatmul.mubr.bf16.gmra.mxu0 %v1295
  %v3400 = vpop.f32.mrf.mxu0
  %v3401 = vadd.f32 %v3224, %v3400
  %v3402 = vpop.f32.mrf.mxu0
  %v3403 = vpop.f32.mrf.mxu0
  %v3404 = vadd.f32 %v3227, %v3403
  %v3405 = vpop.f32.mrf.mxu0
  %3406 = vmatprep.mubr.bf16.mxu0 %v1310
  %3407 = vmatmul.mubr.bf16.gmra.mxu0 %v1309
  %v3408 = vpop.f32.mrf.mxu0
  %v3409 = vadd.f32 %v3232, %v3408
  %v3410 = vpop.f32.mrf.mxu0
  %v3411 = vpop.f32.mrf.mxu0
  %v3412 = vadd.f32 %v3235, %v3411
  %v3413 = vpop.f32.mrf.mxu0
  %3414 = vmatprep.mubr.bf16.mxu0 %v1324
  %3415 = vmatmul.mubr.bf16.gmra.mxu0 %v1323
  %v3416 = vpop.f32.mrf.mxu0
  %v3417 = vadd.f32 %v3240, %v3416
  %v3418 = vpop.f32.mrf.mxu0
  %v3419 = vpop.f32.mrf.mxu0
  %v3420 = vadd.f32 %v3243, %v3419
  %v3421 = vpop.f32.mrf.mxu0
  %3422 = vmatprep.mubr.bf16.mxu0 %v1338
  %3423 = vmatmul.mubr.bf16.gmra.mxu0 %v1337
  %v3424 = vpop.f32.mrf.mxu0
  %v3425 = vadd.f32 %v3248, %v3424
  %v3426 = vpop.f32.mrf.mxu0
  %v3427 = vpop.f32.mrf.mxu0
  %v3428 = vadd.f32 %v3251, %v3427
  %v3429 = vpop.f32.mrf.mxu0
  %3430 = vmatprep.mubr.bf16.mxu0 %v1352
  %3431 = vmatmul.mubr.bf16.gmra.mxu0 %v1351
  %v3432 = vpop.f32.mrf.mxu0
  %v3433 = vadd.f32 %v3256, %v3432
  %v3434 = vpop.f32.mrf.mxu0
  %v3435 = vpop.f32.mrf.mxu0
  %v3436 = vadd.f32 %v3259, %v3435
  %v3437 = vpop.f32.mrf.mxu0
  %3438 = vmatprep.mubr.bf16.mxu0 %v1366
  %3439 = vmatmul.mubr.bf16.gmra.mxu0 %v1365
  %v3440 = vpop.f32.mrf.mxu0
  %v3441 = vadd.f32 %v3264, %v3440
  %v3442 = vpop.f32.mrf.mxu0
  %v3443 = vpop.f32.mrf.mxu0
  %v3444 = vadd.f32 %v3267, %v3443
  %v3445 = vpop.f32.mrf.mxu0
  %3446 = vmatprep.mubr.bf16.mxu0 %v1380
  %3447 = vmatmul.mubr.bf16.gmra.mxu0 %v1379
  %v3448 = vpop.f32.mrf.mxu0
  %v3449 = vadd.f32 %v3272, %v3448
  %v3450 = vpop.f32.mrf.mxu0
  %v3451 = vpop.f32.mrf.mxu0
  %v3452 = vadd.f32 %v3275, %v3451
  %v3453 = vpop.f32.mrf.mxu0
  %3454 = vmatprep.mubr.bf16.mxu0 %v1394
  %3455 = vmatmul.mubr.bf16.gmra.mxu0 %v1393
  %v3456 = vpop.f32.mrf.mxu0
  %v3457 = vadd.f32 %v3280, %v3456
  %v3458 = vpop.f32.mrf.mxu0
  %v3459 = vpop.f32.mrf.mxu0
  %v3460 = vadd.f32 %v3283, %v3459
  %v3461 = vpop.f32.mrf.mxu0
  %3462 = vmatprep.mubr.bf16.mxu0 %v1408
  %3463 = vmatmul.mubr.bf16.gmra.mxu0 %v1407
  %v3464 = vpop.f32.mrf.mxu0
  %v3465 = vadd.f32 %v3288, %v3464
  %v3466 = vpop.f32.mrf.mxu0
  %v3467 = vpop.f32.mrf.mxu0
  %v3468 = vadd.f32 %v3291, %v3467
  %v3469 = vpop.f32.mrf.mxu0
  %3470 = vmatprep.mubr.bf16.mxu0 %v1422
  %3471 = vmatmul.mubr.bf16.gmra.mxu0 %v1421
  %v3472 = vpop.f32.mrf.mxu0
  %v3473 = vadd.f32 %v3296, %v3472
  %v3474 = vpop.f32.mrf.mxu0
  %v3475 = vpop.f32.mrf.mxu0
  %v3476 = vadd.f32 %v3299, %v3475
  %v3477 = vpop.f32.mrf.mxu0
  %3478 = vmatprep.mubr.bf16.mxu0 %v1436
  %3479 = vmatmul.mubr.bf16.gmra.mxu0 %v1435
  %v3480 = vpop.f32.mrf.mxu0
  %v3481 = vadd.f32 %v3304, %v3480
  %v3482 = vpop.f32.mrf.mxu0
  %v3483 = vpop.f32.mrf.mxu0
  %v3484 = vadd.f32 %v3307, %v3483
  %v3485 = vpop.f32.mrf.mxu0
  %3486 = vmatprep.mubr.bf16.mxu0 %v1450
  %3487 = vmatmul.mubr.bf16.gmra.mxu0 %v1449
  %v3488 = vpop.f32.mrf.mxu0
  %v3489 = vadd.f32 %v3312, %v3488
  %v3490 = vpop.f32.mrf.mxu0
  %v3491 = vpop.f32.mrf.mxu0
  %v3492 = vadd.f32 %v3315, %v3491
  %v3493 = vpop.f32.mrf.mxu0
  %3494 = vmatprep.mubr.bf16.mxu0 %v1464
  %3495 = vmatmul.mubr.bf16.gmra.mxu0 %v1463
  %v3496 = vpop.f32.mrf.mxu0
  %v3497 = vadd.f32 %v3320, %v3496
  %v3498 = vpop.f32.mrf.mxu0
  %v3499 = vpop.f32.mrf.mxu0
  %v3500 = vadd.f32 %v3323, %v3499
  %v3501 = vpop.f32.mrf.mxu0
  %3502 = vmatprep.mubr.bf16.mxu0 %v1478
  %3503 = vmatmul.mubr.bf16.gmra.mxu0 %v1477
  %v3504 = vpop.f32.mrf.mxu0
  %v3505 = vadd.f32 %v3328, %v3504
  %v3506 = vpop.f32.mrf.mxu0
  %v3507 = vpop.f32.mrf.mxu0
  %v3508 = vadd.f32 %v3331, %v3507
  %v3509 = vpop.f32.mrf.mxu0
  %3510 = vmatprep.mubr.bf16.mxu0 %v1492
  %3511 = vmatmul.mubr.bf16.gmra.mxu0 %v1491
  %v3512 = vpop.f32.mrf.mxu0
  %v3513 = vadd.f32 %v3336, %v3512
  %v3514 = vpop.f32.mrf.mxu0
  %v3515 = vpop.f32.mrf.mxu0
  %v3516 = vadd.f32 %v3339, %v3515
  %v3517 = vpop.f32.mrf.mxu0
  %3518 = vmatprep.mubr.bf16.mxu0 %v1506
  %3519 = vmatmul.mubr.bf16.gmra.mxu0 %v1505
  %v3520 = vpop.f32.mrf.mxu0
  %v3521 = vadd.f32 %v3344, %v3520
  %v3522 = vpop.f32.mrf.mxu0
  %v3523 = vpop.f32.mrf.mxu0
  %v3524 = vadd.f32 %v3347, %v3523
  %v3525 = vpop.f32.mrf.mxu0
  %3526 = vdwg.mxu0
  %3527 = vmatprep.subr.bf16.mxu0 0
  %3528 = vmatpush1.bf16.msra.mxu0 %v2288
  %3529 = vmatprep.subr.bf16.mxu0 0
  %3530 = vmatpush1.bf16.msra.mxu0 %v2287
  %3531 = vmatprep.subr.bf16.mxu0 0
  %3532 = vmatpush1.bf16.msra.mxu0 %v2286
  %3533 = vmatprep.subr.bf16.mxu0 0
  %3534 = vmatpush1.bf16.msra.mxu0 %v2285
  %3535 = vmatprep.subr.bf16.mxu0 0
  %3536 = vmatpush1.bf16.msra.mxu0 %v2284
  %3537 = vmatprep.subr.bf16.mxu0 0
  %3538 = vmatpush1.bf16.msra.mxu0 %v2283
  %3539 = vmatprep.subr.bf16.mxu0 0
  %3540 = vmatpush1.bf16.msra.mxu0 %v2282
  %3541 = vmatprep.subr.bf16.mxu0 0
  %3542 = vmatpush1.bf16.msra.mxu0 %v2281
  %3543 = vmatprep.subr.bf16.mxu0 0
  %3544 = vmatpush2.bf16.msra.mxu0 0
  %3545 = vmatprep.subr.bf16.mxu0 0
  %3546 = vmatpush2.bf16.msra.mxu0 %v2463
  %3547 = vmatprep.subr.bf16.mxu0 0
  %3548 = vmatpush2.bf16.msra.mxu0 %v2294
  %3549 = vmatprep.subr.bf16.mxu0 0
  %3550 = vmatpush2.bf16.msra.mxu0 %v2293
  %3551 = vmatprep.subr.bf16.mxu0 0
  %3552 = vmatpush2.bf16.msra.mxu0 %v2292
  %3553 = vmatprep.subr.bf16.mxu0 0
  %3554 = vmatpush2.bf16.msra.mxu0 %v2291
  %3555 = vmatprep.subr.bf16.mxu0 0
  %3556 = vmatpush2.bf16.msra.mxu0 %v2290
  %3557 = vmatprep.subr.bf16.mxu0 0
  %3558 = vmatpush2.bf16.msra.mxu0 %v2289
  %3559 = vmatprep.mubr.bf16.mxu0 %v2408
  %3560 = vmatmul.mubr.bf16.gmra.mxu0 %v1269
  %v3561 = vpop.f32.mrf.mxu0
  %v3562 = vadd.f32 %v3385, %v3561
  %v3563 = vpop.f32.mrf.mxu0
  %v3564 = vpop.f32.mrf.mxu0
  %v3565 = vadd.f32 %v3388, %v3564
  %v3566 = vpop.f32.mrf.mxu0
  %3567 = vmatprep.mubr.bf16.mxu0 %v2411
  %3568 = vmatmul.mubr.bf16.gmra.mxu0 %v1283
  %v3569 = vpop.f32.mrf.mxu0
  %v3570 = vadd.f32 %v3393, %v3569
  %v3571 = vpop.f32.mrf.mxu0
  %v3572 = vpop.f32.mrf.mxu0
  %v3573 = vadd.f32 %v3396, %v3572
  %v3574 = vpop.f32.mrf.mxu0
  %3575 = vmatprep.mubr.bf16.mxu0 %v2414
  %3576 = vmatmul.mubr.bf16.gmra.mxu0 %v1297
  %v3577 = vpop.f32.mrf.mxu0
  %v3578 = vadd.f32 %v3401, %v3577
  %v3579 = vpop.f32.mrf.mxu0
  %v3580 = vpop.f32.mrf.mxu0
  %v3581 = vadd.f32 %v3404, %v3580
  %v3582 = vpop.f32.mrf.mxu0
  %3583 = vmatprep.mubr.bf16.mxu0 %v2417
  %3584 = vmatmul.mubr.bf16.gmra.mxu0 %v1311
  %v3585 = vpop.f32.mrf.mxu0
  %v3586 = vadd.f32 %v3409, %v3585
  %v3587 = vpop.f32.mrf.mxu0
  %v3588 = vpop.f32.mrf.mxu0
  %v3589 = vadd.f32 %v3412, %v3588
  %v3590 = vpop.f32.mrf.mxu0
  %3591 = vmatprep.mubr.bf16.mxu0 %v2420
  %3592 = vmatmul.mubr.bf16.gmra.mxu0 %v1325
  %v3593 = vpop.f32.mrf.mxu0
  %v3594 = vadd.f32 %v3417, %v3593
  %v3595 = vpop.f32.mrf.mxu0
  %v3596 = vpop.f32.mrf.mxu0
  %v3597 = vadd.f32 %v3420, %v3596
  %v3598 = vpop.f32.mrf.mxu0
  %3599 = vmatprep.mubr.bf16.mxu0 %v2423
  %3600 = vmatmul.mubr.bf16.gmra.mxu0 %v1339
  %v3601 = vpop.f32.mrf.mxu0
  %v3602 = vadd.f32 %v3425, %v3601
  %v3603 = vpop.f32.mrf.mxu0
  %v3604 = vpop.f32.mrf.mxu0
  %v3605 = vadd.f32 %v3428, %v3604
  %v3606 = vpop.f32.mrf.mxu0
  %3607 = vmatprep.mubr.bf16.mxu0 %v2426
  %3608 = vmatmul.mubr.bf16.gmra.mxu0 %v1353
  %v3609 = vpop.f32.mrf.mxu0
  %v3610 = vadd.f32 %v3433, %v3609
  %v3611 = vpop.f32.mrf.mxu0
  %v3612 = vpop.f32.mrf.mxu0
  %v3613 = vadd.f32 %v3436, %v3612
  %v3614 = vpop.f32.mrf.mxu0
  %3615 = vmatprep.mubr.bf16.mxu0 %v2429
  %3616 = vmatmul.mubr.bf16.gmra.mxu0 %v1367
  %v3617 = vpop.f32.mrf.mxu0
  %v3618 = vadd.f32 %v3441, %v3617
  %v3619 = vpop.f32.mrf.mxu0
  %v3620 = vpop.f32.mrf.mxu0
  %v3621 = vadd.f32 %v3444, %v3620
  %v3622 = vpop.f32.mrf.mxu0
  %3623 = vmatprep.mubr.bf16.mxu0 %v2432
  %3624 = vmatmul.mubr.bf16.gmra.mxu0 %v1381
  %v3625 = vpop.f32.mrf.mxu0
  %v3626 = vadd.f32 %v3449, %v3625
  %v3627 = vpop.f32.mrf.mxu0
  %v3628 = vpop.f32.mrf.mxu0
  %v3629 = vadd.f32 %v3452, %v3628
  %v3630 = vpop.f32.mrf.mxu0
  %3631 = vmatprep.mubr.bf16.mxu0 %v2435
  %3632 = vmatmul.mubr.bf16.gmra.mxu0 %v1395
  %v3633 = vpop.f32.mrf.mxu0
  %v3634 = vadd.f32 %v3457, %v3633
  %v3635 = vpop.f32.mrf.mxu0
  %v3636 = vpop.f32.mrf.mxu0
  %v3637 = vadd.f32 %v3460, %v3636
  %v3638 = vpop.f32.mrf.mxu0
  %3639 = vmatprep.mubr.bf16.mxu0 %v2438
  %3640 = vmatmul.mubr.bf16.gmra.mxu0 %v1409
  %v3641 = vpop.f32.mrf.mxu0
  %v3642 = vadd.f32 %v3465, %v3641
  %v3643 = vpop.f32.mrf.mxu0
  %v3644 = vpop.f32.mrf.mxu0
  %v3645 = vadd.f32 %v3468, %v3644
  %v3646 = vpop.f32.mrf.mxu0
  %3647 = vmatprep.mubr.bf16.mxu0 %v2441
  %3648 = vmatmul.mubr.bf16.gmra.mxu0 %v1423
  %v3649 = vpop.f32.mrf.mxu0
  %v3650 = vadd.f32 %v3473, %v3649
  %v3651 = vpop.f32.mrf.mxu0
  %v3652 = vpop.f32.mrf.mxu0
  %v3653 = vadd.f32 %v3476, %v3652
  %v3654 = vpop.f32.mrf.mxu0
  %3655 = vmatprep.mubr.bf16.mxu0 %v2444
  %3656 = vmatmul.mubr.bf16.gmra.mxu0 %v1437
  %v3657 = vpop.f32.mrf.mxu0
  %v3658 = vadd.f32 %v3481, %v3657
  %v3659 = vpop.f32.mrf.mxu0
  %v3660 = vpop.f32.mrf.mxu0
  %v3661 = vadd.f32 %v3484, %v3660
  %v3662 = vpop.f32.mrf.mxu0
  %3663 = vmatprep.mubr.bf16.mxu0 %v2447
  %3664 = vmatmul.mubr.bf16.gmra.mxu0 %v1451
  %v3665 = vpop.f32.mrf.mxu0
  %v3666 = vadd.f32 %v3489, %v3665
  %v3667 = vpop.f32.mrf.mxu0
  %v3668 = vpop.f32.mrf.mxu0
  %v3669 = vadd.f32 %v3492, %v3668
  %v3670 = vpop.f32.mrf.mxu0
  %3671 = vmatprep.mubr.bf16.mxu0 %v2450
  %3672 = vmatmul.mubr.bf16.gmra.mxu0 %v1465
  %v3673 = vpop.f32.mrf.mxu0
  %v3674 = vadd.f32 %v3497, %v3673
  %v3675 = vpop.f32.mrf.mxu0
  %v3676 = vpop.f32.mrf.mxu0
  %v3677 = vadd.f32 %v3500, %v3676
  %v3678 = vpop.f32.mrf.mxu0
  %3679 = vmatprep.mubr.bf16.mxu0 %v2453
  %3680 = vmatmul.mubr.bf16.gmra.mxu0 %v1479
  %v3681 = vpop.f32.mrf.mxu0
  %v3682 = vadd.f32 %v3505, %v3681
  %v3683 = vpop.f32.mrf.mxu0
  %v3684 = vpop.f32.mrf.mxu0
  %v3685 = vadd.f32 %v3508, %v3684
  %v3686 = vpop.f32.mrf.mxu0
  %3687 = vmatprep.mubr.bf16.mxu0 %v2456
  %3688 = vmatmul.mubr.bf16.gmra.mxu0 %v1493
  %v3689 = vpop.f32.mrf.mxu0
  %v3690 = vadd.f32 %v3513, %v3689
  %v3691 = vpop.f32.mrf.mxu0
  %v3692 = vpop.f32.mrf.mxu0
  %v3693 = vadd.f32 %v3516, %v3692
  %v3694 = vpop.f32.mrf.mxu0
  %3695 = vmatprep.mubr.bf16.mxu0 %v2459
  %3696 = vmatmul.mubr.bf16.gmra.mxu0 %v1507
  %v3697 = vpop.f32.mrf.mxu0
  %v3698 = vadd.f32 %v3521, %v3697
  %v3699 = vpop.f32.mrf.mxu0
  %v3700 = vpop.f32.mrf.mxu0
  %v3701 = vadd.f32 %v3524, %v3700
  %v3702 = vpop.f32.mrf.mxu0
  %3703 = vdwg.mxu0
  %v3704 = vadd.f32 %v3562, %v3565
  %v3705 = vadd.f32 %v3704, %v3570
  %v3706 = vadd.f32 %v3705, %v3573
  %v3707 = vadd.f32 %v3706, %v3578
  %v3708 = vadd.f32 %v3707, %v3581
  %v3709 = vadd.f32 %v3708, %v3586
  %v3710 = vadd.f32 %v3709, %v3589
  %v3711 = vadd.f32 %v3710, %v3594
  %v3712 = vadd.f32 %v3711, %v3597
  %v3713 = vadd.f32 %v3712, %v3602
  %v3714 = vadd.f32 %v3713, %v3605
  %v3715 = vadd.f32 %v3714, %v3610
  %v3716 = vadd.f32 %v3715, %v3613
  %v3717 = vadd.f32 %v3716, %v3618
  %v3718 = vadd.f32 %v3717, %v3621
  %v3719 = vadd.f32 %v3718, %v3626
  %v3720 = vadd.f32 %v3719, %v3629
  %v3721 = vadd.f32 %v3720, %v3634
  %v3722 = vadd.f32 %v3721, %v3637
  %v3723 = vadd.f32 %v3722, %v3642
  %v3724 = vadd.f32 %v3723, %v3645
  %v3725 = vadd.f32 %v3724, %v3650
  %v3726 = vadd.f32 %v3725, %v3653
  %v3727 = vadd.f32 %v3726, %v3658
  %v3728 = vadd.f32 %v3727, %v3661
  %v3729 = vadd.f32 %v3728, %v3666
  %v3730 = vadd.f32 %v3729, %v3669
  %v3731 = vadd.f32 %v3730, %v3674
  %v3732 = vadd.f32 %v3731, %v3677
  %v3733 = vadd.f32 %v3732, %v3682
  %v3734 = vadd.f32 %v3733, %v3685
  %v3735 = vadd.f32 %v3734, %v3690
  %v3736 = vadd.f32 %v3735, %v3693
  %v3737 = vadd.f32 %v3736, %v3698
  %v3738 = vadd.f32 %v3737, %v3701
  %v3739 = vrot.slane %v3738, 4
  %v3740 = vadd.f32 %v3738, %v3739
  %v3741 = vrot.slane %v3740, 2
  %v3742 = vadd.f32 %v3740, %v3741
  %v3743 = vrot.slane %v3742, 1
  %v3744 = vadd.f32 %v3742, %v3743
  %v3745 = vrcp.pop 288.0
  %v3746 = vmul.f32 %v3744, %v3745
  %v3747 = vsub.f32 %v3562, %v3746
  %v3748 = vsub.f32 %v3565, %v3746
  %v3749 = vsub.f32 %v3570, %v3746
  %v3750 = vsub.f32 %v3573, %v3746
  %v3751 = vsub.f32 %v3578, %v3746
  %v3752 = vsub.f32 %v3581, %v3746
  %v3753 = vsub.f32 %v3586, %v3746
  %v3754 = vsub.f32 %v3589, %v3746
  %v3755 = vsub.f32 %v3594, %v3746
  %v3756 = vsub.f32 %v3597, %v3746
  %v3757 = vsub.f32 %v3602, %v3746
  %v3758 = vsub.f32 %v3605, %v3746
  %v3759 = vsub.f32 %v3610, %v3746
  %v3760 = vsub.f32 %v3613, %v3746
  %v3761 = vsub.f32 %v3618, %v3746
  %v3762 = vsub.f32 %v3621, %v3746
  %v3763 = vsub.f32 %v3626, %v3746
  %v3764 = vsub.f32 %v3629, %v3746
  %v3765 = vsub.f32 %v3634, %v3746
  %v3766 = vsub.f32 %v3637, %v3746
  %v3767 = vsub.f32 %v3642, %v3746
  %v3768 = vsub.f32 %v3645, %v3746
  %v3769 = vsub.f32 %v3650, %v3746
  %v3770 = vsub.f32 %v3653, %v3746
  %v3771 = vsub.f32 %v3658, %v3746
  %v3772 = vsub.f32 %v3661, %v3746
  %v3773 = vsub.f32 %v3666, %v3746
  %v3774 = vsub.f32 %v3669, %v3746
  %v3775 = vsub.f32 %v3674, %v3746
  %v3776 = vsub.f32 %v3677, %v3746
  %v3777 = vsub.f32 %v3682, %v3746
  %v3778 = vsub.f32 %v3685, %v3746
  %v3779 = vsub.f32 %v3690, %v3746
  %v3780 = vsub.f32 %v3693, %v3746
  %v3781 = vsub.f32 %v3698, %v3746
  %v3782 = vsub.f32 %v3701, %v3746
  %v3783 = vmul.f32 %v3747, %v3747
  %v3784 = vmul.f32 %v3748, %v3748
  %v3785 = vmul.f32 %v3749, %v3749
  %v3786 = vmul.f32 %v3750, %v3750
  %v3787 = vmul.f32 %v3751, %v3751
  %v3788 = vmul.f32 %v3752, %v3752
  %v3789 = vmul.f32 %v3753, %v3753
  %v3790 = vmul.f32 %v3754, %v3754
  %v3791 = vmul.f32 %v3755, %v3755
  %v3792 = vmul.f32 %v3756, %v3756
  %v3793 = vmul.f32 %v3757, %v3757
  %v3794 = vmul.f32 %v3758, %v3758
  %v3795 = vmul.f32 %v3759, %v3759
  %v3796 = vmul.f32 %v3760, %v3760
  %v3797 = vmul.f32 %v3761, %v3761
  %v3798 = vmul.f32 %v3762, %v3762
  %v3799 = vmul.f32 %v3763, %v3763
  %v3800 = vmul.f32 %v3764, %v3764
  %v3801 = vmul.f32 %v3765, %v3765
  %v3802 = vmul.f32 %v3766, %v3766
  %v3803 = vmul.f32 %v3767, %v3767
  %v3804 = vmul.f32 %v3768, %v3768
  %v3805 = vmul.f32 %v3769, %v3769
  %v3806 = vmul.f32 %v3770, %v3770
  %v3807 = vmul.f32 %v3771, %v3771
  %v3808 = vmul.f32 %v3772, %v3772
  %v3809 = vmul.f32 %v3773, %v3773
  %v3810 = vmul.f32 %v3774, %v3774
  %v3811 = vmul.f32 %v3775, %v3775
  %v3812 = vmul.f32 %v3776, %v3776
  %v3813 = vmul.f32 %v3777, %v3777
  %v3814 = vmul.f32 %v3778, %v3778
  %v3815 = vmul.f32 %v3779, %v3779
  %v3816 = vmul.f32 %v3780, %v3780
  %v3817 = vmul.f32 %v3781, %v3781
  %v3818 = vmul.f32 %v3782, %v3782
  %v3819 = vadd.f32 %v3783, %v3784
  %v3820 = vadd.f32 %v3819, %v3785
  %v3821 = vadd.f32 %v3820, %v3786
  %v3822 = vadd.f32 %v3821, %v3787
  %v3823 = vadd.f32 %v3822, %v3788
  %v3824 = vadd.f32 %v3823, %v3789
  %v3825 = vadd.f32 %v3824, %v3790
  %v3826 = vadd.f32 %v3825, %v3791
  %v3827 = vadd.f32 %v3826, %v3792
  %v3828 = vadd.f32 %v3827, %v3793
  %v3829 = vadd.f32 %v3828, %v3794
  %v3830 = vadd.f32 %v3829, %v3795
  %v3831 = vadd.f32 %v3830, %v3796
  %v3832 = vadd.f32 %v3831, %v3797
  %v3833 = vadd.f32 %v3832, %v3798
  %v3834 = vadd.f32 %v3833, %v3799
  %v3835 = vadd.f32 %v3834, %v3800
  %v3836 = vadd.f32 %v3835, %v3801
  %v3837 = vadd.f32 %v3836, %v3802
  %v3838 = vadd.f32 %v3837, %v3803
  %v3839 = vadd.f32 %v3838, %v3804
  %v3840 = vadd.f32 %v3839, %v3805
  %v3841 = vadd.f32 %v3840, %v3806
  %v3842 = vadd.f32 %v3841, %v3807
  %v3843 = vadd.f32 %v3842, %v3808
  %v3844 = vadd.f32 %v3843, %v3809
  %v3845 = vadd.f32 %v3844, %v3810
  %v3846 = vadd.f32 %v3845, %v3811
  %v3847 = vadd.f32 %v3846, %v3812
  %v3848 = vadd.f32 %v3847, %v3813
  %v3849 = vadd.f32 %v3848, %v3814
  %v3850 = vadd.f32 %v3849, %v3815
  %v3851 = vadd.f32 %v3850, %v3816
  %v3852 = vadd.f32 %v3851, %v3817
  %v3853 = vadd.f32 %v3852, %v3818
  %v3854 = vrot.slane %v3853, 4
  %v3855 = vadd.f32 %v3853, %v3854
  %v3856 = vrot.slane %v3855, 2
  %v3857 = vadd.f32 %v3855, %v3856
  %v3858 = vrot.slane %v3857, 1
  %v3859 = vadd.f32 %v3857, %v3858
  %v3860 = vmul.f32 %v3859, %v3745
  %v3861 = vadd.f32 %v3860, 1e-05
  %v3862 = vrsqrt.pop %v3861
  %v3863 = vmul.f32 %v3747, %v3862
  %v3864 = vmul.f32 %v3748, %v3862
  %v3865 = vmul.f32 %v3749, %v3862
  %v3866 = vmul.f32 %v3750, %v3862
  %v3867 = vmul.f32 %v3751, %v3862
  %v3868 = vmul.f32 %v3752, %v3862
  %v3869 = vmul.f32 %v3753, %v3862
  %v3870 = vmul.f32 %v3754, %v3862
  %v3871 = vmul.f32 %v3755, %v3862
  %v3872 = vmul.f32 %v3756, %v3862
  %v3873 = vmul.f32 %v3757, %v3862
  %v3874 = vmul.f32 %v3758, %v3862
  %v3875 = vmul.f32 %v3759, %v3862
  %v3876 = vmul.f32 %v3760, %v3862
  %v3877 = vmul.f32 %v3761, %v3862
  %v3878 = vmul.f32 %v3762, %v3862
  %v3879 = vmul.f32 %v3763, %v3862
  %v3880 = vmul.f32 %v3764, %v3862
  %v3881 = vmul.f32 %v3765, %v3862
  %v3882 = vmul.f32 %v3766, %v3862
  %v3883 = vmul.f32 %v3767, %v3862
  %v3884 = vmul.f32 %v3768, %v3862
  %v3885 = vmul.f32 %v3769, %v3862
  %v3886 = vmul.f32 %v3770, %v3862
  %v3887 = vmul.f32 %v3771, %v3862
  %v3888 = vmul.f32 %v3772, %v3862
  %v3889 = vmul.f32 %v3773, %v3862
  %v3890 = vmul.f32 %v3774, %v3862
  %v3891 = vmul.f32 %v3775, %v3862
  %v3892 = vmul.f32 %v3776, %v3862
  %v3893 = vmul.f32 %v3777, %v3862
  %v3894 = vmul.f32 %v3778, %v3862
  %v3895 = vmul.f32 %v3779, %v3862
  %v3896 = vmul.f32 %v3780, %v3862
  %v3897 = vmul.f32 %v3781, %v3862
  %v3898 = vmul.f32 %v3782, %v3862
  %v3899 = vld [vmem:[%s3] sm:$0x1]
  %v3901 = vlaneseq
  %v3902 = vshrl.u32 %v3901, 7
  %v3903 = vsub.s32 0, %v3902
  %v3904 = vrot.slane %v3899, %v3903
  %v3906 = vmul.f32 %v3863, %v3904
  %v3907 = vmul.f32 %v3864, %v3904
  %v3908 = vmul.f32 %v3865, %v3904
  %v3909 = vmul.f32 %v3866, %v3904
  %v3910 = vmul.f32 %v3867, %v3904
  %v3911 = vmul.f32 %v3868, %v3904
  %v3912 = vmul.f32 %v3869, %v3904
  %v3913 = vmul.f32 %v3870, %v3904
  %v3914 = vmul.f32 %v3871, %v3904
  %v3915 = vmul.f32 %v3872, %v3904
  %v3916 = vmul.f32 %v3873, %v3904
  %v3917 = vmul.f32 %v3874, %v3904
  %v3918 = vmul.f32 %v3875, %v3904
  %v3919 = vmul.f32 %v3876, %v3904
  %v3920 = vmul.f32 %v3877, %v3904
  %v3921 = vmul.f32 %v3878, %v3904
  %v3922 = vmul.f32 %v3879, %v3904
  %v3923 = vmul.f32 %v3880, %v3904
  %v3924 = vmul.f32 %v3881, %v3904
  %v3925 = vmul.f32 %v3882, %v3904
  %v3926 = vmul.f32 %v3883, %v3904
  %v3927 = vmul.f32 %v3884, %v3904
  %v3928 = vmul.f32 %v3885, %v3904
  %v3929 = vmul.f32 %v3886, %v3904
  %v3930 = vmul.f32 %v3887, %v3904
  %v3931 = vmul.f32 %v3888, %v3904
  %v3932 = vmul.f32 %v3889, %v3904
  %v3933 = vmul.f32 %v3890, %v3904
  %v3934 = vmul.f32 %v3891, %v3904
  %v3935 = vmul.f32 %v3892, %v3904
  %v3936 = vmul.f32 %v3893, %v3904
  %v3937 = vmul.f32 %v3894, %v3904
  %v3938 = vmul.f32 %v3895, %v3904
  %v3939 = vmul.f32 %v3896, %v3904
  %v3940 = vmul.f32 %v3897, %v3904
  %v3941 = vmul.f32 %v3898, %v3904
  %v3942 = vld [vmem:[%s4] sm:$0x1]
  %v3944 = vlaneseq
  %v3945 = vshrl.u32 %v3944, 7
  %v3946 = vsub.s32 0, %v3945
  %v3947 = vrot.slane %v3942, %v3946
  %v3949 = vadd.f32 %v3906, %v3947
  %v3950 = vadd.f32 %v3907, %v3947
  %v3951 = vadd.f32 %v3908, %v3947
  %v3952 = vadd.f32 %v3909, %v3947
  %v3953 = vadd.f32 %v3910, %v3947
  %v3954 = vadd.f32 %v3911, %v3947
  %v3955 = vadd.f32 %v3912, %v3947
  %v3956 = vadd.f32 %v3913, %v3947
  %v3957 = vadd.f32 %v3914, %v3947
  %v3958 = vadd.f32 %v3915, %v3947
  %v3959 = vadd.f32 %v3916, %v3947
  %v3960 = vadd.f32 %v3917, %v3947
  %v3961 = vadd.f32 %v3918, %v3947
  %v3962 = vadd.f32 %v3919, %v3947
  %v3963 = vadd.f32 %v3920, %v3947
  %v3964 = vadd.f32 %v3921, %v3947
  %v3965 = vadd.f32 %v3922, %v3947
  %v3966 = vadd.f32 %v3923, %v3947
  %v3967 = vadd.f32 %v3924, %v3947
  %v3968 = vadd.f32 %v3925, %v3947
  %v3969 = vadd.f32 %v3926, %v3947
  %v3970 = vadd.f32 %v3927, %v3947
  %v3971 = vadd.f32 %v3928, %v3947
  %v3972 = vadd.f32 %v3929, %v3947
  %v3973 = vadd.f32 %v3930, %v3947
  %v3974 = vadd.f32 %v3931, %v3947
  %v3975 = vadd.f32 %v3932, %v3947
  %v3976 = vadd.f32 %v3933, %v3947
  %v3977 = vadd.f32 %v3934, %v3947
  %v3978 = vadd.f32 %v3935, %v3947
  %v3979 = vadd.f32 %v3936, %v3947
  %v3980 = vadd.f32 %v3937, %v3947
  %v3981 = vadd.f32 %v3938, %v3947
  %v3982 = vadd.f32 %v3939, %v3947
  %v3983 = vadd.f32 %v3940, %v3947
  %v3984 = vadd.f32 %v3941, %v3947
  %vm3985 = vcmp.gt.f32.partialorder %v3949, 0.0
  %vm3986 = vcmp.gt.f32.partialorder %v3950, 0.0
  %vm3987 = vcmp.gt.f32.partialorder %v3951, 0.0
  %vm3988 = vcmp.gt.f32.partialorder %v3952, 0.0
  %vm3989 = vcmp.gt.f32.partialorder %v3953, 0.0
  %vm3990 = vcmp.gt.f32.partialorder %v3954, 0.0
  %vm3991 = vcmp.gt.f32.partialorder %v3955, 0.0
  %vm3992 = vcmp.gt.f32.partialorder %v3956, 0.0
  %vm3993 = vcmp.gt.f32.partialorder %v3957, 0.0
  %vm3994 = vcmp.gt.f32.partialorder %v3958, 0.0
  %vm3995 = vcmp.gt.f32.partialorder %v3959, 0.0
  %vm3996 = vcmp.gt.f32.partialorder %v3960, 0.0
  %vm3997 = vcmp.gt.f32.partialorder %v3961, 0.0
  %vm3998 = vcmp.gt.f32.partialorder %v3962, 0.0
  %vm3999 = vcmp.gt.f32.partialorder %v3963, 0.0
  %vm4000 = vcmp.gt.f32.partialorder %v3964, 0.0
  %vm4001 = vcmp.gt.f32.partialorder %v3965, 0.0
  %vm4002 = vcmp.gt.f32.partialorder %v3966, 0.0
  %vm4003 = vcmp.gt.f32.partialorder %v3967, 0.0
  %vm4004 = vcmp.gt.f32.partialorder %v3968, 0.0
  %vm4005 = vcmp.gt.f32.partialorder %v3969, 0.0
  %vm4006 = vcmp.gt.f32.partialorder %v3970, 0.0
  %vm4007 = vcmp.gt.f32.partialorder %v3971, 0.0
  %vm4008 = vcmp.gt.f32.partialorder %v3972, 0.0
  %vm4009 = vcmp.gt.f32.partialorder %v3973, 0.0
  %vm4010 = vcmp.gt.f32.partialorder %v3974, 0.0
  %vm4011 = vcmp.gt.f32.partialorder %v3975, 0.0
  %vm4012 = vcmp.gt.f32.partialorder %v3976, 0.0
  %vm4013 = vcmp.gt.f32.partialorder %v3977, 0.0
  %vm4014 = vcmp.gt.f32.partialorder %v3978, 0.0
  %vm4015 = vcmp.gt.f32.partialorder %v3979, 0.0
  %vm4016 = vcmp.gt.f32.partialorder %v3980, 0.0
  %vm4017 = vcmp.gt.f32.partialorder %v3981, 0.0
  %vm4018 = vcmp.gt.f32.partialorder %v3982, 0.0
  %vm4019 = vcmp.gt.f32.partialorder %v3983, 0.0
  %vm4020 = vcmp.gt.f32.partialorder %v3984, 0.0
  %v4021 = vmul.f32 %v3949, 0.01
  %v4022 = vmul.f32 %v3950, 0.01
  %v4023 = vmul.f32 %v3951, 0.01
  %v4024 = vmul.f32 %v3952, 0.01
  %v4025 = vmul.f32 %v3953, 0.01
  %v4026 = vmul.f32 %v3954, 0.01
  %v4027 = vmul.f32 %v3955, 0.01
  %v4028 = vmul.f32 %v3956, 0.01
  %v4029 = vmul.f32 %v3957, 0.01
  %v4030 = vmul.f32 %v3958, 0.01
  %v4031 = vmul.f32 %v3959, 0.01
  %v4032 = vmul.f32 %v3960, 0.01
  %v4033 = vmul.f32 %v3961, 0.01
  %v4034 = vmul.f32 %v3962, 0.01
  %v4035 = vmul.f32 %v3963, 0.01
  %v4036 = vmul.f32 %v3964, 0.01
  %v4037 = vmul.f32 %v3965, 0.01
  %v4038 = vmul.f32 %v3966, 0.01
  %v4039 = vmul.f32 %v3967, 0.01
  %v4040 = vmul.f32 %v3968, 0.01
  %v4041 = vmul.f32 %v3969, 0.01
  %v4042 = vmul.f32 %v3970, 0.01
  %v4043 = vmul.f32 %v3971, 0.01
  %v4044 = vmul.f32 %v3972, 0.01
  %v4045 = vmul.f32 %v3973, 0.01
  %v4046 = vmul.f32 %v3974, 0.01
  %v4047 = vmul.f32 %v3975, 0.01
  %v4048 = vmul.f32 %v3976, 0.01
  %v4049 = vmul.f32 %v3977, 0.01
  %v4050 = vmul.f32 %v3978, 0.01
  %v4051 = vmul.f32 %v3979, 0.01
  %v4052 = vmul.f32 %v3980, 0.01
  %v4053 = vmul.f32 %v3981, 0.01
  %v4054 = vmul.f32 %v3982, 0.01
  %v4055 = vmul.f32 %v3983, 0.01
  %v4056 = vmul.f32 %v3984, 0.01
  %v4057 = vsel %vm3985, %v3949, %v4021
  %v4058 = vsel %vm3986, %v3950, %v4022
  %v4059 = vsel %vm3987, %v3951, %v4023
  %v4060 = vsel %vm3988, %v3952, %v4024
  %v4061 = vsel %vm3989, %v3953, %v4025
  %v4062 = vsel %vm3990, %v3954, %v4026
  %v4063 = vsel %vm3991, %v3955, %v4027
  %v4064 = vsel %vm3992, %v3956, %v4028
  %v4065 = vsel %vm3993, %v3957, %v4029
  %v4066 = vsel %vm3994, %v3958, %v4030
  %v4067 = vsel %vm3995, %v3959, %v4031
  %v4068 = vsel %vm3996, %v3960, %v4032
  %v4069 = vsel %vm3997, %v3961, %v4033
  %v4070 = vsel %vm3998, %v3962, %v4034
  %v4071 = vsel %vm3999, %v3963, %v4035
  %v4072 = vsel %vm4000, %v3964, %v4036
  %v4073 = vsel %vm4001, %v3965, %v4037
  %v4074 = vsel %vm4002, %v3966, %v4038
  %v4075 = vsel %vm4003, %v3967, %v4039
  %v4076 = vsel %vm4004, %v3968, %v4040
  %v4077 = vsel %vm4005, %v3969, %v4041
  %v4078 = vsel %vm4006, %v3970, %v4042
  %v4079 = vsel %vm4007, %v3971, %v4043
  %v4080 = vsel %vm4008, %v3972, %v4044
  %v4081 = vsel %vm4009, %v3973, %v4045
  %v4082 = vsel %vm4010, %v3974, %v4046
  %v4083 = vsel %vm4011, %v3975, %v4047
  %v4084 = vsel %vm4012, %v3976, %v4048
  %v4085 = vsel %vm4013, %v3977, %v4049
  %v4086 = vsel %vm4014, %v3978, %v4050
  %v4087 = vsel %vm4015, %v3979, %v4051
  %v4088 = vsel %vm4016, %v3980, %v4052
  %v4089 = vsel %vm4017, %v3981, %v4053
  %v4090 = vsel %vm4018, %v3982, %v4054
  %v4091 = vsel %vm4019, %v3983, %v4055
  %v4092 = vsel %vm4020, %v3984, %v4056
  %v4093 = vpack.c.bf16 %v4058, %v4057
  %v4094 = vpack.c.bf16 %v4060, %v4059
  %v4095 = vpack.c.bf16 %v4062, %v4061
  %v4096 = vpack.c.bf16 %v4064, %v4063
  %v4097 = vpack.c.bf16 %v4066, %v4065
  %v4098 = vpack.c.bf16 %v4068, %v4067
  %v4099 = vpack.c.bf16 %v4070, %v4069
  %v4100 = vpack.c.bf16 %v4072, %v4071
  %v4101 = vpack.c.bf16 %v4074, %v4073
  %v4102 = vpack.c.bf16 %v4076, %v4075
  %v4103 = vpack.c.bf16 %v4078, %v4077
  %v4104 = vpack.c.bf16 %v4080, %v4079
  %v4105 = vpack.c.bf16 %v4082, %v4081
  %v4106 = vpack.c.bf16 %v4084, %v4083
  %v4107 = vpack.c.bf16 %v4086, %v4085
  %v4108 = vpack.c.bf16 %v4088, %v4087
  %v4109 = vpack.c.bf16 %v4090, %v4089
  %v4110 = vpack.c.bf16 %v4092, %v4091
  %v4129 = vunpack.c.l.b16 %v4093
  %v4130 = vunpack.c.h.b16 %v4093
  %v4131 = vunpack.c.l.b16 %v4094
  %v4132 = vunpack.c.h.b16 %v4094
  %v4133 = vunpack.c.l.b16 %v4095
  %v4134 = vunpack.c.h.b16 %v4095
  %v4135 = vunpack.c.l.b16 %v4096
  %v4136 = vunpack.c.h.b16 %v4096
  %v4137 = vunpack.c.l.b16 %v4097
  %v4138 = vunpack.c.h.b16 %v4097
  %v4139 = vunpack.c.l.b16 %v4098
  %v4140 = vunpack.c.h.b16 %v4098
  %v4141 = vunpack.c.l.b16 %v4099
  %v4142 = vunpack.c.h.b16 %v4099
  %v4143 = vunpack.c.l.b16 %v4100
  %v4144 = vunpack.c.h.b16 %v4100
  %v4145 = vunpack.c.l.b16 %v4101
  %v4146 = vunpack.c.h.b16 %v4101
  %v4147 = vunpack.c.l.b16 %v4102
  %v4148 = vunpack.c.h.b16 %v4102
  %v4149 = vunpack.c.l.b16 %v4103
  %v4150 = vunpack.c.h.b16 %v4103
  %v4151 = vunpack.c.l.b16 %v4104
  %v4152 = vunpack.c.h.b16 %v4104
  %v4153 = vunpack.c.l.b16 %v4105
  %v4154 = vunpack.c.h.b16 %v4105
  %v4155 = vunpack.c.l.b16 %v4106
  %v4156 = vunpack.c.h.b16 %v4106
  %v4157 = vunpack.c.l.b16 %v4107
  %v4158 = vunpack.c.h.b16 %v4107
  %v4159 = vunpack.c.l.b16 %v4108
  %v4160 = vunpack.c.h.b16 %v4108
  %v4161 = vunpack.c.l.b16 %v4109
  %v4162 = vunpack.c.h.b16 %v4109
  %v4163 = vunpack.c.l.b16 %v4110
  %v4164 = vunpack.c.h.b16 %v4110
  %v4165 = vpack.c.b16 %v4129, %v4129
  %v4166 = vpack.c.b16 %v4130, %v4130
  %v4167 = vpack.c.b16 %v4131, %v4131
  %v4168 = vpack.c.b16 %v4132, %v4132
  %v4169 = vpack.c.b16 %v4133, %v4133
  %v4170 = vpack.c.b16 %v4134, %v4134
  %v4171 = vpack.c.b16 %v4135, %v4135
  %v4172 = vpack.c.b16 %v4136, %v4136
  %v4173 = vpack.c.b16 %v4137, %v4137
  %v4174 = vpack.c.b16 %v4138, %v4138
  %v4175 = vpack.c.b16 %v4139, %v4139
  %v4176 = vpack.c.b16 %v4140, %v4140
  %v4177 = vpack.c.b16 %v4141, %v4141
  %v4178 = vpack.c.b16 %v4142, %v4142
  %v4179 = vpack.c.b16 %v4143, %v4143
  %v4180 = vpack.c.b16 %v4144, %v4144
  %v4181 = vpack.c.b16 %v4145, %v4145
  %v4182 = vpack.c.b16 %v4146, %v4146
  %v4183 = vpack.c.b16 %v4147, %v4147
  %v4184 = vpack.c.b16 %v4148, %v4148
  %v4185 = vpack.c.b16 %v4149, %v4149
  %v4186 = vpack.c.b16 %v4150, %v4150
  %v4187 = vpack.c.b16 %v4151, %v4151
  %v4188 = vpack.c.b16 %v4152, %v4152
  %v4189 = vpack.c.b16 %v4153, %v4153
  %v4190 = vpack.c.b16 %v4154, %v4154
  %v4191 = vpack.c.b16 %v4155, %v4155
  %v4192 = vpack.c.b16 %v4156, %v4156
  %v4193 = vpack.c.b16 %v4157, %v4157
  %v4194 = vpack.c.b16 %v4158, %v4158
  %v4195 = vpack.c.b16 %v4159, %v4159
  %v4196 = vpack.c.b16 %v4160, %v4160
  %v4197 = vpack.c.b16 %v4161, %v4161
  %v4198 = vpack.c.b16 %v4162, %v4162
  %v4199 = vpack.c.b16 %v4163, %v4163
  %v4200 = vpack.c.b16 %v4164, %v4164
  %4237 = vst [vmem:[%s5] sm:$0xf] %v4165
  %4238 = vst [vmem:[%s5 + $0x4] sm:$0xf] %v4166
  %4239 = vst [vmem:[%s5 + $0x8] sm:$0xf] %v4167
  %4240 = vst [vmem:[%s5 + $0xc] sm:$0xf] %v4168
  %4241 = vst [vmem:[%s5 + $0x10] sm:$0xf] %v4169
  %4242 = vst [vmem:[%s5 + $0x14] sm:$0xf] %v4170
  %4243 = vst [vmem:[%s5 + $0x18] sm:$0xf] %v4171
  %4244 = vst [vmem:[%s5 + $0x1c] sm:$0xf] %v4172
  %4245 = vst [vmem:[%s5 + $0x20] sm:$0xf] %v4173
  %4246 = vst [vmem:[%s5 + $0x24] sm:$0xf] %v4174
  %4247 = vst [vmem:[%s5 + $0x28] sm:$0xf] %v4175
  %4248 = vst [vmem:[%s5 + $0x2c] sm:$0xf] %v4176
  %4249 = vst [vmem:[%s5 + $0x30] sm:$0xf] %v4177
  %4250 = vst [vmem:[%s5 + $0x34] sm:$0xf] %v4178
  %4251 = vst [vmem:[%s5 + $0x38] sm:$0xf] %v4179
  %4252 = vst [vmem:[%s5 + $0x3c] sm:$0xf] %v4180
  %4253 = vst [vmem:[%s5 + $0x40] sm:$0xf] %v4181
  %4254 = vst [vmem:[%s5 + $0x44] sm:$0xf] %v4182
  %4255 = vst [vmem:[%s5 + $0x48] sm:$0xf] %v4183
  %4256 = vst [vmem:[%s5 + $0x4c] sm:$0xf] %v4184
  %4257 = vst [vmem:[%s5 + $0x50] sm:$0xf] %v4185
  %4258 = vst [vmem:[%s5 + $0x54] sm:$0xf] %v4186
  %4259 = vst [vmem:[%s5 + $0x58] sm:$0xf] %v4187
  %4260 = vst [vmem:[%s5 + $0x5c] sm:$0xf] %v4188
  %4261 = vst [vmem:[%s5 + $0x60] sm:$0xf] %v4189
  %4262 = vst [vmem:[%s5 + $0x64] sm:$0xf] %v4190
  %4263 = vst [vmem:[%s5 + $0x68] sm:$0xf] %v4191
  %4264 = vst [vmem:[%s5 + $0x6c] sm:$0xf] %v4192
  %4265 = vst [vmem:[%s5 + $0x70] sm:$0xf] %v4193
  %4266 = vst [vmem:[%s5 + $0x74] sm:$0xf] %v4194
  %4267 = vst [vmem:[%s5 + $0x78] sm:$0xf] %v4195
  %4268 = vst [vmem:[%s5 + $0x7c] sm:$0xf] %v4196
  %4269 = vst [vmem:[%s5 + $0x80] sm:$0xf] %v4197
  %4270 = vst [vmem:[%s5 + $0x84] sm:$0xf] %v4198
  %4271 = vst [vmem:[%s5 + $0x88] sm:$0xf] %v4199
  %4272 = vst [vmem:[%s5 + $0x8c] sm:$0xf] %v4200
  // Predicated region
  $region22: #{netd3d_forward.6} parent=0 // pred_check
    _
  $region23: #{netd3d_forward.6} parent=0 // pred_check_branch
    %4274 = sbr.rel (0) target = $region25
  $region24: #{netd3d_forward.6} parent=0 // pred_region
    _
  $region25: #{netd3d_forward.6} parent=0 // pred_fallthru
    _
  // Predicated region
  $region26: #{netd3d_forward.6} parent=0 // pred_check
    _
  $region27: #{netd3d_forward.6} parent=0 // pred_check_branch
    %4276 = sbr.rel (0) target = $region29
  $region28: #{netd3d_forward.6} parent=0 // pred_region
    _
  $region29: #{netd3d_forward.6} parent=0 // pred_fallthru
    _

// kernel: netd3d_forward.7
$region0: #{netd3d_forward.7}
  #allocation0 [shape = 'u32[]', space=smem, size = 0x4, offset = 0x4, fixed_abs, tag = 'smem constant byte address 0x4 - core index']
  #allocation1 [shape = 'u32[144,128]{1,0:T(1,128)}', space=vmem, size = 0x12000, scoped, tag = 'internal scratch']
  %s0 = inlined_call_operand.vmem [shape: bf16[32,1764], index: 0, kind: input, shape index: {}]
  %s1 = inlined_call_operand.vmem [shape: bf16[1764,128], index: 1, kind: input, shape index: {}]
  %s2 = inlined_call_operand.vmem [shape: f32[1,128], index: 2, kind: input, shape index: {}]
  %s3 = inlined_call_operand.vmem [shape: f32[1,128], index: 3, kind: input, shape index: {}]
  %s4 = inlined_call_operand.vmem [shape: f32[1,128], index: 4, kind: input, shape index: {}]
  %s5 = inlined_call_operand.vmem [shape: bf16[32,128], index: 5, kind: output, shape index: {}]
  %s6 = sld [smem:[#allocation0]]
  $region30: #{netd3d_forward.7} parent=0
    _
  %s8 = ssub.s32 1, %s6
  %s9 = scalar_select 0, %s8, %s6
  // Predicated region
  $region2: #{netd3d_forward.7} parent=0 // pred_check
    _
  $region3: #{netd3d_forward.7} parent=0 // pred_check_branch
    %11 = sbr.rel (0) target = $region5
  $region4: #{netd3d_forward.7} parent=0 // pred_region
    _
  $region5: #{netd3d_forward.7} parent=0 // pred_fallthru
    _
  // Predicated region
  $region6: #{netd3d_forward.7} parent=0 // pred_check
    _
  $region7: #{netd3d_forward.7} parent=0 // pred_check_branch
    %13 = sbr.rel (0) target = $region9
  $region8: #{netd3d_forward.7} parent=0 // pred_region
    _
  $region9: #{netd3d_forward.7} parent=0 // pred_fallthru
    _
  // Predicated region
  $region10: #{netd3d_forward.7} parent=0 // pred_check
    _
  $region11: #{netd3d_forward.7} parent=0 // pred_check_branch
    %15 = sbr.rel (0) target = $region13
  $region12: #{netd3d_forward.7} parent=0 // pred_region
    _
  $region13: #{netd3d_forward.7} parent=0 // pred_fallthru
    _
  // Predicated region
  $region14: #{netd3d_forward.7} parent=0 // pred_check
    _
  $region15: #{netd3d_forward.7} parent=0 // pred_check_branch
    %17 = sbr.rel (0) target = $region17
  $region16: #{netd3d_forward.7} parent=0 // pred_region
    _
  $region17: #{netd3d_forward.7} parent=0 // pred_fallthru
    _
  // Predicated region
  $region18: #{netd3d_forward.7} parent=0 // pred_check
    _
  $region19: #{netd3d_forward.7} parent=0 // pred_check_branch
    %19 = sbr.rel (0) target = $region21
  $region20: #{netd3d_forward.7} parent=0 // pred_region
    _
  $region21: #{netd3d_forward.7} parent=0 // pred_fallthru
    _
  %v21 = vld [vmem:[%s0] sm:$0xff]
  %v22 = vld [vmem:[%s0 + $0x8] sm:$0xff]
  %v23 = vld [vmem:[%s0 + $0x10] sm:$0xff]
  %v24 = vld [vmem:[%s0 + $0x18] sm:$0xff]
  %v25 = vld [vmem:[%s0 + $0x20] sm:$0xff]
  %v26 = vld [vmem:[%s0 + $0x28] sm:$0xff]
  %v27 = vld [vmem:[%s0 + $0x30] sm:$0xff]
  %v28 = vld [vmem:[%s0 + $0x38] sm:$0xff]
  %v29 = vld [vmem:[%s0 + $0x40] sm:$0xff]
  %v30 = vld [vmem:[%s0 + $0x48] sm:$0xff]
  %v31 = vld [vmem:[%s0 + $0x50] sm:$0xff]
  %v32 = vld [vmem:[%s0 + $0x58] sm:$0xff]
  %v33 = vld [vmem:[%s0 + $0x60] sm:$0xff]
  %v34 = vld [vmem:[%s0 + $0x68] sm:$0xff]
  %v35 = vld [vmem:[%s0 + $0x70] sm:$0xff]
  %v36 = vld [vmem:[%s0 + $0x78] sm:$0xff]
  %v37 = vld [vmem:[%s0 + $0x80] sm:$0xff]
  %v38 = vld [vmem:[%s0 + $0x88] sm:$0xff]
  %v39 = vld [vmem:[%s0 + $0x90] sm:$0xff]
  %v40 = vld [vmem:[%s0 + $0x98] sm:$0xff]
  %v41 = vld [vmem:[%s0 + $0xa0] sm:$0xff]
  %v42 = vld [vmem:[%s0 + $0xa8] sm:$0xff]
  %v43 = vld [vmem:[%s0 + $0xb0] sm:$0xff]
  %v44 = vld [vmem:[%s0 + $0xb8] sm:$0xff]
  %v45 = vld [vmem:[%s0 + $0xc0] sm:$0xff]
  %v46 = vld [vmem:[%s0 + $0xc8] sm:$0xff]
  %v47 = vld [vmem:[%s0 + $0xd0] sm:$0xff]
  %v48 = vld [vmem:[%s0 + $0xd8] sm:$0xff]
  %v49 = vld [vmem:[%s1] sm:$0xf]
  %v50 = vld [vmem:[%s1 + $0x4] sm:$0xf]
  %v51 = vld [vmem:[%s1 + $0x8] sm:$0xf]
  %v52 = vld [vmem:[%s1 + $0xc] sm:$0xf]
  %v53 = vld [vmem:[%s1 + $0x10] sm:$0xf]
  %v54 = vld [vmem:[%s1 + $0x14] sm:$0xf]
  %v55 = vld [vmem:[%s1 + $0x18] sm:$0xf]
  %v56 = vld [vmem:[%s1 + $0x1c] sm:$0xf]
  %v57 = vld [vmem:[%s1 + $0x20] sm:$0xf]
  %v58 = vld [vmem:[%s1 + $0x24] sm:$0xf]
  %v59 = vld [vmem:[%s1 + $0x28] sm:$0xf]
  %v60 = vld [vmem:[%s1 + $0x2c] sm:$0xf]
  %v61 = vld [vmem:[%s1 + $0x30] sm:$0xf]
  %v62 = vld [vmem:[%s1 + $0x34] sm:$0xf]
  %v63 = vld [vmem:[%s1 + $0x38] sm:$0xf]
  %v64 = vld [vmem:[%s1 + $0x3c] sm:$0xf]
  %v65 = vld [vmem:[%s1 + $0x40] sm:$0xf]
  %v66 = vld [vmem:[%s1 + $0x44] sm:$0xf]
  %v67 = vld [vmem:[%s1 + $0x48] sm:$0xf]
  %v68 = vld [vmem:[%s1 + $0x4c] sm:$0xf]
  %v69 = vld [vmem:[%s1 + $0x50] sm:$0xf]
  %v70 = vld [vmem:[%s1 + $0x54] sm:$0xf]
  %v71 = vld [vmem:[%s1 + $0x58] sm:$0xf]
  %v72 = vld [vmem:[%s1 + $0x5c] sm:$0xf]
  %v73 = vld [vmem:[%s1 + $0x60] sm:$0xf]
  %v74 = vld [vmem:[%s1 + $0x64] sm:$0xf]
  %v75 = vld [vmem:[%s1 + $0x68] sm:$0xf]
  %v76 = vld [vmem:[%s1 + $0x6c] sm:$0xf]
  %v77 = vld [vmem:[%s1 + $0x70] sm:$0xf]
  %v78 = vld [vmem:[%s1 + $0x74] sm:$0xf]
  %v79 = vld [vmem:[%s1 + $0x78] sm:$0xf]
  %v80 = vld [vmem:[%s1 + $0x7c] sm:$0xf]
  %v81 = vld [vmem:[%s1 + $0x80] sm:$0xf]
  %v82 = vld [vmem:[%s1 + $0x84] sm:$0xf]
  %v83 = vld [vmem:[%s1 + $0x88] sm:$0xf]
  %v84 = vld [vmem:[%s1 + $0x8c] sm:$0xf]
  %v85 = vld [vmem:[%s1 + $0x90] sm:$0xf]
  %v86 = vld [vmem:[%s1 + $0x94] sm:$0xf]
  %v87 = vld [vmem:[%s1 + $0x98] sm:$0xf]
  %v88 = vld [vmem:[%s1 + $0x9c] sm:$0xf]
  %v89 = vld [vmem:[%s1 + $0xa0] sm:$0xf]
  %v90 = vld [vmem:[%s1 + $0xa4] sm:$0xf]
  %v91 = vld [vmem:[%s1 + $0xa8] sm:$0xf]
  %v92 = vld [vmem:[%s1 + $0xac] sm:$0xf]
  %v93 = vld [vmem:[%s1 + $0xb0] sm:$0xf]
  %v94 = vld [vmem:[%s1 + $0xb4] sm:$0xf]
  %v95 = vld [vmem:[%s1 + $0xb8] sm:$0xf]
  %v96 = vld [vmem:[%s1 + $0xbc] sm:$0xf]
  %v97 = vld [vmem:[%s1 + $0xc0] sm:$0xf]
  %v98 = vld [vmem:[%s1 + $0xc4] sm:$0xf]
  %v99 = vld [vmem:[%s1 + $0xc8] sm:$0xf]
  %v100 = vld [vmem:[%s1 + $0xcc] sm:$0xf]
  %v101 = vld [vmem:[%s1 + $0xd0] sm:$0xf]
  %v102 = vld [vmem:[%s1 + $0xd4] sm:$0xf]
  %v103 = vld [vmem:[%s1 + $0xd8] sm:$0xf]
  %v104 = vld [vmem:[%s1 + $0xdc] sm:$0xf]
  %v105 = vld [vmem:[%s1 + $0xe0] sm:$0xf]
  %v106 = vld [vmem:[%s1 + $0xe4] sm:$0xf]
  %v107 = vld [vmem:[%s1 + $0xe8] sm:$0xf]
  %v108 = vld [vmem:[%s1 + $0xec] sm:$0xf]
  %v109 = vld [vmem:[%s1 + $0xf0] sm:$0xf]
  %v110 = vld [vmem:[%s1 + $0xf4] sm:$0xf]
  %v111 = vld [vmem:[%s1 + $0xf8] sm:$0xf]
  %v112 = vld [vmem:[%s1 + $0xfc] sm:$0xf]
  %v113 = vld [vmem:[%s1 + $0x100] sm:$0xf]
  %v114 = vld [vmem:[%s1 + $0x104] sm:$0xf]
  %v115 = vld [vmem:[%s1 + $0x108] sm:$0xf]
  %v116 = vld [vmem:[%s1 + $0x10c] sm:$0xf]
  %v117 = vld [vmem:[%s1 + $0x110] sm:$0xf]
  %v118 = vld [vmem:[%s1 + $0x114] sm:$0xf]
  %v119 = vld [vmem:[%s1 + $0x118] sm:$0xf]
  %v120 = vld [vmem:[%s1 + $0x11c] sm:$0xf]
  %v121 = vld [vmem:[%s1 + $0x120] sm:$0xf]
  %v122 = vld [vmem:[%s1 + $0x124] sm:$0xf]
  %v123 = vld [vmem:[%s1 + $0x128] sm:$0xf]
  %v124 = vld [vmem:[%s1 + $0x12c] sm:$0xf]
  %v125 = vld [vmem:[%s1 + $0x130] sm:$0xf]
  %v126 = vld [vmem:[%s1 + $0x134] sm:$0xf]
  %v127 = vld [vmem:[%s1 + $0x138] sm:$0xf]
  %v128 = vld [vmem:[%s1 + $0x13c] sm:$0xf]
  %v129 = vld [vmem:[%s1 + $0x140] sm:$0xf]
  %v130 = vld [vmem:[%s1 + $0x144] sm:$0xf]
  %v131 = vld [vmem:[%s1 + $0x148] sm:$0xf]
  %v132 = vld [vmem:[%s1 + $0x14c] sm:$0xf]
  %v133 = vld [vmem:[%s1 + $0x150] sm:$0xf]
  %v134 = vld [vmem:[%s1 + $0x154] sm:$0xf]
  %v135 = vld [vmem:[%s1 + $0x158] sm:$0xf]
  %v136 = vld [vmem:[%s1 + $0x15c] sm:$0xf]
  %v137 = vld [vmem:[%s1 + $0x160] sm:$0xf]
  %v138 = vld [vmem:[%s1 + $0x164] sm:$0xf]
  %v139 = vld [vmem:[%s1 + $0x168] sm:$0xf]
  %v140 = vld [vmem:[%s1 + $0x16c] sm:$0xf]
  %v141 = vld [vmem:[%s1 + $0x170] sm:$0xf]
  %v142 = vld [vmem:[%s1 + $0x174] sm:$0xf]
  %v143 = vld [vmem:[%s1 + $0x178] sm:$0xf]
  %v144 = vld [vmem:[%s1 + $0x17c] sm:$0xf]
  %v145 = vld [vmem:[%s1 + $0x180] sm:$0xf]
  %v146 = vld [vmem:[%s1 + $0x184] sm:$0xf]
  %v147 = vld [vmem:[%s1 + $0x188] sm:$0xf]
  %v148 = vld [vmem:[%s1 + $0x18c] sm:$0xf]
  %v149 = vld [vmem:[%s1 + $0x190] sm:$0xf]
  %v150 = vld [vmem:[%s1 + $0x194] sm:$0xf]
  %v151 = vld [vmem:[%s1 + $0x198] sm:$0xf]
  %v152 = vld [vmem:[%s1 + $0x19c] sm:$0xf]
  %v153 = vld [vmem:[%s1 + $0x1a0] sm:$0xf]
  %v154 = vld [vmem:[%s1 + $0x1a4] sm:$0xf]
  %v155 = vld [vmem:[%s1 + $0x1a8] sm:$0xf]
  %v156 = vld [vmem:[%s1 + $0x1ac] sm:$0xf]
  %v157 = vld [vmem:[%s1 + $0x1b0] sm:$0xf]
  %v158 = vld [vmem:[%s1 + $0x1b4] sm:$0xf]
  %v159 = vld [vmem:[%s1 + $0x1b8] sm:$0xf]
  %v160 = vld [vmem:[%s1 + $0x1bc] sm:$0xf]
  %v161 = vld [vmem:[%s1 + $0x1c0] sm:$0xf]
  %v162 = vld [vmem:[%s1 + $0x1c4] sm:$0xf]
  %v163 = vld [vmem:[%s1 + $0x1c8] sm:$0xf]
  %v164 = vld [vmem:[%s1 + $0x1cc] sm:$0xf]
  %v165 = vld [vmem:[%s1 + $0x1d0] sm:$0xf]
  %v166 = vld [vmem:[%s1 + $0x1d4] sm:$0xf]
  %v167 = vld [vmem:[%s1 + $0x1d8] sm:$0xf]
  %v168 = vld [vmem:[%s1 + $0x1dc] sm:$0xf]
  %v169 = vld [vmem:[%s1 + $0x1e0] sm:$0xf]
  %v170 = vld [vmem:[%s1 + $0x1e4] sm:$0xf]
  %v171 = vld [vmem:[%s1 + $0x1e8] sm:$0xf]
  %v172 = vld [vmem:[%s1 + $0x1ec] sm:$0xf]
  %v173 = vld [vmem:[%s1 + $0x1f0] sm:$0xf]
  %v174 = vld [vmem:[%s1 + $0x1f4] sm:$0xf]
  %v175 = vld [vmem:[%s1 + $0x1f8] sm:$0xf]
  %v176 = vld [vmem:[%s1 + $0x1fc] sm:$0xf]
  %v177 = vld [vmem:[%s1 + $0x200] sm:$0xf]
  %v178 = vld [vmem:[%s1 + $0x204] sm:$0xf]
  %v179 = vld [vmem:[%s1 + $0x208] sm:$0xf]
  %v180 = vld [vmem:[%s1 + $0x20c] sm:$0xf]
  %v181 = vld [vmem:[%s1 + $0x210] sm:$0xf]
  %v182 = vld [vmem:[%s1 + $0x214] sm:$0xf]
  %v183 = vld [vmem:[%s1 + $0x218] sm:$0xf]
  %v184 = vld [vmem:[%s1 + $0x21c] sm:$0xf]
  %v185 = vld [vmem:[%s1 + $0x220] sm:$0xf]
  %v186 = vld [vmem:[%s1 + $0x224] sm:$0xf]
  %v187 = vld [vmem:[%s1 + $0x228] sm:$0xf]
  %v188 = vld [vmem:[%s1 + $0x22c] sm:$0xf]
  %v189 = vld [vmem:[%s1 + $0x230] sm:$0xf]
  %v190 = vld [vmem:[%s1 + $0x234] sm:$0xf]
  %v191 = vld [vmem:[%s1 + $0x238] sm:$0xf]
  %v192 = vld [vmem:[%s1 + $0x23c] sm:$0xf]
  %v193 = vld [vmem:[%s1 + $0x240] sm:$0xf]
  %v194 = vld [vmem:[%s1 + $0x244] sm:$0xf]
  %v195 = vld [vmem:[%s1 + $0x248] sm:$0xf]
  %v196 = vld [vmem:[%s1 + $0x24c] sm:$0xf]
  %v197 = vld [vmem:[%s1 + $0x250] sm:$0xf]
  %v198 = vld [vmem:[%s1 + $0x254] sm:$0xf]
  %v199 = vld [vmem:[%s1 + $0x258] sm:$0xf]
  %v200 = vld [vmem:[%s1 + $0x25c] sm:$0xf]
  %v201 = vld [vmem:[%s1 + $0x260] sm:$0xf]
  %v202 = vld [vmem:[%s1 + $0x264] sm:$0xf]
  %v203 = vld [vmem:[%s1 + $0x268] sm:$0xf]
  %v204 = vld [vmem:[%s1 + $0x26c] sm:$0xf]
  %v205 = vld [vmem:[%s1 + $0x270] sm:$0xf]
  %v206 = vld [vmem:[%s1 + $0x274] sm:$0xf]
  %v207 = vld [vmem:[%s1 + $0x278] sm:$0xf]
  %v208 = vld [vmem:[%s1 + $0x27c] sm:$0xf]
  %v209 = vld [vmem:[%s1 + $0x280] sm:$0xf]
  %v210 = vld [vmem:[%s1 + $0x284] sm:$0xf]
  %v211 = vld [vmem:[%s1 + $0x288] sm:$0xf]
  %v212 = vld [vmem:[%s1 + $0x28c] sm:$0xf]
  %v213 = vld [vmem:[%s1 + $0x290] sm:$0xf]
  %v214 = vld [vmem:[%s1 + $0x294] sm:$0xf]
  %v215 = vld [vmem:[%s1 + $0x298] sm:$0xf]
  %v216 = vld [vmem:[%s1 + $0x29c] sm:$0xf]
  %v217 = vld [vmem:[%s1 + $0x2a0] sm:$0xf]
  %v218 = vld [vmem:[%s1 + $0x2a4] sm:$0xf]
  %v219 = vld [vmem:[%s1 + $0x2a8] sm:$0xf]
  %v220 = vld [vmem:[%s1 + $0x2ac] sm:$0xf]
  %v221 = vld [vmem:[%s1 + $0x2b0] sm:$0xf]
  %v222 = vld [vmem:[%s1 + $0x2b4] sm:$0xf]
  %v223 = vld [vmem:[%s1 + $0x2b8] sm:$0xf]
  %v224 = vld [vmem:[%s1 + $0x2bc] sm:$0xf]
  %v225 = vld [vmem:[%s1 + $0x2c0] sm:$0xf]
  %v226 = vld [vmem:[%s1 + $0x2c4] sm:$0xf]
  %v227 = vld [vmem:[%s1 + $0x2c8] sm:$0xf]
  %v228 = vld [vmem:[%s1 + $0x2cc] sm:$0xf]
  %v229 = vld [vmem:[%s1 + $0x2d0] sm:$0xf]
  %v230 = vld [vmem:[%s1 + $0x2d4] sm:$0xf]
  %v231 = vld [vmem:[%s1 + $0x2d8] sm:$0xf]
  %v232 = vld [vmem:[%s1 + $0x2dc] sm:$0xf]
  %v233 = vld [vmem:[%s1 + $0x2e0] sm:$0xf]
  %v234 = vld [vmem:[%s1 + $0x2e4] sm:$0xf]
  %v235 = vld [vmem:[%s1 + $0x2e8] sm:$0xf]
  %v236 = vld [vmem:[%s1 + $0x2ec] sm:$0xf]
  %v237 = vld [vmem:[%s1 + $0x2f0] sm:$0xf]
  %v238 = vld [vmem:[%s1 + $0x2f4] sm:$0xf]
  %v239 = vld [vmem:[%s1 + $0x2f8] sm:$0xf]
  %v240 = vld [vmem:[%s1 + $0x2fc] sm:$0xf]
  %v241 = vld [vmem:[%s1 + $0x300] sm:$0xf]
  %v242 = vld [vmem:[%s1 + $0x304] sm:$0xf]
  %v243 = vld [vmem:[%s1 + $0x308] sm:$0xf]
  %v244 = vld [vmem:[%s1 + $0x30c] sm:$0xf]
  %v245 = vld [vmem:[%s1 + $0x310] sm:$0xf]
  %v246 = vld [vmem:[%s1 + $0x314] sm:$0xf]
  %v247 = vld [vmem:[%s1 + $0x318] sm:$0xf]
  %v248 = vld [vmem:[%s1 + $0x31c] sm:$0xf]
  %v249 = vld [vmem:[%s1 + $0x320] sm:$0xf]
  %v250 = vld [vmem:[%s1 + $0x324] sm:$0xf]
  %v251 = vld [vmem:[%s1 + $0x328] sm:$0xf]
  %v252 = vld [vmem:[%s1 + $0x32c] sm:$0xf]
  %v253 = vld [vmem:[%s1 + $0x330] sm:$0xf]
  %v254 = vld [vmem:[%s1 + $0x334] sm:$0xf]
  %v255 = vld [vmem:[%s1 + $0x338] sm:$0xf]
  %v256 = vld [vmem:[%s1 + $0x33c] sm:$0xf]
  %v257 = vld [vmem:[%s1 + $0x340] sm:$0xf]
  %v258 = vld [vmem:[%s1 + $0x344] sm:$0xf]
  %v259 = vld [vmem:[%s1 + $0x348] sm:$0xf]
  %v260 = vld [vmem:[%s1 + $0x34c] sm:$0xf]
  %v261 = vld [vmem:[%s1 + $0x350] sm:$0xf]
  %v262 = vld [vmem:[%s1 + $0x354] sm:$0xf]
  %v263 = vld [vmem:[%s1 + $0x358] sm:$0xf]
  %v264 = vld [vmem:[%s1 + $0x35c] sm:$0xf]
  %v265 = vld [vmem:[%s1 + $0x360] sm:$0xf]
  %v266 = vld [vmem:[%s1 + $0x364] sm:$0xf]
  %v267 = vld [vmem:[%s1 + $0x368] sm:$0xf]
  %v268 = vld [vmem:[%s1 + $0x36c] sm:$0xf]
  %v269 = vld [vmem:[%s1 + $0x370] sm:$0x3]
  %v270 = vld [vmem:[%s2] sm:$0x1]
  %v272 = vlaneseq
  %v273 = vshrl.u32 %v272, 7
  %v274 = vsub.s32 0, %v273
  %v275 = vrot.slane %v270, %v274
  %v305 = vunpack.c.l.b16 %v21
  %v306 = vunpack.c.h.b16 %v21
  %v307 = vunpack.c.l.b16 %v22
  %v308 = vunpack.c.h.b16 %v22
  %v309 = vunpack.c.l.b16 %v23
  %v310 = vunpack.c.h.b16 %v23
  %v311 = vunpack.c.l.b16 %v24
  %v312 = vunpack.c.h.b16 %v24
  %v313 = vunpack.c.l.b16 %v25
  %v314 = vunpack.c.h.b16 %v25
  %v315 = vunpack.c.l.b16 %v26
  %v316 = vunpack.c.h.b16 %v26
  %v317 = vunpack.c.l.b16 %v27
  %v318 = vunpack.c.h.b16 %v27
  %v319 = vunpack.c.l.b16 %v28
  %v320 = vunpack.c.h.b16 %v28
  %v321 = vunpack.c.l.b16 %v29
  %v322 = vunpack.c.h.b16 %v29
  %v323 = vunpack.c.l.b16 %v30
  %v324 = vunpack.c.h.b16 %v30
  %v325 = vunpack.c.l.b16 %v31
  %v326 = vunpack.c.h.b16 %v31
  %v327 = vunpack.c.l.b16 %v32
  %v328 = vunpack.c.h.b16 %v32
  %v329 = vunpack.c.l.b16 %v33
  %v330 = vunpack.c.h.b16 %v33
  %v331 = vunpack.c.l.b16 %v34
  %v332 = vunpack.c.h.b16 %v34
  %v333 = vunpack.c.l.b16 %v35
  %v334 = vunpack.c.h.b16 %v35
  %v335 = vunpack.c.l.b16 %v36
  %v336 = vunpack.c.h.b16 %v36
  %v337 = vunpack.c.l.b16 %v37
  %v338 = vunpack.c.h.b16 %v37
  %v339 = vunpack.c.l.b16 %v38
  %v340 = vunpack.c.h.b16 %v38
  %v341 = vunpack.c.l.b16 %v39
  %v342 = vunpack.c.h.b16 %v39
  %v343 = vunpack.c.l.b16 %v40
  %v344 = vunpack.c.h.b16 %v40
  %v345 = vunpack.c.l.b16 %v41
  %v346 = vunpack.c.h.b16 %v41
  %v347 = vunpack.c.l.b16 %v42
  %v348 = vunpack.c.h.b16 %v42
  %v349 = vunpack.c.l.b16 %v43
  %v350 = vunpack.c.h.b16 %v43
  %v351 = vunpack.c.l.b16 %v44
  %v352 = vunpack.c.h.b16 %v44
  %v353 = vunpack.c.l.b16 %v45
  %v354 = vunpack.c.h.b16 %v45
  %v355 = vunpack.c.l.b16 %v46
  %v356 = vunpack.c.h.b16 %v46
  %v357 = vunpack.c.l.b16 %v47
  %v358 = vunpack.c.h.b16 %v47
  %v359 = vunpack.c.l.b16 %v48
  %v360 = vunpack.c.h.b16 %v48
  %v361 = vpack.c.b16 %v319, %v305
  %v362 = vpack.c.b16 %v320, %v306
  %v363 = vpack.c.b16 %v321, %v307
  %v364 = vpack.c.b16 %v322, %v308
  %v365 = vpack.c.b16 %v323, %v309
  %v366 = vpack.c.b16 %v324, %v310
  %v367 = vpack.c.b16 %v325, %v311
  %v368 = vpack.c.b16 %v326, %v312
  %v369 = vpack.c.b16 %v327, %v313
  %v370 = vpack.c.b16 %v328, %v314
  %v371 = vpack.c.b16 %v329, %v315
  %v372 = vpack.c.b16 %v330, %v316
  %v373 = vpack.c.b16 %v331, %v317
  %v374 = vpack.c.b16 %v332, %v318
  %v375 = vpack.c.b16 %v347, %v333
  %v376 = vpack.c.b16 %v348, %v334
  %v377 = vpack.c.b16 %v349, %v335
  %v378 = vpack.c.b16 %v350, %v336
  %v379 = vpack.c.b16 %v351, %v337
  %v380 = vpack.c.b16 %v352, %v338
  %v381 = vpack.c.b16 %v353, %v339
  %v382 = vpack.c.b16 %v354, %v340
  %v383 = vpack.c.b16 %v355, %v341
  %v384 = vpack.c.b16 %v356, %v342
  %v385 = vpack.c.b16 %v357, %v343
  %v386 = vpack.c.b16 %v358, %v344
  %v387 = vpack.c.b16 %v359, %v345
  %v388 = vpack.c.b16 %v360, %v346
  %v636 = vunpack.c.l.b16 %v49
  %v637 = vunpack.c.l.b16 %v50
  %v638 = vunpack.c.l.b16 %v51
  %v639 = vunpack.c.l.b16 %v52
  %v640 = vunpack.c.l.b16 %v53
  %v641 = vunpack.c.l.b16 %v54
  %v642 = vunpack.c.l.b16 %v55
  %v643 = vunpack.c.l.b16 %v56
  %v644 = vunpack.c.l.b16 %v57
  %v645 = vunpack.c.l.b16 %v58
  %v646 = vunpack.c.l.b16 %v59
  %v647 = vunpack.c.l.b16 %v60
  %v648 = vunpack.c.l.b16 %v61
  %v649 = vunpack.c.l.b16 %v62
  %v650 = vunpack.c.l.b16 %v63
  %v651 = vunpack.c.l.b16 %v64
  %v652 = vunpack.c.l.b16 %v65
  %v653 = vunpack.c.l.b16 %v66
  %v654 = vunpack.c.l.b16 %v67
  %v655 = vunpack.c.l.b16 %v68
  %v656 = vunpack.c.l.b16 %v69
  %v657 = vunpack.c.l.b16 %v70
  %v658 = vunpack.c.l.b16 %v71
  %v659 = vunpack.c.l.b16 %v72
  %v660 = vunpack.c.l.b16 %v73
  %v661 = vunpack.c.l.b16 %v74
  %v662 = vunpack.c.l.b16 %v75
  %v663 = vunpack.c.l.b16 %v76
  %v664 = vunpack.c.l.b16 %v77
  %v665 = vunpack.c.l.b16 %v78
  %v666 = vunpack.c.l.b16 %v79
  %v667 = vunpack.c.l.b16 %v80
  %v668 = vunpack.c.l.b16 %v81
  %v669 = vunpack.c.l.b16 %v82
  %v670 = vunpack.c.l.b16 %v83
  %v671 = vunpack.c.l.b16 %v84
  %v672 = vunpack.c.l.b16 %v85
  %v673 = vunpack.c.l.b16 %v86
  %v674 = vunpack.c.l.b16 %v87
  %v675 = vunpack.c.l.b16 %v88
  %v676 = vunpack.c.l.b16 %v89
  %v677 = vunpack.c.l.b16 %v90
  %v678 = vunpack.c.l.b16 %v91
  %v679 = vunpack.c.l.b16 %v92
  %v680 = vunpack.c.l.b16 %v93
  %v681 = vunpack.c.l.b16 %v94
  %v682 = vunpack.c.l.b16 %v95
  %v683 = vunpack.c.l.b16 %v96
  %v684 = vunpack.c.l.b16 %v97
  %v685 = vunpack.c.l.b16 %v98
  %v686 = vunpack.c.l.b16 %v99
  %v687 = vunpack.c.l.b16 %v100
  %v688 = vunpack.c.l.b16 %v101
  %v689 = vunpack.c.l.b16 %v102
  %v690 = vunpack.c.l.b16 %v103
  %v691 = vunpack.c.l.b16 %v104
  %v692 = vunpack.c.l.b16 %v105
  %v693 = vunpack.c.l.b16 %v106
  %v694 = vunpack.c.l.b16 %v107
  %v695 = vunpack.c.l.b16 %v108
  %v696 = vunpack.c.l.b16 %v109
  %v697 = vunpack.c.l.b16 %v110
  %v698 = vunpack.c.l.b16 %v111
  %v699 = vunpack.c.l.b16 %v112
  %v700 = vunpack.c.l.b16 %v113
  %v701 = vunpack.c.l.b16 %v114
  %v702 = vunpack.c.l.b16 %v115
  %v703 = vunpack.c.l.b16 %v116
  %v704 = vunpack.c.l.b16 %v117
  %v705 = vunpack.c.l.b16 %v118
  %v706 = vunpack.c.l.b16 %v119
  %v707 = vunpack.c.l.b16 %v120
  %v708 = vunpack.c.l.b16 %v121
  %v709 = vunpack.c.l.b16 %v122
  %v710 = vunpack.c.l.b16 %v123
  %v711 = vunpack.c.l.b16 %v124
  %v712 = vunpack.c.l.b16 %v125
  %v713 = vunpack.c.l.b16 %v126
  %v714 = vunpack.c.l.b16 %v127
  %v715 = vunpack.c.l.b16 %v128
  %v716 = vunpack.c.l.b16 %v129
  %v717 = vunpack.c.l.b16 %v130
  %v718 = vunpack.c.l.b16 %v131
  %v719 = vunpack.c.l.b16 %v132
  %v720 = vunpack.c.l.b16 %v133
  %v721 = vunpack.c.l.b16 %v134
  %v722 = vunpack.c.l.b16 %v135
  %v723 = vunpack.c.l.b16 %v136
  %v724 = vunpack.c.l.b16 %v137
  %v725 = vunpack.c.l.b16 %v138
  %v726 = vunpack.c.l.b16 %v139
  %v727 = vunpack.c.l.b16 %v140
  %v728 = vunpack.c.l.b16 %v141
  %v729 = vunpack.c.l.b16 %v142
  %v730 = vunpack.c.l.b16 %v143
  %v731 = vunpack.c.l.b16 %v144
  %v732 = vunpack.c.l.b16 %v145
  %v733 = vunpack.c.l.b16 %v146
  %v734 = vunpack.c.l.b16 %v147
  %v735 = vunpack.c.l.b16 %v148
  %v736 = vunpack.c.l.b16 %v149
  %v737 = vunpack.c.l.b16 %v150
  %v738 = vunpack.c.l.b16 %v151
  %v739 = vunpack.c.l.b16 %v152
  %v740 = vunpack.c.l.b16 %v153
  %v741 = vunpack.c.l.b16 %v154
  %v742 = vunpack.c.l.b16 %v155
  %v743 = vunpack.c.l.b16 %v156
  %v744 = vunpack.c.l.b16 %v157
  %v745 = vunpack.c.l.b16 %v158
  %v746 = vunpack.c.l.b16 %v159
  %v747 = vunpack.c.l.b16 %v160
  %v748 = vunpack.c.l.b16 %v161
  %v749 = vunpack.c.l.b16 %v162
  %v750 = vunpack.c.l.b16 %v163
  %v751 = vunpack.c.l.b16 %v164
  %v752 = vunpack.c.l.b16 %v165
  %v753 = vunpack.c.l.b16 %v166
  %v754 = vunpack.c.l.b16 %v167
  %v755 = vunpack.c.l.b16 %v168
  %v756 = vunpack.c.l.b16 %v169
  %v757 = vunpack.c.l.b16 %v170
  %v758 = vunpack.c.l.b16 %v171
  %v759 = vunpack.c.l.b16 %v172
  %v760 = vunpack.c.l.b16 %v173
  %v761 = vunpack.c.l.b16 %v174
  %v762 = vunpack.c.l.b16 %v175
  %v763 = vunpack.c.l.b16 %v176
  %v764 = vunpack.c.l.b16 %v177
  %v765 = vunpack.c.l.b16 %v178
  %v766 = vunpack.c.l.b16 %v179
  %v767 = vunpack.c.l.b16 %v180
  %v768 = vunpack.c.l.b16 %v181
  %v769 = vunpack.c.l.b16 %v182
  %v770 = vunpack.c.l.b16 %v183
  %v771 = vunpack.c.l.b16 %v184
  %v772 = vunpack.c.l.b16 %v185
  %v773 = vunpack.c.l.b16 %v186
  %v774 = vunpack.c.l.b16 %v187
  %v775 = vunpack.c.l.b16 %v188
  %v776 = vunpack.c.l.b16 %v189
  %v777 = vunpack.c.l.b16 %v190
  %v778 = vunpack.c.l.b16 %v191
  %v779 = vunpack.c.l.b16 %v192
  %v780 = vunpack.c.l.b16 %v193
  %v781 = vunpack.c.l.b16 %v194
  %v782 = vunpack.c.l.b16 %v195
  %v783 = vunpack.c.l.b16 %v196
  %v784 = vunpack.c.l.b16 %v197
  %v785 = vunpack.c.l.b16 %v198
  %v786 = vunpack.c.l.b16 %v199
  %v787 = vunpack.c.l.b16 %v200
  %v788 = vunpack.c.l.b16 %v201
  %v789 = vunpack.c.l.b16 %v202
  %v790 = vunpack.c.l.b16 %v203
  %v791 = vunpack.c.l.b16 %v204
  %v792 = vunpack.c.l.b16 %v205
  %v793 = vunpack.c.l.b16 %v206
  %v794 = vunpack.c.l.b16 %v207
  %v795 = vunpack.c.l.b16 %v208
  %v796 = vunpack.c.l.b16 %v209
  %v797 = vunpack.c.l.b16 %v210
  %v798 = vunpack.c.l.b16 %v211
  %v799 = vunpack.c.l.b16 %v212
  %v800 = vunpack.c.l.b16 %v213
  %v801 = vunpack.c.l.b16 %v214
  %v802 = vunpack.c.l.b16 %v215
  %v803 = vunpack.c.l.b16 %v216
  %v804 = vunpack.c.l.b16 %v217
  %v805 = vunpack.c.l.b16 %v218
  %v806 = vunpack.c.l.b16 %v219
  %v807 = vunpack.c.l.b16 %v220
  %v808 = vunpack.c.l.b16 %v221
  %v809 = vunpack.c.l.b16 %v222
  %v810 = vunpack.c.l.b16 %v223
  %v811 = vunpack.c.l.b16 %v224
  %v812 = vunpack.c.l.b16 %v225
  %v813 = vunpack.c.l.b16 %v226
  %v814 = vunpack.c.l.b16 %v227
  %v815 = vunpack.c.l.b16 %v228
  %v816 = vunpack.c.l.b16 %v229
  %v817 = vunpack.c.l.b16 %v230
  %v818 = vunpack.c.l.b16 %v231
  %v819 = vunpack.c.l.b16 %v232
  %v820 = vunpack.c.l.b16 %v233
  %v821 = vunpack.c.l.b16 %v234
  %v822 = vunpack.c.l.b16 %v235
  %v823 = vunpack.c.l.b16 %v236
  %v824 = vunpack.c.l.b16 %v237
  %v825 = vunpack.c.l.b16 %v238
  %v826 = vunpack.c.l.b16 %v239
  %v827 = vunpack.c.l.b16 %v240
  %v828 = vunpack.c.l.b16 %v241
  %v829 = vunpack.c.l.b16 %v242
  %v830 = vunpack.c.l.b16 %v243
  %v831 = vunpack.c.l.b16 %v244
  %v832 = vunpack.c.l.b16 %v245
  %v833 = vunpack.c.l.b16 %v246
  %v834 = vunpack.c.l.b16 %v247
  %v835 = vunpack.c.l.b16 %v248
  %v836 = vunpack.c.l.b16 %v249
  %v837 = vunpack.c.l.b16 %v250
  %v838 = vunpack.c.l.b16 %v251
  %v839 = vunpack.c.l.b16 %v252
  %v840 = vunpack.c.l.b16 %v253
  %v841 = vunpack.c.l.b16 %v254
  %v842 = vunpack.c.l.b16 %v255
  %v843 = vunpack.c.l.b16 %v256
  %v844 = vunpack.c.l.b16 %v257
  %v845 = vunpack.c.l.b16 %v258
  %v846 = vunpack.c.l.b16 %v259
  %v847 = vunpack.c.l.b16 %v260
  %v848 = vunpack.c.l.b16 %v261
  %v849 = vunpack.c.l.b16 %v262
  %v850 = vunpack.c.l.b16 %v263
  %v851 = vunpack.c.l.b16 %v264
  %v852 = vunpack.c.l.b16 %v265
  %v853 = vunpack.c.l.b16 %v266
  %v854 = vunpack.c.l.b16 %v267
  %v855 = vunpack.c.l.b16 %v268
  %v856 = vunpack.c.l.b16 %v269
  %v857 = vpack.c.b16 %v637, %v636
  %v858 = vpack.c.b16 %v639, %v638
  %v859 = vpack.c.b16 %v641, %v640
  %v860 = vpack.c.b16 %v643, %v642
  %v861 = vpack.c.b16 %v645, %v644
  %v862 = vpack.c.b16 %v647, %v646
  %v863 = vpack.c.b16 %v649, %v648
  %v864 = vpack.c.b16 %v651, %v650
  %v865 = vpack.c.b16 %v653, %v652
  %v866 = vpack.c.b16 %v655, %v654
  %v867 = vpack.c.b16 %v657, %v656
  %v868 = vpack.c.b16 %v659, %v658
  %v869 = vpack.c.b16 %v661, %v660
  %v870 = vpack.c.b16 %v663, %v662
  %v871 = vpack.c.b16 %v665, %v664
  %v872 = vpack.c.b16 %v667, %v666
  %v873 = vpack.c.b16 %v669, %v668
  %v874 = vpack.c.b16 %v671, %v670
  %v875 = vpack.c.b16 %v673, %v672
  %v876 = vpack.c.b16 %v675, %v674
  %v877 = vpack.c.b16 %v677, %v676
  %v878 = vpack.c.b16 %v679, %v678
  %v879 = vpack.c.b16 %v681, %v680
  %v880 = vpack.c.b16 %v683, %v682
  %v881 = vpack.c.b16 %v685, %v684
  %v882 = vpack.c.b16 %v687, %v686
  %v883 = vpack.c.b16 %v689, %v688
  %v884 = vpack.c.b16 %v691, %v690
  %v885 = vpack.c.b16 %v693, %v692
  %v886 = vpack.c.b16 %v695, %v694
  %v887 = vpack.c.b16 %v697, %v696
  %v888 = vpack.c.b16 %v699, %v698
  %v889 = vpack.c.b16 %v701, %v700
  %v890 = vpack.c.b16 %v703, %v702
  %v891 = vpack.c.b16 %v705, %v704
  %v892 = vpack.c.b16 %v707, %v706
  %v893 = vpack.c.b16 %v709, %v708
  %v894 = vpack.c.b16 %v711, %v710
  %v895 = vpack.c.b16 %v713, %v712
  %v896 = vpack.c.b16 %v715, %v714
  %v897 = vpack.c.b16 %v717, %v716
  %v898 = vpack.c.b16 %v719, %v718
  %v899 = vpack.c.b16 %v721, %v720
  %v900 = vpack.c.b16 %v723, %v722
  %v901 = vpack.c.b16 %v725, %v724
  %v902 = vpack.c.b16 %v727, %v726
  %v903 = vpack.c.b16 %v729, %v728
  %v904 = vpack.c.b16 %v731, %v730
  %v905 = vpack.c.b16 %v733, %v732
  %v906 = vpack.c.b16 %v735, %v734
  %v907 = vpack.c.b16 %v737, %v736
  %v908 = vpack.c.b16 %v739, %v738
  %v909 = vpack.c.b16 %v741, %v740
  %v910 = vpack.c.b16 %v743, %v742
  %v911 = vpack.c.b16 %v745, %v744
  %v912 = vpack.c.b16 %v747, %v746
  %v913 = vpack.c.b16 %v749, %v748
  %v914 = vpack.c.b16 %v751, %v750
  %v915 = vpack.c.b16 %v753, %v752
  %v916 = vpack.c.b16 %v755, %v754
  %v917 = vpack.c.b16 %v757, %v756
  %v918 = vpack.c.b16 %v759, %v758
  %v919 = vpack.c.b16 %v761, %v760
  %v920 = vpack.c.b16 %v763, %v762
  %v921 = vpack.c.b16 %v765, %v764
  %v922 = vpack.c.b16 %v767, %v766
  %v923 = vpack.c.b16 %v769, %v768
  %v924 = vpack.c.b16 %v771, %v770
  %v925 = vpack.c.b16 %v773, %v772
  %v926 = vpack.c.b16 %v775, %v774
  %v927 = vpack.c.b16 %v777, %v776
  %v928 = vpack.c.b16 %v779, %v778
  %v929 = vpack.c.b16 %v781, %v780
  %v930 = vpack.c.b16 %v783, %v782
  %v931 = vpack.c.b16 %v785, %v784
  %v932 = vpack.c.b16 %v787, %v786
  %v933 = vpack.c.b16 %v789, %v788
  %v934 = vpack.c.b16 %v791, %v790
  %v935 = vpack.c.b16 %v793, %v792
  %v936 = vpack.c.b16 %v795, %v794
  %v937 = vpack.c.b16 %v797, %v796
  %v938 = vpack.c.b16 %v799, %v798
  %v939 = vpack.c.b16 %v801, %v800
  %v940 = vpack.c.b16 %v803, %v802
  %v941 = vpack.c.b16 %v805, %v804
  %v942 = vpack.c.b16 %v807, %v806
  %v943 = vpack.c.b16 %v809, %v808
  %v944 = vpack.c.b16 %v811, %v810
  %v945 = vpack.c.b16 %v813, %v812
  %v946 = vpack.c.b16 %v815, %v814
  %v947 = vpack.c.b16 %v817, %v816
  %v948 = vpack.c.b16 %v819, %v818
  %v949 = vpack.c.b16 %v821, %v820
  %v950 = vpack.c.b16 %v823, %v822
  %v951 = vpack.c.b16 %v825, %v824
  %v952 = vpack.c.b16 %v827, %v826
  %v953 = vpack.c.b16 %v829, %v828
  %v954 = vpack.c.b16 %v831, %v830
  %v955 = vpack.c.b16 %v833, %v832
  %v956 = vpack.c.b16 %v835, %v834
  %v957 = vpack.c.b16 %v837, %v836
  %v958 = vpack.c.b16 %v839, %v838
  %v959 = vpack.c.b16 %v841, %v840
  %v960 = vpack.c.b16 %v843, %v842
  %v961 = vpack.c.b16 %v845, %v844
  %v962 = vpack.c.b16 %v847, %v846
  %v963 = vpack.c.b16 %v849, %v848
  %v964 = vpack.c.b16 %v851, %v850
  %v965 = vpack.c.b16 %v853, %v852
  %v966 = vpack.c.b16 %v855, %v854
  %v967 = vpack.c.b16 %v856, %v856
  %vm1078 = vcmask 818176
  %v1080 = vsel %vm1078, %v374, 0
  %v1083 = vsel %vm1078, %v388, 0
  %vm1085 = vcmask 1041408
  %v1087 = vsel %vm1085, %v967, 0
  %1089 = vmatprep.subr.bf16.mxu0 0
  %1090 = vmatpush1.bf16.msra.mxu0 %v864
  %1091 = vmatprep.subr.bf16.mxu0 0
  %1092 = vmatpush1.bf16.msra.mxu0 %v863
  %1093 = vmatprep.subr.bf16.mxu0 0
  %1094 = vmatpush1.bf16.msra.mxu0 %v862
  %1095 = vmatprep.subr.bf16.mxu0 0
  %1096 = vmatpush1.bf16.msra.mxu0 %v861
  %1097 = vmatprep.subr.bf16.mxu0 0
  %1098 = vmatpush1.bf16.msra.mxu0 %v860
  %1099 = vmatprep.subr.bf16.mxu0 0
  %1100 = vmatpush1.bf16.msra.mxu0 %v859
  %1101 = vmatprep.subr.bf16.mxu0 0
  %1102 = vmatpush1.bf16.msra.mxu0 %v858
  %1103 = vmatprep.subr.bf16.mxu0 0
  %1104 = vmatpush1.bf16.msra.mxu0 %v857
  %1105 = vmatprep.subr.bf16.mxu0 0
  %1106 = vmatpush2.bf16.msra.mxu0 %v872
  %1107 = vmatprep.subr.bf16.mxu0 0
  %1108 = vmatpush2.bf16.msra.mxu0 %v871
  %1109 = vmatprep.subr.bf16.mxu0 0
  %1110 = vmatpush2.bf16.msra.mxu0 %v870
  %1111 = vmatprep.subr.bf16.mxu0 0
  %1112 = vmatpush2.bf16.msra.mxu0 %v869
  %1113 = vmatprep.subr.bf16.mxu0 0
  %1114 = vmatpush2.bf16.msra.mxu0 %v868
  %1115 = vmatprep.subr.bf16.mxu0 0
  %1116 = vmatpush2.bf16.msra.mxu0 %v867
  %1117 = vmatprep.subr.bf16.mxu0 0
  %1118 = vmatpush2.bf16.msra.mxu0 %v866
  %1119 = vmatprep.subr.bf16.mxu0 0
  %1120 = vmatpush2.bf16.msra.mxu0 %v865
  %1121 = vmatprep.mubr.bf16.mxu0 %v362
  %1122 = vmatmul.mubr.bf16.gmra.mxu0 %v361
  %v1123 = vpop.f32.mrf.mxu0
  %v1124 = vadd.f32 %v275, %v1123
  %v1125 = vpop.f32.mrf.mxu0
  %v1126 = vpop.f32.mrf.mxu0
  %v1127 = vadd.f32 %v275, %v1126
  %v1128 = vpop.f32.mrf.mxu0
  %1129 = vmatprep.mubr.bf16.mxu0 %v376
  %1130 = vmatmul.mubr.bf16.gmra.mxu0 %v375
  %v1131 = vpop.f32.mrf.mxu0
  %v1132 = vadd.f32 %v275, %v1131
  %v1133 = vpop.f32.mrf.mxu0
  %v1134 = vpop.f32.mrf.mxu0
  %v1135 = vadd.f32 %v275, %v1134
  %v1136 = vpop.f32.mrf.mxu0
  %1137 = vdwg.mxu0
  %1138 = vmatprep.subr.bf16.mxu0 0
  %1139 = vmatpush1.bf16.msra.mxu0 %v880
  %1140 = vmatprep.subr.bf16.mxu0 0
  %1141 = vmatpush1.bf16.msra.mxu0 %v879
  %1142 = vmatprep.subr.bf16.mxu0 0
  %1143 = vmatpush1.bf16.msra.mxu0 %v878
  %1144 = vmatprep.subr.bf16.mxu0 0
  %1145 = vmatpush1.bf16.msra.mxu0 %v877
  %1146 = vmatprep.subr.bf16.mxu0 0
  %1147 = vmatpush1.bf16.msra.mxu0 %v876
  %1148 = vmatprep.subr.bf16.mxu0 0
  %1149 = vmatpush1.bf16.msra.mxu0 %v875
  %1150 = vmatprep.subr.bf16.mxu0 0
  %1151 = vmatpush1.bf16.msra.mxu0 %v874
  %1152 = vmatprep.subr.bf16.mxu0 0
  %1153 = vmatpush1.bf16.msra.mxu0 %v873
  %1154 = vmatprep.subr.bf16.mxu0 0
  %1155 = vmatpush2.bf16.msra.mxu0 %v888
  %1156 = vmatprep.subr.bf16.mxu0 0
  %1157 = vmatpush2.bf16.msra.mxu0 %v887
  %1158 = vmatprep.subr.bf16.mxu0 0
  %1159 = vmatpush2.bf16.msra.mxu0 %v886
  %1160 = vmatprep.subr.bf16.mxu0 0
  %1161 = vmatpush2.bf16.msra.mxu0 %v885
  %1162 = vmatprep.subr.bf16.mxu0 0
  %1163 = vmatpush2.bf16.msra.mxu0 %v884
  %1164 = vmatprep.subr.bf16.mxu0 0
  %1165 = vmatpush2.bf16.msra.mxu0 %v883
  %1166 = vmatprep.subr.bf16.mxu0 0
  %1167 = vmatpush2.bf16.msra.mxu0 %v882
  %1168 = vmatprep.subr.bf16.mxu0 0
  %1169 = vmatpush2.bf16.msra.mxu0 %v881
  %1170 = vmatprep.mubr.bf16.mxu0 %v364
  %1171 = vmatmul.mubr.bf16.gmra.mxu0 %v363
  %v1172 = vpop.f32.mrf.mxu0
  %v1173 = vadd.f32 %v1124, %v1172
  %v1174 = vpop.f32.mrf.mxu0
  %v1175 = vpop.f32.mrf.mxu0
  %v1176 = vadd.f32 %v1127, %v1175
  %v1177 = vpop.f32.mrf.mxu0
  %1178 = vmatprep.mubr.bf16.mxu0 %v378
  %1179 = vmatmul.mubr.bf16.gmra.mxu0 %v377
  %v1180 = vpop.f32.mrf.mxu0
  %v1181 = vadd.f32 %v1132, %v1180
  %v1182 = vpop.f32.mrf.mxu0
  %v1183 = vpop.f32.mrf.mxu0
  %v1184 = vadd.f32 %v1135, %v1183
  %v1185 = vpop.f32.mrf.mxu0
  %1186 = vdwg.mxu0
  %1187 = vmatprep.subr.bf16.mxu0 0
  %1188 = vmatpush1.bf16.msra.mxu0 %v896
  %1189 = vmatprep.subr.bf16.mxu0 0
  %1190 = vmatpush1.bf16.msra.mxu0 %v895
  %1191 = vmatprep.subr.bf16.mxu0 0
  %1192 = vmatpush1.bf16.msra.mxu0 %v894
  %1193 = vmatprep.subr.bf16.mxu0 0
  %1194 = vmatpush1.bf16.msra.mxu0 %v893
  %1195 = vmatprep.subr.bf16.mxu0 0
  %1196 = vmatpush1.bf16.msra.mxu0 %v892
  %1197 = vmatprep.subr.bf16.mxu0 0
  %1198 = vmatpush1.bf16.msra.mxu0 %v891
  %1199 = vmatprep.subr.bf16.mxu0 0
  %1200 = vmatpush1.bf16.msra.mxu0 %v890
  %1201 = vmatprep.subr.bf16.mxu0 0
  %1202 = vmatpush1.bf16.msra.mxu0 %v889
  %1203 = vmatprep.subr.bf16.mxu0 0
  %1204 = vmatpush2.bf16.msra.mxu0 %v904
  %1205 = vmatprep.subr.bf16.mxu0 0
  %1206 = vmatpush2.bf16.msra.mxu0 %v903
  %1207 = vmatprep.subr.bf16.mxu0 0
  %1208 = vmatpush2.bf16.msra.mxu0 %v902
  %1209 = vmatprep.subr.bf16.mxu0 0
  %1210 = vmatpush2.bf16.msra.mxu0 %v901
  %1211 = vmatprep.subr.bf16.mxu0 0
  %1212 = vmatpush2.bf16.msra.mxu0 %v900
  %1213 = vmatprep.subr.bf16.mxu0 0
  %1214 = vmatpush2.bf16.msra.mxu0 %v899
  %1215 = vmatprep.subr.bf16.mxu0 0
  %1216 = vmatpush2.bf16.msra.mxu0 %v898
  %1217 = vmatprep.subr.bf16.mxu0 0
  %1218 = vmatpush2.bf16.msra.mxu0 %v897
  %1219 = vmatprep.mubr.bf16.mxu0 %v366
  %1220 = vmatmul.mubr.bf16.gmra.mxu0 %v365
  %v1221 = vpop.f32.mrf.mxu0
  %v1222 = vadd.f32 %v1173, %v1221
  %v1223 = vpop.f32.mrf.mxu0
  %v1224 = vpop.f32.mrf.mxu0
  %v1225 = vadd.f32 %v1176, %v1224
  %v1226 = vpop.f32.mrf.mxu0
  %1227 = vmatprep.mubr.bf16.mxu0 %v380
  %1228 = vmatmul.mubr.bf16.gmra.mxu0 %v379
  %v1229 = vpop.f32.mrf.mxu0
  %v1230 = vadd.f32 %v1181, %v1229
  %v1231 = vpop.f32.mrf.mxu0
  %v1232 = vpop.f32.mrf.mxu0
  %v1233 = vadd.f32 %v1184, %v1232
  %v1234 = vpop.f32.mrf.mxu0
  %1235 = vdwg.mxu0
  %1236 = vmatprep.subr.bf16.mxu0 0
  %1237 = vmatpush1.bf16.msra.mxu0 %v912
  %1238 = vmatprep.subr.bf16.mxu0 0
  %1239 = vmatpush1.bf16.msra.mxu0 %v911
  %1240 = vmatprep.subr.bf16.mxu0 0
  %1241 = vmatpush1.bf16.msra.mxu0 %v910
  %1242 = vmatprep.subr.bf16.mxu0 0
  %1243 = vmatpush1.bf16.msra.mxu0 %v909
  %1244 = vmatprep.subr.bf16.mxu0 0
  %1245 = vmatpush1.bf16.msra.mxu0 %v908
  %1246 = vmatprep.subr.bf16.mxu0 0
  %1247 = vmatpush1.bf16.msra.mxu0 %v907
  %1248 = vmatprep.subr.bf16.mxu0 0
  %1249 = vmatpush1.bf16.msra.mxu0 %v906
  %1250 = vmatprep.subr.bf16.mxu0 0
  %1251 = vmatpush1.bf16.msra.mxu0 %v905
  %1252 = vmatprep.subr.bf16.mxu0 0
  %1253 = vmatpush2.bf16.msra.mxu0 %v920
  %1254 = vmatprep.subr.bf16.mxu0 0
  %1255 = vmatpush2.bf16.msra.mxu0 %v919
  %1256 = vmatprep.subr.bf16.mxu0 0
  %1257 = vmatpush2.bf16.msra.mxu0 %v918
  %1258 = vmatprep.subr.bf16.mxu0 0
  %1259 = vmatpush2.bf16.msra.mxu0 %v917
  %1260 = vmatprep.subr.bf16.mxu0 0
  %1261 = vmatpush2.bf16.msra.mxu0 %v916
  %1262 = vmatprep.subr.bf16.mxu0 0
  %1263 = vmatpush2.bf16.msra.mxu0 %v915
  %1264 = vmatprep.subr.bf16.mxu0 0
  %1265 = vmatpush2.bf16.msra.mxu0 %v914
  %1266 = vmatprep.subr.bf16.mxu0 0
  %1267 = vmatpush2.bf16.msra.mxu0 %v913
  %1268 = vmatprep.mubr.bf16.mxu0 %v368
  %1269 = vmatmul.mubr.bf16.gmra.mxu0 %v367
  %v1270 = vpop.f32.mrf.mxu0
  %v1271 = vadd.f32 %v1222, %v1270
  %v1272 = vpop.f32.mrf.mxu0
  %v1273 = vpop.f32.mrf.mxu0
  %v1274 = vadd.f32 %v1225, %v1273
  %v1275 = vpop.f32.mrf.mxu0
  %1276 = vmatprep.mubr.bf16.mxu0 %v382
  %1277 = vmatmul.mubr.bf16.gmra.mxu0 %v381
  %v1278 = vpop.f32.mrf.mxu0
  %v1279 = vadd.f32 %v1230, %v1278
  %v1280 = vpop.f32.mrf.mxu0
  %v1281 = vpop.f32.mrf.mxu0
  %v1282 = vadd.f32 %v1233, %v1281
  %v1283 = vpop.f32.mrf.mxu0
  %1284 = vdwg.mxu0
  %1285 = vmatprep.subr.bf16.mxu0 0
  %1286 = vmatpush1.bf16.msra.mxu0 %v928
  %1287 = vmatprep.subr.bf16.mxu0 0
  %1288 = vmatpush1.bf16.msra.mxu0 %v927
  %1289 = vmatprep.subr.bf16.mxu0 0
  %1290 = vmatpush1.bf16.msra.mxu0 %v926
  %1291 = vmatprep.subr.bf16.mxu0 0
  %1292 = vmatpush1.bf16.msra.mxu0 %v925
  %1293 = vmatprep.subr.bf16.mxu0 0
  %1294 = vmatpush1.bf16.msra.mxu0 %v924
  %1295 = vmatprep.subr.bf16.mxu0 0
  %1296 = vmatpush1.bf16.msra.mxu0 %v923
  %1297 = vmatprep.subr.bf16.mxu0 0
  %1298 = vmatpush1.bf16.msra.mxu0 %v922
  %1299 = vmatprep.subr.bf16.mxu0 0
  %1300 = vmatpush1.bf16.msra.mxu0 %v921
  %1301 = vmatprep.subr.bf16.mxu0 0
  %1302 = vmatpush2.bf16.msra.mxu0 %v936
  %1303 = vmatprep.subr.bf16.mxu0 0
  %1304 = vmatpush2.bf16.msra.mxu0 %v935
  %1305 = vmatprep.subr.bf16.mxu0 0
  %1306 = vmatpush2.bf16.msra.mxu0 %v934
  %1307 = vmatprep.subr.bf16.mxu0 0
  %1308 = vmatpush2.bf16.msra.mxu0 %v933
  %1309 = vmatprep.subr.bf16.mxu0 0
  %1310 = vmatpush2.bf16.msra.mxu0 %v932
  %1311 = vmatprep.subr.bf16.mxu0 0
  %1312 = vmatpush2.bf16.msra.mxu0 %v931
  %1313 = vmatprep.subr.bf16.mxu0 0
  %1314 = vmatpush2.bf16.msra.mxu0 %v930
  %1315 = vmatprep.subr.bf16.mxu0 0
  %1316 = vmatpush2.bf16.msra.mxu0 %v929
  %1317 = vmatprep.mubr.bf16.mxu0 %v370
  %1318 = vmatmul.mubr.bf16.gmra.mxu0 %v369
  %v1319 = vpop.f32.mrf.mxu0
  %v1320 = vadd.f32 %v1271, %v1319
  %v1321 = vpop.f32.mrf.mxu0
  %v1322 = vpop.f32.mrf.mxu0
  %v1323 = vadd.f32 %v1274, %v1322
  %v1324 = vpop.f32.mrf.mxu0
  %1325 = vmatprep.mubr.bf16.mxu0 %v384
  %1326 = vmatmul.mubr.bf16.gmra.mxu0 %v383
  %v1327 = vpop.f32.mrf.mxu0
  %v1328 = vadd.f32 %v1279, %v1327
  %v1329 = vpop.f32.mrf.mxu0
  %v1330 = vpop.f32.mrf.mxu0
  %v1331 = vadd.f32 %v1282, %v1330
  %v1332 = vpop.f32.mrf.mxu0
  %1333 = vdwg.mxu0
  %1334 = vmatprep.subr.bf16.mxu0 0
  %1335 = vmatpush1.bf16.msra.mxu0 %v944
  %1336 = vmatprep.subr.bf16.mxu0 0
  %1337 = vmatpush1.bf16.msra.mxu0 %v943
  %1338 = vmatprep.subr.bf16.mxu0 0
  %1339 = vmatpush1.bf16.msra.mxu0 %v942
  %1340 = vmatprep.subr.bf16.mxu0 0
  %1341 = vmatpush1.bf16.msra.mxu0 %v941
  %1342 = vmatprep.subr.bf16.mxu0 0
  %1343 = vmatpush1.bf16.msra.mxu0 %v940
  %1344 = vmatprep.subr.bf16.mxu0 0
  %1345 = vmatpush1.bf16.msra.mxu0 %v939
  %1346 = vmatprep.subr.bf16.mxu0 0
  %1347 = vmatpush1.bf16.msra.mxu0 %v938
  %1348 = vmatprep.subr.bf16.mxu0 0
  %1349 = vmatpush1.bf16.msra.mxu0 %v937
  %1350 = vmatprep.subr.bf16.mxu0 0
  %1351 = vmatpush2.bf16.msra.mxu0 %v952
  %1352 = vmatprep.subr.bf16.mxu0 0
  %1353 = vmatpush2.bf16.msra.mxu0 %v951
  %1354 = vmatprep.subr.bf16.mxu0 0
  %1355 = vmatpush2.bf16.msra.mxu0 %v950
  %1356 = vmatprep.subr.bf16.mxu0 0
  %1357 = vmatpush2.bf16.msra.mxu0 %v949
  %1358 = vmatprep.subr.bf16.mxu0 0
  %1359 = vmatpush2.bf16.msra.mxu0 %v948
  %1360 = vmatprep.subr.bf16.mxu0 0
  %1361 = vmatpush2.bf16.msra.mxu0 %v947
  %1362 = vmatprep.subr.bf16.mxu0 0
  %1363 = vmatpush2.bf16.msra.mxu0 %v946
  %1364 = vmatprep.subr.bf16.mxu0 0
  %1365 = vmatpush2.bf16.msra.mxu0 %v945
  %1366 = vmatprep.mubr.bf16.mxu0 %v372
  %1367 = vmatmul.mubr.bf16.gmra.mxu0 %v371
  %v1368 = vpop.f32.mrf.mxu0
  %v1369 = vadd.f32 %v1320, %v1368
  %v1370 = vpop.f32.mrf.mxu0
  %v1371 = vpop.f32.mrf.mxu0
  %v1372 = vadd.f32 %v1323, %v1371
  %v1373 = vpop.f32.mrf.mxu0
  %1374 = vmatprep.mubr.bf16.mxu0 %v386
  %1375 = vmatmul.mubr.bf16.gmra.mxu0 %v385
  %v1376 = vpop.f32.mrf.mxu0
  %v1377 = vadd.f32 %v1328, %v1376
  %v1378 = vpop.f32.mrf.mxu0
  %v1379 = vpop.f32.mrf.mxu0
  %v1380 = vadd.f32 %v1331, %v1379
  %v1381 = vpop.f32.mrf.mxu0
  %1382 = vdwg.mxu0
  %1383 = vmatprep.subr.bf16.mxu0 0
  %1384 = vmatpush1.bf16.msra.mxu0 %v960
  %1385 = vmatprep.subr.bf16.mxu0 0
  %1386 = vmatpush1.bf16.msra.mxu0 %v959
  %1387 = vmatprep.subr.bf16.mxu0 0
  %1388 = vmatpush1.bf16.msra.mxu0 %v958
  %1389 = vmatprep.subr.bf16.mxu0 0
  %1390 = vmatpush1.bf16.msra.mxu0 %v957
  %1391 = vmatprep.subr.bf16.mxu0 0
  %1392 = vmatpush1.bf16.msra.mxu0 %v956
  %1393 = vmatprep.subr.bf16.mxu0 0
  %1394 = vmatpush1.bf16.msra.mxu0 %v955
  %1395 = vmatprep.subr.bf16.mxu0 0
  %1396 = vmatpush1.bf16.msra.mxu0 %v954
  %1397 = vmatprep.subr.bf16.mxu0 0
  %1398 = vmatpush1.bf16.msra.mxu0 %v953
  %1399 = vmatprep.subr.bf16.mxu0 0
  %1400 = vmatpush2.bf16.msra.mxu0 0
  %1401 = vmatprep.subr.bf16.mxu0 0
  %1402 = vmatpush2.bf16.msra.mxu0 %v1087
  %1403 = vmatprep.subr.bf16.mxu0 0
  %1404 = vmatpush2.bf16.msra.mxu0 %v966
  %1405 = vmatprep.subr.bf16.mxu0 0
  %1406 = vmatpush2.bf16.msra.mxu0 %v965
  %1407 = vmatprep.subr.bf16.mxu0 0
  %1408 = vmatpush2.bf16.msra.mxu0 %v964
  %1409 = vmatprep.subr.bf16.mxu0 0
  %1410 = vmatpush2.bf16.msra.mxu0 %v963
  %1411 = vmatprep.subr.bf16.mxu0 0
  %1412 = vmatpush2.bf16.msra.mxu0 %v962
  %1413 = vmatprep.subr.bf16.mxu0 0
  %1414 = vmatpush2.bf16.msra.mxu0 %v961
  %1415 = vmatprep.mubr.bf16.mxu0 %v1080
  %1416 = vmatmul.mubr.bf16.gmra.mxu0 %v373
  %v1417 = vpop.f32.mrf.mxu0
  %v1418 = vadd.f32 %v1369, %v1417
  %v1419 = vpop.f32.mrf.mxu0
  %v1420 = vpop.f32.mrf.mxu0
  %v1421 = vadd.f32 %v1372, %v1420
  %v1422 = vpop.f32.mrf.mxu0
  %1423 = vmatprep.mubr.bf16.mxu0 %v1083
  %1424 = vmatmul.mubr.bf16.gmra.mxu0 %v387
  %v1425 = vpop.f32.mrf.mxu0
  %v1426 = vadd.f32 %v1377, %v1425
  %v1427 = vpop.f32.mrf.mxu0
  %v1428 = vpop.f32.mrf.mxu0
  %v1429 = vadd.f32 %v1380, %v1428
  %v1430 = vpop.f32.mrf.mxu0
  %1431 = vdwg.mxu0
  %v1432 = vadd.f32 %v1418, %v1421
  %v1433 = vadd.f32 %v1432, %v1426
  %v1434 = vadd.f32 %v1433, %v1429
  %v1435 = vrot.slane %v1434, 4
  %v1436 = vadd.f32 %v1434, %v1435
  %v1437 = vrot.slane %v1436, 2
  %v1438 = vadd.f32 %v1436, %v1437
  %v1439 = vrot.slane %v1438, 1
  %v1440 = vadd.f32 %v1438, %v1439
  %v1441 = vrcp.pop 32.0
  %v1442 = vmul.f32 %v1440, %v1441
  %v1443 = vsub.f32 %v1418, %v1442
  %v1444 = vsub.f32 %v1421, %v1442
  %v1445 = vsub.f32 %v1426, %v1442
  %v1446 = vsub.f32 %v1429, %v1442
  %v1447 = vmul.f32 %v1443, %v1443
  %v1448 = vmul.f32 %v1444, %v1444
  %v1449 = vmul.f32 %v1445, %v1445
  %v1450 = vmul.f32 %v1446, %v1446
  %v1451 = vadd.f32 %v1447, %v1448
  %v1452 = vadd.f32 %v1451, %v1449
  %v1453 = vadd.f32 %v1452, %v1450
  %v1454 = vrot.slane %v1453, 4
  %v1455 = vadd.f32 %v1453, %v1454
  %v1456 = vrot.slane %v1455, 2
  %v1457 = vadd.f32 %v1455, %v1456
  %v1458 = vrot.slane %v1457, 1
  %v1459 = vadd.f32 %v1457, %v1458
  %v1460 = vmul.f32 %v1459, %v1441
  %v1461 = vadd.f32 %v1460, 1e-05
  %v1462 = vrsqrt.pop %v1461
  %v1463 = vmul.f32 %v1443, %v1462
  %v1464 = vmul.f32 %v1444, %v1462
  %v1465 = vmul.f32 %v1445, %v1462
  %v1466 = vmul.f32 %v1446, %v1462
  %v1467 = vld [vmem:[%s3] sm:$0x1]
  %v1469 = vlaneseq
  %v1470 = vshrl.u32 %v1469, 7
  %v1471 = vsub.s32 0, %v1470
  %v1472 = vrot.slane %v1467, %v1471
  %v1474 = vmul.f32 %v1463, %v1472
  %v1475 = vmul.f32 %v1464, %v1472
  %v1476 = vmul.f32 %v1465, %v1472
  %v1477 = vmul.f32 %v1466, %v1472
  %v1478 = vld [vmem:[%s4] sm:$0x1]
  %v1480 = vlaneseq
  %v1481 = vshrl.u32 %v1480, 7
  %v1482 = vsub.s32 0, %v1481
  %v1483 = vrot.slane %v1478, %v1482
  %v1485 = vadd.f32 %v1474, %v1483
  %v1486 = vadd.f32 %v1475, %v1483
  %v1487 = vadd.f32 %v1476, %v1483
  %v1488 = vadd.f32 %v1477, %v1483
  %vm1489 = vcmp.gt.f32.partialorder %v1485, 0.0
  %vm1490 = vcmp.gt.f32.partialorder %v1486, 0.0
  %vm1491 = vcmp.gt.f32.partialorder %v1487, 0.0
  %vm1492 = vcmp.gt.f32.partialorder %v1488, 0.0
  %v1493 = vmul.f32 %v1485, 0.01
  %v1494 = vmul.f32 %v1486, 0.01
  %v1495 = vmul.f32 %v1487, 0.01
  %v1496 = vmul.f32 %v1488, 0.01
  %v1497 = vsel %vm1489, %v1485, %v1493
  %v1498 = vsel %vm1490, %v1486, %v1494
  %v1499 = vsel %vm1491, %v1487, %v1495
  %v1500 = vsel %vm1492, %v1488, %v1496
  %v1501 = vpack.c.bf16 %v1498, %v1497
  %v1502 = vpack.c.bf16 %v1500, %v1499
  %v1505 = vunpack.c.l.b16 %v1501
  %v1506 = vunpack.c.h.b16 %v1501
  %v1507 = vunpack.c.l.b16 %v1502
  %v1508 = vunpack.c.h.b16 %v1502
  %v1509 = vpack.c.b16 %v1505, %v1505
  %v1510 = vpack.c.b16 %v1506, %v1506
  %v1511 = vpack.c.b16 %v1507, %v1507
  %v1512 = vpack.c.b16 %v1508, %v1508
  %1517 = vst [vmem:[%s5] sm:$0xf] %v1509
  %1518 = vst [vmem:[%s5 + $0x4] sm:$0xf] %v1510
  %1519 = vst [vmem:[%s5 + $0x8] sm:$0xf] %v1511
  %1520 = vst [vmem:[%s5 + $0xc] sm:$0xf] %v1512
  // Predicated region
  $region22: #{netd3d_forward.7} parent=0 // pred_check
    _
  $region23: #{netd3d_forward.7} parent=0 // pred_check_branch
    %1522 = sbr.rel (0) target = $region25
  $region24: #{netd3d_forward.7} parent=0 // pred_region
    _
  $region25: #{netd3d_forward.7} parent=0 // pred_fallthru
    _
  // Predicated region
  $region26: #{netd3d_forward.7} parent=0 // pred_check
    _
  $region27: #{netd3d_forward.7} parent=0 // pred_check_branch
    %1524 = sbr.rel (0) target = $region29
  $region28: #{netd3d_forward.7} parent=0 // pred_region
    _
  $region29: #{netd3d_forward.7} parent=0 // pred_fallthru
    _

// kernel: netd3d_forward.8
$region0: #{netd3d_forward.8}
  #allocation0 [shape = 'u32[]', space=smem, size = 0x4, offset = 0x4, fixed_abs, tag = 'smem constant byte address 0x4 - core index']
  #allocation1 [shape = 'u32[144,128]{1,0:T(1,128)}', space=vmem, size = 0x12000, scoped, tag = 'internal scratch']
  %s0 = inlined_call_operand.vmem [shape: bf16[32,196], index: 0, kind: input, shape index: {}]
  %s1 = inlined_call_operand.vmem [shape: bf16[196,128], index: 1, kind: input, shape index: {}]
  %s2 = inlined_call_operand.vmem [shape: f32[1,128], index: 2, kind: input, shape index: {}]
  %s3 = inlined_call_operand.vmem [shape: f32[1,128], index: 3, kind: input, shape index: {}]
  %s4 = inlined_call_operand.vmem [shape: f32[1,128], index: 4, kind: input, shape index: {}]
  %s5 = inlined_call_operand.vmem [shape: bf16[32,128], index: 5, kind: output, shape index: {}]
  %s6 = sld [smem:[#allocation0]]
  $region30: #{netd3d_forward.8} parent=0
    _
  %s8 = ssub.s32 1, %s6
  %s9 = scalar_select 0, %s8, %s6
  // Predicated region
  $region2: #{netd3d_forward.8} parent=0 // pred_check
    _
  $region3: #{netd3d_forward.8} parent=0 // pred_check_branch
    %11 = sbr.rel (0) target = $region5
  $region4: #{netd3d_forward.8} parent=0 // pred_region
    _
  $region5: #{netd3d_forward.8} parent=0 // pred_fallthru
    _
  // Predicated region
  $region6: #{netd3d_forward.8} parent=0 // pred_check
    _
  $region7: #{netd3d_forward.8} parent=0 // pred_check_branch
    %13 = sbr.rel (0) target = $region9
  $region8: #{netd3d_forward.8} parent=0 // pred_region
    _
  $region9: #{netd3d_forward.8} parent=0 // pred_fallthru
    _
  // Predicated region
  $region10: #{netd3d_forward.8} parent=0 // pred_check
    _
  $region11: #{netd3d_forward.8} parent=0 // pred_check_branch
    %15 = sbr.rel (0) target = $region13
  $region12: #{netd3d_forward.8} parent=0 // pred_region
    _
  $region13: #{netd3d_forward.8} parent=0 // pred_fallthru
    _
  // Predicated region
  $region14: #{netd3d_forward.8} parent=0 // pred_check
    _
  $region15: #{netd3d_forward.8} parent=0 // pred_check_branch
    %17 = sbr.rel (0) target = $region17
  $region16: #{netd3d_forward.8} parent=0 // pred_region
    _
  $region17: #{netd3d_forward.8} parent=0 // pred_fallthru
    _
  // Predicated region
  $region18: #{netd3d_forward.8} parent=0 // pred_check
    _
  $region19: #{netd3d_forward.8} parent=0 // pred_check_branch
    %19 = sbr.rel (0) target = $region21
  $region20: #{netd3d_forward.8} parent=0 // pred_region
    _
  $region21: #{netd3d_forward.8} parent=0 // pred_fallthru
    _
  %v21 = vld [vmem:[%s0] sm:$0xff]
  %v22 = vld [vmem:[%s0 + $0x8] sm:$0xff]
  %v23 = vld [vmem:[%s0 + $0x10] sm:$0xff]
  %v24 = vld [vmem:[%s0 + $0x18] sm:$0xff]
  %v25 = vld [vmem:[%s1] sm:$0xf]
  %v26 = vld [vmem:[%s1 + $0x4] sm:$0xf]
  %v27 = vld [vmem:[%s1 + $0x8] sm:$0xf]
  %v28 = vld [vmem:[%s1 + $0xc] sm:$0xf]
  %v29 = vld [vmem:[%s1 + $0x10] sm:$0xf]
  %v30 = vld [vmem:[%s1 + $0x14] sm:$0xf]
  %v31 = vld [vmem:[%s1 + $0x18] sm:$0xf]
  %v32 = vld [vmem:[%s1 + $0x1c] sm:$0xf]
  %v33 = vld [vmem:[%s1 + $0x20] sm:$0xf]
  %v34 = vld [vmem:[%s1 + $0x24] sm:$0xf]
  %v35 = vld [vmem:[%s1 + $0x28] sm:$0xf]
  %v36 = vld [vmem:[%s1 + $0x2c] sm:$0xf]
  %v37 = vld [vmem:[%s1 + $0x30] sm:$0xf]
  %v38 = vld [vmem:[%s1 + $0x34] sm:$0xf]
  %v39 = vld [vmem:[%s1 + $0x38] sm:$0xf]
  %v40 = vld [vmem:[%s1 + $0x3c] sm:$0xf]
  %v41 = vld [vmem:[%s1 + $0x40] sm:$0xf]
  %v42 = vld [vmem:[%s1 + $0x44] sm:$0xf]
  %v43 = vld [vmem:[%s1 + $0x48] sm:$0xf]
  %v44 = vld [vmem:[%s1 + $0x4c] sm:$0xf]
  %v45 = vld [vmem:[%s1 + $0x50] sm:$0xf]
  %v46 = vld [vmem:[%s1 + $0x54] sm:$0xf]
  %v47 = vld [vmem:[%s1 + $0x58] sm:$0xf]
  %v48 = vld [vmem:[%s1 + $0x5c] sm:$0xf]
  %v49 = vld [vmem:[%s1 + $0x60] sm:$0x3]
  %v50 = vld [vmem:[%s2] sm:$0x1]
  %v52 = vlaneseq
  %v53 = vshrl.u32 %v52, 7
  %v54 = vsub.s32 0, %v53
  %v55 = vrot.slane %v50, %v54
  %v61 = vunpack.c.l.b16 %v21
  %v62 = vunpack.c.h.b16 %v21
  %v63 = vunpack.c.l.b16 %v22
  %v64 = vunpack.c.h.b16 %v22
  %v65 = vunpack.c.l.b16 %v23
  %v66 = vunpack.c.h.b16 %v23
  %v67 = vunpack.c.l.b16 %v24
  %v68 = vunpack.c.h.b16 %v24
  %v69 = vpack.c.b16 %v63, %v61
  %v70 = vpack.c.b16 %v64, %v62
  %v71 = vpack.c.b16 %v67, %v65
  %v72 = vpack.c.b16 %v68, %v66
  %v100 = vunpack.c.l.b16 %v25
  %v101 = vunpack.c.l.b16 %v26
  %v102 = vunpack.c.l.b16 %v27
  %v103 = vunpack.c.l.b16 %v28
  %v104 = vunpack.c.l.b16 %v29
  %v105 = vunpack.c.l.b16 %v30
  %v106 = vunpack.c.l.b16 %v31
  %v107 = vunpack.c.l.b16 %v32
  %v108 = vunpack.c.l.b16 %v33
  %v109 = vunpack.c.l.b16 %v34
  %v110 = vunpack.c.l.b16 %v35
  %v111 = vunpack.c.l.b16 %v36
  %v112 = vunpack.c.l.b16 %v37
  %v113 = vunpack.c.l.b16 %v38
  %v114 = vunpack.c.l.b16 %v39
  %v115 = vunpack.c.l.b16 %v40
  %v116 = vunpack.c.l.b16 %v41
  %v117 = vunpack.c.l.b16 %v42
  %v118 = vunpack.c.l.b16 %v43
  %v119 = vunpack.c.l.b16 %v44
  %v120 = vunpack.c.l.b16 %v45
  %v121 = vunpack.c.l.b16 %v46
  %v122 = vunpack.c.l.b16 %v47
  %v123 = vunpack.c.l.b16 %v48
  %v124 = vunpack.c.l.b16 %v49
  %v125 = vpack.c.b16 %v101, %v100
  %v126 = vpack.c.b16 %v103, %v102
  %v127 = vpack.c.b16 %v105, %v104
  %v128 = vpack.c.b16 %v107, %v106
  %v129 = vpack.c.b16 %v109, %v108
  %v130 = vpack.c.b16 %v111, %v110
  %v131 = vpack.c.b16 %v113, %v112
  %v132 = vpack.c.b16 %v115, %v114
  %v133 = vpack.c.b16 %v117, %v116
  %v134 = vpack.c.b16 %v119, %v118
  %v135 = vpack.c.b16 %v121, %v120
  %v136 = vpack.c.b16 %v123, %v122
  %v137 = vpack.c.b16 %v124, %v124
  %vm150 = vcmask 556032
  %v152 = vsel %vm150, %v70, 0
  %v155 = vsel %vm150, %v72, 0
  %vm157 = vcmask 1041408
  %v159 = vsel %vm157, %v137, 0
  %161 = vmatprep.subr.bf16.mxu0 0
  %162 = vmatpush1.bf16.msra.mxu0 %v132
  %163 = vmatprep.subr.bf16.mxu0 0
  %164 = vmatpush1.bf16.msra.mxu0 %v131
  %165 = vmatprep.subr.bf16.mxu0 0
  %166 = vmatpush1.bf16.msra.mxu0 %v130
  %167 = vmatprep.subr.bf16.mxu0 0
  %168 = vmatpush1.bf16.msra.mxu0 %v129
  %169 = vmatprep.subr.bf16.mxu0 0
  %170 = vmatpush1.bf16.msra.mxu0 %v128
  %171 = vmatprep.subr.bf16.mxu0 0
  %172 = vmatpush1.bf16.msra.mxu0 %v127
  %173 = vmatprep.subr.bf16.mxu0 0
  %174 = vmatpush1.bf16.msra.mxu0 %v126
  %175 = vmatprep.subr.bf16.mxu0 0
  %176 = vmatpush1.bf16.msra.mxu0 %v125
  %177 = vmatprep.subr.bf16.mxu0 0
  %178 = vmatpush2.bf16.msra.mxu0 0
  %179 = vmatprep.subr.bf16.mxu0 0
  %180 = vmatpush2.bf16.msra.mxu0 0
  %181 = vmatprep.subr.bf16.mxu0 0
  %182 = vmatpush2.bf16.msra.mxu0 0
  %183 = vmatprep.subr.bf16.mxu0 0
  %184 = vmatpush2.bf16.msra.mxu0 %v159
  %185 = vmatprep.subr.bf16.mxu0 0
  %186 = vmatpush2.bf16.msra.mxu0 %v136
  %187 = vmatprep.subr.bf16.mxu0 0
  %188 = vmatpush2.bf16.msra.mxu0 %v135
  %189 = vmatprep.subr.bf16.mxu0 0
  %190 = vmatpush2.bf16.msra.mxu0 %v134
  %191 = vmatprep.subr.bf16.mxu0 0
  %192 = vmatpush2.bf16.msra.mxu0 %v133
  %193 = vmatprep.mubr.bf16.mxu0 %v152
  %194 = vmatmul.mubr.bf16.gmra.mxu0 %v69
  %v195 = vpop.f32.mrf.mxu0
  %v196 = vadd.f32 %v55, %v195
  %v197 = vpop.f32.mrf.mxu0
  %v198 = vpop.f32.mrf.mxu0
  %v199 = vadd.f32 %v55, %v198
  %v200 = vpop.f32.mrf.mxu0
  %201 = vmatprep.mubr.bf16.mxu0 %v155
  %202 = vmatmul.mubr.bf16.gmra.mxu0 %v71
  %v203 = vpop.f32.mrf.mxu0
  %v204 = vadd.f32 %v55, %v203
  %v205 = vpop.f32.mrf.mxu0
  %v206 = vpop.f32.mrf.mxu0
  %v207 = vadd.f32 %v55, %v206
  %v208 = vpop.f32.mrf.mxu0
  %209 = vdwg.mxu0
  %v210 = vadd.f32 %v196, %v199
  %v211 = vadd.f32 %v210, %v204
  %v212 = vadd.f32 %v211, %v207
  %v213 = vrot.slane %v212, 4
  %v214 = vadd.f32 %v212, %v213
  %v215 = vrot.slane %v214, 2
  %v216 = vadd.f32 %v214, %v215
  %v217 = vrot.slane %v216, 1
  %v218 = vadd.f32 %v216, %v217
  %v219 = vrcp.pop 32.0
  %v220 = vmul.f32 %v218, %v219
  %v221 = vsub.f32 %v196, %v220
  %v222 = vsub.f32 %v199, %v220
  %v223 = vsub.f32 %v204, %v220
  %v224 = vsub.f32 %v207, %v220
  %v225 = vmul.f32 %v221, %v221
  %v226 = vmul.f32 %v222, %v222
  %v227 = vmul.f32 %v223, %v223
  %v228 = vmul.f32 %v224, %v224
  %v229 = vadd.f32 %v225, %v226
  %v230 = vadd.f32 %v229, %v227
  %v231 = vadd.f32 %v230, %v228
  %v232 = vrot.slane %v231, 4
  %v233 = vadd.f32 %v231, %v232
  %v234 = vrot.slane %v233, 2
  %v235 = vadd.f32 %v233, %v234
  %v236 = vrot.slane %v235, 1
  %v237 = vadd.f32 %v235, %v236
  %v238 = vmul.f32 %v237, %v219
  %v239 = vadd.f32 %v238, 1e-05
  %v240 = vrsqrt.pop %v239
  %v241 = vmul.f32 %v221, %v240
  %v242 = vmul.f32 %v222, %v240
  %v243 = vmul.f32 %v223, %v240
  %v244 = vmul.f32 %v224, %v240
  %v245 = vld [vmem:[%s3] sm:$0x1]
  %v247 = vlaneseq
  %v248 = vshrl.u32 %v247, 7
  %v249 = vsub.s32 0, %v248
  %v250 = vrot.slane %v245, %v249
  %v252 = vmul.f32 %v241, %v250
  %v253 = vmul.f32 %v242, %v250
  %v254 = vmul.f32 %v243, %v250
  %v255 = vmul.f32 %v244, %v250
  %v256 = vld [vmem:[%s4] sm:$0x1]
  %v258 = vlaneseq
  %v259 = vshrl.u32 %v258, 7
  %v260 = vsub.s32 0, %v259
  %v261 = vrot.slane %v256, %v260
  %v263 = vadd.f32 %v252, %v261
  %v264 = vadd.f32 %v253, %v261
  %v265 = vadd.f32 %v254, %v261
  %v266 = vadd.f32 %v255, %v261
  %vm267 = vcmp.gt.f32.partialorder %v263, 0.0
  %vm268 = vcmp.gt.f32.partialorder %v264, 0.0
  %vm269 = vcmp.gt.f32.partialorder %v265, 0.0
  %vm270 = vcmp.gt.f32.partialorder %v266, 0.0
  %v271 = vmul.f32 %v263, 0.01
  %v272 = vmul.f32 %v264, 0.01
  %v273 = vmul.f32 %v265, 0.01
  %v274 = vmul.f32 %v266, 0.01
  %v275 = vsel %vm267, %v263, %v271
  %v276 = vsel %vm268, %v264, %v272
  %v277 = vsel %vm269, %v265, %v273
  %v278 = vsel %vm270, %v266, %v274
  %v279 = vpack.c.bf16 %v276, %v275
  %v280 = vpack.c.bf16 %v278, %v277
  %v283 = vunpack.c.l.b16 %v279
  %v284 = vunpack.c.h.b16 %v279
  %v285 = vunpack.c.l.b16 %v280
  %v286 = vunpack.c.h.b16 %v280
  %v287 = vpack.c.b16 %v283, %v283
  %v288 = vpack.c.b16 %v284, %v284
  %v289 = vpack.c.b16 %v285, %v285
  %v290 = vpack.c.b16 %v286, %v286
  %295 = vst [vmem:[%s5] sm:$0xf] %v287
  %296 = vst [vmem:[%s5 + $0x4] sm:$0xf] %v288
  %297 = vst [vmem:[%s5 + $0x8] sm:$0xf] %v289
  %298 = vst [vmem:[%s5 + $0xc] sm:$0xf] %v290
  // Predicated region
  $region22: #{netd3d_forward.8} parent=0 // pred_check
    _
  $region23: #{netd3d_forward.8} parent=0 // pred_check_branch
    %300 = sbr.rel (0) target = $region25
  $region24: #{netd3d_forward.8} parent=0 // pred_region
    _
  $region25: #{netd3d_forward.8} parent=0 // pred_fallthru
    _
  // Predicated region
  $region26: #{netd3d_forward.8} parent=0 // pred_check
    _
  $region27: #{netd3d_forward.8} parent=0 // pred_check_branch
    %302 = sbr.rel (0) target = $region29
  $region28: #{netd3d_forward.8} parent=0 // pred_region
    _
  $region29: #{netd3d_forward.8} parent=0 // pred_fallthru
    _

// kernel: netd3d_forward.9
$region0: #{netd3d_forward.9}
  #allocation0 [shape = 'u32[]', space=smem, size = 0x4, offset = 0x4, fixed_abs, tag = 'smem constant byte address 0x4 - core index']
  #allocation1 [shape = 'u32[144,128]{1,0:T(1,128)}', space=vmem, size = 0x12000, scoped, tag = 'internal scratch']
  %s0 = inlined_call_operand.vmem [shape: bf16[2,16], index: 0, kind: input, shape index: {}]
  %s1 = inlined_call_operand.vmem [shape: bf16[16,128], index: 1, kind: input, shape index: {}]
  %s2 = inlined_call_operand.vmem [shape: f32[1,128], index: 2, kind: input, shape index: {}]
  %s3 = inlined_call_operand.vmem [shape: f32[1,128], index: 3, kind: input, shape index: {}]
  %s4 = inlined_call_operand.vmem [shape: f32[1,128], index: 4, kind: input, shape index: {}]
  %s5 = inlined_call_operand.vmem [shape: f32[2,128], index: 5, kind: output, shape index: {}]
  %s6 = sld [smem:[#allocation0]]
  $region30: #{netd3d_forward.9} parent=0
    _
  %s8 = ssub.s32 1, %s6
  %s9 = scalar_select 0, %s8, %s6
  // Predicated region
  $region2: #{netd3d_forward.9} parent=0 // pred_check
    _
  $region3: #{netd3d_forward.9} parent=0 // pred_check_branch
    %11 = sbr.rel (0) target = $region5
  $region4: #{netd3d_forward.9} parent=0 // pred_region
    _
  $region5: #{netd3d_forward.9} parent=0 // pred_fallthru
    _
  // Predicated region
  $region6: #{netd3d_forward.9} parent=0 // pred_check
    _
  $region7: #{netd3d_forward.9} parent=0 // pred_check_branch
    %13 = sbr.rel (0) target = $region9
  $region8: #{netd3d_forward.9} parent=0 // pred_region
    _
  $region9: #{netd3d_forward.9} parent=0 // pred_fallthru
    _
  // Predicated region
  $region10: #{netd3d_forward.9} parent=0 // pred_check
    _
  $region11: #{netd3d_forward.9} parent=0 // pred_check_branch
    %15 = sbr.rel (0) target = $region13
  $region12: #{netd3d_forward.9} parent=0 // pred_region
    _
  $region13: #{netd3d_forward.9} parent=0 // pred_fallthru
    _
  // Predicated region
  $region14: #{netd3d_forward.9} parent=0 // pred_check
    _
  $region15: #{netd3d_forward.9} parent=0 // pred_check_branch
    %17 = sbr.rel (0) target = $region17
  $region16: #{netd3d_forward.9} parent=0 // pred_region
    _
  $region17: #{netd3d_forward.9} parent=0 // pred_fallthru
    _
  // Predicated region
  $region18: #{netd3d_forward.9} parent=0 // pred_check
    _
  $region19: #{netd3d_forward.9} parent=0 // pred_check_branch
    %19 = sbr.rel (0) target = $region21
  $region20: #{netd3d_forward.9} parent=0 // pred_region
    _
  $region21: #{netd3d_forward.9} parent=0 // pred_fallthru
    _
  %v21 = vld [vmem:[%s0] sm:$0x1]
  %v22 = vld [vmem:[%s1] sm:$0xf]
  %v23 = vld [vmem:[%s1 + $0x4] sm:$0xf]
  %v24 = vld [vmem:[%s2] sm:$0x1]
  %v26 = vlaneseq
  %v27 = vshrl.u32 %v26, 7
  %v28 = vsub.s32 0, %v27
  %v29 = vrot.slane %v24, %v28
  %v33 = vunpack.c.l.b16 %v22
  %v34 = vunpack.c.l.b16 %v23
  %v35 = vpack.c.b16 %v34, %v33
  %vm37 = vcmask 130048
  %v39 = vsel %vm37, %v21, 0
  %41 = vmatprep.subr.bf16.mxu0 0
  %42 = vmatpush1.bf16.msra.mxu0 0
  %43 = vmatprep.subr.bf16.mxu0 0
  %44 = vmatpush1.bf16.msra.mxu0 0
  %45 = vmatprep.subr.bf16.mxu0 0
  %46 = vmatpush1.bf16.msra.mxu0 0
  %47 = vmatprep.subr.bf16.mxu0 0
  %48 = vmatpush1.bf16.msra.mxu0 0
  %49 = vmatprep.subr.bf16.mxu0 0
  %50 = vmatpush1.bf16.msra.mxu0 0
  %51 = vmatprep.subr.bf16.mxu0 0
  %52 = vmatpush1.bf16.msra.mxu0 0
  %53 = vmatprep.subr.bf16.mxu0 0
  %54 = vmatpush1.bf16.msra.mxu0 0
  %55 = vmatprep.subr.bf16.mxu0 0
  %56 = vmatpush1.bf16.msra.mxu0 %v35
  %57 = vmatprep.subr.bf16.mxu0 0
  %58 = vmatpush2.bf16.msra.mxu0 0
  %59 = vmatprep.subr.bf16.mxu0 0
  %60 = vmatpush2.bf16.msra.mxu0 0
  %61 = vmatprep.subr.bf16.mxu0 0
  %62 = vmatpush2.bf16.msra.mxu0 0
  %63 = vmatprep.subr.bf16.mxu0 0
  %64 = vmatpush2.bf16.msra.mxu0 0
  %65 = vmatprep.subr.bf16.mxu0 0
  %66 = vmatpush2.bf16.msra.mxu0 0
  %67 = vmatprep.subr.bf16.mxu0 0
  %68 = vmatpush2.bf16.msra.mxu0 0
  %69 = vmatprep.subr.bf16.mxu0 0
  %70 = vmatpush2.bf16.msra.mxu0 0
  %71 = vmatprep.subr.bf16.mxu0 0
  %72 = vmatpush2.bf16.msra.mxu0 0
  %73 = vmatprep.mubr.bf16.mxu0 0
  %74 = vmatmul.mubr.bf16.gmra.mxu0 %v39
  %v75 = vpop.f32.mrf.mxu0
  %v76 = vadd.f32 %v29, %v75
  %v77 = vpop.f32.mrf.mxu0
  %v78 = vpop.f32.mrf.mxu0
  %v79 = vpop.f32.mrf.mxu0
  %80 = vdwg.mxu0
  %v81 = vsub.f32 0.0, %v76
  %v82 = vmul.f32 %v81, 1.442695
  %v83 = vpow.pop %v82
  %v84 = vadd.f32 %v83, 1.0
  %v85 = vrcp.pop %v84
  %v86 = vmul.f32 1.0, %v85
  %87 = vst [vmem:[%s5] sm:$0x3] %v86
  // Predicated region
  $region22: #{netd3d_forward.9} parent=0 // pred_check
    _
  $region23: #{netd3d_forward.9} parent=0 // pred_check_branch
    %89 = sbr.rel (0) target = $region25
  $region24: #{netd3d_forward.9} parent=0 // pred_region
    _
  $region25: #{netd3d_forward.9} parent=0 // pred_fallthru
    _
  // Predicated region
  $region26: #{netd3d_forward.9} parent=0 // pred_check
    _
  $region27: #{netd3d_forward.9} parent=0 // pred_check_branch
    %91 = sbr.rel (0) target = $region29
  $region28: #{netd3d_forward.9} parent=0 // pred_region
    _
  $region29: #{netd3d_forward.9} parent=0 // pred_fallthru
    _

</llo_original>
